<compile_context>
chip_gen: v5e
topology: v5e:2x2
jax: 0.10.0
libtpu: 0.0.40
codegen_flags: <defaults>
</compile_context>

<pallas_src>
import math
from functools import partial

import jax
import jax.numpy as jnp
from jax import lax
from jax.experimental import pallas as pl
from jax.experimental.pallas import tpu as pltpu


MXU_DTYPE = jnp.bfloat16   # matmul operand dtype (set to jnp.float32 for bit-strict math)
_SLAB_WIDTH = 32           # lane width of the packed parameter slabs
_N_GROUPS = 8              # GroupNorm groups


class Configs:
    horizon = 8
    transition_dim = 6
    action_dim = 2
    cond_dim = 4           # = transition_dim - action_dim (observation dim)
    dmodel = 16            # external "bert" encoder output dim
    dimenc = 12            # state/action embedding hidden dim


# ------------------------------ element-wise helpers ------------------------------

def _softplus(x):
    return jnp.maximum(x, 0.0) + jnp.log(1.0 + jnp.exp(-jnp.abs(x)))


def _mish(x):
    return x * jnp.tanh(_softplus(x))


def _log2(v):
    assert v > 0 and (v & (v - 1)) == 0, f"{v} must be a power of two"
    return v.bit_length() - 1


# ------------------------------ fused kernel body ------------------------------

def _unet_body(meta, B, x_ref, cond_ref, w_ref, v_ref, out_ref):
    H = Configs.horizon
    A = Configs.action_dim
    Td = Configs.transition_dim
    dim = meta['dim']

    consts = {}   # memoized iota-derived constants (each built once per trace)

    # ---- packed-parameter access: static pl.ds offsets into the resident slabs ----
    def W(m):
        off, r, c = m
        return w_ref[pl.ds(off, r), pl.ds(0, c)]

    def V(m):
        off, c = m
        return v_ref[pl.ds(off, 1), pl.ds(0, c)]

    # ---- memoized iota helpers ----
    def row_iota(n):
        k = ('row', n)
        if k not in consts:
            consts[k] = lax.broadcasted_iota(jnp.int32, (n, 1), 0)
        return consts[k]

    def lane_iota(c):
        k = ('lane', c)
        if k not in consts:
            consts[k] = lax.broadcasted_iota(jnp.int32, (1, c), 1)
        return consts[k]

    def tap_mask(n, hl, d):
        """[n,1] mask: 1 where (local row + d) stays inside its batch segment."""
        k = ('mask', n, hl, d)
        if k not in consts:
            loc = row_iota(n) & (hl - 1)
            ok = jnp.logical_and(loc + d >= 0, loc + d < hl)
            consts[k] = jnp.where(ok, 1.0, 0.0).astype(MXU_DTYPE)
        return consts[k]

    def ds_select(n, hl):
        """[n//2, n] f32 0/1 matrix keeping local-even rows of every batch segment."""
        k = ('dsel', n, hl)
        if k not in consts:
            no, ho = n // 2, hl // 2
            r = lax.broadcasted_iota(jnp.int32, (no, n), 0)
            c = lax.broadcasted_iota(jnp.int32, (no, n), 1)
            src = (r >> _log2(ho)) * hl + 2 * (r & (ho - 1))
            consts[k] = jnp.where(c == src, 1.0, 0.0)
        return consts[k]

    def us_select(n, hl):
        """Even/odd interleave matrices [2n, n] for ConvTranspose1d(stride=2)."""
        k = ('usel', n, hl)
        if k not in consts:
            no, ho = 2 * n, 2 * hl
            r = lax.broadcasted_iota(jnp.int32, (no, n), 0)
            c = lax.broadcasted_iota(jnp.int32, (no, n), 1)
            lr = r & (ho - 1)
            hit = c == (r >> _log2(ho)) * hl + (lr >> 1)
            even = jnp.where(jnp.logical_and((lr & 1) == 0, hit), 1.0, 0.0)
            odd = jnp.where(jnp.logical_and((lr & 1) == 1, hit), 1.0, 0.0)
            consts[k] = (even, odd)
        return consts[k]

    # ---- primitives ----
    def mm(x, wm, bm=None):
        y = jnp.dot(x.astype(MXU_DTYPE), W(wm), preferred_element_type=jnp.float32)
        if bm is not None:
            y = y + V(bm)
        return y

    def two_linear(x, lst):
        return mm(mm(x, lst[0]['w'], lst[0]['b']), lst[1]['w'], lst[1]['b'])

    def shifted(xb, hl, d):
        """xb shifted by d rows inside every batch segment (zero outside range)."""
        if d == 0:
            return xb
        # jnp.roll with a static shift lowers to slice + concat along sublanes.
        return jnp.roll(xb, -d, axis=0) * tap_mask(xb.shape[0], hl, d)

    def conv_same(x, cm, hl):
        """'same' Conv1d: in-VMEM im2col (row shifts + masks) -> ONE bf16 matmul."""
        K = cm['K']
        xb = x.astype(MXU_DTYPE)
        if K == 1:
            xcol = xb
        else:
            pad = K // 2
            xcol = jnp.concatenate([shifted(xb, hl, k - pad) for k in range(K)],
                                   axis=-1)
        y = jnp.dot(xcol, W(cm['w']), preferred_element_type=jnp.float32)
        return y + V(cm['b'])

    def group_fold(s, cg):
        """Sum [rows, C] statistics within contiguous channel groups of size cg
        (power of two) with a lane-roll butterfly -- exact f32, no MXU."""
        if cg == 1:
            return s
        c = s.shape[-1]
        lane = lane_iota(c)
        step = 1
        while step < cg:
            fwd = jnp.roll(s, -step, axis=1)          # s[., l + step]
            bwd = jnp.roll(s, step, axis=1)           # s[., l - step]
            take_fwd = ((lane >> _log2(step)) & 1) == 0
            s = s + jnp.where(take_fwd, fwd, bwd)
            step *= 2
        return s

    def gn_mish(y, gm, bm, hl, eps=1e-5):
        """GroupNorm(8) + Mish, batch-segment aware, single-pass f32 statistics."""
        n, C = y.shape
        nb = n // hl
        cg = C // _N_GROUPS
        # TODO(synk): non power-of-two GroupNorm group sizes are not supported.
        assert cg > 0 and (cg & (cg - 1)) == 0
        cnt = float(hl * cg)
        rows = []
        for b in range(nb):
            ys = y[b * hl:(b + 1) * hl, :]
            rows.append(jnp.sum(ys, axis=0, keepdims=True))
            rows.append(jnp.sum(ys * ys, axis=0, keepdims=True))
        stats = group_fold(jnp.concatenate(rows, axis=0), cg)      # [2*nb, C] f32
        means, invs = [], []
        for b in range(nb):
            mean = stats[2 * b:2 * b + 1, :] / cnt
            var = stats[2 * b + 1:2 * b + 2, :] / cnt - mean * mean
            means.append(mean)
            invs.append(lax.rsqrt(var + eps))
        ri = row_iota(n)
        mean_r, inv_r = means[0], invs[0]
        for b in range(1, nb):
            sel = ri >= b * hl
            mean_r = jnp.where(sel, means[b], mean_r)
            inv_r = jnp.where(sel, invs[b], inv_r)
        return _mish((y - mean_r) * inv_r * V(gm) + V(bm))

    def conv_block(x, bm, hl):
        return gn_mish(conv_same(x, bm['conv'], hl), bm['g'], bm['b'], hl)

    def res_block(x, rm, hl, t_rows):
        h = conv_block(x, rm['b0'], hl)
        h = h + mm(t_rows, rm['time']['w'], rm['time']['b'])
        h = conv_block(h, rm['b1'], hl)
        res = conv_same(x, rm['res'], hl) if rm['res'] is not None else x
        return h + res

    def downsample(x, cm, hl):
        y = conv_same(x, cm, hl)                     # stride-1 'same' conv (K=3)
        return jnp.dot(ds_select(x.shape[0], hl), y,  # keep local-even rows (exact)
                       preferred_element_type=jnp.float32)

    def upsample(x, um, hl):
        """ConvTranspose1d(K=4, stride=2, padding=1): two phase convs + interleave."""
        n = x.shape[0]
        xb = x.astype(MXU_DTYPE)
        even = jnp.dot(jnp.concatenate([shifted(xb, hl, -1), xb], axis=-1),
                       W(um['we']), preferred_element_type=jnp.float32)
        odd = jnp.dot(jnp.concatenate([xb, shifted(xb, hl, +1)], axis=-1),
                      W(um['wo']), preferred_element_type=jnp.float32)
        se, so = us_select(n, hl)
        out = (jnp.dot(se, even, preferred_element_type=jnp.float32)
               + jnp.dot(so, odd, preferred_element_type=jnp.float32))
        return out + V(um['b'])

    def seg_rows(vals, n, hl):
        """Broadcast per-batch rows [B, C] onto the [n, C] batch segments."""
        ri = row_iota(n)
        out = vals[0:1, :]
        for b in range(1, n // hl):
            out = jnp.where(ri >= b * hl, vals[b:b + 1, :], out)
        return out

    # ------------------------------------------------------------------ body ----
    n, hl = B * H, H
    cond = cond_ref[...]                                  # [B, cond+act+2]
    hobs = cond[:, 0:Configs.cond_dim]
    hact = cond[:, Configs.cond_dim:Td]
    msk = cond[:, Td:Td + 1]
    tcol = cond[:, Td + 1:Td + 2]

    # time MLP: SinusoidalPosEmb -> Linear -> Mish -> Linear.  The Mish applied to
    # `t` by every ResidualTemporalBlock.time_mlp is hoisted here.
    half = dim // 2
    freqs = jnp.exp(lane_iota(half).astype(jnp.float32)
                    * (-math.log(10000.0) / (half - 1)))
    arg = tcol * freqs                                    # [B, half]
    pos = jnp.concatenate([jnp.sin(arg), jnp.cos(arg)], axis=-1)
    t_emb = mm(_mish(mm(pos, meta['time_mlp'][0]['w'], meta['time_mlp'][0]['b'])),
               meta['time_mlp'][1]['w'], meta['time_mlp'][1]['b'])
    t_mish = _mish(t_emb)                                 # [B, dim]
    t_cache = {}

    def t_rows_for(nn, hh):
        if (nn, hh) not in t_cache:
            t_cache[(nn, hh)] = seg_rows(t_mish, nn, hh)
        return t_cache[(nn, hh)]

    # history conditioning on the single consumed timestep (-horizon).
    # TODO(synk): `bert` is an external encoder passed at call time in the PyTorch
    # forward; a deterministic masked-linear stand-in is used here.
    hobs_e = two_linear(hobs, meta['state_emb'])          # [B, cond_dim]
    hact_e = two_linear(hact, meta['action_emb'])         # [B, action_dim]
    bert_o = mm(jnp.concatenate([hobs_e, hact_e], axis=-1),
                meta['bert']['w'], meta['bert']['b']) * msk
    hcond = mm(bert_o, meta['reduce']['w'], meta['reduce']['b'])   # [B, Td]

    # input embeddings (batch folded onto sublanes: [B*H, Td]).
    x_in = x_ref[...]
    st_e = two_linear(x_in[:, A:], meta['state_emb'])
    ac_e = two_linear(x_in[:, :A], meta['action_emb'])
    xe = jnp.concatenate([ac_e, st_e], axis=-1)           # [B*H, Td]

    # fold the reduced history conditioning into horizon step 0 of every batch
    # segment through `reduce2` (kept from the previously reviewed version).
    xe_first = jnp.concatenate([xe[b * H:b * H + 1, :] for b in range(B)], axis=0)
    x0 = mm(jnp.concatenate([xe_first, hcond], axis=-1),
            meta['reduce2']['w'], meta['reduce2']['b'])   # [B, Td]
    first = (row_iota(n) & (H - 1)) == 0
    x = jnp.where(first, seg_rows(x0, n, H), xe)

    # U-Net: activations stay [B*horizon, channels] in VMEM throughout.
    skips = []
    for lvl in meta['downs']:
        t_rows = t_rows_for(n, hl)
        x = res_block(x, lvl['r1'], hl, t_rows)
        x = res_block(x, lvl['r2'], hl, t_rows)
        skips.append(x)                                   # attn == Identity
        if lvl['down'] is not None:                       # Downsample1d
            x = downsample(x, lvl['down'], hl)
            n, hl = n // 2, hl // 2

    t_rows = t_rows_for(n, hl)
    x = res_block(x, meta['mid1'], hl, t_rows)
    x = res_block(x, meta['mid2'], hl, t_rows)            # mid_attn == Identity

    for lvl in meta['ups']:
        t_rows = t_rows_for(n, hl)
        x = jnp.concatenate([x, skips.pop()], axis=-1)
        x = res_block(x, lvl['r1'], hl, t_rows)
        x = res_block(x, lvl['r2'], hl, t_rows)
        if lvl['up'] is not None:                         # Upsample1d
            x = upsample(x, lvl['up'], hl)
            n, hl = n * 2, hl * 2

    x = conv_block(x, meta['final_block'], hl)
    x = conv_same(x, meta['final_conv'], hl)              # 1x1 conv head
    out_ref[...] = x[:, :Td]


# ------------------------------ pallas_call wrapper ------------------------------

def unet_forward(meta, wslab, vslab, x, time, mask, history_obs, history_act):
    """Single fused pallas_call; batch folded onto the sublane axis, grid = 1 step.

    x:[B,horizon,transition]  time:[B]  mask:[B,T_hist]
    history_obs:[B,T_hist,cond_dim]  history_act:[B,T_hist,action_dim]
    """
    B, H, Td = x.shape
    assert H == Configs.horizon and Td == Configs.transition_dim
    assert H & (H - 1) == 0, "horizon must be a power of two"
    T_hist = history_obs.shape[1]
    assert T_hist >= Configs.horizon, "history must be at least `horizon` long"
    idx = T_hist - Configs.horizon        # only history row consumed (-horizon index)

    x2d = x.astype(jnp.float32).reshape(B * H, Td)
    cond = jnp.concatenate(
        [history_obs[:, idx, :].astype(jnp.float32),
         history_act[:, idx, :].astype(jnp.float32),
         mask[:, idx:idx + 1].astype(jnp.float32),
         time.astype(jnp.float32).reshape(B, 1)], axis=-1)         # [B, Td + 2]

    kernel = partial(_unet_body, meta, B)
    out = pl.pallas_call(
        kernel,
        out_shape=jax.ShapeDtypeStruct((B * H, Td), jnp.float32),
        grid=(1,),
        in_specs=[
            pl.BlockSpec((B * H, Td), lambda i: (0, 0)),
            pl.BlockSpec(cond.shape, lambda i: (0, 0)),
            pl.BlockSpec(wslab.shape, lambda i: (0, 0)),   # resident bf16 weight slab
            pl.BlockSpec(vslab.shape, lambda i: (0, 0)),   # resident f32 bias/GN slab
        ],
        out_specs=pl.BlockSpec((B * H, Td), lambda i: (0, 0)),
        compiler_params=pltpu.CompilerParams(dimension_semantics=("arbitrary",)),
    )(x2d, cond, wslab, vslab)
    return out.reshape(B, H, Td)


# ------------------------------ parameter init ------------------------------

class _Init:
    def __init__(self, seed=0):
        self.key = jax.random.PRNGKey(seed)

    def rand(self, shape, scale=0.1):
        self.key, k = jax.random.split(self.key)
        return (jax.random.normal(k, shape) * scale).astype(jnp.float32)

    def linear(self, fin, fout):
        return {'w': self.rand((fin, fout)), 'b': self.rand((fout,))}

    def conv(self, cin, cout, k):
        return {'w': self.rand((cout, cin, k)), 'b': self.rand((cout,))}

    def convT(self, cin, cout, k):
        return {'w': self.rand((cin, cout, k)), 'b': self.rand((cout,))}

    def conv_block(self, cin, cout, k):
        return {'conv': self.conv(cin, cout, k),
                'gn_g': 1.0 + self.rand((cout,)),
                'gn_b': self.rand((cout,))}

    def res_block(self, cin, cout, embed_dim, k=5):
        return {'b0': self.conv_block(cin, cout, k),
                'b1': self.conv_block(cout, cout, k),
                'time': self.linear(embed_dim, cout),
                'res': self.conv(cin, cout, 1) if cin != cout else None}


def init_params(transition_dim, cond_dim, dim=8, dim_mults=(1, 2)):
    ini = _Init(0)
    action_dim = transition_dim - cond_dim
    dims = [transition_dim] + [dim * m for m in dim_mults]
    in_out = list(zip(dims[:-1], dims[1:]))
    num_res = len(in_out)

    p = {}
    p['state_emb'] = [ini.linear(cond_dim, Configs.dimenc),
                      ini.linear(Configs.dimenc, cond_dim)]
    p['action_emb'] = [ini.linear(action_dim, Configs.dimenc),
                       ini.linear(Configs.dimenc, action_dim)]
    p['reduce'] = ini.linear(Configs.dmodel, transition_dim)
    p['reduce2'] = ini.linear(transition_dim * 2, transition_dim)
    p['time_mlp'] = [ini.linear(dim, dim * 4), ini.linear(dim * 4, dim)]

    downs = []
    for ind, (din, dout) in enumerate(in_out):
        is_last = ind >= num_res - 1
        downs.append({'r1': ini.res_block(din, dout, dim),
                      'r2': ini.res_block(dout, dout, dim),
                      'down': (ini.conv(dout, dout, 3) if not is_last else None)})
    p['downs'] = downs

    mid = dims[-1]
    p['mid1'] = ini.res_block(mid, mid, dim)
    p['mid2'] = ini.res_block(mid, mid, dim)

    ups = []
    for ind, (din, dout) in enumerate(reversed(in_out[1:])):
        is_last = ind >= num_res - 1
        ups.append({'r1': ini.res_block(dout * 2, din, dim),
                    'r2': ini.res_block(din, din, dim),
                    'up': (ini.convT(din, din, 4) if not is_last else None)})
    p['ups'] = ups

    p['final_block'] = ini.conv_block(dim, dim, 5)
    p['final_conv'] = ini.conv(dim, transition_dim, 1)

    p['bert_w'] = ini.rand((transition_dim, Configs.dmodel))
    p['bert_b'] = ini.rand((Configs.dmodel,))
    return p


# ------------------------------ parameter packing (one-time) ------------------------------

class _SlabBuilder:
    """Packs many small parameter matrices into one [rows, _SLAB_WIDTH] slab."""

    def __init__(self, dtype, row_align=1):
        self.dtype = dtype
        self.row_align = row_align
        self.pieces = []
        self.nrows = 0

    def add(self, arr):
        arr = jnp.asarray(arr, jnp.float32)
        if arr.ndim == 1:
            arr = arr.reshape(1, -1)
        r, c = arr.shape
        assert c <= _SLAB_WIDTH, (r, c)
        off = self.nrows
        pad_r = (-r) % self.row_align
        piece = jnp.pad(arr, ((0, pad_r), (0, _SLAB_WIDTH - c))).astype(self.dtype)
        self.pieces.append(piece)
        self.nrows += r + pad_r
        return off, r, c

    def build(self):
        slab = jnp.concatenate(self.pieces, axis=0)
        pad = (-slab.shape[0]) % 8
        if pad:
            slab = jnp.pad(slab, ((0, pad), (0, 0)))
        return slab


def prepare_params(p):
    """Re-layout + pack every leaf into a bf16 weight slab and an f32 vector slab.

    Returns (meta, wslab, vslab) where `meta` holds only static Python offsets.
    """
    dim = int(p['time_mlp'][0]['w'].shape[0])
    wb = _SlabBuilder(MXU_DTYPE, row_align=8)
    vb = _SlabBuilder(jnp.float32, row_align=1)

    def vec(a):
        off, _, c = vb.add(a)
        return (off, c)

    def linm(q):
        return {'w': wb.add(q['w']), 'b': vec(q['b'])}

    def convm(q):
        w = q['w']                                     # torch layout [Cout, Cin, K]
        cout, cin, K = w.shape
        flat = jnp.transpose(w, (2, 1, 0)).reshape(K * cin, cout)   # [K*Cin, Cout]
        return {'w': wb.add(flat), 'b': vec(q['b']), 'K': int(K)}

    def convTm(q):
        w = q['w']                                     # torch layout [Cin, Cout, K=4]
        assert w.shape[-1] == 4
        we = jnp.concatenate([w[:, :, 3], w[:, :, 1]], axis=0)      # even phase
        wo = jnp.concatenate([w[:, :, 2], w[:, :, 0]], axis=0)      # odd phase
        return {'we': wb.add(we), 'wo': wb.add(wo), 'b': vec(q['b'])}

    def blockm(q):
        return {'conv': convm(q['conv']), 'g': vec(q['gn_g']), 'b': vec(q['gn_b'])}

    def resm(q):
        return {'b0': blockm(q['b0']), 'b1': blockm(q['b1']),
                'time': linm(q['time']),
                'res': convm(q['res']) if q['res'] is not None else None}

    meta = {
        'dim': dim,
        'state_emb': [linm(l) for l in p['state_emb']],
        'action_emb': [linm(l) for l in p['action_emb']],
        'reduce': linm(p['reduce']),
        'reduce2': linm(p['reduce2']),
        'time_mlp': [linm(l) for l in p['time_mlp']],
        'bert': {'w': wb.add(p['bert_w']), 'b': vec(p['bert_b'])},
        'downs': [{'r1': resm(l['r1']), 'r2': resm(l['r2']),
                   'down': convm(l['down']) if l['down'] is not None else None}
                  for l in p['downs']],
        'mid1': resm(p['mid1']),
        'mid2': resm(p['mid2']),
        'ups': [{'r1': resm(l['r1']), 'r2': resm(l['r2']),
                 'up': convTm(l['up']) if l['up'] is not None else None}
                for l in p['ups']],
        'final_block': blockm(p['final_block']),
        'final_conv': convm(p['final_conv']),
    }
    return meta, wb.build(), vb.build()


# ------------------------------ pure-JAX reference ------------------------------

def _ref_mm(x, w, b):
    return jnp.dot(x.astype(MXU_DTYPE), w.astype(MXU_DTYPE),
                   preferred_element_type=jnp.float32) + b


def _ref_linear(p, x):
    lead = x.shape[:-1]
    y = _ref_mm(x.reshape(-1, x.shape[-1]), p['w'], p['b'])
    return y.reshape(*lead, -1)


def _ref_conv1d(x, w, b, stride=1, padding=0):
    B, Cin, L = x.shape
    Cout, _, K = w.shape
    xp = jnp.pad(x, ((0, 0), (0, 0), (padding, padding)))
    Lout = (L + 2 * padding - K) // stride + 1
    idx = (jnp.arange(Lout) * stride)[:, None] + jnp.arange(K)[None, :]
    patches = xp[:, :, idx]
    patches = jnp.transpose(patches, (0, 2, 1, 3)).reshape(B * Lout, Cin * K)
    wmat = w.reshape(Cout, Cin * K).T
    out = jnp.dot(patches.astype(MXU_DTYPE), wmat.astype(MXU_DTYPE),
                  preferred_element_type=jnp.float32) + b
    return out.reshape(B, Lout, Cout).transpose(0, 2, 1)


def _ref_conv_transpose1d(x, w, b, stride=2, padding=1):
    B, Cin, L = x.shape
    _, Cout, K = w.shape
    xz = jnp.zeros((B, Cin, (L - 1) * stride + 1), x.dtype)
    xz = xz.at[:, :, ::stride].set(x)
    w_eq = jnp.flip(w, axis=-1).transpose(1, 0, 2)
    return _ref_conv1d(xz, w_eq, b, stride=1, padding=K - 1 - padding)


def _ref_gn_mish(x, g, b, n_groups=8, eps=1e-5):
    B, C, L = x.shape
    xg = x.reshape(B, n_groups, C // n_groups, L)
    mean = jnp.mean(xg, axis=(2, 3), keepdims=True)
    var = jnp.mean(jnp.square(xg - mean), axis=(2, 3), keepdims=True)
    xn = ((xg - mean) * lax.rsqrt(var + eps)).reshape(B, C, L)
    return _mish(xn * g.reshape(1, -1, 1) + b.reshape(1, -1, 1))


def _ref_conv_block(p, x):
    K = p['conv']['w'].shape[-1]
    y = _ref_conv1d(x, p['conv']['w'], p['conv']['b'], stride=1, padding=K // 2)
    return _ref_gn_mish(y, p['gn_g'], p['gn_b'])


def _ref_res_block(p, x, t):
    out = _ref_conv_block(p['b0'], x)
    out = out + _ref_linear(p['time'], _mish(t))[:, :, None]
    out = _ref_conv_block(p['b1'], out)
    res = (_ref_conv1d(x, p['res']['w'], p['res']['b'])
           if p['res'] is not None else x)
    return out + res


def reference_forward(params, x, time, mask, history_obs, history_act, dim=8):
    def two_lin(ps, v):
        return _ref_linear(ps[1], _ref_linear(ps[0], v))

    hobs_e = two_lin(params['state_emb'], history_obs)
    hact_e = two_lin(params['action_emb'], history_act)
    h = jnp.concatenate([hobs_e, hact_e], axis=-1)
    B, T, D = h.shape
    bert_o = (_ref_mm(h.reshape(B * T, D), params['bert_w'], params['bert_b'])
              .reshape(B, T, -1) * mask[:, :, None])
    hcond = _ref_linear(params['reduce'], bert_o[:, T - Configs.horizon, :])

    states = x[:, :, Configs.action_dim:]
    actions = x[:, :, :Configs.action_dim]
    xe = jnp.concatenate([two_lin(params['action_emb'], actions),
                          two_lin(params['state_emb'], states)], axis=-1)
    x0 = _ref_linear(params['reduce2'],
                     jnp.concatenate([xe[:, 0, :], hcond], axis=-1))
    xe = xe.at[:, 0, :].set(x0)
    cur = jnp.transpose(xe, (0, 2, 1))                     # NCH

    half = dim // 2
    freqs = jnp.exp(jnp.arange(half, dtype=jnp.float32)
                    * (-math.log(10000.0) / (half - 1)))
    arg = time.astype(jnp.float32)[:, None] * freqs[None, :]
    pos = jnp.concatenate([jnp.sin(arg), jnp.cos(arg)], axis=-1)
    t = _ref_linear(params['time_mlp'][1],
                    _mish(_ref_linear(params['time_mlp'][0], pos)))

    hs = []
    for lvl in params['downs']:
        cur = _ref_res_block(lvl['r1'], cur, t)
        cur = _ref_res_block(lvl['r2'], cur, t)
        hs.append(cur)
        if lvl['down'] is not None:
            cur = _ref_conv1d(cur, lvl['down']['w'], lvl['down']['b'],
                              stride=2, padding=1)
    cur = _ref_res_block(params['mid1'], cur, t)
    cur = _ref_res_block(params['mid2'], cur, t)
    for lvl in params['ups']:
        cur = jnp.concatenate([cur, hs.pop()], axis=1)
        cur = _ref_res_block(lvl['r1'], cur, t)
        cur = _ref_res_block(lvl['r2'], cur, t)
        if lvl['up'] is not None:
            cur = _ref_conv_transpose1d(cur, lvl['up']['w'], lvl['up']['b'],
                                        stride=2, padding=1)
    cur = _ref_conv_block(params['final_block'], cur)
    cur = _ref_conv1d(cur, params['final_conv']['w'], params['final_conv']['b'])
    return jnp.transpose(cur, (0, 2, 1))[:, :, :Configs.transition_dim]


# ------------------------------ main ------------------------------

if __name__ == "__main__":
    DIM = 8
    DIM_MULTS = (1, 2)
    B = 2
    T_HIST = 12

    params = init_params(Configs.transition_dim, Configs.cond_dim,
                         dim=DIM, dim_mults=DIM_MULTS)
    meta, wslab, vslab = prepare_params(params)    # one-time re-layout + slab packing

    key = jax.random.PRNGKey(0)
    k1, k2, k3 = jax.random.split(key, 3)
    x = jax.random.normal(k1, (B, Configs.horizon, Configs.transition_dim),
                          jnp.float32)
    time = jnp.array([3.0, 7.0], jnp.float32)
    history_obs = jax.random.normal(k2, (B, T_HIST, Configs.cond_dim), jnp.float32)
    history_act = jax.random.normal(k3, (B, T_HIST, Configs.action_dim), jnp.float32)
    mask = jnp.ones((B, T_HIST), jnp.float32)

    run = jax.jit(partial(unet_forward, meta))
    out = jax.block_until_ready(
        run(wslab, vslab, x, time, mask, history_obs, history_act))

    assert out.shape == (B, Configs.horizon, Configs.transition_dim), out.shape
    assert bool(jnp.all(jnp.isfinite(out)))

    # validate the fused kernel against the pure-JAX reference
    ref = jax.jit(partial(reference_forward, dim=DIM))(
        params, x, time, mask, history_obs, history_act)
    err = float(jnp.max(jnp.abs(out - ref)))
    assert err < 2e-2, f"kernel/reference mismatch: max abs err = {err}"

    print("KERNEL_OK")
</pallas_src>

<mosaic_0001>
module attributes {stable_mosaic.version = 11 : i64} {
  func.func @_unet_body(%arg0: i32, %arg1: memref<16x6xf32, #tpu.memory_space<vmem>>, %arg2: memref<2x8xf32, #tpu.memory_space<vmem>>, %arg3: memref<1376x32xbf16, #tpu.memory_space<vmem>>, %arg4: memref<80x32xf32, #tpu.memory_space<vmem>>, %arg5: memref<16x6xf32, #tpu.memory_space<vmem>>) attributes {dimension_semantics = [#tpu.dimension_semantics<arbitrary>], iteration_bounds = array<i64: 1>, scalar_prefetch = 0 : i64, scratch_operands = 0 : i64, tpu.core_type = #tpu.core_type<tc>, window_params = [{pipeline_mode = #tpu.pipeline_mode<synchronous>, transform_indices = @transform_0, window_bounds = array<i64: 16, 6>}, {pipeline_mode = #tpu.pipeline_mode<synchronous>, transform_indices = @transform_1, window_bounds = array<i64: 2, 8>}, {pipeline_mode = #tpu.pipeline_mode<synchronous>, transform_indices = @transform_2, window_bounds = array<i64: 1376, 32>}, {pipeline_mode = #tpu.pipeline_mode<synchronous>, transform_indices = @transform_3, window_bounds = array<i64: 80, 32>}, {pipeline_mode = #tpu.pipeline_mode<synchronous>, transform_indices = @transform_4, window_bounds = array<i64: 16, 6>}]} {
    %c0 = arith.constant 0 : index
    %c0_0 = arith.constant 0 : index
    %0 = vector.load %arg2[%c0, %c0_0] : memref<2x8xf32, #tpu.memory_space<vmem>>, vector<2x8xf32>
    %1 = vector.extract_strided_slice %0 {offsets = [0, 0], sizes = [2, 4], strides = [1, 1]} : vector<2x8xf32> to vector<2x4xf32>
    %2 = vector.extract_strided_slice %0 {offsets = [0, 4], sizes = [2, 2], strides = [1, 1]} : vector<2x8xf32> to vector<2x2xf32>
    %3 = vector.extract_strided_slice %0 {offsets = [0, 6], sizes = [2, 1], strides = [1, 1]} : vector<2x8xf32> to vector<2x1xf32>
    %4 = vector.extract_strided_slice %0 {offsets = [0, 7], sizes = [2, 1], strides = [1, 1]} : vector<2x8xf32> to vector<2x1xf32>
    %5 = tpu.iota {dimensions = array<i32: 1>} : vector<1x4xi32>
    %6 = arith.sitofp %5 : vector<1x4xi32> to vector<1x4xf32>
    %cst = arith.constant -3.07011342 : f32
    %7 = vector.broadcast %cst : f32 to vector<1x4xf32>
    %8 = arith.mulf %6, %7 : vector<1x4xf32>
    %9 = math.exp %8 : vector<1x4xf32>
    %10 = vector.broadcast %4 : vector<2x1xf32> to vector<2x4xf32>
    %11 = vector.broadcast %9 : vector<1x4xf32> to vector<2x4xf32>
    %12 = arith.mulf %10, %11 : vector<2x4xf32>
    %13 = math.sin %12 : vector<2x4xf32>
    %14 = math.cos %12 : vector<2x4xf32>
    %15 = tpu.concatenate %13, %14 in 1 : vector<2x4xf32>, vector<2x4xf32> -> vector<2x8xf32>
    %16 = arith.truncf %15 : vector<2x8xf32> to vector<2x8xbf16>
    %c80 = arith.constant 80 : index
    %c0_1 = arith.constant 0 : index
    %17 = vector.load %arg3[%c80, %c0_1] : memref<1376x32xbf16, #tpu.memory_space<vmem>>, vector<8x32xbf16>
    %cst_2 = arith.constant dense<0.000000e+00> : vector<2x32xf32>
    %18 = tpu.matmul %16, %17, %cst_2 {dimension_numbers = #tpu.dot_dimension_numbers<[1], [0], [0], [1], [0, 0, 1, 1], [], []>} : vector<2x8xbf16>, vector<8x32xbf16>, vector<2x32xf32> -> vector<2x32xf32>
    %c6 = arith.constant 6 : index
    %c0_3 = arith.constant 0 : index
    %19 = vector.load %arg4[%c6, %c0_3] : memref<80x32xf32, #tpu.memory_space<vmem>>, vector<1x32xf32>
    %20 = vector.broadcast %19 : vector<1x32xf32> to vector<2x32xf32>
    %21 = arith.addf %18, %20 : vector<2x32xf32>
    %cst_4 = arith.constant 0.000000e+00 : f32
    %22 = vector.broadcast %cst_4 : f32 to vector<2x32xf32>
    %23 = arith.maximumf %21, %22 : vector<2x32xf32>
    %24 = math.absf %21 : vector<2x32xf32>
    %cst_5 = arith.constant 0.000000e+00 : f32
    %25 = vector.broadcast %cst_5 : f32 to vector<2x32xf32>
    %26 = arith.subf %25, %24 : vector<2x32xf32>
    %27 = math.exp %26 : vector<2x32xf32>
    %cst_6 = arith.constant 1.000000e+00 : f32
    %28 = vector.broadcast %cst_6 : f32 to vector<2x32xf32>
    %29 = arith.addf %28, %27 : vector<2x32xf32>
    %30 = math.log %29 : vector<2x32xf32>
    %31 = arith.addf %23, %30 : vector<2x32xf32>
    %32 = math.tanh %31 : vector<2x32xf32>
    %33 = arith.mulf %21, %32 : vector<2x32xf32>
    %34 = arith.truncf %33 : vector<2x32xf32> to vector<2x32xbf16>
    %c88 = arith.constant 88 : index
    %c0_7 = arith.constant 0 : index
    %35 = vector.load %arg3[%c88, %c0_7] : memref<1376x32xbf16, #tpu.memory_space<vmem>>, vector<32x8xbf16>
    %cst_8 = arith.constant dense<0.000000e+00> : vector<2x8xf32>
    %36 = tpu.matmul %34, %35, %cst_8 {dimension_numbers = #tpu.dot_dimension_numbers<[1], [0], [0], [1], [0, 0, 1, 1], [], []>} : vector<2x32xbf16>, vector<32x8xbf16>, vector<2x8xf32> -> vector<2x8xf32>
    %c7 = arith.constant 7 : index
    %c0_9 = arith.constant 0 : index
    %37 = vector.load %arg4[%c7, %c0_9] : memref<80x32xf32, #tpu.memory_space<vmem>>, vector<1x8xf32>
    %38 = vector.broadcast %37 : vector<1x8xf32> to vector<2x8xf32>
    %39 = arith.addf %36, %38 : vector<2x8xf32>
    %cst_10 = arith.constant 0.000000e+00 : f32
    %40 = vector.broadcast %cst_10 : f32 to vector<2x8xf32>
    %41 = arith.maximumf %39, %40 : vector<2x8xf32>
    %42 = math.absf %39 : vector<2x8xf32>
    %cst_11 = arith.constant 0.000000e+00 : f32
    %43 = vector.broadcast %cst_11 : f32 to vector<2x8xf32>
    %44 = arith.subf %43, %42 : vector<2x8xf32>
    %45 = math.exp %44 : vector<2x8xf32>
    %cst_12 = arith.constant 1.000000e+00 : f32
    %46 = vector.broadcast %cst_12 : f32 to vector<2x8xf32>
    %47 = arith.addf %46, %45 : vector<2x8xf32>
    %48 = math.log %47 : vector<2x8xf32>
    %49 = arith.addf %41, %48 : vector<2x8xf32>
    %50 = math.tanh %49 : vector<2x8xf32>
    %51 = arith.mulf %39, %50 : vector<2x8xf32>
    %52 = arith.truncf %1 : vector<2x4xf32> to vector<2x4xbf16>
    %c0_13 = arith.constant 0 : index
    %c0_14 = arith.constant 0 : index
    %53 = vector.load %arg3[%c0_13, %c0_14] : memref<1376x32xbf16, #tpu.memory_space<vmem>>, vector<4x12xbf16>
    %cst_15 = arith.constant dense<0.000000e+00> : vector<2x12xf32>
    %54 = tpu.matmul %52, %53, %cst_15 {dimension_numbers = #tpu.dot_dimension_numbers<[1], [0], [0], [1], [0, 0, 1, 1], [], []>} : vector<2x4xbf16>, vector<4x12xbf16>, vector<2x12xf32> -> vector<2x12xf32>
    %c0_16 = arith.constant 0 : index
    %c0_17 = arith.constant 0 : index
    %55 = vector.load %arg4[%c0_16, %c0_17] : memref<80x32xf32, #tpu.memory_space<vmem>>, vector<1x12xf32>
    %56 = vector.broadcast %55 : vector<1x12xf32> to vector<2x12xf32>
    %57 = arith.addf %54, %56 : vector<2x12xf32>
    %58 = arith.truncf %57 : vector<2x12xf32> to vector<2x12xbf16>
    %c8 = arith.constant 8 : index
    %c0_18 = arith.constant 0 : index
    %59 = vector.load %arg3[%c8, %c0_18] : memref<1376x32xbf16, #tpu.memory_space<vmem>>, vector<12x4xbf16>
    %cst_19 = arith.constant dense<0.000000e+00> : vector<2x4xf32>
    %60 = tpu.matmul %58, %59, %cst_19 {dimension_numbers = #tpu.dot_dimension_numbers<[1], [0], [0], [1], [0, 0, 1, 1], [], []>} : vector<2x12xbf16>, vector<12x4xbf16>, vector<2x4xf32> -> vector<2x4xf32>
    %c1 = arith.constant 1 : index
    %c0_20 = arith.constant 0 : index
    %61 = vector.load %arg4[%c1, %c0_20] : memref<80x32xf32, #tpu.memory_space<vmem>>, vector<1x4xf32>
    %62 = vector.broadcast %61 : vector<1x4xf32> to vector<2x4xf32>
    %63 = arith.addf %60, %62 : vector<2x4xf32>
    %64 = arith.truncf %2 : vector<2x2xf32> to vector<2x2xbf16>
    %c24 = arith.constant 24 : index
    %c0_21 = arith.constant 0 : index
    %65 = vector.load %arg3[%c24, %c0_21] : memref<1376x32xbf16, #tpu.memory_space<vmem>>, vector<2x12xbf16>
    %cst_22 = arith.constant dense<0.000000e+00> : vector<2x12xf32>
    %66 = tpu.matmul %64, %65, %cst_22 {dimension_numbers = #tpu.dot_dimension_numbers<[1], [0], [0], [1], [0, 0, 1, 1], [], []>} : vector<2x2xbf16>, vector<2x12xbf16>, vector<2x12xf32> -> vector<2x12xf32>
    %c2 = arith.constant 2 : index
    %c0_23 = arith.constant 0 : index
    %67 = vector.load %arg4[%c2, %c0_23] : memref<80x32xf32, #tpu.memory_space<vmem>>, vector<1x12xf32>
    %68 = vector.broadcast %67 : vector<1x12xf32> to vector<2x12xf32>
    %69 = arith.addf %66, %68 : vector<2x12xf32>
    %70 = arith.truncf %69 : vector<2x12xf32> to vector<2x12xbf16>
    %c32 = arith.constant 32 : index
    %c0_24 = arith.constant 0 : index
    %71 = vector.load %arg3[%c32, %c0_24] : memref<1376x32xbf16, #tpu.memory_space<vmem>>, vector<12x2xbf16>
    %cst_25 = arith.constant dense<0.000000e+00> : vector<2x2xf32>
    %72 = tpu.matmul %70, %71, %cst_25 {dimension_numbers = #tpu.dot_dimension_numbers<[1], [0], [0], [1], [0, 0, 1, 1], [], []>} : vector<2x12xbf16>, vector<12x2xbf16>, vector<2x2xf32> -> vector<2x2xf32>
    %c3 = arith.constant 3 : index
    %c0_26 = arith.constant 0 : index
    %73 = vector.load %arg4[%c3, %c0_26] : memref<80x32xf32, #tpu.memory_space<vmem>>, vector<1x2xf32>
    %74 = vector.broadcast %73 : vector<1x2xf32> to vector<2x2xf32>
    %75 = arith.addf %72, %74 : vector<2x2xf32>
    %76 = tpu.concatenate %63, %75 in 1 : vector<2x4xf32>, vector<2x2xf32> -> vector<2x6xf32>
    %77 = arith.truncf %76 : vector<2x6xf32> to vector<2x6xbf16>
    %c120 = arith.constant 120 : index
    %c0_27 = arith.constant 0 : index
    %78 = vector.load %arg3[%c120, %c0_27] : memref<1376x32xbf16, #tpu.memory_space<vmem>>, vector<6x16xbf16>
    %cst_28 = arith.constant dense<0.000000e+00> : vector<2x16xf32>
    %79 = tpu.matmul %77, %78, %cst_28 {dimension_numbers = #tpu.dot_dimension_numbers<[1], [0], [0], [1], [0, 0, 1, 1], [], []>} : vector<2x6xbf16>, vector<6x16xbf16>, vector<2x16xf32> -> vector<2x16xf32>
    %c8_29 = arith.constant 8 : index
    %c0_30 = arith.constant 0 : index
    %80 = vector.load %arg4[%c8_29, %c0_30] : memref<80x32xf32, #tpu.memory_space<vmem>>, vector<1x16xf32>
    %81 = vector.broadcast %80 : vector<1x16xf32> to vector<2x16xf32>
    %82 = arith.addf %79, %81 : vector<2x16xf32>
    %83 = vector.broadcast %3 : vector<2x1xf32> to vector<2x16xf32>
    %84 = arith.mulf %82, %83 : vector<2x16xf32>
    %85 = arith.truncf %84 : vector<2x16xf32> to vector<2x16xbf16>
    %c48 = arith.constant 48 : index
    %c0_31 = arith.constant 0 : index
    %86 = vector.load %arg3[%c48, %c0_31] : memref<1376x32xbf16, #tpu.memory_space<vmem>>, vector<16x6xbf16>
    %cst_32 = arith.constant dense<0.000000e+00> : vector<2x6xf32>
    %87 = tpu.matmul %85, %86, %cst_32 {dimension_numbers = #tpu.dot_dimension_numbers<[1], [0], [0], [1], [0, 0, 1, 1], [], []>} : vector<2x16xbf16>, vector<16x6xbf16>, vector<2x6xf32> -> vector<2x6xf32>
    %c4 = arith.constant 4 : index
    %c0_33 = arith.constant 0 : index
    %88 = vector.load %arg4[%c4, %c0_33] : memref<80x32xf32, #tpu.memory_space<vmem>>, vector<1x6xf32>
    %89 = vector.broadcast %88 : vector<1x6xf32> to vector<2x6xf32>
    %90 = arith.addf %87, %89 : vector<2x6xf32>
    %c0_34 = arith.constant 0 : index
    %c0_35 = arith.constant 0 : index
    %91 = vector.load %arg1[%c0_34, %c0_35] : memref<16x6xf32, #tpu.memory_space<vmem>>, vector<16x6xf32>
    %92 = vector.extract_strided_slice %91 {offsets = [0, 2], sizes = [16, 4], strides = [1, 1]} : vector<16x6xf32> to vector<16x4xf32>
    %93 = arith.truncf %92 : vector<16x4xf32> to vector<16x4xbf16>
    %c0_36 = arith.constant 0 : index
    %c0_37 = arith.constant 0 : index
    %94 = vector.load %arg3[%c0_36, %c0_37] : memref<1376x32xbf16, #tpu.memory_space<vmem>>, vector<4x12xbf16>
    %cst_38 = arith.constant dense<0.000000e+00> : vector<16x12xf32>
    %95 = tpu.matmul %93, %94, %cst_38 {dimension_numbers = #tpu.dot_dimension_numbers<[1], [0], [0], [1], [0, 0, 1, 1], [], []>} : vector<16x4xbf16>, vector<4x12xbf16>, vector<16x12xf32> -> vector<16x12xf32>
    %c0_39 = arith.constant 0 : index
    %c0_40 = arith.constant 0 : index
    %96 = vector.load %arg4[%c0_39, %c0_40] : memref<80x32xf32, #tpu.memory_space<vmem>>, vector<1x12xf32>
    %97 = vector.broadcast %96 : vector<1x12xf32> to vector<16x12xf32>
    %98 = arith.addf %95, %97 : vector<16x12xf32>
    %99 = arith.truncf %98 : vector<16x12xf32> to vector<16x12xbf16>
    %c8_41 = arith.constant 8 : index
    %c0_42 = arith.constant 0 : index
    %100 = vector.load %arg3[%c8_41, %c0_42] : memref<1376x32xbf16, #tpu.memory_space<vmem>>, vector<12x4xbf16>
    %cst_43 = arith.constant dense<0.000000e+00> : vector<16x4xf32>
    %101 = tpu.matmul %99, %100, %cst_43 {dimension_numbers = #tpu.dot_dimension_numbers<[1], [0], [0], [1], [0, 0, 1, 1], [], []>} : vector<16x12xbf16>, vector<12x4xbf16>, vector<16x4xf32> -> vector<16x4xf32>
    %c1_44 = arith.constant 1 : index
    %c0_45 = arith.constant 0 : index
    %102 = vector.load %arg4[%c1_44, %c0_45] : memref<80x32xf32, #tpu.memory_space<vmem>>, vector<1x4xf32>
    %103 = vector.broadcast %102 : vector<1x4xf32> to vector<16x4xf32>
    %104 = arith.addf %101, %103 : vector<16x4xf32>
    %105 = vector.extract_strided_slice %91 {offsets = [0, 0], sizes = [16, 2], strides = [1, 1]} : vector<16x6xf32> to vector<16x2xf32>
    %106 = arith.truncf %105 : vector<16x2xf32> to vector<16x2xbf16>
    %c24_46 = arith.constant 24 : index
    %c0_47 = arith.constant 0 : index
    %107 = vector.load %arg3[%c24_46, %c0_47] : memref<1376x32xbf16, #tpu.memory_space<vmem>>, vector<2x12xbf16>
    %cst_48 = arith.constant dense<0.000000e+00> : vector<16x12xf32>
    %108 = tpu.matmul %106, %107, %cst_48 {dimension_numbers = #tpu.dot_dimension_numbers<[1], [0], [0], [1], [0, 0, 1, 1], [], []>} : vector<16x2xbf16>, vector<2x12xbf16>, vector<16x12xf32> -> vector<16x12xf32>
    %c2_49 = arith.constant 2 : index
    %c0_50 = arith.constant 0 : index
    %109 = vector.load %arg4[%c2_49, %c0_50] : memref<80x32xf32, #tpu.memory_space<vmem>>, vector<1x12xf32>
    %110 = vector.broadcast %109 : vector<1x12xf32> to vector<16x12xf32>
    %111 = arith.addf %108, %110 : vector<16x12xf32>
    %112 = arith.truncf %111 : vector<16x12xf32> to vector<16x12xbf16>
    %c32_51 = arith.constant 32 : index
    %c0_52 = arith.constant 0 : index
    %113 = vector.load %arg3[%c32_51, %c0_52] : memref<1376x32xbf16, #tpu.memory_space<vmem>>, vector<12x2xbf16>
    %cst_53 = arith.constant dense<0.000000e+00> : vector<16x2xf32>
    %114 = tpu.matmul %112, %113, %cst_53 {dimension_numbers = #tpu.dot_dimension_numbers<[1], [0], [0], [1], [0, 0, 1, 1], [], []>} : vector<16x12xbf16>, vector<12x2xbf16>, vector<16x2xf32> -> vector<16x2xf32>
    %c3_54 = arith.constant 3 : index
    %c0_55 = arith.constant 0 : index
    %115 = vector.load %arg4[%c3_54, %c0_55] : memref<80x32xf32, #tpu.memory_space<vmem>>, vector<1x2xf32>
    %116 = vector.broadcast %115 : vector<1x2xf32> to vector<16x2xf32>
    %117 = arith.addf %114, %116 : vector<16x2xf32>
    %118 = tpu.concatenate %117, %104 in 1 : vector<16x2xf32>, vector<16x4xf32> -> vector<16x6xf32>
    %119 = vector.extract_strided_slice %118 {offsets = [0, 0], sizes = [1, 6], strides = [1, 1]} : vector<16x6xf32> to vector<1x6xf32>
    %120 = vector.extract_strided_slice %118 {offsets = [8, 0], sizes = [1, 6], strides = [1, 1]} : vector<16x6xf32> to vector<1x6xf32>
    %121 = tpu.concatenate %119, %120 in 0 : vector<1x6xf32>, vector<1x6xf32> -> vector<2x6xf32>
    %122 = tpu.concatenate %121, %90 in 1 : vector<2x6xf32>, vector<2x6xf32> -> vector<2x12xf32>
    %123 = arith.truncf %122 : vector<2x12xf32> to vector<2x12xbf16>
    %c64 = arith.constant 64 : index
    %c0_56 = arith.constant 0 : index
    %124 = vector.load %arg3[%c64, %c0_56] : memref<1376x32xbf16, #tpu.memory_space<vmem>>, vector<12x6xbf16>
    %cst_57 = arith.constant dense<0.000000e+00> : vector<2x6xf32>
    %125 = tpu.matmul %123, %124, %cst_57 {dimension_numbers = #tpu.dot_dimension_numbers<[1], [0], [0], [1], [0, 0, 1, 1], [], []>} : vector<2x12xbf16>, vector<12x6xbf16>, vector<2x6xf32> -> vector<2x6xf32>
    %c5 = arith.constant 5 : index
    %c0_58 = arith.constant 0 : index
    %126 = vector.load %arg4[%c5, %c0_58] : memref<80x32xf32, #tpu.memory_space<vmem>>, vector<1x6xf32>
    %127 = vector.broadcast %126 : vector<1x6xf32> to vector<2x6xf32>
    %128 = arith.addf %125, %127 : vector<2x6xf32>
    %129 = tpu.iota {dimensions = array<i32: 0>} : vector<16x1xi32>
    %c7_i32 = arith.constant 7 : i32
    %130 = vector.broadcast %c7_i32 : i32 to vector<16x1xi32>
    %131 = arith.andi %129, %130 : vector<16x1xi32>
    %c0_i32 = arith.constant 0 : i32
    %132 = vector.broadcast %c0_i32 : i32 to vector<16x1xi32>
    %133 = arith.cmpi eq, %131, %132 : vector<16x1xi32>
    %134 = vector.extract_strided_slice %128 {offsets = [0, 0], sizes = [1, 6], strides = [1, 1]} : vector<2x6xf32> to vector<1x6xf32>
    %c8_i32 = arith.constant 8 : i32
    %135 = vector.broadcast %c8_i32 : i32 to vector<16x1xi32>
    %136 = arith.cmpi sge, %129, %135 : vector<16x1xi32>
    %137 = vector.extract_strided_slice %128 {offsets = [1, 0], sizes = [1, 6], strides = [1, 1]} : vector<2x6xf32> to vector<1x6xf32>
    %138 = vector.shape_cast %136 : vector<16x1xi1> to vector<16x1xi1>
    %139 = vector.broadcast %138 : vector<16x1xi1> to vector<16x6xi1>
    %140 = vector.shape_cast %137 : vector<1x6xf32> to vector<1x6xf32>
    %141 = vector.broadcast %140 : vector<1x6xf32> to vector<16x6xf32>
    %142 = vector.shape_cast %134 : vector<1x6xf32> to vector<1x6xf32>
    %143 = vector.broadcast %142 : vector<1x6xf32> to vector<16x6xf32>
    %144 = arith.select %139, %141, %143 : vector<16x6xi1>, vector<16x6xf32>
    %145 = vector.shape_cast %133 : vector<16x1xi1> to vector<16x1xi1>
    %146 = vector.broadcast %145 : vector<16x1xi1> to vector<16x6xi1>
    %147 = arith.select %146, %144, %118 : vector<16x6xi1>, vector<16x6xf32>
    %148 = vector.extract_strided_slice %51 {offsets = [0, 0], sizes = [1, 8], strides = [1, 1]} : vector<2x8xf32> to vector<1x8xf32>
    %c8_i32_59 = arith.constant 8 : i32
    %149 = vector.broadcast %c8_i32_59 : i32 to vector<16x1xi32>
    %150 = arith.cmpi sge, %129, %149 : vector<16x1xi32>
    %151 = vector.extract_strided_slice %51 {offsets = [1, 0], sizes = [1, 8], strides = [1, 1]} : vector<2x8xf32> to vector<1x8xf32>
    %152 = vector.shape_cast %150 : vector<16x1xi1> to vector<16x1xi1>
    %153 = vector.broadcast %152 : vector<16x1xi1> to vector<16x8xi1>
    %154 = vector.shape_cast %151 : vector<1x8xf32> to vector<1x8xf32>
    %155 = vector.broadcast %154 : vector<1x8xf32> to vector<16x8xf32>
    %156 = vector.shape_cast %148 : vector<1x8xf32> to vector<1x8xf32>
    %157 = vector.broadcast %156 : vector<1x8xf32> to vector<16x8xf32>
    %158 = arith.select %153, %155, %157 : vector<16x8xi1>, vector<16x8xf32>
    %159 = arith.truncf %147 : vector<16x6xf32> to vector<16x6xbf16>
    %160 = vector.extract_strided_slice %159 {offsets = [14, 0], sizes = [2, 6], strides = [1, 1]} : vector<16x6xbf16> to vector<2x6xbf16>
    %161 = vector.extract_strided_slice %159 {offsets = [0, 0], sizes = [14, 6], strides = [1, 1]} : vector<16x6xbf16> to vector<14x6xbf16>
    %162 = tpu.concatenate %160, %161 in 0 : vector<2x6xbf16>, vector<14x6xbf16> -> vector<16x6xbf16>
    %c7_i32_60 = arith.constant 7 : i32
    %163 = vector.broadcast %c7_i32_60 : i32 to vector<16x1xi32>
    %164 = arith.andi %129, %163 : vector<16x1xi32>
    %c-2_i32 = arith.constant -2 : i32
    %165 = vector.broadcast %c-2_i32 : i32 to vector<16x1xi32>
    %166 = arith.addi %164, %165 : vector<16x1xi32>
    %c0_i32_61 = arith.constant 0 : i32
    %167 = vector.broadcast %c0_i32_61 : i32 to vector<16x1xi32>
    %168 = arith.cmpi sge, %166, %167 : vector<16x1xi32>
    %c-2_i32_62 = arith.constant -2 : i32
    %169 = vector.broadcast %c-2_i32_62 : i32 to vector<16x1xi32>
    %170 = arith.addi %164, %169 : vector<16x1xi32>
    %c8_i32_63 = arith.constant 8 : i32
    %171 = vector.broadcast %c8_i32_63 : i32 to vector<16x1xi32>
    %172 = arith.cmpi slt, %170, %171 : vector<16x1xi32>
    %173 = arith.andi %168, %172 : vector<16x1xi1>
    %cst_64 = arith.constant 1.000000e+00 : f32
    %cst_65 = arith.constant 0.000000e+00 : f32
    %174 = vector.broadcast %cst_64 : f32 to vector<16x1xf32>
    %175 = vector.broadcast %cst_65 : f32 to vector<16x1xf32>
    %176 = arith.select %173, %174, %175 : vector<16x1xi1>, vector<16x1xf32>
    %177 = arith.truncf %176 : vector<16x1xf32> to vector<16x1xbf16>
    %178 = vector.broadcast %177 : vector<16x1xbf16> to vector<16x6xbf16>
    %179 = arith.mulf %162, %178 : vector<16x6xbf16>
    %180 = vector.extract_strided_slice %159 {offsets = [15, 0], sizes = [1, 6], strides = [1, 1]} : vector<16x6xbf16> to vector<1x6xbf16>
    %181 = vector.extract_strided_slice %159 {offsets = [0, 0], sizes = [15, 6], strides = [1, 1]} : vector<16x6xbf16> to vector<15x6xbf16>
    %182 = tpu.concatenate %180, %181 in 0 : vector<1x6xbf16>, vector<15x6xbf16> -> vector<16x6xbf16>
    %c7_i32_66 = arith.constant 7 : i32
    %183 = vector.broadcast %c7_i32_66 : i32 to vector<16x1xi32>
    %184 = arith.andi %129, %183 : vector<16x1xi32>
    %c-1_i32 = arith.constant -1 : i32
    %185 = vector.broadcast %c-1_i32 : i32 to vector<16x1xi32>
    %186 = arith.addi %184, %185 : vector<16x1xi32>
    %c0_i32_67 = arith.constant 0 : i32
    %187 = vector.broadcast %c0_i32_67 : i32 to vector<16x1xi32>
    %188 = arith.cmpi sge, %186, %187 : vector<16x1xi32>
    %c-1_i32_68 = arith.constant -1 : i32
    %189 = vector.broadcast %c-1_i32_68 : i32 to vector<16x1xi32>
    %190 = arith.addi %184, %189 : vector<16x1xi32>
    %c8_i32_69 = arith.constant 8 : i32
    %191 = vector.broadcast %c8_i32_69 : i32 to vector<16x1xi32>
    %192 = arith.cmpi slt, %190, %191 : vector<16x1xi32>
    %193 = arith.andi %188, %192 : vector<16x1xi1>
    %cst_70 = arith.constant 1.000000e+00 : f32
    %cst_71 = arith.constant 0.000000e+00 : f32
    %194 = vector.broadcast %cst_70 : f32 to vector<16x1xf32>
    %195 = vector.broadcast %cst_71 : f32 to vector<16x1xf32>
    %196 = arith.select %193, %194, %195 : vector<16x1xi1>, vector<16x1xf32>
    %197 = arith.truncf %196 : vector<16x1xf32> to vector<16x1xbf16>
    %198 = vector.broadcast %197 : vector<16x1xbf16> to vector<16x6xbf16>
    %199 = arith.mulf %182, %198 : vector<16x6xbf16>
    %200 = vector.extract_strided_slice %159 {offsets = [1, 0], sizes = [15, 6], strides = [1, 1]} : vector<16x6xbf16> to vector<15x6xbf16>
    %201 = vector.extract_strided_slice %159 {offsets = [0, 0], sizes = [1, 6], strides = [1, 1]} : vector<16x6xbf16> to vector<1x6xbf16>
    %202 = tpu.concatenate %200, %201 in 0 : vector<15x6xbf16>, vector<1x6xbf16> -> vector<16x6xbf16>
    %c7_i32_72 = arith.constant 7 : i32
    %203 = vector.broadcast %c7_i32_72 : i32 to vector<16x1xi32>
    %204 = arith.andi %129, %203 : vector<16x1xi32>
    %c1_i32 = arith.constant 1 : i32
    %205 = vector.broadcast %c1_i32 : i32 to vector<16x1xi32>
    %206 = arith.addi %204, %205 : vector<16x1xi32>
    %c0_i32_73 = arith.constant 0 : i32
    %207 = vector.broadcast %c0_i32_73 : i32 to vector<16x1xi32>
    %208 = arith.cmpi sge, %206, %207 : vector<16x1xi32>
    %c1_i32_74 = arith.constant 1 : i32
    %209 = vector.broadcast %c1_i32_74 : i32 to vector<16x1xi32>
    %210 = arith.addi %204, %209 : vector<16x1xi32>
    %c8_i32_75 = arith.constant 8 : i32
    %211 = vector.broadcast %c8_i32_75 : i32 to vector<16x1xi32>
    %212 = arith.cmpi slt, %210, %211 : vector<16x1xi32>
    %213 = arith.andi %208, %212 : vector<16x1xi1>
    %cst_76 = arith.constant 1.000000e+00 : f32
    %cst_77 = arith.constant 0.000000e+00 : f32
    %214 = vector.broadcast %cst_76 : f32 to vector<16x1xf32>
    %215 = vector.broadcast %cst_77 : f32 to vector<16x1xf32>
    %216 = arith.select %213, %214, %215 : vector<16x1xi1>, vector<16x1xf32>
    %217 = arith.truncf %216 : vector<16x1xf32> to vector<16x1xbf16>
    %218 = vector.broadcast %217 : vector<16x1xbf16> to vector<16x6xbf16>
    %219 = arith.mulf %202, %218 : vector<16x6xbf16>
    %220 = vector.extract_strided_slice %159 {offsets = [2, 0], sizes = [14, 6], strides = [1, 1]} : vector<16x6xbf16> to vector<14x6xbf16>
    %221 = vector.extract_strided_slice %159 {offsets = [0, 0], sizes = [2, 6], strides = [1, 1]} : vector<16x6xbf16> to vector<2x6xbf16>
    %222 = tpu.concatenate %220, %221 in 0 : vector<14x6xbf16>, vector<2x6xbf16> -> vector<16x6xbf16>
    %c7_i32_78 = arith.constant 7 : i32
    %223 = vector.broadcast %c7_i32_78 : i32 to vector<16x1xi32>
    %224 = arith.andi %129, %223 : vector<16x1xi32>
    %c2_i32 = arith.constant 2 : i32
    %225 = vector.broadcast %c2_i32 : i32 to vector<16x1xi32>
    %226 = arith.addi %224, %225 : vector<16x1xi32>
    %c0_i32_79 = arith.constant 0 : i32
    %227 = vector.broadcast %c0_i32_79 : i32 to vector<16x1xi32>
    %228 = arith.cmpi sge, %226, %227 : vector<16x1xi32>
    %c2_i32_80 = arith.constant 2 : i32
    %229 = vector.broadcast %c2_i32_80 : i32 to vector<16x1xi32>
    %230 = arith.addi %224, %229 : vector<16x1xi32>
    %c8_i32_81 = arith.constant 8 : i32
    %231 = vector.broadcast %c8_i32_81 : i32 to vector<16x1xi32>
    %232 = arith.cmpi slt, %230, %231 : vector<16x1xi32>
    %233 = arith.andi %228, %232 : vector<16x1xi1>
    %cst_82 = arith.constant 1.000000e+00 : f32
    %cst_83 = arith.constant 0.000000e+00 : f32
    %234 = vector.broadcast %cst_82 : f32 to vector<16x1xf32>
    %235 = vector.broadcast %cst_83 : f32 to vector<16x1xf32>
    %236 = arith.select %233, %234, %235 : vector<16x1xi1>, vector<16x1xf32>
    %237 = arith.truncf %236 : vector<16x1xf32> to vector<16x1xbf16>
    %238 = vector.broadcast %237 : vector<16x1xbf16> to vector<16x6xbf16>
    %239 = arith.mulf %222, %238 : vector<16x6xbf16>
    %240 = tpu.concatenate %179, %199, %159, %219, %239 in 1 : vector<16x6xbf16>, vector<16x6xbf16>, vector<16x6xbf16>, vector<16x6xbf16>, vector<16x6xbf16> -> vector<16x30xbf16>
    %c128 = arith.constant 128 : index
    %c0_84 = arith.constant 0 : index
    %241 = vector.load %arg3[%c128, %c0_84] : memref<1376x32xbf16, #tpu.memory_space<vmem>>, vector<30x8xbf16>
    %cst_85 = arith.constant dense<0.000000e+00> : vector<16x8xf32>
    %242 = tpu.matmul %240, %241, %cst_85 {dimension_numbers = #tpu.dot_dimension_numbers<[1], [0], [0], [1], [0, 0, 1, 1], [], []>} : vector<16x30xbf16>, vector<30x8xbf16>, vector<16x8xf32> -> vector<16x8xf32>
    %c9 = arith.constant 9 : index
    %c0_86 = arith.constant 0 : index
    %243 = vector.load %arg4[%c9, %c0_86] : memref<80x32xf32, #tpu.memory_space<vmem>>, vector<1x8xf32>
    %244 = vector.broadcast %243 : vector<1x8xf32> to vector<16x8xf32>
    %245 = arith.addf %242, %244 : vector<16x8xf32>
    %246 = vector.extract_strided_slice %245 {offsets = [0, 0], sizes = [8, 8], strides = [1, 1]} : vector<16x8xf32> to vector<8x8xf32>
    %cst_87 = arith.constant dense<0.000000e+00> : vector<8xf32>
    %247 = vector.multi_reduction <add>, %246, %cst_87 [0] : vector<8x8xf32> to vector<8xf32>
    %248 = vector.shape_cast %247 : vector<8xf32> to vector<1x8xf32>
    %249 = arith.mulf %246, %246 : vector<8x8xf32>
    %cst_88 = arith.constant dense<0.000000e+00> : vector<8xf32>
    %250 = vector.multi_reduction <add>, %249, %cst_88 [0] : vector<8x8xf32> to vector<8xf32>
    %251 = vector.shape_cast %250 : vector<8xf32> to vector<1x8xf32>
    %252 = vector.extract_strided_slice %245 {offsets = [8, 0], sizes = [8, 8], strides = [1, 1]} : vector<16x8xf32> to vector<8x8xf32>
    %cst_89 = arith.constant dense<0.000000e+00> : vector<8xf32>
    %253 = vector.multi_reduction <add>, %252, %cst_89 [0] : vector<8x8xf32> to vector<8xf32>
    %254 = vector.shape_cast %253 : vector<8xf32> to vector<1x8xf32>
    %255 = arith.mulf %252, %252 : vector<8x8xf32>
    %cst_90 = arith.constant dense<0.000000e+00> : vector<8xf32>
    %256 = vector.multi_reduction <add>, %255, %cst_90 [0] : vector<8x8xf32> to vector<8xf32>
    %257 = vector.shape_cast %256 : vector<8xf32> to vector<1x8xf32>
    %258 = tpu.concatenate %248, %251, %254, %257 in 0 : vector<1x8xf32>, vector<1x8xf32>, vector<1x8xf32>, vector<1x8xf32> -> vector<4x8xf32>
    %259 = vector.extract_strided_slice %258 {offsets = [0, 0], sizes = [1, 8], strides = [1, 1]} : vector<4x8xf32> to vector<1x8xf32>
    %cst_91 = arith.constant 8.000000e+00 : f32
    %260 = vector.broadcast %cst_91 : f32 to vector<1x8xf32>
    %261 = arith.divf %259, %260 : vector<1x8xf32>
    %262 = vector.extract_strided_slice %258 {offsets = [1, 0], sizes = [1, 8], strides = [1, 1]} : vector<4x8xf32> to vector<1x8xf32>
    %cst_92 = arith.constant 8.000000e+00 : f32
    %263 = vector.broadcast %cst_92 : f32 to vector<1x8xf32>
    %264 = arith.divf %262, %263 : vector<1x8xf32>
    %265 = arith.mulf %261, %261 : vector<1x8xf32>
    %266 = arith.subf %264, %265 : vector<1x8xf32>
    %cst_93 = arith.constant 9.99999974E-6 : f32
    %267 = vector.broadcast %cst_93 : f32 to vector<1x8xf32>
    %268 = arith.addf %266, %267 : vector<1x8xf32>
    %269 = math.rsqrt %268 : vector<1x8xf32>
    %270 = vector.extract_strided_slice %258 {offsets = [2, 0], sizes = [1, 8], strides = [1, 1]} : vector<4x8xf32> to vector<1x8xf32>
    %cst_94 = arith.constant 8.000000e+00 : f32
    %271 = vector.broadcast %cst_94 : f32 to vector<1x8xf32>
    %272 = arith.divf %270, %271 : vector<1x8xf32>
    %273 = vector.extract_strided_slice %258 {offsets = [3, 0], sizes = [1, 8], strides = [1, 1]} : vector<4x8xf32> to vector<1x8xf32>
    %cst_95 = arith.constant 8.000000e+00 : f32
    %274 = vector.broadcast %cst_95 : f32 to vector<1x8xf32>
    %275 = arith.divf %273, %274 : vector<1x8xf32>
    %276 = arith.mulf %272, %272 : vector<1x8xf32>
    %277 = arith.subf %275, %276 : vector<1x8xf32>
    %cst_96 = arith.constant 9.99999974E-6 : f32
    %278 = vector.broadcast %cst_96 : f32 to vector<1x8xf32>
    %279 = arith.addf %277, %278 : vector<1x8xf32>
    %280 = math.rsqrt %279 : vector<1x8xf32>
    %c8_i32_97 = arith.constant 8 : i32
    %281 = vector.broadcast %c8_i32_97 : i32 to vector<16x1xi32>
    %282 = arith.cmpi sge, %129, %281 : vector<16x1xi32>
    %283 = vector.shape_cast %282 : vector<16x1xi1> to vector<16x1xi1>
    %284 = vector.broadcast %283 : vector<16x1xi1> to vector<16x8xi1>
    %285 = vector.shape_cast %272 : vector<1x8xf32> to vector<1x8xf32>
    %286 = vector.broadcast %285 : vector<1x8xf32> to vector<16x8xf32>
    %287 = vector.shape_cast %261 : vector<1x8xf32> to vector<1x8xf32>
    %288 = vector.broadcast %287 : vector<1x8xf32> to vector<16x8xf32>
    %289 = arith.select %284, %286, %288 : vector<16x8xi1>, vector<16x8xf32>
    %290 = vector.shape_cast %282 : vector<16x1xi1> to vector<16x1xi1>
    %291 = vector.broadcast %290 : vector<16x1xi1> to vector<16x8xi1>
    %292 = vector.shape_cast %280 : vector<1x8xf32> to vector<1x8xf32>
    %293 = vector.broadcast %292 : vector<1x8xf32> to vector<16x8xf32>
    %294 = vector.shape_cast %269 : vector<1x8xf32> to vector<1x8xf32>
    %295 = vector.broadcast %294 : vector<1x8xf32> to vector<16x8xf32>
    %296 = arith.select %291, %293, %295 : vector<16x8xi1>, vector<16x8xf32>
    %297 = arith.subf %245, %289 : vector<16x8xf32>
    %298 = arith.mulf %297, %296 : vector<16x8xf32>
    %c10 = arith.constant 10 : index
    %c0_98 = arith.constant 0 : index
    %299 = vector.load %arg4[%c10, %c0_98] : memref<80x32xf32, #tpu.memory_space<vmem>>, vector<1x8xf32>
    %300 = vector.broadcast %299 : vector<1x8xf32> to vector<16x8xf32>
    %301 = arith.mulf %298, %300 : vector<16x8xf32>
    %c11 = arith.constant 11 : index
    %c0_99 = arith.constant 0 : index
    %302 = vector.load %arg4[%c11, %c0_99] : memref<80x32xf32, #tpu.memory_space<vmem>>, vector<1x8xf32>
    %303 = vector.broadcast %302 : vector<1x8xf32> to vector<16x8xf32>
    %304 = arith.addf %301, %303 : vector<16x8xf32>
    %cst_100 = arith.constant 0.000000e+00 : f32
    %305 = vector.broadcast %cst_100 : f32 to vector<16x8xf32>
    %306 = arith.maximumf %304, %305 : vector<16x8xf32>
    %307 = math.absf %304 : vector<16x8xf32>
    %cst_101 = arith.constant 0.000000e+00 : f32
    %308 = vector.broadcast %cst_101 : f32 to vector<16x8xf32>
    %309 = arith.subf %308, %307 : vector<16x8xf32>
    %310 = math.exp %309 : vector<16x8xf32>
    %cst_102 = arith.constant 1.000000e+00 : f32
    %311 = vector.broadcast %cst_102 : f32 to vector<16x8xf32>
    %312 = arith.addf %311, %310 : vector<16x8xf32>
    %313 = math.log %312 : vector<16x8xf32>
    %314 = arith.addf %306, %313 : vector<16x8xf32>
    %315 = math.tanh %314 : vector<16x8xf32>
    %316 = arith.mulf %304, %315 : vector<16x8xf32>
    %317 = arith.truncf %158 : vector<16x8xf32> to vector<16x8xbf16>
    %c200 = arith.constant 200 : index
    %c0_103 = arith.constant 0 : index
    %318 = vector.load %arg3[%c200, %c0_103] : memref<1376x32xbf16, #tpu.memory_space<vmem>>, vector<8x8xbf16>
    %cst_104 = arith.constant dense<0.000000e+00> : vector<16x8xf32>
    %319 = tpu.matmul %317, %318, %cst_104 {dimension_numbers = #tpu.dot_dimension_numbers<[1], [0], [0], [1], [0, 0, 1, 1], [], []>} : vector<16x8xbf16>, vector<8x8xbf16>, vector<16x8xf32> -> vector<16x8xf32>
    %c15 = arith.constant 15 : index
    %c0_105 = arith.constant 0 : index
    %320 = vector.load %arg4[%c15, %c0_105] : memref<80x32xf32, #tpu.memory_space<vmem>>, vector<1x8xf32>
    %321 = vector.broadcast %320 : vector<1x8xf32> to vector<16x8xf32>
    %322 = arith.addf %319, %321 : vector<16x8xf32>
    %323 = arith.addf %316, %322 : vector<16x8xf32>
    %324 = arith.truncf %323 : vector<16x8xf32> to vector<16x8xbf16>
    %325 = vector.extract_strided_slice %324 {offsets = [14, 0], sizes = [2, 8], strides = [1, 1]} : vector<16x8xbf16> to vector<2x8xbf16>
    %326 = vector.extract_strided_slice %324 {offsets = [0, 0], sizes = [14, 8], strides = [1, 1]} : vector<16x8xbf16> to vector<14x8xbf16>
    %327 = tpu.concatenate %325, %326 in 0 : vector<2x8xbf16>, vector<14x8xbf16> -> vector<16x8xbf16>
    %328 = vector.broadcast %177 : vector<16x1xbf16> to vector<16x8xbf16>
    %329 = arith.mulf %327, %328 : vector<16x8xbf16>
    %330 = vector.extract_strided_slice %324 {offsets = [15, 0], sizes = [1, 8], strides = [1, 1]} : vector<16x8xbf16> to vector<1x8xbf16>
    %331 = vector.extract_strided_slice %324 {offsets = [0, 0], sizes = [15, 8], strides = [1, 1]} : vector<16x8xbf16> to vector<15x8xbf16>
    %332 = tpu.concatenate %330, %331 in 0 : vector<1x8xbf16>, vector<15x8xbf16> -> vector<16x8xbf16>
    %333 = vector.broadcast %197 : vector<16x1xbf16> to vector<16x8xbf16>
    %334 = arith.mulf %332, %333 : vector<16x8xbf16>
    %335 = vector.extract_strided_slice %324 {offsets = [1, 0], sizes = [15, 8], strides = [1, 1]} : vector<16x8xbf16> to vector<15x8xbf16>
    %336 = vector.extract_strided_slice %324 {offsets = [0, 0], sizes = [1, 8], strides = [1, 1]} : vector<16x8xbf16> to vector<1x8xbf16>
    %337 = tpu.concatenate %335, %336 in 0 : vector<15x8xbf16>, vector<1x8xbf16> -> vector<16x8xbf16>
    %338 = vector.broadcast %217 : vector<16x1xbf16> to vector<16x8xbf16>
    %339 = arith.mulf %337, %338 : vector<16x8xbf16>
    %340 = vector.extract_strided_slice %324 {offsets = [2, 0], sizes = [14, 8], strides = [1, 1]} : vector<16x8xbf16> to vector<14x8xbf16>
    %341 = vector.extract_strided_slice %324 {offsets = [0, 0], sizes = [2, 8], strides = [1, 1]} : vector<16x8xbf16> to vector<2x8xbf16>
    %342 = tpu.concatenate %340, %341 in 0 : vector<14x8xbf16>, vector<2x8xbf16> -> vector<16x8xbf16>
    %343 = vector.broadcast %237 : vector<16x1xbf16> to vector<16x8xbf16>
    %344 = arith.mulf %342, %343 : vector<16x8xbf16>
    %345 = tpu.concatenate %329, %334, %324, %339, %344 in 1 : vector<16x8xbf16>, vector<16x8xbf16>, vector<16x8xbf16>, vector<16x8xbf16>, vector<16x8xbf16> -> vector<16x40xbf16>
    %c160 = arith.constant 160 : index
    %c0_106 = arith.constant 0 : index
    %346 = vector.load %arg3[%c160, %c0_106] : memref<1376x32xbf16, #tpu.memory_space<vmem>>, vector<40x8xbf16>
    %cst_107 = arith.constant dense<0.000000e+00> : vector<16x8xf32>
    %347 = tpu.matmul %345, %346, %cst_107 {dimension_numbers = #tpu.dot_dimension_numbers<[1], [0], [0], [1], [0, 0, 1, 1], [], []>} : vector<16x40xbf16>, vector<40x8xbf16>, vector<16x8xf32> -> vector<16x8xf32>
    %c12 = arith.constant 12 : index
    %c0_108 = arith.constant 0 : index
    %348 = vector.load %arg4[%c12, %c0_108] : memref<80x32xf32, #tpu.memory_space<vmem>>, vector<1x8xf32>
    %349 = vector.broadcast %348 : vector<1x8xf32> to vector<16x8xf32>
    %350 = arith.addf %347, %349 : vector<16x8xf32>
    %351 = vector.extract_strided_slice %350 {offsets = [0, 0], sizes = [8, 8], strides = [1, 1]} : vector<16x8xf32> to vector<8x8xf32>
    %cst_109 = arith.constant dense<0.000000e+00> : vector<8xf32>
    %352 = vector.multi_reduction <add>, %351, %cst_109 [0] : vector<8x8xf32> to vector<8xf32>
    %353 = vector.shape_cast %352 : vector<8xf32> to vector<1x8xf32>
    %354 = arith.mulf %351, %351 : vector<8x8xf32>
    %cst_110 = arith.constant dense<0.000000e+00> : vector<8xf32>
    %355 = vector.multi_reduction <add>, %354, %cst_110 [0] : vector<8x8xf32> to vector<8xf32>
    %356 = vector.shape_cast %355 : vector<8xf32> to vector<1x8xf32>
    %357 = vector.extract_strided_slice %350 {offsets = [8, 0], sizes = [8, 8], strides = [1, 1]} : vector<16x8xf32> to vector<8x8xf32>
    %cst_111 = arith.constant dense<0.000000e+00> : vector<8xf32>
    %358 = vector.multi_reduction <add>, %357, %cst_111 [0] : vector<8x8xf32> to vector<8xf32>
    %359 = vector.shape_cast %358 : vector<8xf32> to vector<1x8xf32>
    %360 = arith.mulf %357, %357 : vector<8x8xf32>
    %cst_112 = arith.constant dense<0.000000e+00> : vector<8xf32>
    %361 = vector.multi_reduction <add>, %360, %cst_112 [0] : vector<8x8xf32> to vector<8xf32>
    %362 = vector.shape_cast %361 : vector<8xf32> to vector<1x8xf32>
    %363 = tpu.concatenate %353, %356, %359, %362 in 0 : vector<1x8xf32>, vector<1x8xf32>, vector<1x8xf32>, vector<1x8xf32> -> vector<4x8xf32>
    %364 = vector.extract_strided_slice %363 {offsets = [0, 0], sizes = [1, 8], strides = [1, 1]} : vector<4x8xf32> to vector<1x8xf32>
    %cst_113 = arith.constant 8.000000e+00 : f32
    %365 = vector.broadcast %cst_113 : f32 to vector<1x8xf32>
    %366 = arith.divf %364, %365 : vector<1x8xf32>
    %367 = vector.extract_strided_slice %363 {offsets = [1, 0], sizes = [1, 8], strides = [1, 1]} : vector<4x8xf32> to vector<1x8xf32>
    %cst_114 = arith.constant 8.000000e+00 : f32
    %368 = vector.broadcast %cst_114 : f32 to vector<1x8xf32>
    %369 = arith.divf %367, %368 : vector<1x8xf32>
    %370 = arith.mulf %366, %366 : vector<1x8xf32>
    %371 = arith.subf %369, %370 : vector<1x8xf32>
    %cst_115 = arith.constant 9.99999974E-6 : f32
    %372 = vector.broadcast %cst_115 : f32 to vector<1x8xf32>
    %373 = arith.addf %371, %372 : vector<1x8xf32>
    %374 = math.rsqrt %373 : vector<1x8xf32>
    %375 = vector.extract_strided_slice %363 {offsets = [2, 0], sizes = [1, 8], strides = [1, 1]} : vector<4x8xf32> to vector<1x8xf32>
    %cst_116 = arith.constant 8.000000e+00 : f32
    %376 = vector.broadcast %cst_116 : f32 to vector<1x8xf32>
    %377 = arith.divf %375, %376 : vector<1x8xf32>
    %378 = vector.extract_strided_slice %363 {offsets = [3, 0], sizes = [1, 8], strides = [1, 1]} : vector<4x8xf32> to vector<1x8xf32>
    %cst_117 = arith.constant 8.000000e+00 : f32
    %379 = vector.broadcast %cst_117 : f32 to vector<1x8xf32>
    %380 = arith.divf %378, %379 : vector<1x8xf32>
    %381 = arith.mulf %377, %377 : vector<1x8xf32>
    %382 = arith.subf %380, %381 : vector<1x8xf32>
    %cst_118 = arith.constant 9.99999974E-6 : f32
    %383 = vector.broadcast %cst_118 : f32 to vector<1x8xf32>
    %384 = arith.addf %382, %383 : vector<1x8xf32>
    %385 = math.rsqrt %384 : vector<1x8xf32>
    %c8_i32_119 = arith.constant 8 : i32
    %386 = vector.broadcast %c8_i32_119 : i32 to vector<16x1xi32>
    %387 = arith.cmpi sge, %129, %386 : vector<16x1xi32>
    %388 = vector.shape_cast %387 : vector<16x1xi1> to vector<16x1xi1>
    %389 = vector.broadcast %388 : vector<16x1xi1> to vector<16x8xi1>
    %390 = vector.shape_cast %377 : vector<1x8xf32> to vector<1x8xf32>
    %391 = vector.broadcast %390 : vector<1x8xf32> to vector<16x8xf32>
    %392 = vector.shape_cast %366 : vector<1x8xf32> to vector<1x8xf32>
    %393 = vector.broadcast %392 : vector<1x8xf32> to vector<16x8xf32>
    %394 = arith.select %389, %391, %393 : vector<16x8xi1>, vector<16x8xf32>
    %395 = vector.shape_cast %387 : vector<16x1xi1> to vector<16x1xi1>
    %396 = vector.broadcast %395 : vector<16x1xi1> to vector<16x8xi1>
    %397 = vector.shape_cast %385 : vector<1x8xf32> to vector<1x8xf32>
    %398 = vector.broadcast %397 : vector<1x8xf32> to vector<16x8xf32>
    %399 = vector.shape_cast %374 : vector<1x8xf32> to vector<1x8xf32>
    %400 = vector.broadcast %399 : vector<1x8xf32> to vector<16x8xf32>
    %401 = arith.select %396, %398, %400 : vector<16x8xi1>, vector<16x8xf32>
    %402 = arith.subf %350, %394 : vector<16x8xf32>
    %403 = arith.mulf %402, %401 : vector<16x8xf32>
    %c13 = arith.constant 13 : index
    %c0_120 = arith.constant 0 : index
    %404 = vector.load %arg4[%c13, %c0_120] : memref<80x32xf32, #tpu.memory_space<vmem>>, vector<1x8xf32>
    %405 = vector.broadcast %404 : vector<1x8xf32> to vector<16x8xf32>
    %406 = arith.mulf %403, %405 : vector<16x8xf32>
    %c14 = arith.constant 14 : index
    %c0_121 = arith.constant 0 : index
    %407 = vector.load %arg4[%c14, %c0_121] : memref<80x32xf32, #tpu.memory_space<vmem>>, vector<1x8xf32>
    %408 = vector.broadcast %407 : vector<1x8xf32> to vector<16x8xf32>
    %409 = arith.addf %406, %408 : vector<16x8xf32>
    %cst_122 = arith.constant 0.000000e+00 : f32
    %410 = vector.broadcast %cst_122 : f32 to vector<16x8xf32>
    %411 = arith.maximumf %409, %410 : vector<16x8xf32>
    %412 = math.absf %409 : vector<16x8xf32>
    %cst_123 = arith.constant 0.000000e+00 : f32
    %413 = vector.broadcast %cst_123 : f32 to vector<16x8xf32>
    %414 = arith.subf %413, %412 : vector<16x8xf32>
    %415 = math.exp %414 : vector<16x8xf32>
    %cst_124 = arith.constant 1.000000e+00 : f32
    %416 = vector.broadcast %cst_124 : f32 to vector<16x8xf32>
    %417 = arith.addf %416, %415 : vector<16x8xf32>
    %418 = math.log %417 : vector<16x8xf32>
    %419 = arith.addf %411, %418 : vector<16x8xf32>
    %420 = math.tanh %419 : vector<16x8xf32>
    %421 = arith.mulf %409, %420 : vector<16x8xf32>
    %422 = arith.truncf %147 : vector<16x6xf32> to vector<16x6xbf16>
    %c208 = arith.constant 208 : index
    %c0_125 = arith.constant 0 : index
    %423 = vector.load %arg3[%c208, %c0_125] : memref<1376x32xbf16, #tpu.memory_space<vmem>>, vector<6x8xbf16>
    %cst_126 = arith.constant dense<0.000000e+00> : vector<16x8xf32>
    %424 = tpu.matmul %422, %423, %cst_126 {dimension_numbers = #tpu.dot_dimension_numbers<[1], [0], [0], [1], [0, 0, 1, 1], [], []>} : vector<16x6xbf16>, vector<6x8xbf16>, vector<16x8xf32> -> vector<16x8xf32>
    %c16 = arith.constant 16 : index
    %c0_127 = arith.constant 0 : index
    %425 = vector.load %arg4[%c16, %c0_127] : memref<80x32xf32, #tpu.memory_space<vmem>>, vector<1x8xf32>
    %426 = vector.broadcast %425 : vector<1x8xf32> to vector<16x8xf32>
    %427 = arith.addf %424, %426 : vector<16x8xf32>
    %428 = arith.addf %421, %427 : vector<16x8xf32>
    %429 = arith.truncf %428 : vector<16x8xf32> to vector<16x8xbf16>
    %430 = vector.extract_strided_slice %429 {offsets = [14, 0], sizes = [2, 8], strides = [1, 1]} : vector<16x8xbf16> to vector<2x8xbf16>
    %431 = vector.extract_strided_slice %429 {offsets = [0, 0], sizes = [14, 8], strides = [1, 1]} : vector<16x8xbf16> to vector<14x8xbf16>
    %432 = tpu.concatenate %430, %431 in 0 : vector<2x8xbf16>, vector<14x8xbf16> -> vector<16x8xbf16>
    %433 = vector.broadcast %177 : vector<16x1xbf16> to vector<16x8xbf16>
    %434 = arith.mulf %432, %433 : vector<16x8xbf16>
    %435 = vector.extract_strided_slice %429 {offsets = [15, 0], sizes = [1, 8], strides = [1, 1]} : vector<16x8xbf16> to vector<1x8xbf16>
    %436 = vector.extract_strided_slice %429 {offsets = [0, 0], sizes = [15, 8], strides = [1, 1]} : vector<16x8xbf16> to vector<15x8xbf16>
    %437 = tpu.concatenate %435, %436 in 0 : vector<1x8xbf16>, vector<15x8xbf16> -> vector<16x8xbf16>
    %438 = vector.broadcast %197 : vector<16x1xbf16> to vector<16x8xbf16>
    %439 = arith.mulf %437, %438 : vector<16x8xbf16>
    %440 = vector.extract_strided_slice %429 {offsets = [1, 0], sizes = [15, 8], strides = [1, 1]} : vector<16x8xbf16> to vector<15x8xbf16>
    %441 = vector.extract_strided_slice %429 {offsets = [0, 0], sizes = [1, 8], strides = [1, 1]} : vector<16x8xbf16> to vector<1x8xbf16>
    %442 = tpu.concatenate %440, %441 in 0 : vector<15x8xbf16>, vector<1x8xbf16> -> vector<16x8xbf16>
    %443 = vector.broadcast %217 : vector<16x1xbf16> to vector<16x8xbf16>
    %444 = arith.mulf %442, %443 : vector<16x8xbf16>
    %445 = vector.extract_strided_slice %429 {offsets = [2, 0], sizes = [14, 8], strides = [1, 1]} : vector<16x8xbf16> to vector<14x8xbf16>
    %446 = vector.extract_strided_slice %429 {offsets = [0, 0], sizes = [2, 8], strides = [1, 1]} : vector<16x8xbf16> to vector<2x8xbf16>
    %447 = tpu.concatenate %445, %446 in 0 : vector<14x8xbf16>, vector<2x8xbf16> -> vector<16x8xbf16>
    %448 = vector.broadcast %237 : vector<16x1xbf16> to vector<16x8xbf16>
    %449 = arith.mulf %447, %448 : vector<16x8xbf16>
    %450 = tpu.concatenate %434, %439, %429, %444, %449 in 1 : vector<16x8xbf16>, vector<16x8xbf16>, vector<16x8xbf16>, vector<16x8xbf16>, vector<16x8xbf16> -> vector<16x40xbf16>
    %c216 = arith.constant 216 : index
    %c0_128 = arith.constant 0 : index
    %451 = vector.load %arg3[%c216, %c0_128] : memref<1376x32xbf16, #tpu.memory_space<vmem>>, vector<40x8xbf16>
    %cst_129 = arith.constant dense<0.000000e+00> : vector<16x8xf32>
    %452 = tpu.matmul %450, %451, %cst_129 {dimension_numbers = #tpu.dot_dimension_numbers<[1], [0], [0], [1], [0, 0, 1, 1], [], []>} : vector<16x40xbf16>, vector<40x8xbf16>, vector<16x8xf32> -> vector<16x8xf32>
    %c17 = arith.constant 17 : index
    %c0_130 = arith.constant 0 : index
    %453 = vector.load %arg4[%c17, %c0_130] : memref<80x32xf32, #tpu.memory_space<vmem>>, vector<1x8xf32>
    %454 = vector.broadcast %453 : vector<1x8xf32> to vector<16x8xf32>
    %455 = arith.addf %452, %454 : vector<16x8xf32>
    %456 = vector.extract_strided_slice %455 {offsets = [0, 0], sizes = [8, 8], strides = [1, 1]} : vector<16x8xf32> to vector<8x8xf32>
    %cst_131 = arith.constant dense<0.000000e+00> : vector<8xf32>
    %457 = vector.multi_reduction <add>, %456, %cst_131 [0] : vector<8x8xf32> to vector<8xf32>
    %458 = vector.shape_cast %457 : vector<8xf32> to vector<1x8xf32>
    %459 = arith.mulf %456, %456 : vector<8x8xf32>
    %cst_132 = arith.constant dense<0.000000e+00> : vector<8xf32>
    %460 = vector.multi_reduction <add>, %459, %cst_132 [0] : vector<8x8xf32> to vector<8xf32>
    %461 = vector.shape_cast %460 : vector<8xf32> to vector<1x8xf32>
    %462 = vector.extract_strided_slice %455 {offsets = [8, 0], sizes = [8, 8], strides = [1, 1]} : vector<16x8xf32> to vector<8x8xf32>
    %cst_133 = arith.constant dense<0.000000e+00> : vector<8xf32>
    %463 = vector.multi_reduction <add>, %462, %cst_133 [0] : vector<8x8xf32> to vector<8xf32>
    %464 = vector.shape_cast %463 : vector<8xf32> to vector<1x8xf32>
    %465 = arith.mulf %462, %462 : vector<8x8xf32>
    %cst_134 = arith.constant dense<0.000000e+00> : vector<8xf32>
    %466 = vector.multi_reduction <add>, %465, %cst_134 [0] : vector<8x8xf32> to vector<8xf32>
    %467 = vector.shape_cast %466 : vector<8xf32> to vector<1x8xf32>
    %468 = tpu.concatenate %458, %461, %464, %467 in 0 : vector<1x8xf32>, vector<1x8xf32>, vector<1x8xf32>, vector<1x8xf32> -> vector<4x8xf32>
    %469 = vector.extract_strided_slice %468 {offsets = [0, 0], sizes = [1, 8], strides = [1, 1]} : vector<4x8xf32> to vector<1x8xf32>
    %cst_135 = arith.constant 8.000000e+00 : f32
    %470 = vector.broadcast %cst_135 : f32 to vector<1x8xf32>
    %471 = arith.divf %469, %470 : vector<1x8xf32>
    %472 = vector.extract_strided_slice %468 {offsets = [1, 0], sizes = [1, 8], strides = [1, 1]} : vector<4x8xf32> to vector<1x8xf32>
    %cst_136 = arith.constant 8.000000e+00 : f32
    %473 = vector.broadcast %cst_136 : f32 to vector<1x8xf32>
    %474 = arith.divf %472, %473 : vector<1x8xf32>
    %475 = arith.mulf %471, %471 : vector<1x8xf32>
    %476 = arith.subf %474, %475 : vector<1x8xf32>
    %cst_137 = arith.constant 9.99999974E-6 : f32
    %477 = vector.broadcast %cst_137 : f32 to vector<1x8xf32>
    %478 = arith.addf %476, %477 : vector<1x8xf32>
    %479 = math.rsqrt %478 : vector<1x8xf32>
    %480 = vector.extract_strided_slice %468 {offsets = [2, 0], sizes = [1, 8], strides = [1, 1]} : vector<4x8xf32> to vector<1x8xf32>
    %cst_138 = arith.constant 8.000000e+00 : f32
    %481 = vector.broadcast %cst_138 : f32 to vector<1x8xf32>
    %482 = arith.divf %480, %481 : vector<1x8xf32>
    %483 = vector.extract_strided_slice %468 {offsets = [3, 0], sizes = [1, 8], strides = [1, 1]} : vector<4x8xf32> to vector<1x8xf32>
    %cst_139 = arith.constant 8.000000e+00 : f32
    %484 = vector.broadcast %cst_139 : f32 to vector<1x8xf32>
    %485 = arith.divf %483, %484 : vector<1x8xf32>
    %486 = arith.mulf %482, %482 : vector<1x8xf32>
    %487 = arith.subf %485, %486 : vector<1x8xf32>
    %cst_140 = arith.constant 9.99999974E-6 : f32
    %488 = vector.broadcast %cst_140 : f32 to vector<1x8xf32>
    %489 = arith.addf %487, %488 : vector<1x8xf32>
    %490 = math.rsqrt %489 : vector<1x8xf32>
    %c8_i32_141 = arith.constant 8 : i32
    %491 = vector.broadcast %c8_i32_141 : i32 to vector<16x1xi32>
    %492 = arith.cmpi sge, %129, %491 : vector<16x1xi32>
    %493 = vector.shape_cast %492 : vector<16x1xi1> to vector<16x1xi1>
    %494 = vector.broadcast %493 : vector<16x1xi1> to vector<16x8xi1>
    %495 = vector.shape_cast %482 : vector<1x8xf32> to vector<1x8xf32>
    %496 = vector.broadcast %495 : vector<1x8xf32> to vector<16x8xf32>
    %497 = vector.shape_cast %471 : vector<1x8xf32> to vector<1x8xf32>
    %498 = vector.broadcast %497 : vector<1x8xf32> to vector<16x8xf32>
    %499 = arith.select %494, %496, %498 : vector<16x8xi1>, vector<16x8xf32>
    %500 = vector.shape_cast %492 : vector<16x1xi1> to vector<16x1xi1>
    %501 = vector.broadcast %500 : vector<16x1xi1> to vector<16x8xi1>
    %502 = vector.shape_cast %490 : vector<1x8xf32> to vector<1x8xf32>
    %503 = vector.broadcast %502 : vector<1x8xf32> to vector<16x8xf32>
    %504 = vector.shape_cast %479 : vector<1x8xf32> to vector<1x8xf32>
    %505 = vector.broadcast %504 : vector<1x8xf32> to vector<16x8xf32>
    %506 = arith.select %501, %503, %505 : vector<16x8xi1>, vector<16x8xf32>
    %507 = arith.subf %455, %499 : vector<16x8xf32>
    %508 = arith.mulf %507, %506 : vector<16x8xf32>
    %c18 = arith.constant 18 : index
    %c0_142 = arith.constant 0 : index
    %509 = vector.load %arg4[%c18, %c0_142] : memref<80x32xf32, #tpu.memory_space<vmem>>, vector<1x8xf32>
    %510 = vector.broadcast %509 : vector<1x8xf32> to vector<16x8xf32>
    %511 = arith.mulf %508, %510 : vector<16x8xf32>
    %c19 = arith.constant 19 : index
    %c0_143 = arith.constant 0 : index
    %512 = vector.load %arg4[%c19, %c0_143] : memref<80x32xf32, #tpu.memory_space<vmem>>, vector<1x8xf32>
    %513 = vector.broadcast %512 : vector<1x8xf32> to vector<16x8xf32>
    %514 = arith.addf %511, %513 : vector<16x8xf32>
    %cst_144 = arith.constant 0.000000e+00 : f32
    %515 = vector.broadcast %cst_144 : f32 to vector<16x8xf32>
    %516 = arith.maximumf %514, %515 : vector<16x8xf32>
    %517 = math.absf %514 : vector<16x8xf32>
    %cst_145 = arith.constant 0.000000e+00 : f32
    %518 = vector.broadcast %cst_145 : f32 to vector<16x8xf32>
    %519 = arith.subf %518, %517 : vector<16x8xf32>
    %520 = math.exp %519 : vector<16x8xf32>
    %cst_146 = arith.constant 1.000000e+00 : f32
    %521 = vector.broadcast %cst_146 : f32 to vector<16x8xf32>
    %522 = arith.addf %521, %520 : vector<16x8xf32>
    %523 = math.log %522 : vector<16x8xf32>
    %524 = arith.addf %516, %523 : vector<16x8xf32>
    %525 = math.tanh %524 : vector<16x8xf32>
    %526 = arith.mulf %514, %525 : vector<16x8xf32>
    %527 = arith.truncf %158 : vector<16x8xf32> to vector<16x8xbf16>
    %c296 = arith.constant 296 : index
    %c0_147 = arith.constant 0 : index
    %528 = vector.load %arg3[%c296, %c0_147] : memref<1376x32xbf16, #tpu.memory_space<vmem>>, vector<8x8xbf16>
    %cst_148 = arith.constant dense<0.000000e+00> : vector<16x8xf32>
    %529 = tpu.matmul %527, %528, %cst_148 {dimension_numbers = #tpu.dot_dimension_numbers<[1], [0], [0], [1], [0, 0, 1, 1], [], []>} : vector<16x8xbf16>, vector<8x8xbf16>, vector<16x8xf32> -> vector<16x8xf32>
    %c23 = arith.constant 23 : index
    %c0_149 = arith.constant 0 : index
    %530 = vector.load %arg4[%c23, %c0_149] : memref<80x32xf32, #tpu.memory_space<vmem>>, vector<1x8xf32>
    %531 = vector.broadcast %530 : vector<1x8xf32> to vector<16x8xf32>
    %532 = arith.addf %529, %531 : vector<16x8xf32>
    %533 = arith.addf %526, %532 : vector<16x8xf32>
    %534 = arith.truncf %533 : vector<16x8xf32> to vector<16x8xbf16>
    %535 = vector.extract_strided_slice %534 {offsets = [14, 0], sizes = [2, 8], strides = [1, 1]} : vector<16x8xbf16> to vector<2x8xbf16>
    %536 = vector.extract_strided_slice %534 {offsets = [0, 0], sizes = [14, 8], strides = [1, 1]} : vector<16x8xbf16> to vector<14x8xbf16>
    %537 = tpu.concatenate %535, %536 in 0 : vector<2x8xbf16>, vector<14x8xbf16> -> vector<16x8xbf16>
    %538 = vector.broadcast %177 : vector<16x1xbf16> to vector<16x8xbf16>
    %539 = arith.mulf %537, %538 : vector<16x8xbf16>
    %540 = vector.extract_strided_slice %534 {offsets = [15, 0], sizes = [1, 8], strides = [1, 1]} : vector<16x8xbf16> to vector<1x8xbf16>
    %541 = vector.extract_strided_slice %534 {offsets = [0, 0], sizes = [15, 8], strides = [1, 1]} : vector<16x8xbf16> to vector<15x8xbf16>
    %542 = tpu.concatenate %540, %541 in 0 : vector<1x8xbf16>, vector<15x8xbf16> -> vector<16x8xbf16>
    %543 = vector.broadcast %197 : vector<16x1xbf16> to vector<16x8xbf16>
    %544 = arith.mulf %542, %543 : vector<16x8xbf16>
    %545 = vector.extract_strided_slice %534 {offsets = [1, 0], sizes = [15, 8], strides = [1, 1]} : vector<16x8xbf16> to vector<15x8xbf16>
    %546 = vector.extract_strided_slice %534 {offsets = [0, 0], sizes = [1, 8], strides = [1, 1]} : vector<16x8xbf16> to vector<1x8xbf16>
    %547 = tpu.concatenate %545, %546 in 0 : vector<15x8xbf16>, vector<1x8xbf16> -> vector<16x8xbf16>
    %548 = vector.broadcast %217 : vector<16x1xbf16> to vector<16x8xbf16>
    %549 = arith.mulf %547, %548 : vector<16x8xbf16>
    %550 = vector.extract_strided_slice %534 {offsets = [2, 0], sizes = [14, 8], strides = [1, 1]} : vector<16x8xbf16> to vector<14x8xbf16>
    %551 = vector.extract_strided_slice %534 {offsets = [0, 0], sizes = [2, 8], strides = [1, 1]} : vector<16x8xbf16> to vector<2x8xbf16>
    %552 = tpu.concatenate %550, %551 in 0 : vector<14x8xbf16>, vector<2x8xbf16> -> vector<16x8xbf16>
    %553 = vector.broadcast %237 : vector<16x1xbf16> to vector<16x8xbf16>
    %554 = arith.mulf %552, %553 : vector<16x8xbf16>
    %555 = tpu.concatenate %539, %544, %534, %549, %554 in 1 : vector<16x8xbf16>, vector<16x8xbf16>, vector<16x8xbf16>, vector<16x8xbf16>, vector<16x8xbf16> -> vector<16x40xbf16>
    %c256 = arith.constant 256 : index
    %c0_150 = arith.constant 0 : index
    %556 = vector.load %arg3[%c256, %c0_150] : memref<1376x32xbf16, #tpu.memory_space<vmem>>, vector<40x8xbf16>
    %cst_151 = arith.constant dense<0.000000e+00> : vector<16x8xf32>
    %557 = tpu.matmul %555, %556, %cst_151 {dimension_numbers = #tpu.dot_dimension_numbers<[1], [0], [0], [1], [0, 0, 1, 1], [], []>} : vector<16x40xbf16>, vector<40x8xbf16>, vector<16x8xf32> -> vector<16x8xf32>
    %c20 = arith.constant 20 : index
    %c0_152 = arith.constant 0 : index
    %558 = vector.load %arg4[%c20, %c0_152] : memref<80x32xf32, #tpu.memory_space<vmem>>, vector<1x8xf32>
    %559 = vector.broadcast %558 : vector<1x8xf32> to vector<16x8xf32>
    %560 = arith.addf %557, %559 : vector<16x8xf32>
    %561 = vector.extract_strided_slice %560 {offsets = [0, 0], sizes = [8, 8], strides = [1, 1]} : vector<16x8xf32> to vector<8x8xf32>
    %cst_153 = arith.constant dense<0.000000e+00> : vector<8xf32>
    %562 = vector.multi_reduction <add>, %561, %cst_153 [0] : vector<8x8xf32> to vector<8xf32>
    %563 = vector.shape_cast %562 : vector<8xf32> to vector<1x8xf32>
    %564 = arith.mulf %561, %561 : vector<8x8xf32>
    %cst_154 = arith.constant dense<0.000000e+00> : vector<8xf32>
    %565 = vector.multi_reduction <add>, %564, %cst_154 [0] : vector<8x8xf32> to vector<8xf32>
    %566 = vector.shape_cast %565 : vector<8xf32> to vector<1x8xf32>
    %567 = vector.extract_strided_slice %560 {offsets = [8, 0], sizes = [8, 8], strides = [1, 1]} : vector<16x8xf32> to vector<8x8xf32>
    %cst_155 = arith.constant dense<0.000000e+00> : vector<8xf32>
    %568 = vector.multi_reduction <add>, %567, %cst_155 [0] : vector<8x8xf32> to vector<8xf32>
    %569 = vector.shape_cast %568 : vector<8xf32> to vector<1x8xf32>
    %570 = arith.mulf %567, %567 : vector<8x8xf32>
    %cst_156 = arith.constant dense<0.000000e+00> : vector<8xf32>
    %571 = vector.multi_reduction <add>, %570, %cst_156 [0] : vector<8x8xf32> to vector<8xf32>
    %572 = vector.shape_cast %571 : vector<8xf32> to vector<1x8xf32>
    %573 = tpu.concatenate %563, %566, %569, %572 in 0 : vector<1x8xf32>, vector<1x8xf32>, vector<1x8xf32>, vector<1x8xf32> -> vector<4x8xf32>
    %574 = vector.extract_strided_slice %573 {offsets = [0, 0], sizes = [1, 8], strides = [1, 1]} : vector<4x8xf32> to vector<1x8xf32>
    %cst_157 = arith.constant 8.000000e+00 : f32
    %575 = vector.broadcast %cst_157 : f32 to vector<1x8xf32>
    %576 = arith.divf %574, %575 : vector<1x8xf32>
    %577 = vector.extract_strided_slice %573 {offsets = [1, 0], sizes = [1, 8], strides = [1, 1]} : vector<4x8xf32> to vector<1x8xf32>
    %cst_158 = arith.constant 8.000000e+00 : f32
    %578 = vector.broadcast %cst_158 : f32 to vector<1x8xf32>
    %579 = arith.divf %577, %578 : vector<1x8xf32>
    %580 = arith.mulf %576, %576 : vector<1x8xf32>
    %581 = arith.subf %579, %580 : vector<1x8xf32>
    %cst_159 = arith.constant 9.99999974E-6 : f32
    %582 = vector.broadcast %cst_159 : f32 to vector<1x8xf32>
    %583 = arith.addf %581, %582 : vector<1x8xf32>
    %584 = math.rsqrt %583 : vector<1x8xf32>
    %585 = vector.extract_strided_slice %573 {offsets = [2, 0], sizes = [1, 8], strides = [1, 1]} : vector<4x8xf32> to vector<1x8xf32>
    %cst_160 = arith.constant 8.000000e+00 : f32
    %586 = vector.broadcast %cst_160 : f32 to vector<1x8xf32>
    %587 = arith.divf %585, %586 : vector<1x8xf32>
    %588 = vector.extract_strided_slice %573 {offsets = [3, 0], sizes = [1, 8], strides = [1, 1]} : vector<4x8xf32> to vector<1x8xf32>
    %cst_161 = arith.constant 8.000000e+00 : f32
    %589 = vector.broadcast %cst_161 : f32 to vector<1x8xf32>
    %590 = arith.divf %588, %589 : vector<1x8xf32>
    %591 = arith.mulf %587, %587 : vector<1x8xf32>
    %592 = arith.subf %590, %591 : vector<1x8xf32>
    %cst_162 = arith.constant 9.99999974E-6 : f32
    %593 = vector.broadcast %cst_162 : f32 to vector<1x8xf32>
    %594 = arith.addf %592, %593 : vector<1x8xf32>
    %595 = math.rsqrt %594 : vector<1x8xf32>
    %c8_i32_163 = arith.constant 8 : i32
    %596 = vector.broadcast %c8_i32_163 : i32 to vector<16x1xi32>
    %597 = arith.cmpi sge, %129, %596 : vector<16x1xi32>
    %598 = vector.shape_cast %597 : vector<16x1xi1> to vector<16x1xi1>
    %599 = vector.broadcast %598 : vector<16x1xi1> to vector<16x8xi1>
    %600 = vector.shape_cast %587 : vector<1x8xf32> to vector<1x8xf32>
    %601 = vector.broadcast %600 : vector<1x8xf32> to vector<16x8xf32>
    %602 = vector.shape_cast %576 : vector<1x8xf32> to vector<1x8xf32>
    %603 = vector.broadcast %602 : vector<1x8xf32> to vector<16x8xf32>
    %604 = arith.select %599, %601, %603 : vector<16x8xi1>, vector<16x8xf32>
    %605 = vector.shape_cast %597 : vector<16x1xi1> to vector<16x1xi1>
    %606 = vector.broadcast %605 : vector<16x1xi1> to vector<16x8xi1>
    %607 = vector.shape_cast %595 : vector<1x8xf32> to vector<1x8xf32>
    %608 = vector.broadcast %607 : vector<1x8xf32> to vector<16x8xf32>
    %609 = vector.shape_cast %584 : vector<1x8xf32> to vector<1x8xf32>
    %610 = vector.broadcast %609 : vector<1x8xf32> to vector<16x8xf32>
    %611 = arith.select %606, %608, %610 : vector<16x8xi1>, vector<16x8xf32>
    %612 = arith.subf %560, %604 : vector<16x8xf32>
    %613 = arith.mulf %612, %611 : vector<16x8xf32>
    %c21 = arith.constant 21 : index
    %c0_164 = arith.constant 0 : index
    %614 = vector.load %arg4[%c21, %c0_164] : memref<80x32xf32, #tpu.memory_space<vmem>>, vector<1x8xf32>
    %615 = vector.broadcast %614 : vector<1x8xf32> to vector<16x8xf32>
    %616 = arith.mulf %613, %615 : vector<16x8xf32>
    %c22 = arith.constant 22 : index
    %c0_165 = arith.constant 0 : index
    %617 = vector.load %arg4[%c22, %c0_165] : memref<80x32xf32, #tpu.memory_space<vmem>>, vector<1x8xf32>
    %618 = vector.broadcast %617 : vector<1x8xf32> to vector<16x8xf32>
    %619 = arith.addf %616, %618 : vector<16x8xf32>
    %cst_166 = arith.constant 0.000000e+00 : f32
    %620 = vector.broadcast %cst_166 : f32 to vector<16x8xf32>
    %621 = arith.maximumf %619, %620 : vector<16x8xf32>
    %622 = math.absf %619 : vector<16x8xf32>
    %cst_167 = arith.constant 0.000000e+00 : f32
    %623 = vector.broadcast %cst_167 : f32 to vector<16x8xf32>
    %624 = arith.subf %623, %622 : vector<16x8xf32>
    %625 = math.exp %624 : vector<16x8xf32>
    %cst_168 = arith.constant 1.000000e+00 : f32
    %626 = vector.broadcast %cst_168 : f32 to vector<16x8xf32>
    %627 = arith.addf %626, %625 : vector<16x8xf32>
    %628 = math.log %627 : vector<16x8xf32>
    %629 = arith.addf %621, %628 : vector<16x8xf32>
    %630 = math.tanh %629 : vector<16x8xf32>
    %631 = arith.mulf %619, %630 : vector<16x8xf32>
    %632 = arith.addf %631, %428 : vector<16x8xf32>
    %633 = arith.truncf %632 : vector<16x8xf32> to vector<16x8xbf16>
    %634 = vector.extract_strided_slice %633 {offsets = [15, 0], sizes = [1, 8], strides = [1, 1]} : vector<16x8xbf16> to vector<1x8xbf16>
    %635 = vector.extract_strided_slice %633 {offsets = [0, 0], sizes = [15, 8], strides = [1, 1]} : vector<16x8xbf16> to vector<15x8xbf16>
    %636 = tpu.concatenate %634, %635 in 0 : vector<1x8xbf16>, vector<15x8xbf16> -> vector<16x8xbf16>
    %637 = vector.broadcast %197 : vector<16x1xbf16> to vector<16x8xbf16>
    %638 = arith.mulf %636, %637 : vector<16x8xbf16>
    %639 = vector.extract_strided_slice %633 {offsets = [1, 0], sizes = [15, 8], strides = [1, 1]} : vector<16x8xbf16> to vector<15x8xbf16>
    %640 = vector.extract_strided_slice %633 {offsets = [0, 0], sizes = [1, 8], strides = [1, 1]} : vector<16x8xbf16> to vector<1x8xbf16>
    %641 = tpu.concatenate %639, %640 in 0 : vector<15x8xbf16>, vector<1x8xbf16> -> vector<16x8xbf16>
    %642 = vector.broadcast %217 : vector<16x1xbf16> to vector<16x8xbf16>
    %643 = arith.mulf %641, %642 : vector<16x8xbf16>
    %644 = tpu.concatenate %638, %633, %643 in 1 : vector<16x8xbf16>, vector<16x8xbf16>, vector<16x8xbf16> -> vector<16x24xbf16>
    %c304 = arith.constant 304 : index
    %c0_169 = arith.constant 0 : index
    %645 = vector.load %arg3[%c304, %c0_169] : memref<1376x32xbf16, #tpu.memory_space<vmem>>, vector<24x8xbf16>
    %cst_170 = arith.constant dense<0.000000e+00> : vector<16x8xf32>
    %646 = tpu.matmul %644, %645, %cst_170 {dimension_numbers = #tpu.dot_dimension_numbers<[1], [0], [0], [1], [0, 0, 1, 1], [], []>} : vector<16x24xbf16>, vector<24x8xbf16>, vector<16x8xf32> -> vector<16x8xf32>
    %c24_171 = arith.constant 24 : index
    %c0_172 = arith.constant 0 : index
    %647 = vector.load %arg4[%c24_171, %c0_172] : memref<80x32xf32, #tpu.memory_space<vmem>>, vector<1x8xf32>
    %648 = vector.broadcast %647 : vector<1x8xf32> to vector<16x8xf32>
    %649 = arith.addf %646, %648 : vector<16x8xf32>
    %650 = tpu.iota {dimensions = array<i32: 0>} : vector<8x16xi32>
    %651 = tpu.iota {dimensions = array<i32: 1>} : vector<8x16xi32>
    %c2_i32_173 = arith.constant 2 : i32
    %652 = vector.broadcast %c2_i32_173 : i32 to vector<8x16xi32>
    %653 = arith.shrsi %650, %652 : vector<8x16xi32>
    %c8_i32_174 = arith.constant 8 : i32
    %654 = vector.broadcast %c8_i32_174 : i32 to vector<8x16xi32>
    %655 = arith.muli %653, %654 : vector<8x16xi32>
    %c3_i32 = arith.constant 3 : i32
    %656 = vector.broadcast %c3_i32 : i32 to vector<8x16xi32>
    %657 = arith.andi %650, %656 : vector<8x16xi32>
    %c2_i32_175 = arith.constant 2 : i32
    %658 = vector.broadcast %c2_i32_175 : i32 to vector<8x16xi32>
    %659 = arith.muli %658, %657 : vector<8x16xi32>
    %660 = arith.addi %655, %659 : vector<8x16xi32>
    %661 = arith.cmpi eq, %651, %660 : vector<8x16xi32>
    %cst_176 = arith.constant 1.000000e+00 : f32
    %cst_177 = arith.constant 0.000000e+00 : f32
    %662 = vector.broadcast %cst_176 : f32 to vector<8x16xf32>
    %663 = vector.broadcast %cst_177 : f32 to vector<8x16xf32>
    %664 = arith.select %661, %662, %663 : vector<8x16xi1>, vector<8x16xf32>
    %cst_178 = arith.constant dense<0.000000e+00> : vector<8x8xf32>
    %665 = tpu.matmul %664, %649, %cst_178 {dimension_numbers = #tpu.dot_dimension_numbers<[1], [0], [0], [1], [0, 0, 1, 1], [], []>} : vector<8x16xf32>, vector<16x8xf32>, vector<8x8xf32> -> vector<8x8xf32>
    %666 = tpu.iota {dimensions = array<i32: 0>} : vector<8x1xi32>
    %667 = vector.extract_strided_slice %51 {offsets = [0, 0], sizes = [1, 8], strides = [1, 1]} : vector<2x8xf32> to vector<1x8xf32>
    %c4_i32 = arith.constant 4 : i32
    %668 = vector.broadcast %c4_i32 : i32 to vector<8x1xi32>
    %669 = arith.cmpi sge, %666, %668 : vector<8x1xi32>
    %670 = vector.extract_strided_slice %51 {offsets = [1, 0], sizes = [1, 8], strides = [1, 1]} : vector<2x8xf32> to vector<1x8xf32>
    %671 = vector.shape_cast %669 : vector<8x1xi1> to vector<8x1xi1>
    %672 = vector.broadcast %671 : vector<8x1xi1> to vector<8x8xi1>
    %673 = vector.shape_cast %670 : vector<1x8xf32> to vector<1x8xf32>
    %674 = vector.broadcast %673 : vector<1x8xf32> to vector<8x8xf32>
    %675 = vector.shape_cast %667 : vector<1x8xf32> to vector<1x8xf32>
    %676 = vector.broadcast %675 : vector<1x8xf32> to vector<8x8xf32>
    %677 = arith.select %672, %674, %676 : vector<8x8xi1>, vector<8x8xf32>
    %678 = arith.truncf %665 : vector<8x8xf32> to vector<8x8xbf16>
    %679 = vector.extract_strided_slice %678 {offsets = [6, 0], sizes = [2, 8], strides = [1, 1]} : vector<8x8xbf16> to vector<2x8xbf16>
    %680 = vector.extract_strided_slice %678 {offsets = [0, 0], sizes = [6, 8], strides = [1, 1]} : vector<8x8xbf16> to vector<6x8xbf16>
    %681 = tpu.concatenate %679, %680 in 0 : vector<2x8xbf16>, vector<6x8xbf16> -> vector<8x8xbf16>
    %c3_i32_179 = arith.constant 3 : i32
    %682 = vector.broadcast %c3_i32_179 : i32 to vector<8x1xi32>
    %683 = arith.andi %666, %682 : vector<8x1xi32>
    %c-2_i32_180 = arith.constant -2 : i32
    %684 = vector.broadcast %c-2_i32_180 : i32 to vector<8x1xi32>
    %685 = arith.addi %683, %684 : vector<8x1xi32>
    %c0_i32_181 = arith.constant 0 : i32
    %686 = vector.broadcast %c0_i32_181 : i32 to vector<8x1xi32>
    %687 = arith.cmpi sge, %685, %686 : vector<8x1xi32>
    %c-2_i32_182 = arith.constant -2 : i32
    %688 = vector.broadcast %c-2_i32_182 : i32 to vector<8x1xi32>
    %689 = arith.addi %683, %688 : vector<8x1xi32>
    %c4_i32_183 = arith.constant 4 : i32
    %690 = vector.broadcast %c4_i32_183 : i32 to vector<8x1xi32>
    %691 = arith.cmpi slt, %689, %690 : vector<8x1xi32>
    %692 = arith.andi %687, %691 : vector<8x1xi1>
    %cst_184 = arith.constant 1.000000e+00 : f32
    %cst_185 = arith.constant 0.000000e+00 : f32
    %693 = vector.broadcast %cst_184 : f32 to vector<8x1xf32>
    %694 = vector.broadcast %cst_185 : f32 to vector<8x1xf32>
    %695 = arith.select %692, %693, %694 : vector<8x1xi1>, vector<8x1xf32>
    %696 = arith.truncf %695 : vector<8x1xf32> to vector<8x1xbf16>
    %697 = vector.broadcast %696 : vector<8x1xbf16> to vector<8x8xbf16>
    %698 = arith.mulf %681, %697 : vector<8x8xbf16>
    %699 = vector.extract_strided_slice %678 {offsets = [7, 0], sizes = [1, 8], strides = [1, 1]} : vector<8x8xbf16> to vector<1x8xbf16>
    %700 = vector.extract_strided_slice %678 {offsets = [0, 0], sizes = [7, 8], strides = [1, 1]} : vector<8x8xbf16> to vector<7x8xbf16>
    %701 = tpu.concatenate %699, %700 in 0 : vector<1x8xbf16>, vector<7x8xbf16> -> vector<8x8xbf16>
    %c3_i32_186 = arith.constant 3 : i32
    %702 = vector.broadcast %c3_i32_186 : i32 to vector<8x1xi32>
    %703 = arith.andi %666, %702 : vector<8x1xi32>
    %c-1_i32_187 = arith.constant -1 : i32
    %704 = vector.broadcast %c-1_i32_187 : i32 to vector<8x1xi32>
    %705 = arith.addi %703, %704 : vector<8x1xi32>
    %c0_i32_188 = arith.constant 0 : i32
    %706 = vector.broadcast %c0_i32_188 : i32 to vector<8x1xi32>
    %707 = arith.cmpi sge, %705, %706 : vector<8x1xi32>
    %c-1_i32_189 = arith.constant -1 : i32
    %708 = vector.broadcast %c-1_i32_189 : i32 to vector<8x1xi32>
    %709 = arith.addi %703, %708 : vector<8x1xi32>
    %c4_i32_190 = arith.constant 4 : i32
    %710 = vector.broadcast %c4_i32_190 : i32 to vector<8x1xi32>
    %711 = arith.cmpi slt, %709, %710 : vector<8x1xi32>
    %712 = arith.andi %707, %711 : vector<8x1xi1>
    %cst_191 = arith.constant 1.000000e+00 : f32
    %cst_192 = arith.constant 0.000000e+00 : f32
    %713 = vector.broadcast %cst_191 : f32 to vector<8x1xf32>
    %714 = vector.broadcast %cst_192 : f32 to vector<8x1xf32>
    %715 = arith.select %712, %713, %714 : vector<8x1xi1>, vector<8x1xf32>
    %716 = arith.truncf %715 : vector<8x1xf32> to vector<8x1xbf16>
    %717 = vector.broadcast %716 : vector<8x1xbf16> to vector<8x8xbf16>
    %718 = arith.mulf %701, %717 : vector<8x8xbf16>
    %719 = vector.extract_strided_slice %678 {offsets = [1, 0], sizes = [7, 8], strides = [1, 1]} : vector<8x8xbf16> to vector<7x8xbf16>
    %720 = vector.extract_strided_slice %678 {offsets = [0, 0], sizes = [1, 8], strides = [1, 1]} : vector<8x8xbf16> to vector<1x8xbf16>
    %721 = tpu.concatenate %719, %720 in 0 : vector<7x8xbf16>, vector<1x8xbf16> -> vector<8x8xbf16>
    %c3_i32_193 = arith.constant 3 : i32
    %722 = vector.broadcast %c3_i32_193 : i32 to vector<8x1xi32>
    %723 = arith.andi %666, %722 : vector<8x1xi32>
    %c1_i32_194 = arith.constant 1 : i32
    %724 = vector.broadcast %c1_i32_194 : i32 to vector<8x1xi32>
    %725 = arith.addi %723, %724 : vector<8x1xi32>
    %c0_i32_195 = arith.constant 0 : i32
    %726 = vector.broadcast %c0_i32_195 : i32 to vector<8x1xi32>
    %727 = arith.cmpi sge, %725, %726 : vector<8x1xi32>
    %c1_i32_196 = arith.constant 1 : i32
    %728 = vector.broadcast %c1_i32_196 : i32 to vector<8x1xi32>
    %729 = arith.addi %723, %728 : vector<8x1xi32>
    %c4_i32_197 = arith.constant 4 : i32
    %730 = vector.broadcast %c4_i32_197 : i32 to vector<8x1xi32>
    %731 = arith.cmpi slt, %729, %730 : vector<8x1xi32>
    %732 = arith.andi %727, %731 : vector<8x1xi1>
    %cst_198 = arith.constant 1.000000e+00 : f32
    %cst_199 = arith.constant 0.000000e+00 : f32
    %733 = vector.broadcast %cst_198 : f32 to vector<8x1xf32>
    %734 = vector.broadcast %cst_199 : f32 to vector<8x1xf32>
    %735 = arith.select %732, %733, %734 : vector<8x1xi1>, vector<8x1xf32>
    %736 = arith.truncf %735 : vector<8x1xf32> to vector<8x1xbf16>
    %737 = vector.broadcast %736 : vector<8x1xbf16> to vector<8x8xbf16>
    %738 = arith.mulf %721, %737 : vector<8x8xbf16>
    %739 = vector.extract_strided_slice %678 {offsets = [2, 0], sizes = [6, 8], strides = [1, 1]} : vector<8x8xbf16> to vector<6x8xbf16>
    %740 = vector.extract_strided_slice %678 {offsets = [0, 0], sizes = [2, 8], strides = [1, 1]} : vector<8x8xbf16> to vector<2x8xbf16>
    %741 = tpu.concatenate %739, %740 in 0 : vector<6x8xbf16>, vector<2x8xbf16> -> vector<8x8xbf16>
    %c3_i32_200 = arith.constant 3 : i32
    %742 = vector.broadcast %c3_i32_200 : i32 to vector<8x1xi32>
    %743 = arith.andi %666, %742 : vector<8x1xi32>
    %c2_i32_201 = arith.constant 2 : i32
    %744 = vector.broadcast %c2_i32_201 : i32 to vector<8x1xi32>
    %745 = arith.addi %743, %744 : vector<8x1xi32>
    %c0_i32_202 = arith.constant 0 : i32
    %746 = vector.broadcast %c0_i32_202 : i32 to vector<8x1xi32>
    %747 = arith.cmpi sge, %745, %746 : vector<8x1xi32>
    %c2_i32_203 = arith.constant 2 : i32
    %748 = vector.broadcast %c2_i32_203 : i32 to vector<8x1xi32>
    %749 = arith.addi %743, %748 : vector<8x1xi32>
    %c4_i32_204 = arith.constant 4 : i32
    %750 = vector.broadcast %c4_i32_204 : i32 to vector<8x1xi32>
    %751 = arith.cmpi slt, %749, %750 : vector<8x1xi32>
    %752 = arith.andi %747, %751 : vector<8x1xi1>
    %cst_205 = arith.constant 1.000000e+00 : f32
    %cst_206 = arith.constant 0.000000e+00 : f32
    %753 = vector.broadcast %cst_205 : f32 to vector<8x1xf32>
    %754 = vector.broadcast %cst_206 : f32 to vector<8x1xf32>
    %755 = arith.select %752, %753, %754 : vector<8x1xi1>, vector<8x1xf32>
    %756 = arith.truncf %755 : vector<8x1xf32> to vector<8x1xbf16>
    %757 = vector.broadcast %756 : vector<8x1xbf16> to vector<8x8xbf16>
    %758 = arith.mulf %741, %757 : vector<8x8xbf16>
    %759 = tpu.concatenate %698, %718, %678, %738, %758 in 1 : vector<8x8xbf16>, vector<8x8xbf16>, vector<8x8xbf16>, vector<8x8xbf16>, vector<8x8xbf16> -> vector<8x40xbf16>
    %c328 = arith.constant 328 : index
    %c0_207 = arith.constant 0 : index
    %760 = vector.load %arg3[%c328, %c0_207] : memref<1376x32xbf16, #tpu.memory_space<vmem>>, vector<40x16xbf16>
    %cst_208 = arith.constant dense<0.000000e+00> : vector<8x16xf32>
    %761 = tpu.matmul %759, %760, %cst_208 {dimension_numbers = #tpu.dot_dimension_numbers<[1], [0], [0], [1], [0, 0, 1, 1], [], []>} : vector<8x40xbf16>, vector<40x16xbf16>, vector<8x16xf32> -> vector<8x16xf32>
    %c25 = arith.constant 25 : index
    %c0_209 = arith.constant 0 : index
    %762 = vector.load %arg4[%c25, %c0_209] : memref<80x32xf32, #tpu.memory_space<vmem>>, vector<1x16xf32>
    %763 = vector.broadcast %762 : vector<1x16xf32> to vector<8x16xf32>
    %764 = arith.addf %761, %763 : vector<8x16xf32>
    %765 = vector.extract_strided_slice %764 {offsets = [0, 0], sizes = [4, 16], strides = [1, 1]} : vector<8x16xf32> to vector<4x16xf32>
    %cst_210 = arith.constant dense<0.000000e+00> : vector<16xf32>
    %766 = vector.multi_reduction <add>, %765, %cst_210 [0] : vector<4x16xf32> to vector<16xf32>
    %767 = vector.shape_cast %766 : vector<16xf32> to vector<1x16xf32>
    %768 = arith.mulf %765, %765 : vector<4x16xf32>
    %cst_211 = arith.constant dense<0.000000e+00> : vector<16xf32>
    %769 = vector.multi_reduction <add>, %768, %cst_211 [0] : vector<4x16xf32> to vector<16xf32>
    %770 = vector.shape_cast %769 : vector<16xf32> to vector<1x16xf32>
    %771 = vector.extract_strided_slice %764 {offsets = [4, 0], sizes = [4, 16], strides = [1, 1]} : vector<8x16xf32> to vector<4x16xf32>
    %cst_212 = arith.constant dense<0.000000e+00> : vector<16xf32>
    %772 = vector.multi_reduction <add>, %771, %cst_212 [0] : vector<4x16xf32> to vector<16xf32>
    %773 = vector.shape_cast %772 : vector<16xf32> to vector<1x16xf32>
    %774 = arith.mulf %771, %771 : vector<4x16xf32>
    %cst_213 = arith.constant dense<0.000000e+00> : vector<16xf32>
    %775 = vector.multi_reduction <add>, %774, %cst_213 [0] : vector<4x16xf32> to vector<16xf32>
    %776 = vector.shape_cast %775 : vector<16xf32> to vector<1x16xf32>
    %777 = tpu.concatenate %767, %770, %773, %776 in 0 : vector<1x16xf32>, vector<1x16xf32>, vector<1x16xf32>, vector<1x16xf32> -> vector<4x16xf32>
    %778 = tpu.iota {dimensions = array<i32: 1>} : vector<1x16xi32>
    %779 = vector.extract_strided_slice %777 {offsets = [0, 1], sizes = [4, 15], strides = [1, 1]} : vector<4x16xf32> to vector<4x15xf32>
    %780 = vector.extract_strided_slice %777 {offsets = [0, 0], sizes = [4, 1], strides = [1, 1]} : vector<4x16xf32> to vector<4x1xf32>
    %781 = tpu.concatenate %779, %780 in 1 : vector<4x15xf32>, vector<4x1xf32> -> vector<4x16xf32>
    %782 = vector.extract_strided_slice %777 {offsets = [0, 15], sizes = [4, 1], strides = [1, 1]} : vector<4x16xf32> to vector<4x1xf32>
    %783 = vector.extract_strided_slice %777 {offsets = [0, 0], sizes = [4, 15], strides = [1, 1]} : vector<4x16xf32> to vector<4x15xf32>
    %784 = tpu.concatenate %782, %783 in 1 : vector<4x1xf32>, vector<4x15xf32> -> vector<4x16xf32>
    %c0_i32_214 = arith.constant 0 : i32
    %785 = vector.broadcast %c0_i32_214 : i32 to vector<1x16xi32>
    %786 = arith.shrsi %778, %785 : vector<1x16xi32>
    %c1_i32_215 = arith.constant 1 : i32
    %787 = vector.broadcast %c1_i32_215 : i32 to vector<1x16xi32>
    %788 = arith.andi %786, %787 : vector<1x16xi32>
    %c0_i32_216 = arith.constant 0 : i32
    %789 = vector.broadcast %c0_i32_216 : i32 to vector<1x16xi32>
    %790 = arith.cmpi eq, %788, %789 : vector<1x16xi32>
    %791 = vector.shape_cast %790 : vector<1x16xi1> to vector<1x16xi1>
    %792 = vector.broadcast %791 : vector<1x16xi1> to vector<4x16xi1>
    %793 = arith.select %792, %781, %784 : vector<4x16xi1>, vector<4x16xf32>
    %794 = arith.addf %777, %793 : vector<4x16xf32>
    %795 = vector.extract_strided_slice %794 {offsets = [0, 0], sizes = [1, 16], strides = [1, 1]} : vector<4x16xf32> to vector<1x16xf32>
    %cst_217 = arith.constant 8.000000e+00 : f32
    %796 = vector.broadcast %cst_217 : f32 to vector<1x16xf32>
    %797 = arith.divf %795, %796 : vector<1x16xf32>
    %798 = vector.extract_strided_slice %794 {offsets = [1, 0], sizes = [1, 16], strides = [1, 1]} : vector<4x16xf32> to vector<1x16xf32>
    %cst_218 = arith.constant 8.000000e+00 : f32
    %799 = vector.broadcast %cst_218 : f32 to vector<1x16xf32>
    %800 = arith.divf %798, %799 : vector<1x16xf32>
    %801 = arith.mulf %797, %797 : vector<1x16xf32>
    %802 = arith.subf %800, %801 : vector<1x16xf32>
    %cst_219 = arith.constant 9.99999974E-6 : f32
    %803 = vector.broadcast %cst_219 : f32 to vector<1x16xf32>
    %804 = arith.addf %802, %803 : vector<1x16xf32>
    %805 = math.rsqrt %804 : vector<1x16xf32>
    %806 = vector.extract_strided_slice %794 {offsets = [2, 0], sizes = [1, 16], strides = [1, 1]} : vector<4x16xf32> to vector<1x16xf32>
    %cst_220 = arith.constant 8.000000e+00 : f32
    %807 = vector.broadcast %cst_220 : f32 to vector<1x16xf32>
    %808 = arith.divf %806, %807 : vector<1x16xf32>
    %809 = vector.extract_strided_slice %794 {offsets = [3, 0], sizes = [1, 16], strides = [1, 1]} : vector<4x16xf32> to vector<1x16xf32>
    %cst_221 = arith.constant 8.000000e+00 : f32
    %810 = vector.broadcast %cst_221 : f32 to vector<1x16xf32>
    %811 = arith.divf %809, %810 : vector<1x16xf32>
    %812 = arith.mulf %808, %808 : vector<1x16xf32>
    %813 = arith.subf %811, %812 : vector<1x16xf32>
    %cst_222 = arith.constant 9.99999974E-6 : f32
    %814 = vector.broadcast %cst_222 : f32 to vector<1x16xf32>
    %815 = arith.addf %813, %814 : vector<1x16xf32>
    %816 = math.rsqrt %815 : vector<1x16xf32>
    %c4_i32_223 = arith.constant 4 : i32
    %817 = vector.broadcast %c4_i32_223 : i32 to vector<8x1xi32>
    %818 = arith.cmpi sge, %666, %817 : vector<8x1xi32>
    %819 = vector.shape_cast %818 : vector<8x1xi1> to vector<8x1xi1>
    %820 = vector.broadcast %819 : vector<8x1xi1> to vector<8x16xi1>
    %821 = vector.shape_cast %808 : vector<1x16xf32> to vector<1x16xf32>
    %822 = vector.broadcast %821 : vector<1x16xf32> to vector<8x16xf32>
    %823 = vector.shape_cast %797 : vector<1x16xf32> to vector<1x16xf32>
    %824 = vector.broadcast %823 : vector<1x16xf32> to vector<8x16xf32>
    %825 = arith.select %820, %822, %824 : vector<8x16xi1>, vector<8x16xf32>
    %826 = vector.shape_cast %818 : vector<8x1xi1> to vector<8x1xi1>
    %827 = vector.broadcast %826 : vector<8x1xi1> to vector<8x16xi1>
    %828 = vector.shape_cast %816 : vector<1x16xf32> to vector<1x16xf32>
    %829 = vector.broadcast %828 : vector<1x16xf32> to vector<8x16xf32>
    %830 = vector.shape_cast %805 : vector<1x16xf32> to vector<1x16xf32>
    %831 = vector.broadcast %830 : vector<1x16xf32> to vector<8x16xf32>
    %832 = arith.select %827, %829, %831 : vector<8x16xi1>, vector<8x16xf32>
    %833 = arith.subf %764, %825 : vector<8x16xf32>
    %834 = arith.mulf %833, %832 : vector<8x16xf32>
    %c26 = arith.constant 26 : index
    %c0_224 = arith.constant 0 : index
    %835 = vector.load %arg4[%c26, %c0_224] : memref<80x32xf32, #tpu.memory_space<vmem>>, vector<1x16xf32>
    %836 = vector.broadcast %835 : vector<1x16xf32> to vector<8x16xf32>
    %837 = arith.mulf %834, %836 : vector<8x16xf32>
    %c27 = arith.constant 27 : index
    %c0_225 = arith.constant 0 : index
    %838 = vector.load %arg4[%c27, %c0_225] : memref<80x32xf32, #tpu.memory_space<vmem>>, vector<1x16xf32>
    %839 = vector.broadcast %838 : vector<1x16xf32> to vector<8x16xf32>
    %840 = arith.addf %837, %839 : vector<8x16xf32>
    %cst_226 = arith.constant 0.000000e+00 : f32
    %841 = vector.broadcast %cst_226 : f32 to vector<8x16xf32>
    %842 = arith.maximumf %840, %841 : vector<8x16xf32>
    %843 = math.absf %840 : vector<8x16xf32>
    %cst_227 = arith.constant 0.000000e+00 : f32
    %844 = vector.broadcast %cst_227 : f32 to vector<8x16xf32>
    %845 = arith.subf %844, %843 : vector<8x16xf32>
    %846 = math.exp %845 : vector<8x16xf32>
    %cst_228 = arith.constant 1.000000e+00 : f32
    %847 = vector.broadcast %cst_228 : f32 to vector<8x16xf32>
    %848 = arith.addf %847, %846 : vector<8x16xf32>
    %849 = math.log %848 : vector<8x16xf32>
    %850 = arith.addf %842, %849 : vector<8x16xf32>
    %851 = math.tanh %850 : vector<8x16xf32>
    %852 = arith.mulf %840, %851 : vector<8x16xf32>
    %853 = arith.truncf %677 : vector<8x8xf32> to vector<8x8xbf16>
    %c448 = arith.constant 448 : index
    %c0_229 = arith.constant 0 : index
    %854 = vector.load %arg3[%c448, %c0_229] : memref<1376x32xbf16, #tpu.memory_space<vmem>>, vector<8x16xbf16>
    %cst_230 = arith.constant dense<0.000000e+00> : vector<8x16xf32>
    %855 = tpu.matmul %853, %854, %cst_230 {dimension_numbers = #tpu.dot_dimension_numbers<[1], [0], [0], [1], [0, 0, 1, 1], [], []>} : vector<8x8xbf16>, vector<8x16xbf16>, vector<8x16xf32> -> vector<8x16xf32>
    %c31 = arith.constant 31 : index
    %c0_231 = arith.constant 0 : index
    %856 = vector.load %arg4[%c31, %c0_231] : memref<80x32xf32, #tpu.memory_space<vmem>>, vector<1x16xf32>
    %857 = vector.broadcast %856 : vector<1x16xf32> to vector<8x16xf32>
    %858 = arith.addf %855, %857 : vector<8x16xf32>
    %859 = arith.addf %852, %858 : vector<8x16xf32>
    %860 = arith.truncf %859 : vector<8x16xf32> to vector<8x16xbf16>
    %861 = vector.extract_strided_slice %860 {offsets = [6, 0], sizes = [2, 16], strides = [1, 1]} : vector<8x16xbf16> to vector<2x16xbf16>
    %862 = vector.extract_strided_slice %860 {offsets = [0, 0], sizes = [6, 16], strides = [1, 1]} : vector<8x16xbf16> to vector<6x16xbf16>
    %863 = tpu.concatenate %861, %862 in 0 : vector<2x16xbf16>, vector<6x16xbf16> -> vector<8x16xbf16>
    %864 = vector.broadcast %696 : vector<8x1xbf16> to vector<8x16xbf16>
    %865 = arith.mulf %863, %864 : vector<8x16xbf16>
    %866 = vector.extract_strided_slice %860 {offsets = [7, 0], sizes = [1, 16], strides = [1, 1]} : vector<8x16xbf16> to vector<1x16xbf16>
    %867 = vector.extract_strided_slice %860 {offsets = [0, 0], sizes = [7, 16], strides = [1, 1]} : vector<8x16xbf16> to vector<7x16xbf16>
    %868 = tpu.concatenate %866, %867 in 0 : vector<1x16xbf16>, vector<7x16xbf16> -> vector<8x16xbf16>
    %869 = vector.broadcast %716 : vector<8x1xbf16> to vector<8x16xbf16>
    %870 = arith.mulf %868, %869 : vector<8x16xbf16>
    %871 = vector.extract_strided_slice %860 {offsets = [1, 0], sizes = [7, 16], strides = [1, 1]} : vector<8x16xbf16> to vector<7x16xbf16>
    %872 = vector.extract_strided_slice %860 {offsets = [0, 0], sizes = [1, 16], strides = [1, 1]} : vector<8x16xbf16> to vector<1x16xbf16>
    %873 = tpu.concatenate %871, %872 in 0 : vector<7x16xbf16>, vector<1x16xbf16> -> vector<8x16xbf16>
    %874 = vector.broadcast %736 : vector<8x1xbf16> to vector<8x16xbf16>
    %875 = arith.mulf %873, %874 : vector<8x16xbf16>
    %876 = vector.extract_strided_slice %860 {offsets = [2, 0], sizes = [6, 16], strides = [1, 1]} : vector<8x16xbf16> to vector<6x16xbf16>
    %877 = vector.extract_strided_slice %860 {offsets = [0, 0], sizes = [2, 16], strides = [1, 1]} : vector<8x16xbf16> to vector<2x16xbf16>
    %878 = tpu.concatenate %876, %877 in 0 : vector<6x16xbf16>, vector<2x16xbf16> -> vector<8x16xbf16>
    %879 = vector.broadcast %756 : vector<8x1xbf16> to vector<8x16xbf16>
    %880 = arith.mulf %878, %879 : vector<8x16xbf16>
    %881 = tpu.concatenate %865, %870, %860, %875, %880 in 1 : vector<8x16xbf16>, vector<8x16xbf16>, vector<8x16xbf16>, vector<8x16xbf16>, vector<8x16xbf16> -> vector<8x80xbf16>
    %c368 = arith.constant 368 : index
    %c0_232 = arith.constant 0 : index
    %882 = vector.load %arg3[%c368, %c0_232] : memref<1376x32xbf16, #tpu.memory_space<vmem>>, vector<80x16xbf16>
    %cst_233 = arith.constant dense<0.000000e+00> : vector<8x16xf32>
    %883 = tpu.matmul %881, %882, %cst_233 {dimension_numbers = #tpu.dot_dimension_numbers<[1], [0], [0], [1], [0, 0, 1, 1], [], []>} : vector<8x80xbf16>, vector<80x16xbf16>, vector<8x16xf32> -> vector<8x16xf32>
    %c28 = arith.constant 28 : index
    %c0_234 = arith.constant 0 : index
    %884 = vector.load %arg4[%c28, %c0_234] : memref<80x32xf32, #tpu.memory_space<vmem>>, vector<1x16xf32>
    %885 = vector.broadcast %884 : vector<1x16xf32> to vector<8x16xf32>
    %886 = arith.addf %883, %885 : vector<8x16xf32>
    %887 = vector.extract_strided_slice %886 {offsets = [0, 0], sizes = [4, 16], strides = [1, 1]} : vector<8x16xf32> to vector<4x16xf32>
    %cst_235 = arith.constant dense<0.000000e+00> : vector<16xf32>
    %888 = vector.multi_reduction <add>, %887, %cst_235 [0] : vector<4x16xf32> to vector<16xf32>
    %889 = vector.shape_cast %888 : vector<16xf32> to vector<1x16xf32>
    %890 = arith.mulf %887, %887 : vector<4x16xf32>
    %cst_236 = arith.constant dense<0.000000e+00> : vector<16xf32>
    %891 = vector.multi_reduction <add>, %890, %cst_236 [0] : vector<4x16xf32> to vector<16xf32>
    %892 = vector.shape_cast %891 : vector<16xf32> to vector<1x16xf32>
    %893 = vector.extract_strided_slice %886 {offsets = [4, 0], sizes = [4, 16], strides = [1, 1]} : vector<8x16xf32> to vector<4x16xf32>
    %cst_237 = arith.constant dense<0.000000e+00> : vector<16xf32>
    %894 = vector.multi_reduction <add>, %893, %cst_237 [0] : vector<4x16xf32> to vector<16xf32>
    %895 = vector.shape_cast %894 : vector<16xf32> to vector<1x16xf32>
    %896 = arith.mulf %893, %893 : vector<4x16xf32>
    %cst_238 = arith.constant dense<0.000000e+00> : vector<16xf32>
    %897 = vector.multi_reduction <add>, %896, %cst_238 [0] : vector<4x16xf32> to vector<16xf32>
    %898 = vector.shape_cast %897 : vector<16xf32> to vector<1x16xf32>
    %899 = tpu.concatenate %889, %892, %895, %898 in 0 : vector<1x16xf32>, vector<1x16xf32>, vector<1x16xf32>, vector<1x16xf32> -> vector<4x16xf32>
    %900 = vector.extract_strided_slice %899 {offsets = [0, 1], sizes = [4, 15], strides = [1, 1]} : vector<4x16xf32> to vector<4x15xf32>
    %901 = vector.extract_strided_slice %899 {offsets = [0, 0], sizes = [4, 1], strides = [1, 1]} : vector<4x16xf32> to vector<4x1xf32>
    %902 = tpu.concatenate %900, %901 in 1 : vector<4x15xf32>, vector<4x1xf32> -> vector<4x16xf32>
    %903 = vector.extract_strided_slice %899 {offsets = [0, 15], sizes = [4, 1], strides = [1, 1]} : vector<4x16xf32> to vector<4x1xf32>
    %904 = vector.extract_strided_slice %899 {offsets = [0, 0], sizes = [4, 15], strides = [1, 1]} : vector<4x16xf32> to vector<4x15xf32>
    %905 = tpu.concatenate %903, %904 in 1 : vector<4x1xf32>, vector<4x15xf32> -> vector<4x16xf32>
    %c0_i32_239 = arith.constant 0 : i32
    %906 = vector.broadcast %c0_i32_239 : i32 to vector<1x16xi32>
    %907 = arith.shrsi %778, %906 : vector<1x16xi32>
    %c1_i32_240 = arith.constant 1 : i32
    %908 = vector.broadcast %c1_i32_240 : i32 to vector<1x16xi32>
    %909 = arith.andi %907, %908 : vector<1x16xi32>
    %c0_i32_241 = arith.constant 0 : i32
    %910 = vector.broadcast %c0_i32_241 : i32 to vector<1x16xi32>
    %911 = arith.cmpi eq, %909, %910 : vector<1x16xi32>
    %912 = vector.shape_cast %911 : vector<1x16xi1> to vector<1x16xi1>
    %913 = vector.broadcast %912 : vector<1x16xi1> to vector<4x16xi1>
    %914 = arith.select %913, %902, %905 : vector<4x16xi1>, vector<4x16xf32>
    %915 = arith.addf %899, %914 : vector<4x16xf32>
    %916 = vector.extract_strided_slice %915 {offsets = [0, 0], sizes = [1, 16], strides = [1, 1]} : vector<4x16xf32> to vector<1x16xf32>
    %cst_242 = arith.constant 8.000000e+00 : f32
    %917 = vector.broadcast %cst_242 : f32 to vector<1x16xf32>
    %918 = arith.divf %916, %917 : vector<1x16xf32>
    %919 = vector.extract_strided_slice %915 {offsets = [1, 0], sizes = [1, 16], strides = [1, 1]} : vector<4x16xf32> to vector<1x16xf32>
    %cst_243 = arith.constant 8.000000e+00 : f32
    %920 = vector.broadcast %cst_243 : f32 to vector<1x16xf32>
    %921 = arith.divf %919, %920 : vector<1x16xf32>
    %922 = arith.mulf %918, %918 : vector<1x16xf32>
    %923 = arith.subf %921, %922 : vector<1x16xf32>
    %cst_244 = arith.constant 9.99999974E-6 : f32
    %924 = vector.broadcast %cst_244 : f32 to vector<1x16xf32>
    %925 = arith.addf %923, %924 : vector<1x16xf32>
    %926 = math.rsqrt %925 : vector<1x16xf32>
    %927 = vector.extract_strided_slice %915 {offsets = [2, 0], sizes = [1, 16], strides = [1, 1]} : vector<4x16xf32> to vector<1x16xf32>
    %cst_245 = arith.constant 8.000000e+00 : f32
    %928 = vector.broadcast %cst_245 : f32 to vector<1x16xf32>
    %929 = arith.divf %927, %928 : vector<1x16xf32>
    %930 = vector.extract_strided_slice %915 {offsets = [3, 0], sizes = [1, 16], strides = [1, 1]} : vector<4x16xf32> to vector<1x16xf32>
    %cst_246 = arith.constant 8.000000e+00 : f32
    %931 = vector.broadcast %cst_246 : f32 to vector<1x16xf32>
    %932 = arith.divf %930, %931 : vector<1x16xf32>
    %933 = arith.mulf %929, %929 : vector<1x16xf32>
    %934 = arith.subf %932, %933 : vector<1x16xf32>
    %cst_247 = arith.constant 9.99999974E-6 : f32
    %935 = vector.broadcast %cst_247 : f32 to vector<1x16xf32>
    %936 = arith.addf %934, %935 : vector<1x16xf32>
    %937 = math.rsqrt %936 : vector<1x16xf32>
    %c4_i32_248 = arith.constant 4 : i32
    %938 = vector.broadcast %c4_i32_248 : i32 to vector<8x1xi32>
    %939 = arith.cmpi sge, %666, %938 : vector<8x1xi32>
    %940 = vector.shape_cast %939 : vector<8x1xi1> to vector<8x1xi1>
    %941 = vector.broadcast %940 : vector<8x1xi1> to vector<8x16xi1>
    %942 = vector.shape_cast %929 : vector<1x16xf32> to vector<1x16xf32>
    %943 = vector.broadcast %942 : vector<1x16xf32> to vector<8x16xf32>
    %944 = vector.shape_cast %918 : vector<1x16xf32> to vector<1x16xf32>
    %945 = vector.broadcast %944 : vector<1x16xf32> to vector<8x16xf32>
    %946 = arith.select %941, %943, %945 : vector<8x16xi1>, vector<8x16xf32>
    %947 = vector.shape_cast %939 : vector<8x1xi1> to vector<8x1xi1>
    %948 = vector.broadcast %947 : vector<8x1xi1> to vector<8x16xi1>
    %949 = vector.shape_cast %937 : vector<1x16xf32> to vector<1x16xf32>
    %950 = vector.broadcast %949 : vector<1x16xf32> to vector<8x16xf32>
    %951 = vector.shape_cast %926 : vector<1x16xf32> to vector<1x16xf32>
    %952 = vector.broadcast %951 : vector<1x16xf32> to vector<8x16xf32>
    %953 = arith.select %948, %950, %952 : vector<8x16xi1>, vector<8x16xf32>
    %954 = arith.subf %886, %946 : vector<8x16xf32>
    %955 = arith.mulf %954, %953 : vector<8x16xf32>
    %c29 = arith.constant 29 : index
    %c0_249 = arith.constant 0 : index
    %956 = vector.load %arg4[%c29, %c0_249] : memref<80x32xf32, #tpu.memory_space<vmem>>, vector<1x16xf32>
    %957 = vector.broadcast %956 : vector<1x16xf32> to vector<8x16xf32>
    %958 = arith.mulf %955, %957 : vector<8x16xf32>
    %c30 = arith.constant 30 : index
    %c0_250 = arith.constant 0 : index
    %959 = vector.load %arg4[%c30, %c0_250] : memref<80x32xf32, #tpu.memory_space<vmem>>, vector<1x16xf32>
    %960 = vector.broadcast %959 : vector<1x16xf32> to vector<8x16xf32>
    %961 = arith.addf %958, %960 : vector<8x16xf32>
    %cst_251 = arith.constant 0.000000e+00 : f32
    %962 = vector.broadcast %cst_251 : f32 to vector<8x16xf32>
    %963 = arith.maximumf %961, %962 : vector<8x16xf32>
    %964 = math.absf %961 : vector<8x16xf32>
    %cst_252 = arith.constant 0.000000e+00 : f32
    %965 = vector.broadcast %cst_252 : f32 to vector<8x16xf32>
    %966 = arith.subf %965, %964 : vector<8x16xf32>
    %967 = math.exp %966 : vector<8x16xf32>
    %cst_253 = arith.constant 1.000000e+00 : f32
    %968 = vector.broadcast %cst_253 : f32 to vector<8x16xf32>
    %969 = arith.addf %968, %967 : vector<8x16xf32>
    %970 = math.log %969 : vector<8x16xf32>
    %971 = arith.addf %963, %970 : vector<8x16xf32>
    %972 = math.tanh %971 : vector<8x16xf32>
    %973 = arith.mulf %961, %972 : vector<8x16xf32>
    %974 = arith.truncf %665 : vector<8x8xf32> to vector<8x8xbf16>
    %c456 = arith.constant 456 : index
    %c0_254 = arith.constant 0 : index
    %975 = vector.load %arg3[%c456, %c0_254] : memref<1376x32xbf16, #tpu.memory_space<vmem>>, vector<8x16xbf16>
    %cst_255 = arith.constant dense<0.000000e+00> : vector<8x16xf32>
    %976 = tpu.matmul %974, %975, %cst_255 {dimension_numbers = #tpu.dot_dimension_numbers<[1], [0], [0], [1], [0, 0, 1, 1], [], []>} : vector<8x8xbf16>, vector<8x16xbf16>, vector<8x16xf32> -> vector<8x16xf32>
    %c32_256 = arith.constant 32 : index
    %c0_257 = arith.constant 0 : index
    %977 = vector.load %arg4[%c32_256, %c0_257] : memref<80x32xf32, #tpu.memory_space<vmem>>, vector<1x16xf32>
    %978 = vector.broadcast %977 : vector<1x16xf32> to vector<8x16xf32>
    %979 = arith.addf %976, %978 : vector<8x16xf32>
    %980 = arith.addf %973, %979 : vector<8x16xf32>
    %981 = arith.truncf %980 : vector<8x16xf32> to vector<8x16xbf16>
    %982 = vector.extract_strided_slice %981 {offsets = [6, 0], sizes = [2, 16], strides = [1, 1]} : vector<8x16xbf16> to vector<2x16xbf16>
    %983 = vector.extract_strided_slice %981 {offsets = [0, 0], sizes = [6, 16], strides = [1, 1]} : vector<8x16xbf16> to vector<6x16xbf16>
    %984 = tpu.concatenate %982, %983 in 0 : vector<2x16xbf16>, vector<6x16xbf16> -> vector<8x16xbf16>
    %985 = vector.broadcast %696 : vector<8x1xbf16> to vector<8x16xbf16>
    %986 = arith.mulf %984, %985 : vector<8x16xbf16>
    %987 = vector.extract_strided_slice %981 {offsets = [7, 0], sizes = [1, 16], strides = [1, 1]} : vector<8x16xbf16> to vector<1x16xbf16>
    %988 = vector.extract_strided_slice %981 {offsets = [0, 0], sizes = [7, 16], strides = [1, 1]} : vector<8x16xbf16> to vector<7x16xbf16>
    %989 = tpu.concatenate %987, %988 in 0 : vector<1x16xbf16>, vector<7x16xbf16> -> vector<8x16xbf16>
    %990 = vector.broadcast %716 : vector<8x1xbf16> to vector<8x16xbf16>
    %991 = arith.mulf %989, %990 : vector<8x16xbf16>
    %992 = vector.extract_strided_slice %981 {offsets = [1, 0], sizes = [7, 16], strides = [1, 1]} : vector<8x16xbf16> to vector<7x16xbf16>
    %993 = vector.extract_strided_slice %981 {offsets = [0, 0], sizes = [1, 16], strides = [1, 1]} : vector<8x16xbf16> to vector<1x16xbf16>
    %994 = tpu.concatenate %992, %993 in 0 : vector<7x16xbf16>, vector<1x16xbf16> -> vector<8x16xbf16>
    %995 = vector.broadcast %736 : vector<8x1xbf16> to vector<8x16xbf16>
    %996 = arith.mulf %994, %995 : vector<8x16xbf16>
    %997 = vector.extract_strided_slice %981 {offsets = [2, 0], sizes = [6, 16], strides = [1, 1]} : vector<8x16xbf16> to vector<6x16xbf16>
    %998 = vector.extract_strided_slice %981 {offsets = [0, 0], sizes = [2, 16], strides = [1, 1]} : vector<8x16xbf16> to vector<2x16xbf16>
    %999 = tpu.concatenate %997, %998 in 0 : vector<6x16xbf16>, vector<2x16xbf16> -> vector<8x16xbf16>
    %1000 = vector.broadcast %756 : vector<8x1xbf16> to vector<8x16xbf16>
    %1001 = arith.mulf %999, %1000 : vector<8x16xbf16>
    %1002 = tpu.concatenate %986, %991, %981, %996, %1001 in 1 : vector<8x16xbf16>, vector<8x16xbf16>, vector<8x16xbf16>, vector<8x16xbf16>, vector<8x16xbf16> -> vector<8x80xbf16>
    %c464 = arith.constant 464 : index
    %c0_258 = arith.constant 0 : index
    %1003 = vector.load %arg3[%c464, %c0_258] : memref<1376x32xbf16, #tpu.memory_space<vmem>>, vector<80x16xbf16>
    %cst_259 = arith.constant dense<0.000000e+00> : vector<8x16xf32>
    %1004 = tpu.matmul %1002, %1003, %cst_259 {dimension_numbers = #tpu.dot_dimension_numbers<[1], [0], [0], [1], [0, 0, 1, 1], [], []>} : vector<8x80xbf16>, vector<80x16xbf16>, vector<8x16xf32> -> vector<8x16xf32>
    %c33 = arith.constant 33 : index
    %c0_260 = arith.constant 0 : index
    %1005 = vector.load %arg4[%c33, %c0_260] : memref<80x32xf32, #tpu.memory_space<vmem>>, vector<1x16xf32>
    %1006 = vector.broadcast %1005 : vector<1x16xf32> to vector<8x16xf32>
    %1007 = arith.addf %1004, %1006 : vector<8x16xf32>
    %1008 = vector.extract_strided_slice %1007 {offsets = [0, 0], sizes = [4, 16], strides = [1, 1]} : vector<8x16xf32> to vector<4x16xf32>
    %cst_261 = arith.constant dense<0.000000e+00> : vector<16xf32>
    %1009 = vector.multi_reduction <add>, %1008, %cst_261 [0] : vector<4x16xf32> to vector<16xf32>
    %1010 = vector.shape_cast %1009 : vector<16xf32> to vector<1x16xf32>
    %1011 = arith.mulf %1008, %1008 : vector<4x16xf32>
    %cst_262 = arith.constant dense<0.000000e+00> : vector<16xf32>
    %1012 = vector.multi_reduction <add>, %1011, %cst_262 [0] : vector<4x16xf32> to vector<16xf32>
    %1013 = vector.shape_cast %1012 : vector<16xf32> to vector<1x16xf32>
    %1014 = vector.extract_strided_slice %1007 {offsets = [4, 0], sizes = [4, 16], strides = [1, 1]} : vector<8x16xf32> to vector<4x16xf32>
    %cst_263 = arith.constant dense<0.000000e+00> : vector<16xf32>
    %1015 = vector.multi_reduction <add>, %1014, %cst_263 [0] : vector<4x16xf32> to vector<16xf32>
    %1016 = vector.shape_cast %1015 : vector<16xf32> to vector<1x16xf32>
    %1017 = arith.mulf %1014, %1014 : vector<4x16xf32>
    %cst_264 = arith.constant dense<0.000000e+00> : vector<16xf32>
    %1018 = vector.multi_reduction <add>, %1017, %cst_264 [0] : vector<4x16xf32> to vector<16xf32>
    %1019 = vector.shape_cast %1018 : vector<16xf32> to vector<1x16xf32>
    %1020 = tpu.concatenate %1010, %1013, %1016, %1019 in 0 : vector<1x16xf32>, vector<1x16xf32>, vector<1x16xf32>, vector<1x16xf32> -> vector<4x16xf32>
    %1021 = vector.extract_strided_slice %1020 {offsets = [0, 1], sizes = [4, 15], strides = [1, 1]} : vector<4x16xf32> to vector<4x15xf32>
    %1022 = vector.extract_strided_slice %1020 {offsets = [0, 0], sizes = [4, 1], strides = [1, 1]} : vector<4x16xf32> to vector<4x1xf32>
    %1023 = tpu.concatenate %1021, %1022 in 1 : vector<4x15xf32>, vector<4x1xf32> -> vector<4x16xf32>
    %1024 = vector.extract_strided_slice %1020 {offsets = [0, 15], sizes = [4, 1], strides = [1, 1]} : vector<4x16xf32> to vector<4x1xf32>
    %1025 = vector.extract_strided_slice %1020 {offsets = [0, 0], sizes = [4, 15], strides = [1, 1]} : vector<4x16xf32> to vector<4x15xf32>
    %1026 = tpu.concatenate %1024, %1025 in 1 : vector<4x1xf32>, vector<4x15xf32> -> vector<4x16xf32>
    %c0_i32_265 = arith.constant 0 : i32
    %1027 = vector.broadcast %c0_i32_265 : i32 to vector<1x16xi32>
    %1028 = arith.shrsi %778, %1027 : vector<1x16xi32>
    %c1_i32_266 = arith.constant 1 : i32
    %1029 = vector.broadcast %c1_i32_266 : i32 to vector<1x16xi32>
    %1030 = arith.andi %1028, %1029 : vector<1x16xi32>
    %c0_i32_267 = arith.constant 0 : i32
    %1031 = vector.broadcast %c0_i32_267 : i32 to vector<1x16xi32>
    %1032 = arith.cmpi eq, %1030, %1031 : vector<1x16xi32>
    %1033 = vector.shape_cast %1032 : vector<1x16xi1> to vector<1x16xi1>
    %1034 = vector.broadcast %1033 : vector<1x16xi1> to vector<4x16xi1>
    %1035 = arith.select %1034, %1023, %1026 : vector<4x16xi1>, vector<4x16xf32>
    %1036 = arith.addf %1020, %1035 : vector<4x16xf32>
    %1037 = vector.extract_strided_slice %1036 {offsets = [0, 0], sizes = [1, 16], strides = [1, 1]} : vector<4x16xf32> to vector<1x16xf32>
    %cst_268 = arith.constant 8.000000e+00 : f32
    %1038 = vector.broadcast %cst_268 : f32 to vector<1x16xf32>
    %1039 = arith.divf %1037, %1038 : vector<1x16xf32>
    %1040 = vector.extract_strided_slice %1036 {offsets = [1, 0], sizes = [1, 16], strides = [1, 1]} : vector<4x16xf32> to vector<1x16xf32>
    %cst_269 = arith.constant 8.000000e+00 : f32
    %1041 = vector.broadcast %cst_269 : f32 to vector<1x16xf32>
    %1042 = arith.divf %1040, %1041 : vector<1x16xf32>
    %1043 = arith.mulf %1039, %1039 : vector<1x16xf32>
    %1044 = arith.subf %1042, %1043 : vector<1x16xf32>
    %cst_270 = arith.constant 9.99999974E-6 : f32
    %1045 = vector.broadcast %cst_270 : f32 to vector<1x16xf32>
    %1046 = arith.addf %1044, %1045 : vector<1x16xf32>
    %1047 = math.rsqrt %1046 : vector<1x16xf32>
    %1048 = vector.extract_strided_slice %1036 {offsets = [2, 0], sizes = [1, 16], strides = [1, 1]} : vector<4x16xf32> to vector<1x16xf32>
    %cst_271 = arith.constant 8.000000e+00 : f32
    %1049 = vector.broadcast %cst_271 : f32 to vector<1x16xf32>
    %1050 = arith.divf %1048, %1049 : vector<1x16xf32>
    %1051 = vector.extract_strided_slice %1036 {offsets = [3, 0], sizes = [1, 16], strides = [1, 1]} : vector<4x16xf32> to vector<1x16xf32>
    %cst_272 = arith.constant 8.000000e+00 : f32
    %1052 = vector.broadcast %cst_272 : f32 to vector<1x16xf32>
    %1053 = arith.divf %1051, %1052 : vector<1x16xf32>
    %1054 = arith.mulf %1050, %1050 : vector<1x16xf32>
    %1055 = arith.subf %1053, %1054 : vector<1x16xf32>
    %cst_273 = arith.constant 9.99999974E-6 : f32
    %1056 = vector.broadcast %cst_273 : f32 to vector<1x16xf32>
    %1057 = arith.addf %1055, %1056 : vector<1x16xf32>
    %1058 = math.rsqrt %1057 : vector<1x16xf32>
    %c4_i32_274 = arith.constant 4 : i32
    %1059 = vector.broadcast %c4_i32_274 : i32 to vector<8x1xi32>
    %1060 = arith.cmpi sge, %666, %1059 : vector<8x1xi32>
    %1061 = vector.shape_cast %1060 : vector<8x1xi1> to vector<8x1xi1>
    %1062 = vector.broadcast %1061 : vector<8x1xi1> to vector<8x16xi1>
    %1063 = vector.shape_cast %1050 : vector<1x16xf32> to vector<1x16xf32>
    %1064 = vector.broadcast %1063 : vector<1x16xf32> to vector<8x16xf32>
    %1065 = vector.shape_cast %1039 : vector<1x16xf32> to vector<1x16xf32>
    %1066 = vector.broadcast %1065 : vector<1x16xf32> to vector<8x16xf32>
    %1067 = arith.select %1062, %1064, %1066 : vector<8x16xi1>, vector<8x16xf32>
    %1068 = vector.shape_cast %1060 : vector<8x1xi1> to vector<8x1xi1>
    %1069 = vector.broadcast %1068 : vector<8x1xi1> to vector<8x16xi1>
    %1070 = vector.shape_cast %1058 : vector<1x16xf32> to vector<1x16xf32>
    %1071 = vector.broadcast %1070 : vector<1x16xf32> to vector<8x16xf32>
    %1072 = vector.shape_cast %1047 : vector<1x16xf32> to vector<1x16xf32>
    %1073 = vector.broadcast %1072 : vector<1x16xf32> to vector<8x16xf32>
    %1074 = arith.select %1069, %1071, %1073 : vector<8x16xi1>, vector<8x16xf32>
    %1075 = arith.subf %1007, %1067 : vector<8x16xf32>
    %1076 = arith.mulf %1075, %1074 : vector<8x16xf32>
    %c34 = arith.constant 34 : index
    %c0_275 = arith.constant 0 : index
    %1077 = vector.load %arg4[%c34, %c0_275] : memref<80x32xf32, #tpu.memory_space<vmem>>, vector<1x16xf32>
    %1078 = vector.broadcast %1077 : vector<1x16xf32> to vector<8x16xf32>
    %1079 = arith.mulf %1076, %1078 : vector<8x16xf32>
    %c35 = arith.constant 35 : index
    %c0_276 = arith.constant 0 : index
    %1080 = vector.load %arg4[%c35, %c0_276] : memref<80x32xf32, #tpu.memory_space<vmem>>, vector<1x16xf32>
    %1081 = vector.broadcast %1080 : vector<1x16xf32> to vector<8x16xf32>
    %1082 = arith.addf %1079, %1081 : vector<8x16xf32>
    %cst_277 = arith.constant 0.000000e+00 : f32
    %1083 = vector.broadcast %cst_277 : f32 to vector<8x16xf32>
    %1084 = arith.maximumf %1082, %1083 : vector<8x16xf32>
    %1085 = math.absf %1082 : vector<8x16xf32>
    %cst_278 = arith.constant 0.000000e+00 : f32
    %1086 = vector.broadcast %cst_278 : f32 to vector<8x16xf32>
    %1087 = arith.subf %1086, %1085 : vector<8x16xf32>
    %1088 = math.exp %1087 : vector<8x16xf32>
    %cst_279 = arith.constant 1.000000e+00 : f32
    %1089 = vector.broadcast %cst_279 : f32 to vector<8x16xf32>
    %1090 = arith.addf %1089, %1088 : vector<8x16xf32>
    %1091 = math.log %1090 : vector<8x16xf32>
    %1092 = arith.addf %1084, %1091 : vector<8x16xf32>
    %1093 = math.tanh %1092 : vector<8x16xf32>
    %1094 = arith.mulf %1082, %1093 : vector<8x16xf32>
    %1095 = arith.truncf %677 : vector<8x8xf32> to vector<8x8xbf16>
    %c624 = arith.constant 624 : index
    %c0_280 = arith.constant 0 : index
    %1096 = vector.load %arg3[%c624, %c0_280] : memref<1376x32xbf16, #tpu.memory_space<vmem>>, vector<8x16xbf16>
    %cst_281 = arith.constant dense<0.000000e+00> : vector<8x16xf32>
    %1097 = tpu.matmul %1095, %1096, %cst_281 {dimension_numbers = #tpu.dot_dimension_numbers<[1], [0], [0], [1], [0, 0, 1, 1], [], []>} : vector<8x8xbf16>, vector<8x16xbf16>, vector<8x16xf32> -> vector<8x16xf32>
    %c39 = arith.constant 39 : index
    %c0_282 = arith.constant 0 : index
    %1098 = vector.load %arg4[%c39, %c0_282] : memref<80x32xf32, #tpu.memory_space<vmem>>, vector<1x16xf32>
    %1099 = vector.broadcast %1098 : vector<1x16xf32> to vector<8x16xf32>
    %1100 = arith.addf %1097, %1099 : vector<8x16xf32>
    %1101 = arith.addf %1094, %1100 : vector<8x16xf32>
    %1102 = arith.truncf %1101 : vector<8x16xf32> to vector<8x16xbf16>
    %1103 = vector.extract_strided_slice %1102 {offsets = [6, 0], sizes = [2, 16], strides = [1, 1]} : vector<8x16xbf16> to vector<2x16xbf16>
    %1104 = vector.extract_strided_slice %1102 {offsets = [0, 0], sizes = [6, 16], strides = [1, 1]} : vector<8x16xbf16> to vector<6x16xbf16>
    %1105 = tpu.concatenate %1103, %1104 in 0 : vector<2x16xbf16>, vector<6x16xbf16> -> vector<8x16xbf16>
    %1106 = vector.broadcast %696 : vector<8x1xbf16> to vector<8x16xbf16>
    %1107 = arith.mulf %1105, %1106 : vector<8x16xbf16>
    %1108 = vector.extract_strided_slice %1102 {offsets = [7, 0], sizes = [1, 16], strides = [1, 1]} : vector<8x16xbf16> to vector<1x16xbf16>
    %1109 = vector.extract_strided_slice %1102 {offsets = [0, 0], sizes = [7, 16], strides = [1, 1]} : vector<8x16xbf16> to vector<7x16xbf16>
    %1110 = tpu.concatenate %1108, %1109 in 0 : vector<1x16xbf16>, vector<7x16xbf16> -> vector<8x16xbf16>
    %1111 = vector.broadcast %716 : vector<8x1xbf16> to vector<8x16xbf16>
    %1112 = arith.mulf %1110, %1111 : vector<8x16xbf16>
    %1113 = vector.extract_strided_slice %1102 {offsets = [1, 0], sizes = [7, 16], strides = [1, 1]} : vector<8x16xbf16> to vector<7x16xbf16>
    %1114 = vector.extract_strided_slice %1102 {offsets = [0, 0], sizes = [1, 16], strides = [1, 1]} : vector<8x16xbf16> to vector<1x16xbf16>
    %1115 = tpu.concatenate %1113, %1114 in 0 : vector<7x16xbf16>, vector<1x16xbf16> -> vector<8x16xbf16>
    %1116 = vector.broadcast %736 : vector<8x1xbf16> to vector<8x16xbf16>
    %1117 = arith.mulf %1115, %1116 : vector<8x16xbf16>
    %1118 = vector.extract_strided_slice %1102 {offsets = [2, 0], sizes = [6, 16], strides = [1, 1]} : vector<8x16xbf16> to vector<6x16xbf16>
    %1119 = vector.extract_strided_slice %1102 {offsets = [0, 0], sizes = [2, 16], strides = [1, 1]} : vector<8x16xbf16> to vector<2x16xbf16>
    %1120 = tpu.concatenate %1118, %1119 in 0 : vector<6x16xbf16>, vector<2x16xbf16> -> vector<8x16xbf16>
    %1121 = vector.broadcast %756 : vector<8x1xbf16> to vector<8x16xbf16>
    %1122 = arith.mulf %1120, %1121 : vector<8x16xbf16>
    %1123 = tpu.concatenate %1107, %1112, %1102, %1117, %1122 in 1 : vector<8x16xbf16>, vector<8x16xbf16>, vector<8x16xbf16>, vector<8x16xbf16>, vector<8x16xbf16> -> vector<8x80xbf16>
    %c544 = arith.constant 544 : index
    %c0_283 = arith.constant 0 : index
    %1124 = vector.load %arg3[%c544, %c0_283] : memref<1376x32xbf16, #tpu.memory_space<vmem>>, vector<80x16xbf16>
    %cst_284 = arith.constant dense<0.000000e+00> : vector<8x16xf32>
    %1125 = tpu.matmul %1123, %1124, %cst_284 {dimension_numbers = #tpu.dot_dimension_numbers<[1], [0], [0], [1], [0, 0, 1, 1], [], []>} : vector<8x80xbf16>, vector<80x16xbf16>, vector<8x16xf32> -> vector<8x16xf32>
    %c36 = arith.constant 36 : index
    %c0_285 = arith.constant 0 : index
    %1126 = vector.load %arg4[%c36, %c0_285] : memref<80x32xf32, #tpu.memory_space<vmem>>, vector<1x16xf32>
    %1127 = vector.broadcast %1126 : vector<1x16xf32> to vector<8x16xf32>
    %1128 = arith.addf %1125, %1127 : vector<8x16xf32>
    %1129 = vector.extract_strided_slice %1128 {offsets = [0, 0], sizes = [4, 16], strides = [1, 1]} : vector<8x16xf32> to vector<4x16xf32>
    %cst_286 = arith.constant dense<0.000000e+00> : vector<16xf32>
    %1130 = vector.multi_reduction <add>, %1129, %cst_286 [0] : vector<4x16xf32> to vector<16xf32>
    %1131 = vector.shape_cast %1130 : vector<16xf32> to vector<1x16xf32>
    %1132 = arith.mulf %1129, %1129 : vector<4x16xf32>
    %cst_287 = arith.constant dense<0.000000e+00> : vector<16xf32>
    %1133 = vector.multi_reduction <add>, %1132, %cst_287 [0] : vector<4x16xf32> to vector<16xf32>
    %1134 = vector.shape_cast %1133 : vector<16xf32> to vector<1x16xf32>
    %1135 = vector.extract_strided_slice %1128 {offsets = [4, 0], sizes = [4, 16], strides = [1, 1]} : vector<8x16xf32> to vector<4x16xf32>
    %cst_288 = arith.constant dense<0.000000e+00> : vector<16xf32>
    %1136 = vector.multi_reduction <add>, %1135, %cst_288 [0] : vector<4x16xf32> to vector<16xf32>
    %1137 = vector.shape_cast %1136 : vector<16xf32> to vector<1x16xf32>
    %1138 = arith.mulf %1135, %1135 : vector<4x16xf32>
    %cst_289 = arith.constant dense<0.000000e+00> : vector<16xf32>
    %1139 = vector.multi_reduction <add>, %1138, %cst_289 [0] : vector<4x16xf32> to vector<16xf32>
    %1140 = vector.shape_cast %1139 : vector<16xf32> to vector<1x16xf32>
    %1141 = tpu.concatenate %1131, %1134, %1137, %1140 in 0 : vector<1x16xf32>, vector<1x16xf32>, vector<1x16xf32>, vector<1x16xf32> -> vector<4x16xf32>
    %1142 = vector.extract_strided_slice %1141 {offsets = [0, 1], sizes = [4, 15], strides = [1, 1]} : vector<4x16xf32> to vector<4x15xf32>
    %1143 = vector.extract_strided_slice %1141 {offsets = [0, 0], sizes = [4, 1], strides = [1, 1]} : vector<4x16xf32> to vector<4x1xf32>
    %1144 = tpu.concatenate %1142, %1143 in 1 : vector<4x15xf32>, vector<4x1xf32> -> vector<4x16xf32>
    %1145 = vector.extract_strided_slice %1141 {offsets = [0, 15], sizes = [4, 1], strides = [1, 1]} : vector<4x16xf32> to vector<4x1xf32>
    %1146 = vector.extract_strided_slice %1141 {offsets = [0, 0], sizes = [4, 15], strides = [1, 1]} : vector<4x16xf32> to vector<4x15xf32>
    %1147 = tpu.concatenate %1145, %1146 in 1 : vector<4x1xf32>, vector<4x15xf32> -> vector<4x16xf32>
    %c0_i32_290 = arith.constant 0 : i32
    %1148 = vector.broadcast %c0_i32_290 : i32 to vector<1x16xi32>
    %1149 = arith.shrsi %778, %1148 : vector<1x16xi32>
    %c1_i32_291 = arith.constant 1 : i32
    %1150 = vector.broadcast %c1_i32_291 : i32 to vector<1x16xi32>
    %1151 = arith.andi %1149, %1150 : vector<1x16xi32>
    %c0_i32_292 = arith.constant 0 : i32
    %1152 = vector.broadcast %c0_i32_292 : i32 to vector<1x16xi32>
    %1153 = arith.cmpi eq, %1151, %1152 : vector<1x16xi32>
    %1154 = vector.shape_cast %1153 : vector<1x16xi1> to vector<1x16xi1>
    %1155 = vector.broadcast %1154 : vector<1x16xi1> to vector<4x16xi1>
    %1156 = arith.select %1155, %1144, %1147 : vector<4x16xi1>, vector<4x16xf32>
    %1157 = arith.addf %1141, %1156 : vector<4x16xf32>
    %1158 = vector.extract_strided_slice %1157 {offsets = [0, 0], sizes = [1, 16], strides = [1, 1]} : vector<4x16xf32> to vector<1x16xf32>
    %cst_293 = arith.constant 8.000000e+00 : f32
    %1159 = vector.broadcast %cst_293 : f32 to vector<1x16xf32>
    %1160 = arith.divf %1158, %1159 : vector<1x16xf32>
    %1161 = vector.extract_strided_slice %1157 {offsets = [1, 0], sizes = [1, 16], strides = [1, 1]} : vector<4x16xf32> to vector<1x16xf32>
    %cst_294 = arith.constant 8.000000e+00 : f32
    %1162 = vector.broadcast %cst_294 : f32 to vector<1x16xf32>
    %1163 = arith.divf %1161, %1162 : vector<1x16xf32>
    %1164 = arith.mulf %1160, %1160 : vector<1x16xf32>
    %1165 = arith.subf %1163, %1164 : vector<1x16xf32>
    %cst_295 = arith.constant 9.99999974E-6 : f32
    %1166 = vector.broadcast %cst_295 : f32 to vector<1x16xf32>
    %1167 = arith.addf %1165, %1166 : vector<1x16xf32>
    %1168 = math.rsqrt %1167 : vector<1x16xf32>
    %1169 = vector.extract_strided_slice %1157 {offsets = [2, 0], sizes = [1, 16], strides = [1, 1]} : vector<4x16xf32> to vector<1x16xf32>
    %cst_296 = arith.constant 8.000000e+00 : f32
    %1170 = vector.broadcast %cst_296 : f32 to vector<1x16xf32>
    %1171 = arith.divf %1169, %1170 : vector<1x16xf32>
    %1172 = vector.extract_strided_slice %1157 {offsets = [3, 0], sizes = [1, 16], strides = [1, 1]} : vector<4x16xf32> to vector<1x16xf32>
    %cst_297 = arith.constant 8.000000e+00 : f32
    %1173 = vector.broadcast %cst_297 : f32 to vector<1x16xf32>
    %1174 = arith.divf %1172, %1173 : vector<1x16xf32>
    %1175 = arith.mulf %1171, %1171 : vector<1x16xf32>
    %1176 = arith.subf %1174, %1175 : vector<1x16xf32>
    %cst_298 = arith.constant 9.99999974E-6 : f32
    %1177 = vector.broadcast %cst_298 : f32 to vector<1x16xf32>
    %1178 = arith.addf %1176, %1177 : vector<1x16xf32>
    %1179 = math.rsqrt %1178 : vector<1x16xf32>
    %c4_i32_299 = arith.constant 4 : i32
    %1180 = vector.broadcast %c4_i32_299 : i32 to vector<8x1xi32>
    %1181 = arith.cmpi sge, %666, %1180 : vector<8x1xi32>
    %1182 = vector.shape_cast %1181 : vector<8x1xi1> to vector<8x1xi1>
    %1183 = vector.broadcast %1182 : vector<8x1xi1> to vector<8x16xi1>
    %1184 = vector.shape_cast %1171 : vector<1x16xf32> to vector<1x16xf32>
    %1185 = vector.broadcast %1184 : vector<1x16xf32> to vector<8x16xf32>
    %1186 = vector.shape_cast %1160 : vector<1x16xf32> to vector<1x16xf32>
    %1187 = vector.broadcast %1186 : vector<1x16xf32> to vector<8x16xf32>
    %1188 = arith.select %1183, %1185, %1187 : vector<8x16xi1>, vector<8x16xf32>
    %1189 = vector.shape_cast %1181 : vector<8x1xi1> to vector<8x1xi1>
    %1190 = vector.broadcast %1189 : vector<8x1xi1> to vector<8x16xi1>
    %1191 = vector.shape_cast %1179 : vector<1x16xf32> to vector<1x16xf32>
    %1192 = vector.broadcast %1191 : vector<1x16xf32> to vector<8x16xf32>
    %1193 = vector.shape_cast %1168 : vector<1x16xf32> to vector<1x16xf32>
    %1194 = vector.broadcast %1193 : vector<1x16xf32> to vector<8x16xf32>
    %1195 = arith.select %1190, %1192, %1194 : vector<8x16xi1>, vector<8x16xf32>
    %1196 = arith.subf %1128, %1188 : vector<8x16xf32>
    %1197 = arith.mulf %1196, %1195 : vector<8x16xf32>
    %c37 = arith.constant 37 : index
    %c0_300 = arith.constant 0 : index
    %1198 = vector.load %arg4[%c37, %c0_300] : memref<80x32xf32, #tpu.memory_space<vmem>>, vector<1x16xf32>
    %1199 = vector.broadcast %1198 : vector<1x16xf32> to vector<8x16xf32>
    %1200 = arith.mulf %1197, %1199 : vector<8x16xf32>
    %c38 = arith.constant 38 : index
    %c0_301 = arith.constant 0 : index
    %1201 = vector.load %arg4[%c38, %c0_301] : memref<80x32xf32, #tpu.memory_space<vmem>>, vector<1x16xf32>
    %1202 = vector.broadcast %1201 : vector<1x16xf32> to vector<8x16xf32>
    %1203 = arith.addf %1200, %1202 : vector<8x16xf32>
    %cst_302 = arith.constant 0.000000e+00 : f32
    %1204 = vector.broadcast %cst_302 : f32 to vector<8x16xf32>
    %1205 = arith.maximumf %1203, %1204 : vector<8x16xf32>
    %1206 = math.absf %1203 : vector<8x16xf32>
    %cst_303 = arith.constant 0.000000e+00 : f32
    %1207 = vector.broadcast %cst_303 : f32 to vector<8x16xf32>
    %1208 = arith.subf %1207, %1206 : vector<8x16xf32>
    %1209 = math.exp %1208 : vector<8x16xf32>
    %cst_304 = arith.constant 1.000000e+00 : f32
    %1210 = vector.broadcast %cst_304 : f32 to vector<8x16xf32>
    %1211 = arith.addf %1210, %1209 : vector<8x16xf32>
    %1212 = math.log %1211 : vector<8x16xf32>
    %1213 = arith.addf %1205, %1212 : vector<8x16xf32>
    %1214 = math.tanh %1213 : vector<8x16xf32>
    %1215 = arith.mulf %1203, %1214 : vector<8x16xf32>
    %1216 = arith.addf %1215, %980 : vector<8x16xf32>
    %1217 = arith.truncf %1216 : vector<8x16xf32> to vector<8x16xbf16>
    %1218 = vector.extract_strided_slice %1217 {offsets = [6, 0], sizes = [2, 16], strides = [1, 1]} : vector<8x16xbf16> to vector<2x16xbf16>
    %1219 = vector.extract_strided_slice %1217 {offsets = [0, 0], sizes = [6, 16], strides = [1, 1]} : vector<8x16xbf16> to vector<6x16xbf16>
    %1220 = tpu.concatenate %1218, %1219 in 0 : vector<2x16xbf16>, vector<6x16xbf16> -> vector<8x16xbf16>
    %1221 = vector.broadcast %696 : vector<8x1xbf16> to vector<8x16xbf16>
    %1222 = arith.mulf %1220, %1221 : vector<8x16xbf16>
    %1223 = vector.extract_strided_slice %1217 {offsets = [7, 0], sizes = [1, 16], strides = [1, 1]} : vector<8x16xbf16> to vector<1x16xbf16>
    %1224 = vector.extract_strided_slice %1217 {offsets = [0, 0], sizes = [7, 16], strides = [1, 1]} : vector<8x16xbf16> to vector<7x16xbf16>
    %1225 = tpu.concatenate %1223, %1224 in 0 : vector<1x16xbf16>, vector<7x16xbf16> -> vector<8x16xbf16>
    %1226 = vector.broadcast %716 : vector<8x1xbf16> to vector<8x16xbf16>
    %1227 = arith.mulf %1225, %1226 : vector<8x16xbf16>
    %1228 = vector.extract_strided_slice %1217 {offsets = [1, 0], sizes = [7, 16], strides = [1, 1]} : vector<8x16xbf16> to vector<7x16xbf16>
    %1229 = vector.extract_strided_slice %1217 {offsets = [0, 0], sizes = [1, 16], strides = [1, 1]} : vector<8x16xbf16> to vector<1x16xbf16>
    %1230 = tpu.concatenate %1228, %1229 in 0 : vector<7x16xbf16>, vector<1x16xbf16> -> vector<8x16xbf16>
    %1231 = vector.broadcast %736 : vector<8x1xbf16> to vector<8x16xbf16>
    %1232 = arith.mulf %1230, %1231 : vector<8x16xbf16>
    %1233 = vector.extract_strided_slice %1217 {offsets = [2, 0], sizes = [6, 16], strides = [1, 1]} : vector<8x16xbf16> to vector<6x16xbf16>
    %1234 = vector.extract_strided_slice %1217 {offsets = [0, 0], sizes = [2, 16], strides = [1, 1]} : vector<8x16xbf16> to vector<2x16xbf16>
    %1235 = tpu.concatenate %1233, %1234 in 0 : vector<6x16xbf16>, vector<2x16xbf16> -> vector<8x16xbf16>
    %1236 = vector.broadcast %756 : vector<8x1xbf16> to vector<8x16xbf16>
    %1237 = arith.mulf %1235, %1236 : vector<8x16xbf16>
    %1238 = tpu.concatenate %1222, %1227, %1217, %1232, %1237 in 1 : vector<8x16xbf16>, vector<8x16xbf16>, vector<8x16xbf16>, vector<8x16xbf16>, vector<8x16xbf16> -> vector<8x80xbf16>
    %c632 = arith.constant 632 : index
    %c0_305 = arith.constant 0 : index
    %1239 = vector.load %arg3[%c632, %c0_305] : memref<1376x32xbf16, #tpu.memory_space<vmem>>, vector<80x16xbf16>
    %cst_306 = arith.constant dense<0.000000e+00> : vector<8x16xf32>
    %1240 = tpu.matmul %1238, %1239, %cst_306 {dimension_numbers = #tpu.dot_dimension_numbers<[1], [0], [0], [1], [0, 0, 1, 1], [], []>} : vector<8x80xbf16>, vector<80x16xbf16>, vector<8x16xf32> -> vector<8x16xf32>
    %c40 = arith.constant 40 : index
    %c0_307 = arith.constant 0 : index
    %1241 = vector.load %arg4[%c40, %c0_307] : memref<80x32xf32, #tpu.memory_space<vmem>>, vector<1x16xf32>
    %1242 = vector.broadcast %1241 : vector<1x16xf32> to vector<8x16xf32>
    %1243 = arith.addf %1240, %1242 : vector<8x16xf32>
    %1244 = vector.extract_strided_slice %1243 {offsets = [0, 0], sizes = [4, 16], strides = [1, 1]} : vector<8x16xf32> to vector<4x16xf32>
    %cst_308 = arith.constant dense<0.000000e+00> : vector<16xf32>
    %1245 = vector.multi_reduction <add>, %1244, %cst_308 [0] : vector<4x16xf32> to vector<16xf32>
    %1246 = vector.shape_cast %1245 : vector<16xf32> to vector<1x16xf32>
    %1247 = arith.mulf %1244, %1244 : vector<4x16xf32>
    %cst_309 = arith.constant dense<0.000000e+00> : vector<16xf32>
    %1248 = vector.multi_reduction <add>, %1247, %cst_309 [0] : vector<4x16xf32> to vector<16xf32>
    %1249 = vector.shape_cast %1248 : vector<16xf32> to vector<1x16xf32>
    %1250 = vector.extract_strided_slice %1243 {offsets = [4, 0], sizes = [4, 16], strides = [1, 1]} : vector<8x16xf32> to vector<4x16xf32>
    %cst_310 = arith.constant dense<0.000000e+00> : vector<16xf32>
    %1251 = vector.multi_reduction <add>, %1250, %cst_310 [0] : vector<4x16xf32> to vector<16xf32>
    %1252 = vector.shape_cast %1251 : vector<16xf32> to vector<1x16xf32>
    %1253 = arith.mulf %1250, %1250 : vector<4x16xf32>
    %cst_311 = arith.constant dense<0.000000e+00> : vector<16xf32>
    %1254 = vector.multi_reduction <add>, %1253, %cst_311 [0] : vector<4x16xf32> to vector<16xf32>
    %1255 = vector.shape_cast %1254 : vector<16xf32> to vector<1x16xf32>
    %1256 = tpu.concatenate %1246, %1249, %1252, %1255 in 0 : vector<1x16xf32>, vector<1x16xf32>, vector<1x16xf32>, vector<1x16xf32> -> vector<4x16xf32>
    %1257 = vector.extract_strided_slice %1256 {offsets = [0, 1], sizes = [4, 15], strides = [1, 1]} : vector<4x16xf32> to vector<4x15xf32>
    %1258 = vector.extract_strided_slice %1256 {offsets = [0, 0], sizes = [4, 1], strides = [1, 1]} : vector<4x16xf32> to vector<4x1xf32>
    %1259 = tpu.concatenate %1257, %1258 in 1 : vector<4x15xf32>, vector<4x1xf32> -> vector<4x16xf32>
    %1260 = vector.extract_strided_slice %1256 {offsets = [0, 15], sizes = [4, 1], strides = [1, 1]} : vector<4x16xf32> to vector<4x1xf32>
    %1261 = vector.extract_strided_slice %1256 {offsets = [0, 0], sizes = [4, 15], strides = [1, 1]} : vector<4x16xf32> to vector<4x15xf32>
    %1262 = tpu.concatenate %1260, %1261 in 1 : vector<4x1xf32>, vector<4x15xf32> -> vector<4x16xf32>
    %c0_i32_312 = arith.constant 0 : i32
    %1263 = vector.broadcast %c0_i32_312 : i32 to vector<1x16xi32>
    %1264 = arith.shrsi %778, %1263 : vector<1x16xi32>
    %c1_i32_313 = arith.constant 1 : i32
    %1265 = vector.broadcast %c1_i32_313 : i32 to vector<1x16xi32>
    %1266 = arith.andi %1264, %1265 : vector<1x16xi32>
    %c0_i32_314 = arith.constant 0 : i32
    %1267 = vector.broadcast %c0_i32_314 : i32 to vector<1x16xi32>
    %1268 = arith.cmpi eq, %1266, %1267 : vector<1x16xi32>
    %1269 = vector.shape_cast %1268 : vector<1x16xi1> to vector<1x16xi1>
    %1270 = vector.broadcast %1269 : vector<1x16xi1> to vector<4x16xi1>
    %1271 = arith.select %1270, %1259, %1262 : vector<4x16xi1>, vector<4x16xf32>
    %1272 = arith.addf %1256, %1271 : vector<4x16xf32>
    %1273 = vector.extract_strided_slice %1272 {offsets = [0, 0], sizes = [1, 16], strides = [1, 1]} : vector<4x16xf32> to vector<1x16xf32>
    %cst_315 = arith.constant 8.000000e+00 : f32
    %1274 = vector.broadcast %cst_315 : f32 to vector<1x16xf32>
    %1275 = arith.divf %1273, %1274 : vector<1x16xf32>
    %1276 = vector.extract_strided_slice %1272 {offsets = [1, 0], sizes = [1, 16], strides = [1, 1]} : vector<4x16xf32> to vector<1x16xf32>
    %cst_316 = arith.constant 8.000000e+00 : f32
    %1277 = vector.broadcast %cst_316 : f32 to vector<1x16xf32>
    %1278 = arith.divf %1276, %1277 : vector<1x16xf32>
    %1279 = arith.mulf %1275, %1275 : vector<1x16xf32>
    %1280 = arith.subf %1278, %1279 : vector<1x16xf32>
    %cst_317 = arith.constant 9.99999974E-6 : f32
    %1281 = vector.broadcast %cst_317 : f32 to vector<1x16xf32>
    %1282 = arith.addf %1280, %1281 : vector<1x16xf32>
    %1283 = math.rsqrt %1282 : vector<1x16xf32>
    %1284 = vector.extract_strided_slice %1272 {offsets = [2, 0], sizes = [1, 16], strides = [1, 1]} : vector<4x16xf32> to vector<1x16xf32>
    %cst_318 = arith.constant 8.000000e+00 : f32
    %1285 = vector.broadcast %cst_318 : f32 to vector<1x16xf32>
    %1286 = arith.divf %1284, %1285 : vector<1x16xf32>
    %1287 = vector.extract_strided_slice %1272 {offsets = [3, 0], sizes = [1, 16], strides = [1, 1]} : vector<4x16xf32> to vector<1x16xf32>
    %cst_319 = arith.constant 8.000000e+00 : f32
    %1288 = vector.broadcast %cst_319 : f32 to vector<1x16xf32>
    %1289 = arith.divf %1287, %1288 : vector<1x16xf32>
    %1290 = arith.mulf %1286, %1286 : vector<1x16xf32>
    %1291 = arith.subf %1289, %1290 : vector<1x16xf32>
    %cst_320 = arith.constant 9.99999974E-6 : f32
    %1292 = vector.broadcast %cst_320 : f32 to vector<1x16xf32>
    %1293 = arith.addf %1291, %1292 : vector<1x16xf32>
    %1294 = math.rsqrt %1293 : vector<1x16xf32>
    %c4_i32_321 = arith.constant 4 : i32
    %1295 = vector.broadcast %c4_i32_321 : i32 to vector<8x1xi32>
    %1296 = arith.cmpi sge, %666, %1295 : vector<8x1xi32>
    %1297 = vector.shape_cast %1296 : vector<8x1xi1> to vector<8x1xi1>
    %1298 = vector.broadcast %1297 : vector<8x1xi1> to vector<8x16xi1>
    %1299 = vector.shape_cast %1286 : vector<1x16xf32> to vector<1x16xf32>
    %1300 = vector.broadcast %1299 : vector<1x16xf32> to vector<8x16xf32>
    %1301 = vector.shape_cast %1275 : vector<1x16xf32> to vector<1x16xf32>
    %1302 = vector.broadcast %1301 : vector<1x16xf32> to vector<8x16xf32>
    %1303 = arith.select %1298, %1300, %1302 : vector<8x16xi1>, vector<8x16xf32>
    %1304 = vector.shape_cast %1296 : vector<8x1xi1> to vector<8x1xi1>
    %1305 = vector.broadcast %1304 : vector<8x1xi1> to vector<8x16xi1>
    %1306 = vector.shape_cast %1294 : vector<1x16xf32> to vector<1x16xf32>
    %1307 = vector.broadcast %1306 : vector<1x16xf32> to vector<8x16xf32>
    %1308 = vector.shape_cast %1283 : vector<1x16xf32> to vector<1x16xf32>
    %1309 = vector.broadcast %1308 : vector<1x16xf32> to vector<8x16xf32>
    %1310 = arith.select %1305, %1307, %1309 : vector<8x16xi1>, vector<8x16xf32>
    %1311 = arith.subf %1243, %1303 : vector<8x16xf32>
    %1312 = arith.mulf %1311, %1310 : vector<8x16xf32>
    %c41 = arith.constant 41 : index
    %c0_322 = arith.constant 0 : index
    %1313 = vector.load %arg4[%c41, %c0_322] : memref<80x32xf32, #tpu.memory_space<vmem>>, vector<1x16xf32>
    %1314 = vector.broadcast %1313 : vector<1x16xf32> to vector<8x16xf32>
    %1315 = arith.mulf %1312, %1314 : vector<8x16xf32>
    %c42 = arith.constant 42 : index
    %c0_323 = arith.constant 0 : index
    %1316 = vector.load %arg4[%c42, %c0_323] : memref<80x32xf32, #tpu.memory_space<vmem>>, vector<1x16xf32>
    %1317 = vector.broadcast %1316 : vector<1x16xf32> to vector<8x16xf32>
    %1318 = arith.addf %1315, %1317 : vector<8x16xf32>
    %cst_324 = arith.constant 0.000000e+00 : f32
    %1319 = vector.broadcast %cst_324 : f32 to vector<8x16xf32>
    %1320 = arith.maximumf %1318, %1319 : vector<8x16xf32>
    %1321 = math.absf %1318 : vector<8x16xf32>
    %cst_325 = arith.constant 0.000000e+00 : f32
    %1322 = vector.broadcast %cst_325 : f32 to vector<8x16xf32>
    %1323 = arith.subf %1322, %1321 : vector<8x16xf32>
    %1324 = math.exp %1323 : vector<8x16xf32>
    %cst_326 = arith.constant 1.000000e+00 : f32
    %1325 = vector.broadcast %cst_326 : f32 to vector<8x16xf32>
    %1326 = arith.addf %1325, %1324 : vector<8x16xf32>
    %1327 = math.log %1326 : vector<8x16xf32>
    %1328 = arith.addf %1320, %1327 : vector<8x16xf32>
    %1329 = math.tanh %1328 : vector<8x16xf32>
    %1330 = arith.mulf %1318, %1329 : vector<8x16xf32>
    %1331 = arith.truncf %677 : vector<8x8xf32> to vector<8x8xbf16>
    %c792 = arith.constant 792 : index
    %c0_327 = arith.constant 0 : index
    %1332 = vector.load %arg3[%c792, %c0_327] : memref<1376x32xbf16, #tpu.memory_space<vmem>>, vector<8x16xbf16>
    %cst_328 = arith.constant dense<0.000000e+00> : vector<8x16xf32>
    %1333 = tpu.matmul %1331, %1332, %cst_328 {dimension_numbers = #tpu.dot_dimension_numbers<[1], [0], [0], [1], [0, 0, 1, 1], [], []>} : vector<8x8xbf16>, vector<8x16xbf16>, vector<8x16xf32> -> vector<8x16xf32>
    %c46 = arith.constant 46 : index
    %c0_329 = arith.constant 0 : index
    %1334 = vector.load %arg4[%c46, %c0_329] : memref<80x32xf32, #tpu.memory_space<vmem>>, vector<1x16xf32>
    %1335 = vector.broadcast %1334 : vector<1x16xf32> to vector<8x16xf32>
    %1336 = arith.addf %1333, %1335 : vector<8x16xf32>
    %1337 = arith.addf %1330, %1336 : vector<8x16xf32>
    %1338 = arith.truncf %1337 : vector<8x16xf32> to vector<8x16xbf16>
    %1339 = vector.extract_strided_slice %1338 {offsets = [6, 0], sizes = [2, 16], strides = [1, 1]} : vector<8x16xbf16> to vector<2x16xbf16>
    %1340 = vector.extract_strided_slice %1338 {offsets = [0, 0], sizes = [6, 16], strides = [1, 1]} : vector<8x16xbf16> to vector<6x16xbf16>
    %1341 = tpu.concatenate %1339, %1340 in 0 : vector<2x16xbf16>, vector<6x16xbf16> -> vector<8x16xbf16>
    %1342 = vector.broadcast %696 : vector<8x1xbf16> to vector<8x16xbf16>
    %1343 = arith.mulf %1341, %1342 : vector<8x16xbf16>
    %1344 = vector.extract_strided_slice %1338 {offsets = [7, 0], sizes = [1, 16], strides = [1, 1]} : vector<8x16xbf16> to vector<1x16xbf16>
    %1345 = vector.extract_strided_slice %1338 {offsets = [0, 0], sizes = [7, 16], strides = [1, 1]} : vector<8x16xbf16> to vector<7x16xbf16>
    %1346 = tpu.concatenate %1344, %1345 in 0 : vector<1x16xbf16>, vector<7x16xbf16> -> vector<8x16xbf16>
    %1347 = vector.broadcast %716 : vector<8x1xbf16> to vector<8x16xbf16>
    %1348 = arith.mulf %1346, %1347 : vector<8x16xbf16>
    %1349 = vector.extract_strided_slice %1338 {offsets = [1, 0], sizes = [7, 16], strides = [1, 1]} : vector<8x16xbf16> to vector<7x16xbf16>
    %1350 = vector.extract_strided_slice %1338 {offsets = [0, 0], sizes = [1, 16], strides = [1, 1]} : vector<8x16xbf16> to vector<1x16xbf16>
    %1351 = tpu.concatenate %1349, %1350 in 0 : vector<7x16xbf16>, vector<1x16xbf16> -> vector<8x16xbf16>
    %1352 = vector.broadcast %736 : vector<8x1xbf16> to vector<8x16xbf16>
    %1353 = arith.mulf %1351, %1352 : vector<8x16xbf16>
    %1354 = vector.extract_strided_slice %1338 {offsets = [2, 0], sizes = [6, 16], strides = [1, 1]} : vector<8x16xbf16> to vector<6x16xbf16>
    %1355 = vector.extract_strided_slice %1338 {offsets = [0, 0], sizes = [2, 16], strides = [1, 1]} : vector<8x16xbf16> to vector<2x16xbf16>
    %1356 = tpu.concatenate %1354, %1355 in 0 : vector<6x16xbf16>, vector<2x16xbf16> -> vector<8x16xbf16>
    %1357 = vector.broadcast %756 : vector<8x1xbf16> to vector<8x16xbf16>
    %1358 = arith.mulf %1356, %1357 : vector<8x16xbf16>
    %1359 = tpu.concatenate %1343, %1348, %1338, %1353, %1358 in 1 : vector<8x16xbf16>, vector<8x16xbf16>, vector<8x16xbf16>, vector<8x16xbf16>, vector<8x16xbf16> -> vector<8x80xbf16>
    %c712 = arith.constant 712 : index
    %c0_330 = arith.constant 0 : index
    %1360 = vector.load %arg3[%c712, %c0_330] : memref<1376x32xbf16, #tpu.memory_space<vmem>>, vector<80x16xbf16>
    %cst_331 = arith.constant dense<0.000000e+00> : vector<8x16xf32>
    %1361 = tpu.matmul %1359, %1360, %cst_331 {dimension_numbers = #tpu.dot_dimension_numbers<[1], [0], [0], [1], [0, 0, 1, 1], [], []>} : vector<8x80xbf16>, vector<80x16xbf16>, vector<8x16xf32> -> vector<8x16xf32>
    %c43 = arith.constant 43 : index
    %c0_332 = arith.constant 0 : index
    %1362 = vector.load %arg4[%c43, %c0_332] : memref<80x32xf32, #tpu.memory_space<vmem>>, vector<1x16xf32>
    %1363 = vector.broadcast %1362 : vector<1x16xf32> to vector<8x16xf32>
    %1364 = arith.addf %1361, %1363 : vector<8x16xf32>
    %1365 = vector.extract_strided_slice %1364 {offsets = [0, 0], sizes = [4, 16], strides = [1, 1]} : vector<8x16xf32> to vector<4x16xf32>
    %cst_333 = arith.constant dense<0.000000e+00> : vector<16xf32>
    %1366 = vector.multi_reduction <add>, %1365, %cst_333 [0] : vector<4x16xf32> to vector<16xf32>
    %1367 = vector.shape_cast %1366 : vector<16xf32> to vector<1x16xf32>
    %1368 = arith.mulf %1365, %1365 : vector<4x16xf32>
    %cst_334 = arith.constant dense<0.000000e+00> : vector<16xf32>
    %1369 = vector.multi_reduction <add>, %1368, %cst_334 [0] : vector<4x16xf32> to vector<16xf32>
    %1370 = vector.shape_cast %1369 : vector<16xf32> to vector<1x16xf32>
    %1371 = vector.extract_strided_slice %1364 {offsets = [4, 0], sizes = [4, 16], strides = [1, 1]} : vector<8x16xf32> to vector<4x16xf32>
    %cst_335 = arith.constant dense<0.000000e+00> : vector<16xf32>
    %1372 = vector.multi_reduction <add>, %1371, %cst_335 [0] : vector<4x16xf32> to vector<16xf32>
    %1373 = vector.shape_cast %1372 : vector<16xf32> to vector<1x16xf32>
    %1374 = arith.mulf %1371, %1371 : vector<4x16xf32>
    %cst_336 = arith.constant dense<0.000000e+00> : vector<16xf32>
    %1375 = vector.multi_reduction <add>, %1374, %cst_336 [0] : vector<4x16xf32> to vector<16xf32>
    %1376 = vector.shape_cast %1375 : vector<16xf32> to vector<1x16xf32>
    %1377 = tpu.concatenate %1367, %1370, %1373, %1376 in 0 : vector<1x16xf32>, vector<1x16xf32>, vector<1x16xf32>, vector<1x16xf32> -> vector<4x16xf32>
    %1378 = vector.extract_strided_slice %1377 {offsets = [0, 1], sizes = [4, 15], strides = [1, 1]} : vector<4x16xf32> to vector<4x15xf32>
    %1379 = vector.extract_strided_slice %1377 {offsets = [0, 0], sizes = [4, 1], strides = [1, 1]} : vector<4x16xf32> to vector<4x1xf32>
    %1380 = tpu.concatenate %1378, %1379 in 1 : vector<4x15xf32>, vector<4x1xf32> -> vector<4x16xf32>
    %1381 = vector.extract_strided_slice %1377 {offsets = [0, 15], sizes = [4, 1], strides = [1, 1]} : vector<4x16xf32> to vector<4x1xf32>
    %1382 = vector.extract_strided_slice %1377 {offsets = [0, 0], sizes = [4, 15], strides = [1, 1]} : vector<4x16xf32> to vector<4x15xf32>
    %1383 = tpu.concatenate %1381, %1382 in 1 : vector<4x1xf32>, vector<4x15xf32> -> vector<4x16xf32>
    %c0_i32_337 = arith.constant 0 : i32
    %1384 = vector.broadcast %c0_i32_337 : i32 to vector<1x16xi32>
    %1385 = arith.shrsi %778, %1384 : vector<1x16xi32>
    %c1_i32_338 = arith.constant 1 : i32
    %1386 = vector.broadcast %c1_i32_338 : i32 to vector<1x16xi32>
    %1387 = arith.andi %1385, %1386 : vector<1x16xi32>
    %c0_i32_339 = arith.constant 0 : i32
    %1388 = vector.broadcast %c0_i32_339 : i32 to vector<1x16xi32>
    %1389 = arith.cmpi eq, %1387, %1388 : vector<1x16xi32>
    %1390 = vector.shape_cast %1389 : vector<1x16xi1> to vector<1x16xi1>
    %1391 = vector.broadcast %1390 : vector<1x16xi1> to vector<4x16xi1>
    %1392 = arith.select %1391, %1380, %1383 : vector<4x16xi1>, vector<4x16xf32>
    %1393 = arith.addf %1377, %1392 : vector<4x16xf32>
    %1394 = vector.extract_strided_slice %1393 {offsets = [0, 0], sizes = [1, 16], strides = [1, 1]} : vector<4x16xf32> to vector<1x16xf32>
    %cst_340 = arith.constant 8.000000e+00 : f32
    %1395 = vector.broadcast %cst_340 : f32 to vector<1x16xf32>
    %1396 = arith.divf %1394, %1395 : vector<1x16xf32>
    %1397 = vector.extract_strided_slice %1393 {offsets = [1, 0], sizes = [1, 16], strides = [1, 1]} : vector<4x16xf32> to vector<1x16xf32>
    %cst_341 = arith.constant 8.000000e+00 : f32
    %1398 = vector.broadcast %cst_341 : f32 to vector<1x16xf32>
    %1399 = arith.divf %1397, %1398 : vector<1x16xf32>
    %1400 = arith.mulf %1396, %1396 : vector<1x16xf32>
    %1401 = arith.subf %1399, %1400 : vector<1x16xf32>
    %cst_342 = arith.constant 9.99999974E-6 : f32
    %1402 = vector.broadcast %cst_342 : f32 to vector<1x16xf32>
    %1403 = arith.addf %1401, %1402 : vector<1x16xf32>
    %1404 = math.rsqrt %1403 : vector<1x16xf32>
    %1405 = vector.extract_strided_slice %1393 {offsets = [2, 0], sizes = [1, 16], strides = [1, 1]} : vector<4x16xf32> to vector<1x16xf32>
    %cst_343 = arith.constant 8.000000e+00 : f32
    %1406 = vector.broadcast %cst_343 : f32 to vector<1x16xf32>
    %1407 = arith.divf %1405, %1406 : vector<1x16xf32>
    %1408 = vector.extract_strided_slice %1393 {offsets = [3, 0], sizes = [1, 16], strides = [1, 1]} : vector<4x16xf32> to vector<1x16xf32>
    %cst_344 = arith.constant 8.000000e+00 : f32
    %1409 = vector.broadcast %cst_344 : f32 to vector<1x16xf32>
    %1410 = arith.divf %1408, %1409 : vector<1x16xf32>
    %1411 = arith.mulf %1407, %1407 : vector<1x16xf32>
    %1412 = arith.subf %1410, %1411 : vector<1x16xf32>
    %cst_345 = arith.constant 9.99999974E-6 : f32
    %1413 = vector.broadcast %cst_345 : f32 to vector<1x16xf32>
    %1414 = arith.addf %1412, %1413 : vector<1x16xf32>
    %1415 = math.rsqrt %1414 : vector<1x16xf32>
    %c4_i32_346 = arith.constant 4 : i32
    %1416 = vector.broadcast %c4_i32_346 : i32 to vector<8x1xi32>
    %1417 = arith.cmpi sge, %666, %1416 : vector<8x1xi32>
    %1418 = vector.shape_cast %1417 : vector<8x1xi1> to vector<8x1xi1>
    %1419 = vector.broadcast %1418 : vector<8x1xi1> to vector<8x16xi1>
    %1420 = vector.shape_cast %1407 : vector<1x16xf32> to vector<1x16xf32>
    %1421 = vector.broadcast %1420 : vector<1x16xf32> to vector<8x16xf32>
    %1422 = vector.shape_cast %1396 : vector<1x16xf32> to vector<1x16xf32>
    %1423 = vector.broadcast %1422 : vector<1x16xf32> to vector<8x16xf32>
    %1424 = arith.select %1419, %1421, %1423 : vector<8x16xi1>, vector<8x16xf32>
    %1425 = vector.shape_cast %1417 : vector<8x1xi1> to vector<8x1xi1>
    %1426 = vector.broadcast %1425 : vector<8x1xi1> to vector<8x16xi1>
    %1427 = vector.shape_cast %1415 : vector<1x16xf32> to vector<1x16xf32>
    %1428 = vector.broadcast %1427 : vector<1x16xf32> to vector<8x16xf32>
    %1429 = vector.shape_cast %1404 : vector<1x16xf32> to vector<1x16xf32>
    %1430 = vector.broadcast %1429 : vector<1x16xf32> to vector<8x16xf32>
    %1431 = arith.select %1426, %1428, %1430 : vector<8x16xi1>, vector<8x16xf32>
    %1432 = arith.subf %1364, %1424 : vector<8x16xf32>
    %1433 = arith.mulf %1432, %1431 : vector<8x16xf32>
    %c44 = arith.constant 44 : index
    %c0_347 = arith.constant 0 : index
    %1434 = vector.load %arg4[%c44, %c0_347] : memref<80x32xf32, #tpu.memory_space<vmem>>, vector<1x16xf32>
    %1435 = vector.broadcast %1434 : vector<1x16xf32> to vector<8x16xf32>
    %1436 = arith.mulf %1433, %1435 : vector<8x16xf32>
    %c45 = arith.constant 45 : index
    %c0_348 = arith.constant 0 : index
    %1437 = vector.load %arg4[%c45, %c0_348] : memref<80x32xf32, #tpu.memory_space<vmem>>, vector<1x16xf32>
    %1438 = vector.broadcast %1437 : vector<1x16xf32> to vector<8x16xf32>
    %1439 = arith.addf %1436, %1438 : vector<8x16xf32>
    %cst_349 = arith.constant 0.000000e+00 : f32
    %1440 = vector.broadcast %cst_349 : f32 to vector<8x16xf32>
    %1441 = arith.maximumf %1439, %1440 : vector<8x16xf32>
    %1442 = math.absf %1439 : vector<8x16xf32>
    %cst_350 = arith.constant 0.000000e+00 : f32
    %1443 = vector.broadcast %cst_350 : f32 to vector<8x16xf32>
    %1444 = arith.subf %1443, %1442 : vector<8x16xf32>
    %1445 = math.exp %1444 : vector<8x16xf32>
    %cst_351 = arith.constant 1.000000e+00 : f32
    %1446 = vector.broadcast %cst_351 : f32 to vector<8x16xf32>
    %1447 = arith.addf %1446, %1445 : vector<8x16xf32>
    %1448 = math.log %1447 : vector<8x16xf32>
    %1449 = arith.addf %1441, %1448 : vector<8x16xf32>
    %1450 = math.tanh %1449 : vector<8x16xf32>
    %1451 = arith.mulf %1439, %1450 : vector<8x16xf32>
    %1452 = arith.addf %1451, %1216 : vector<8x16xf32>
    %1453 = arith.truncf %1452 : vector<8x16xf32> to vector<8x16xbf16>
    %1454 = vector.extract_strided_slice %1453 {offsets = [6, 0], sizes = [2, 16], strides = [1, 1]} : vector<8x16xbf16> to vector<2x16xbf16>
    %1455 = vector.extract_strided_slice %1453 {offsets = [0, 0], sizes = [6, 16], strides = [1, 1]} : vector<8x16xbf16> to vector<6x16xbf16>
    %1456 = tpu.concatenate %1454, %1455 in 0 : vector<2x16xbf16>, vector<6x16xbf16> -> vector<8x16xbf16>
    %1457 = vector.broadcast %696 : vector<8x1xbf16> to vector<8x16xbf16>
    %1458 = arith.mulf %1456, %1457 : vector<8x16xbf16>
    %1459 = vector.extract_strided_slice %1453 {offsets = [7, 0], sizes = [1, 16], strides = [1, 1]} : vector<8x16xbf16> to vector<1x16xbf16>
    %1460 = vector.extract_strided_slice %1453 {offsets = [0, 0], sizes = [7, 16], strides = [1, 1]} : vector<8x16xbf16> to vector<7x16xbf16>
    %1461 = tpu.concatenate %1459, %1460 in 0 : vector<1x16xbf16>, vector<7x16xbf16> -> vector<8x16xbf16>
    %1462 = vector.broadcast %716 : vector<8x1xbf16> to vector<8x16xbf16>
    %1463 = arith.mulf %1461, %1462 : vector<8x16xbf16>
    %1464 = vector.extract_strided_slice %1453 {offsets = [1, 0], sizes = [7, 16], strides = [1, 1]} : vector<8x16xbf16> to vector<7x16xbf16>
    %1465 = vector.extract_strided_slice %1453 {offsets = [0, 0], sizes = [1, 16], strides = [1, 1]} : vector<8x16xbf16> to vector<1x16xbf16>
    %1466 = tpu.concatenate %1464, %1465 in 0 : vector<7x16xbf16>, vector<1x16xbf16> -> vector<8x16xbf16>
    %1467 = vector.broadcast %736 : vector<8x1xbf16> to vector<8x16xbf16>
    %1468 = arith.mulf %1466, %1467 : vector<8x16xbf16>
    %1469 = vector.extract_strided_slice %1453 {offsets = [2, 0], sizes = [6, 16], strides = [1, 1]} : vector<8x16xbf16> to vector<6x16xbf16>
    %1470 = vector.extract_strided_slice %1453 {offsets = [0, 0], sizes = [2, 16], strides = [1, 1]} : vector<8x16xbf16> to vector<2x16xbf16>
    %1471 = tpu.concatenate %1469, %1470 in 0 : vector<6x16xbf16>, vector<2x16xbf16> -> vector<8x16xbf16>
    %1472 = vector.broadcast %756 : vector<8x1xbf16> to vector<8x16xbf16>
    %1473 = arith.mulf %1471, %1472 : vector<8x16xbf16>
    %1474 = tpu.concatenate %1458, %1463, %1453, %1468, %1473 in 1 : vector<8x16xbf16>, vector<8x16xbf16>, vector<8x16xbf16>, vector<8x16xbf16>, vector<8x16xbf16> -> vector<8x80xbf16>
    %c800 = arith.constant 800 : index
    %c0_352 = arith.constant 0 : index
    %1475 = vector.load %arg3[%c800, %c0_352] : memref<1376x32xbf16, #tpu.memory_space<vmem>>, vector<80x16xbf16>
    %cst_353 = arith.constant dense<0.000000e+00> : vector<8x16xf32>
    %1476 = tpu.matmul %1474, %1475, %cst_353 {dimension_numbers = #tpu.dot_dimension_numbers<[1], [0], [0], [1], [0, 0, 1, 1], [], []>} : vector<8x80xbf16>, vector<80x16xbf16>, vector<8x16xf32> -> vector<8x16xf32>
    %c47 = arith.constant 47 : index
    %c0_354 = arith.constant 0 : index
    %1477 = vector.load %arg4[%c47, %c0_354] : memref<80x32xf32, #tpu.memory_space<vmem>>, vector<1x16xf32>
    %1478 = vector.broadcast %1477 : vector<1x16xf32> to vector<8x16xf32>
    %1479 = arith.addf %1476, %1478 : vector<8x16xf32>
    %1480 = vector.extract_strided_slice %1479 {offsets = [0, 0], sizes = [4, 16], strides = [1, 1]} : vector<8x16xf32> to vector<4x16xf32>
    %cst_355 = arith.constant dense<0.000000e+00> : vector<16xf32>
    %1481 = vector.multi_reduction <add>, %1480, %cst_355 [0] : vector<4x16xf32> to vector<16xf32>
    %1482 = vector.shape_cast %1481 : vector<16xf32> to vector<1x16xf32>
    %1483 = arith.mulf %1480, %1480 : vector<4x16xf32>
    %cst_356 = arith.constant dense<0.000000e+00> : vector<16xf32>
    %1484 = vector.multi_reduction <add>, %1483, %cst_356 [0] : vector<4x16xf32> to vector<16xf32>
    %1485 = vector.shape_cast %1484 : vector<16xf32> to vector<1x16xf32>
    %1486 = vector.extract_strided_slice %1479 {offsets = [4, 0], sizes = [4, 16], strides = [1, 1]} : vector<8x16xf32> to vector<4x16xf32>
    %cst_357 = arith.constant dense<0.000000e+00> : vector<16xf32>
    %1487 = vector.multi_reduction <add>, %1486, %cst_357 [0] : vector<4x16xf32> to vector<16xf32>
    %1488 = vector.shape_cast %1487 : vector<16xf32> to vector<1x16xf32>
    %1489 = arith.mulf %1486, %1486 : vector<4x16xf32>
    %cst_358 = arith.constant dense<0.000000e+00> : vector<16xf32>
    %1490 = vector.multi_reduction <add>, %1489, %cst_358 [0] : vector<4x16xf32> to vector<16xf32>
    %1491 = vector.shape_cast %1490 : vector<16xf32> to vector<1x16xf32>
    %1492 = tpu.concatenate %1482, %1485, %1488, %1491 in 0 : vector<1x16xf32>, vector<1x16xf32>, vector<1x16xf32>, vector<1x16xf32> -> vector<4x16xf32>
    %1493 = vector.extract_strided_slice %1492 {offsets = [0, 1], sizes = [4, 15], strides = [1, 1]} : vector<4x16xf32> to vector<4x15xf32>
    %1494 = vector.extract_strided_slice %1492 {offsets = [0, 0], sizes = [4, 1], strides = [1, 1]} : vector<4x16xf32> to vector<4x1xf32>
    %1495 = tpu.concatenate %1493, %1494 in 1 : vector<4x15xf32>, vector<4x1xf32> -> vector<4x16xf32>
    %1496 = vector.extract_strided_slice %1492 {offsets = [0, 15], sizes = [4, 1], strides = [1, 1]} : vector<4x16xf32> to vector<4x1xf32>
    %1497 = vector.extract_strided_slice %1492 {offsets = [0, 0], sizes = [4, 15], strides = [1, 1]} : vector<4x16xf32> to vector<4x15xf32>
    %1498 = tpu.concatenate %1496, %1497 in 1 : vector<4x1xf32>, vector<4x15xf32> -> vector<4x16xf32>
    %c0_i32_359 = arith.constant 0 : i32
    %1499 = vector.broadcast %c0_i32_359 : i32 to vector<1x16xi32>
    %1500 = arith.shrsi %778, %1499 : vector<1x16xi32>
    %c1_i32_360 = arith.constant 1 : i32
    %1501 = vector.broadcast %c1_i32_360 : i32 to vector<1x16xi32>
    %1502 = arith.andi %1500, %1501 : vector<1x16xi32>
    %c0_i32_361 = arith.constant 0 : i32
    %1503 = vector.broadcast %c0_i32_361 : i32 to vector<1x16xi32>
    %1504 = arith.cmpi eq, %1502, %1503 : vector<1x16xi32>
    %1505 = vector.shape_cast %1504 : vector<1x16xi1> to vector<1x16xi1>
    %1506 = vector.broadcast %1505 : vector<1x16xi1> to vector<4x16xi1>
    %1507 = arith.select %1506, %1495, %1498 : vector<4x16xi1>, vector<4x16xf32>
    %1508 = arith.addf %1492, %1507 : vector<4x16xf32>
    %1509 = vector.extract_strided_slice %1508 {offsets = [0, 0], sizes = [1, 16], strides = [1, 1]} : vector<4x16xf32> to vector<1x16xf32>
    %cst_362 = arith.constant 8.000000e+00 : f32
    %1510 = vector.broadcast %cst_362 : f32 to vector<1x16xf32>
    %1511 = arith.divf %1509, %1510 : vector<1x16xf32>
    %1512 = vector.extract_strided_slice %1508 {offsets = [1, 0], sizes = [1, 16], strides = [1, 1]} : vector<4x16xf32> to vector<1x16xf32>
    %cst_363 = arith.constant 8.000000e+00 : f32
    %1513 = vector.broadcast %cst_363 : f32 to vector<1x16xf32>
    %1514 = arith.divf %1512, %1513 : vector<1x16xf32>
    %1515 = arith.mulf %1511, %1511 : vector<1x16xf32>
    %1516 = arith.subf %1514, %1515 : vector<1x16xf32>
    %cst_364 = arith.constant 9.99999974E-6 : f32
    %1517 = vector.broadcast %cst_364 : f32 to vector<1x16xf32>
    %1518 = arith.addf %1516, %1517 : vector<1x16xf32>
    %1519 = math.rsqrt %1518 : vector<1x16xf32>
    %1520 = vector.extract_strided_slice %1508 {offsets = [2, 0], sizes = [1, 16], strides = [1, 1]} : vector<4x16xf32> to vector<1x16xf32>
    %cst_365 = arith.constant 8.000000e+00 : f32
    %1521 = vector.broadcast %cst_365 : f32 to vector<1x16xf32>
    %1522 = arith.divf %1520, %1521 : vector<1x16xf32>
    %1523 = vector.extract_strided_slice %1508 {offsets = [3, 0], sizes = [1, 16], strides = [1, 1]} : vector<4x16xf32> to vector<1x16xf32>
    %cst_366 = arith.constant 8.000000e+00 : f32
    %1524 = vector.broadcast %cst_366 : f32 to vector<1x16xf32>
    %1525 = arith.divf %1523, %1524 : vector<1x16xf32>
    %1526 = arith.mulf %1522, %1522 : vector<1x16xf32>
    %1527 = arith.subf %1525, %1526 : vector<1x16xf32>
    %cst_367 = arith.constant 9.99999974E-6 : f32
    %1528 = vector.broadcast %cst_367 : f32 to vector<1x16xf32>
    %1529 = arith.addf %1527, %1528 : vector<1x16xf32>
    %1530 = math.rsqrt %1529 : vector<1x16xf32>
    %c4_i32_368 = arith.constant 4 : i32
    %1531 = vector.broadcast %c4_i32_368 : i32 to vector<8x1xi32>
    %1532 = arith.cmpi sge, %666, %1531 : vector<8x1xi32>
    %1533 = vector.shape_cast %1532 : vector<8x1xi1> to vector<8x1xi1>
    %1534 = vector.broadcast %1533 : vector<8x1xi1> to vector<8x16xi1>
    %1535 = vector.shape_cast %1522 : vector<1x16xf32> to vector<1x16xf32>
    %1536 = vector.broadcast %1535 : vector<1x16xf32> to vector<8x16xf32>
    %1537 = vector.shape_cast %1511 : vector<1x16xf32> to vector<1x16xf32>
    %1538 = vector.broadcast %1537 : vector<1x16xf32> to vector<8x16xf32>
    %1539 = arith.select %1534, %1536, %1538 : vector<8x16xi1>, vector<8x16xf32>
    %1540 = vector.shape_cast %1532 : vector<8x1xi1> to vector<8x1xi1>
    %1541 = vector.broadcast %1540 : vector<8x1xi1> to vector<8x16xi1>
    %1542 = vector.shape_cast %1530 : vector<1x16xf32> to vector<1x16xf32>
    %1543 = vector.broadcast %1542 : vector<1x16xf32> to vector<8x16xf32>
    %1544 = vector.shape_cast %1519 : vector<1x16xf32> to vector<1x16xf32>
    %1545 = vector.broadcast %1544 : vector<1x16xf32> to vector<8x16xf32>
    %1546 = arith.select %1541, %1543, %1545 : vector<8x16xi1>, vector<8x16xf32>
    %1547 = arith.subf %1479, %1539 : vector<8x16xf32>
    %1548 = arith.mulf %1547, %1546 : vector<8x16xf32>
    %c48_369 = arith.constant 48 : index
    %c0_370 = arith.constant 0 : index
    %1549 = vector.load %arg4[%c48_369, %c0_370] : memref<80x32xf32, #tpu.memory_space<vmem>>, vector<1x16xf32>
    %1550 = vector.broadcast %1549 : vector<1x16xf32> to vector<8x16xf32>
    %1551 = arith.mulf %1548, %1550 : vector<8x16xf32>
    %c49 = arith.constant 49 : index
    %c0_371 = arith.constant 0 : index
    %1552 = vector.load %arg4[%c49, %c0_371] : memref<80x32xf32, #tpu.memory_space<vmem>>, vector<1x16xf32>
    %1553 = vector.broadcast %1552 : vector<1x16xf32> to vector<8x16xf32>
    %1554 = arith.addf %1551, %1553 : vector<8x16xf32>
    %cst_372 = arith.constant 0.000000e+00 : f32
    %1555 = vector.broadcast %cst_372 : f32 to vector<8x16xf32>
    %1556 = arith.maximumf %1554, %1555 : vector<8x16xf32>
    %1557 = math.absf %1554 : vector<8x16xf32>
    %cst_373 = arith.constant 0.000000e+00 : f32
    %1558 = vector.broadcast %cst_373 : f32 to vector<8x16xf32>
    %1559 = arith.subf %1558, %1557 : vector<8x16xf32>
    %1560 = math.exp %1559 : vector<8x16xf32>
    %cst_374 = arith.constant 1.000000e+00 : f32
    %1561 = vector.broadcast %cst_374 : f32 to vector<8x16xf32>
    %1562 = arith.addf %1561, %1560 : vector<8x16xf32>
    %1563 = math.log %1562 : vector<8x16xf32>
    %1564 = arith.addf %1556, %1563 : vector<8x16xf32>
    %1565 = math.tanh %1564 : vector<8x16xf32>
    %1566 = arith.mulf %1554, %1565 : vector<8x16xf32>
    %1567 = arith.truncf %677 : vector<8x8xf32> to vector<8x8xbf16>
    %c960 = arith.constant 960 : index
    %c0_375 = arith.constant 0 : index
    %1568 = vector.load %arg3[%c960, %c0_375] : memref<1376x32xbf16, #tpu.memory_space<vmem>>, vector<8x16xbf16>
    %cst_376 = arith.constant dense<0.000000e+00> : vector<8x16xf32>
    %1569 = tpu.matmul %1567, %1568, %cst_376 {dimension_numbers = #tpu.dot_dimension_numbers<[1], [0], [0], [1], [0, 0, 1, 1], [], []>} : vector<8x8xbf16>, vector<8x16xbf16>, vector<8x16xf32> -> vector<8x16xf32>
    %c53 = arith.constant 53 : index
    %c0_377 = arith.constant 0 : index
    %1570 = vector.load %arg4[%c53, %c0_377] : memref<80x32xf32, #tpu.memory_space<vmem>>, vector<1x16xf32>
    %1571 = vector.broadcast %1570 : vector<1x16xf32> to vector<8x16xf32>
    %1572 = arith.addf %1569, %1571 : vector<8x16xf32>
    %1573 = arith.addf %1566, %1572 : vector<8x16xf32>
    %1574 = arith.truncf %1573 : vector<8x16xf32> to vector<8x16xbf16>
    %1575 = vector.extract_strided_slice %1574 {offsets = [6, 0], sizes = [2, 16], strides = [1, 1]} : vector<8x16xbf16> to vector<2x16xbf16>
    %1576 = vector.extract_strided_slice %1574 {offsets = [0, 0], sizes = [6, 16], strides = [1, 1]} : vector<8x16xbf16> to vector<6x16xbf16>
    %1577 = tpu.concatenate %1575, %1576 in 0 : vector<2x16xbf16>, vector<6x16xbf16> -> vector<8x16xbf16>
    %1578 = vector.broadcast %696 : vector<8x1xbf16> to vector<8x16xbf16>
    %1579 = arith.mulf %1577, %1578 : vector<8x16xbf16>
    %1580 = vector.extract_strided_slice %1574 {offsets = [7, 0], sizes = [1, 16], strides = [1, 1]} : vector<8x16xbf16> to vector<1x16xbf16>
    %1581 = vector.extract_strided_slice %1574 {offsets = [0, 0], sizes = [7, 16], strides = [1, 1]} : vector<8x16xbf16> to vector<7x16xbf16>
    %1582 = tpu.concatenate %1580, %1581 in 0 : vector<1x16xbf16>, vector<7x16xbf16> -> vector<8x16xbf16>
    %1583 = vector.broadcast %716 : vector<8x1xbf16> to vector<8x16xbf16>
    %1584 = arith.mulf %1582, %1583 : vector<8x16xbf16>
    %1585 = vector.extract_strided_slice %1574 {offsets = [1, 0], sizes = [7, 16], strides = [1, 1]} : vector<8x16xbf16> to vector<7x16xbf16>
    %1586 = vector.extract_strided_slice %1574 {offsets = [0, 0], sizes = [1, 16], strides = [1, 1]} : vector<8x16xbf16> to vector<1x16xbf16>
    %1587 = tpu.concatenate %1585, %1586 in 0 : vector<7x16xbf16>, vector<1x16xbf16> -> vector<8x16xbf16>
    %1588 = vector.broadcast %736 : vector<8x1xbf16> to vector<8x16xbf16>
    %1589 = arith.mulf %1587, %1588 : vector<8x16xbf16>
    %1590 = vector.extract_strided_slice %1574 {offsets = [2, 0], sizes = [6, 16], strides = [1, 1]} : vector<8x16xbf16> to vector<6x16xbf16>
    %1591 = vector.extract_strided_slice %1574 {offsets = [0, 0], sizes = [2, 16], strides = [1, 1]} : vector<8x16xbf16> to vector<2x16xbf16>
    %1592 = tpu.concatenate %1590, %1591 in 0 : vector<6x16xbf16>, vector<2x16xbf16> -> vector<8x16xbf16>
    %1593 = vector.broadcast %756 : vector<8x1xbf16> to vector<8x16xbf16>
    %1594 = arith.mulf %1592, %1593 : vector<8x16xbf16>
    %1595 = tpu.concatenate %1579, %1584, %1574, %1589, %1594 in 1 : vector<8x16xbf16>, vector<8x16xbf16>, vector<8x16xbf16>, vector<8x16xbf16>, vector<8x16xbf16> -> vector<8x80xbf16>
    %c880 = arith.constant 880 : index
    %c0_378 = arith.constant 0 : index
    %1596 = vector.load %arg3[%c880, %c0_378] : memref<1376x32xbf16, #tpu.memory_space<vmem>>, vector<80x16xbf16>
    %cst_379 = arith.constant dense<0.000000e+00> : vector<8x16xf32>
    %1597 = tpu.matmul %1595, %1596, %cst_379 {dimension_numbers = #tpu.dot_dimension_numbers<[1], [0], [0], [1], [0, 0, 1, 1], [], []>} : vector<8x80xbf16>, vector<80x16xbf16>, vector<8x16xf32> -> vector<8x16xf32>
    %c50 = arith.constant 50 : index
    %c0_380 = arith.constant 0 : index
    %1598 = vector.load %arg4[%c50, %c0_380] : memref<80x32xf32, #tpu.memory_space<vmem>>, vector<1x16xf32>
    %1599 = vector.broadcast %1598 : vector<1x16xf32> to vector<8x16xf32>
    %1600 = arith.addf %1597, %1599 : vector<8x16xf32>
    %1601 = vector.extract_strided_slice %1600 {offsets = [0, 0], sizes = [4, 16], strides = [1, 1]} : vector<8x16xf32> to vector<4x16xf32>
    %cst_381 = arith.constant dense<0.000000e+00> : vector<16xf32>
    %1602 = vector.multi_reduction <add>, %1601, %cst_381 [0] : vector<4x16xf32> to vector<16xf32>
    %1603 = vector.shape_cast %1602 : vector<16xf32> to vector<1x16xf32>
    %1604 = arith.mulf %1601, %1601 : vector<4x16xf32>
    %cst_382 = arith.constant dense<0.000000e+00> : vector<16xf32>
    %1605 = vector.multi_reduction <add>, %1604, %cst_382 [0] : vector<4x16xf32> to vector<16xf32>
    %1606 = vector.shape_cast %1605 : vector<16xf32> to vector<1x16xf32>
    %1607 = vector.extract_strided_slice %1600 {offsets = [4, 0], sizes = [4, 16], strides = [1, 1]} : vector<8x16xf32> to vector<4x16xf32>
    %cst_383 = arith.constant dense<0.000000e+00> : vector<16xf32>
    %1608 = vector.multi_reduction <add>, %1607, %cst_383 [0] : vector<4x16xf32> to vector<16xf32>
    %1609 = vector.shape_cast %1608 : vector<16xf32> to vector<1x16xf32>
    %1610 = arith.mulf %1607, %1607 : vector<4x16xf32>
    %cst_384 = arith.constant dense<0.000000e+00> : vector<16xf32>
    %1611 = vector.multi_reduction <add>, %1610, %cst_384 [0] : vector<4x16xf32> to vector<16xf32>
    %1612 = vector.shape_cast %1611 : vector<16xf32> to vector<1x16xf32>
    %1613 = tpu.concatenate %1603, %1606, %1609, %1612 in 0 : vector<1x16xf32>, vector<1x16xf32>, vector<1x16xf32>, vector<1x16xf32> -> vector<4x16xf32>
    %1614 = vector.extract_strided_slice %1613 {offsets = [0, 1], sizes = [4, 15], strides = [1, 1]} : vector<4x16xf32> to vector<4x15xf32>
    %1615 = vector.extract_strided_slice %1613 {offsets = [0, 0], sizes = [4, 1], strides = [1, 1]} : vector<4x16xf32> to vector<4x1xf32>
    %1616 = tpu.concatenate %1614, %1615 in 1 : vector<4x15xf32>, vector<4x1xf32> -> vector<4x16xf32>
    %1617 = vector.extract_strided_slice %1613 {offsets = [0, 15], sizes = [4, 1], strides = [1, 1]} : vector<4x16xf32> to vector<4x1xf32>
    %1618 = vector.extract_strided_slice %1613 {offsets = [0, 0], sizes = [4, 15], strides = [1, 1]} : vector<4x16xf32> to vector<4x15xf32>
    %1619 = tpu.concatenate %1617, %1618 in 1 : vector<4x1xf32>, vector<4x15xf32> -> vector<4x16xf32>
    %c0_i32_385 = arith.constant 0 : i32
    %1620 = vector.broadcast %c0_i32_385 : i32 to vector<1x16xi32>
    %1621 = arith.shrsi %778, %1620 : vector<1x16xi32>
    %c1_i32_386 = arith.constant 1 : i32
    %1622 = vector.broadcast %c1_i32_386 : i32 to vector<1x16xi32>
    %1623 = arith.andi %1621, %1622 : vector<1x16xi32>
    %c0_i32_387 = arith.constant 0 : i32
    %1624 = vector.broadcast %c0_i32_387 : i32 to vector<1x16xi32>
    %1625 = arith.cmpi eq, %1623, %1624 : vector<1x16xi32>
    %1626 = vector.shape_cast %1625 : vector<1x16xi1> to vector<1x16xi1>
    %1627 = vector.broadcast %1626 : vector<1x16xi1> to vector<4x16xi1>
    %1628 = arith.select %1627, %1616, %1619 : vector<4x16xi1>, vector<4x16xf32>
    %1629 = arith.addf %1613, %1628 : vector<4x16xf32>
    %1630 = vector.extract_strided_slice %1629 {offsets = [0, 0], sizes = [1, 16], strides = [1, 1]} : vector<4x16xf32> to vector<1x16xf32>
    %cst_388 = arith.constant 8.000000e+00 : f32
    %1631 = vector.broadcast %cst_388 : f32 to vector<1x16xf32>
    %1632 = arith.divf %1630, %1631 : vector<1x16xf32>
    %1633 = vector.extract_strided_slice %1629 {offsets = [1, 0], sizes = [1, 16], strides = [1, 1]} : vector<4x16xf32> to vector<1x16xf32>
    %cst_389 = arith.constant 8.000000e+00 : f32
    %1634 = vector.broadcast %cst_389 : f32 to vector<1x16xf32>
    %1635 = arith.divf %1633, %1634 : vector<1x16xf32>
    %1636 = arith.mulf %1632, %1632 : vector<1x16xf32>
    %1637 = arith.subf %1635, %1636 : vector<1x16xf32>
    %cst_390 = arith.constant 9.99999974E-6 : f32
    %1638 = vector.broadcast %cst_390 : f32 to vector<1x16xf32>
    %1639 = arith.addf %1637, %1638 : vector<1x16xf32>
    %1640 = math.rsqrt %1639 : vector<1x16xf32>
    %1641 = vector.extract_strided_slice %1629 {offsets = [2, 0], sizes = [1, 16], strides = [1, 1]} : vector<4x16xf32> to vector<1x16xf32>
    %cst_391 = arith.constant 8.000000e+00 : f32
    %1642 = vector.broadcast %cst_391 : f32 to vector<1x16xf32>
    %1643 = arith.divf %1641, %1642 : vector<1x16xf32>
    %1644 = vector.extract_strided_slice %1629 {offsets = [3, 0], sizes = [1, 16], strides = [1, 1]} : vector<4x16xf32> to vector<1x16xf32>
    %cst_392 = arith.constant 8.000000e+00 : f32
    %1645 = vector.broadcast %cst_392 : f32 to vector<1x16xf32>
    %1646 = arith.divf %1644, %1645 : vector<1x16xf32>
    %1647 = arith.mulf %1643, %1643 : vector<1x16xf32>
    %1648 = arith.subf %1646, %1647 : vector<1x16xf32>
    %cst_393 = arith.constant 9.99999974E-6 : f32
    %1649 = vector.broadcast %cst_393 : f32 to vector<1x16xf32>
    %1650 = arith.addf %1648, %1649 : vector<1x16xf32>
    %1651 = math.rsqrt %1650 : vector<1x16xf32>
    %c4_i32_394 = arith.constant 4 : i32
    %1652 = vector.broadcast %c4_i32_394 : i32 to vector<8x1xi32>
    %1653 = arith.cmpi sge, %666, %1652 : vector<8x1xi32>
    %1654 = vector.shape_cast %1653 : vector<8x1xi1> to vector<8x1xi1>
    %1655 = vector.broadcast %1654 : vector<8x1xi1> to vector<8x16xi1>
    %1656 = vector.shape_cast %1643 : vector<1x16xf32> to vector<1x16xf32>
    %1657 = vector.broadcast %1656 : vector<1x16xf32> to vector<8x16xf32>
    %1658 = vector.shape_cast %1632 : vector<1x16xf32> to vector<1x16xf32>
    %1659 = vector.broadcast %1658 : vector<1x16xf32> to vector<8x16xf32>
    %1660 = arith.select %1655, %1657, %1659 : vector<8x16xi1>, vector<8x16xf32>
    %1661 = vector.shape_cast %1653 : vector<8x1xi1> to vector<8x1xi1>
    %1662 = vector.broadcast %1661 : vector<8x1xi1> to vector<8x16xi1>
    %1663 = vector.shape_cast %1651 : vector<1x16xf32> to vector<1x16xf32>
    %1664 = vector.broadcast %1663 : vector<1x16xf32> to vector<8x16xf32>
    %1665 = vector.shape_cast %1640 : vector<1x16xf32> to vector<1x16xf32>
    %1666 = vector.broadcast %1665 : vector<1x16xf32> to vector<8x16xf32>
    %1667 = arith.select %1662, %1664, %1666 : vector<8x16xi1>, vector<8x16xf32>
    %1668 = arith.subf %1600, %1660 : vector<8x16xf32>
    %1669 = arith.mulf %1668, %1667 : vector<8x16xf32>
    %c51 = arith.constant 51 : index
    %c0_395 = arith.constant 0 : index
    %1670 = vector.load %arg4[%c51, %c0_395] : memref<80x32xf32, #tpu.memory_space<vmem>>, vector<1x16xf32>
    %1671 = vector.broadcast %1670 : vector<1x16xf32> to vector<8x16xf32>
    %1672 = arith.mulf %1669, %1671 : vector<8x16xf32>
    %c52 = arith.constant 52 : index
    %c0_396 = arith.constant 0 : index
    %1673 = vector.load %arg4[%c52, %c0_396] : memref<80x32xf32, #tpu.memory_space<vmem>>, vector<1x16xf32>
    %1674 = vector.broadcast %1673 : vector<1x16xf32> to vector<8x16xf32>
    %1675 = arith.addf %1672, %1674 : vector<8x16xf32>
    %cst_397 = arith.constant 0.000000e+00 : f32
    %1676 = vector.broadcast %cst_397 : f32 to vector<8x16xf32>
    %1677 = arith.maximumf %1675, %1676 : vector<8x16xf32>
    %1678 = math.absf %1675 : vector<8x16xf32>
    %cst_398 = arith.constant 0.000000e+00 : f32
    %1679 = vector.broadcast %cst_398 : f32 to vector<8x16xf32>
    %1680 = arith.subf %1679, %1678 : vector<8x16xf32>
    %1681 = math.exp %1680 : vector<8x16xf32>
    %cst_399 = arith.constant 1.000000e+00 : f32
    %1682 = vector.broadcast %cst_399 : f32 to vector<8x16xf32>
    %1683 = arith.addf %1682, %1681 : vector<8x16xf32>
    %1684 = math.log %1683 : vector<8x16xf32>
    %1685 = arith.addf %1677, %1684 : vector<8x16xf32>
    %1686 = math.tanh %1685 : vector<8x16xf32>
    %1687 = arith.mulf %1675, %1686 : vector<8x16xf32>
    %1688 = arith.addf %1687, %1452 : vector<8x16xf32>
    %1689 = tpu.concatenate %1688, %1216 in 1 : vector<8x16xf32>, vector<8x16xf32> -> vector<8x32xf32>
    %1690 = arith.truncf %1689 : vector<8x32xf32> to vector<8x32xbf16>
    %1691 = vector.extract_strided_slice %1690 {offsets = [6, 0], sizes = [2, 32], strides = [1, 1]} : vector<8x32xbf16> to vector<2x32xbf16>
    %1692 = vector.extract_strided_slice %1690 {offsets = [0, 0], sizes = [6, 32], strides = [1, 1]} : vector<8x32xbf16> to vector<6x32xbf16>
    %1693 = tpu.concatenate %1691, %1692 in 0 : vector<2x32xbf16>, vector<6x32xbf16> -> vector<8x32xbf16>
    %1694 = vector.broadcast %696 : vector<8x1xbf16> to vector<8x32xbf16>
    %1695 = arith.mulf %1693, %1694 : vector<8x32xbf16>
    %1696 = vector.extract_strided_slice %1690 {offsets = [7, 0], sizes = [1, 32], strides = [1, 1]} : vector<8x32xbf16> to vector<1x32xbf16>
    %1697 = vector.extract_strided_slice %1690 {offsets = [0, 0], sizes = [7, 32], strides = [1, 1]} : vector<8x32xbf16> to vector<7x32xbf16>
    %1698 = tpu.concatenate %1696, %1697 in 0 : vector<1x32xbf16>, vector<7x32xbf16> -> vector<8x32xbf16>
    %1699 = vector.broadcast %716 : vector<8x1xbf16> to vector<8x32xbf16>
    %1700 = arith.mulf %1698, %1699 : vector<8x32xbf16>
    %1701 = vector.extract_strided_slice %1690 {offsets = [1, 0], sizes = [7, 32], strides = [1, 1]} : vector<8x32xbf16> to vector<7x32xbf16>
    %1702 = vector.extract_strided_slice %1690 {offsets = [0, 0], sizes = [1, 32], strides = [1, 1]} : vector<8x32xbf16> to vector<1x32xbf16>
    %1703 = tpu.concatenate %1701, %1702 in 0 : vector<7x32xbf16>, vector<1x32xbf16> -> vector<8x32xbf16>
    %1704 = vector.broadcast %736 : vector<8x1xbf16> to vector<8x32xbf16>
    %1705 = arith.mulf %1703, %1704 : vector<8x32xbf16>
    %1706 = vector.extract_strided_slice %1690 {offsets = [2, 0], sizes = [6, 32], strides = [1, 1]} : vector<8x32xbf16> to vector<6x32xbf16>
    %1707 = vector.extract_strided_slice %1690 {offsets = [0, 0], sizes = [2, 32], strides = [1, 1]} : vector<8x32xbf16> to vector<2x32xbf16>
    %1708 = tpu.concatenate %1706, %1707 in 0 : vector<6x32xbf16>, vector<2x32xbf16> -> vector<8x32xbf16>
    %1709 = vector.broadcast %756 : vector<8x1xbf16> to vector<8x32xbf16>
    %1710 = arith.mulf %1708, %1709 : vector<8x32xbf16>
    %1711 = tpu.concatenate %1695, %1700, %1690, %1705, %1710 in 1 : vector<8x32xbf16>, vector<8x32xbf16>, vector<8x32xbf16>, vector<8x32xbf16>, vector<8x32xbf16> -> vector<8x160xbf16>
    %c968 = arith.constant 968 : index
    %c0_400 = arith.constant 0 : index
    %1712 = vector.load %arg3[%c968, %c0_400] : memref<1376x32xbf16, #tpu.memory_space<vmem>>, vector<160x8xbf16>
    %cst_401 = arith.constant dense<0.000000e+00> : vector<8x8xf32>
    %1713 = tpu.matmul %1711, %1712, %cst_401 {dimension_numbers = #tpu.dot_dimension_numbers<[1], [0], [0], [1], [0, 0, 1, 1], [], []>} : vector<8x160xbf16>, vector<160x8xbf16>, vector<8x8xf32> -> vector<8x8xf32>
    %c54 = arith.constant 54 : index
    %c0_402 = arith.constant 0 : index
    %1714 = vector.load %arg4[%c54, %c0_402] : memref<80x32xf32, #tpu.memory_space<vmem>>, vector<1x8xf32>
    %1715 = vector.broadcast %1714 : vector<1x8xf32> to vector<8x8xf32>
    %1716 = arith.addf %1713, %1715 : vector<8x8xf32>
    %1717 = vector.extract_strided_slice %1716 {offsets = [0, 0], sizes = [4, 8], strides = [1, 1]} : vector<8x8xf32> to vector<4x8xf32>
    %cst_403 = arith.constant dense<0.000000e+00> : vector<8xf32>
    %1718 = vector.multi_reduction <add>, %1717, %cst_403 [0] : vector<4x8xf32> to vector<8xf32>
    %1719 = vector.shape_cast %1718 : vector<8xf32> to vector<1x8xf32>
    %1720 = arith.mulf %1717, %1717 : vector<4x8xf32>
    %cst_404 = arith.constant dense<0.000000e+00> : vector<8xf32>
    %1721 = vector.multi_reduction <add>, %1720, %cst_404 [0] : vector<4x8xf32> to vector<8xf32>
    %1722 = vector.shape_cast %1721 : vector<8xf32> to vector<1x8xf32>
    %1723 = vector.extract_strided_slice %1716 {offsets = [4, 0], sizes = [4, 8], strides = [1, 1]} : vector<8x8xf32> to vector<4x8xf32>
    %cst_405 = arith.constant dense<0.000000e+00> : vector<8xf32>
    %1724 = vector.multi_reduction <add>, %1723, %cst_405 [0] : vector<4x8xf32> to vector<8xf32>
    %1725 = vector.shape_cast %1724 : vector<8xf32> to vector<1x8xf32>
    %1726 = arith.mulf %1723, %1723 : vector<4x8xf32>
    %cst_406 = arith.constant dense<0.000000e+00> : vector<8xf32>
    %1727 = vector.multi_reduction <add>, %1726, %cst_406 [0] : vector<4x8xf32> to vector<8xf32>
    %1728 = vector.shape_cast %1727 : vector<8xf32> to vector<1x8xf32>
    %1729 = tpu.concatenate %1719, %1722, %1725, %1728 in 0 : vector<1x8xf32>, vector<1x8xf32>, vector<1x8xf32>, vector<1x8xf32> -> vector<4x8xf32>
    %1730 = vector.extract_strided_slice %1729 {offsets = [0, 0], sizes = [1, 8], strides = [1, 1]} : vector<4x8xf32> to vector<1x8xf32>
    %cst_407 = arith.constant 4.000000e+00 : f32
    %1731 = vector.broadcast %cst_407 : f32 to vector<1x8xf32>
    %1732 = arith.divf %1730, %1731 : vector<1x8xf32>
    %1733 = vector.extract_strided_slice %1729 {offsets = [1, 0], sizes = [1, 8], strides = [1, 1]} : vector<4x8xf32> to vector<1x8xf32>
    %cst_408 = arith.constant 4.000000e+00 : f32
    %1734 = vector.broadcast %cst_408 : f32 to vector<1x8xf32>
    %1735 = arith.divf %1733, %1734 : vector<1x8xf32>
    %1736 = arith.mulf %1732, %1732 : vector<1x8xf32>
    %1737 = arith.subf %1735, %1736 : vector<1x8xf32>
    %cst_409 = arith.constant 9.99999974E-6 : f32
    %1738 = vector.broadcast %cst_409 : f32 to vector<1x8xf32>
    %1739 = arith.addf %1737, %1738 : vector<1x8xf32>
    %1740 = math.rsqrt %1739 : vector<1x8xf32>
    %1741 = vector.extract_strided_slice %1729 {offsets = [2, 0], sizes = [1, 8], strides = [1, 1]} : vector<4x8xf32> to vector<1x8xf32>
    %cst_410 = arith.constant 4.000000e+00 : f32
    %1742 = vector.broadcast %cst_410 : f32 to vector<1x8xf32>
    %1743 = arith.divf %1741, %1742 : vector<1x8xf32>
    %1744 = vector.extract_strided_slice %1729 {offsets = [3, 0], sizes = [1, 8], strides = [1, 1]} : vector<4x8xf32> to vector<1x8xf32>
    %cst_411 = arith.constant 4.000000e+00 : f32
    %1745 = vector.broadcast %cst_411 : f32 to vector<1x8xf32>
    %1746 = arith.divf %1744, %1745 : vector<1x8xf32>
    %1747 = arith.mulf %1743, %1743 : vector<1x8xf32>
    %1748 = arith.subf %1746, %1747 : vector<1x8xf32>
    %cst_412 = arith.constant 9.99999974E-6 : f32
    %1749 = vector.broadcast %cst_412 : f32 to vector<1x8xf32>
    %1750 = arith.addf %1748, %1749 : vector<1x8xf32>
    %1751 = math.rsqrt %1750 : vector<1x8xf32>
    %c4_i32_413 = arith.constant 4 : i32
    %1752 = vector.broadcast %c4_i32_413 : i32 to vector<8x1xi32>
    %1753 = arith.cmpi sge, %666, %1752 : vector<8x1xi32>
    %1754 = vector.shape_cast %1753 : vector<8x1xi1> to vector<8x1xi1>
    %1755 = vector.broadcast %1754 : vector<8x1xi1> to vector<8x8xi1>
    %1756 = vector.shape_cast %1743 : vector<1x8xf32> to vector<1x8xf32>
    %1757 = vector.broadcast %1756 : vector<1x8xf32> to vector<8x8xf32>
    %1758 = vector.shape_cast %1732 : vector<1x8xf32> to vector<1x8xf32>
    %1759 = vector.broadcast %1758 : vector<1x8xf32> to vector<8x8xf32>
    %1760 = arith.select %1755, %1757, %1759 : vector<8x8xi1>, vector<8x8xf32>
    %1761 = vector.shape_cast %1753 : vector<8x1xi1> to vector<8x1xi1>
    %1762 = vector.broadcast %1761 : vector<8x1xi1> to vector<8x8xi1>
    %1763 = vector.shape_cast %1751 : vector<1x8xf32> to vector<1x8xf32>
    %1764 = vector.broadcast %1763 : vector<1x8xf32> to vector<8x8xf32>
    %1765 = vector.shape_cast %1740 : vector<1x8xf32> to vector<1x8xf32>
    %1766 = vector.broadcast %1765 : vector<1x8xf32> to vector<8x8xf32>
    %1767 = arith.select %1762, %1764, %1766 : vector<8x8xi1>, vector<8x8xf32>
    %1768 = arith.subf %1716, %1760 : vector<8x8xf32>
    %1769 = arith.mulf %1768, %1767 : vector<8x8xf32>
    %c55 = arith.constant 55 : index
    %c0_414 = arith.constant 0 : index
    %1770 = vector.load %arg4[%c55, %c0_414] : memref<80x32xf32, #tpu.memory_space<vmem>>, vector<1x8xf32>
    %1771 = vector.broadcast %1770 : vector<1x8xf32> to vector<8x8xf32>
    %1772 = arith.mulf %1769, %1771 : vector<8x8xf32>
    %c56 = arith.constant 56 : index
    %c0_415 = arith.constant 0 : index
    %1773 = vector.load %arg4[%c56, %c0_415] : memref<80x32xf32, #tpu.memory_space<vmem>>, vector<1x8xf32>
    %1774 = vector.broadcast %1773 : vector<1x8xf32> to vector<8x8xf32>
    %1775 = arith.addf %1772, %1774 : vector<8x8xf32>
    %cst_416 = arith.constant 0.000000e+00 : f32
    %1776 = vector.broadcast %cst_416 : f32 to vector<8x8xf32>
    %1777 = arith.maximumf %1775, %1776 : vector<8x8xf32>
    %1778 = math.absf %1775 : vector<8x8xf32>
    %cst_417 = arith.constant 0.000000e+00 : f32
    %1779 = vector.broadcast %cst_417 : f32 to vector<8x8xf32>
    %1780 = arith.subf %1779, %1778 : vector<8x8xf32>
    %1781 = math.exp %1780 : vector<8x8xf32>
    %cst_418 = arith.constant 1.000000e+00 : f32
    %1782 = vector.broadcast %cst_418 : f32 to vector<8x8xf32>
    %1783 = arith.addf %1782, %1781 : vector<8x8xf32>
    %1784 = math.log %1783 : vector<8x8xf32>
    %1785 = arith.addf %1777, %1784 : vector<8x8xf32>
    %1786 = math.tanh %1785 : vector<8x8xf32>
    %1787 = arith.mulf %1775, %1786 : vector<8x8xf32>
    %1788 = arith.truncf %677 : vector<8x8xf32> to vector<8x8xbf16>
    %c1168 = arith.constant 1168 : index
    %c0_419 = arith.constant 0 : index
    %1789 = vector.load %arg3[%c1168, %c0_419] : memref<1376x32xbf16, #tpu.memory_space<vmem>>, vector<8x8xbf16>
    %cst_420 = arith.constant dense<0.000000e+00> : vector<8x8xf32>
    %1790 = tpu.matmul %1788, %1789, %cst_420 {dimension_numbers = #tpu.dot_dimension_numbers<[1], [0], [0], [1], [0, 0, 1, 1], [], []>} : vector<8x8xbf16>, vector<8x8xbf16>, vector<8x8xf32> -> vector<8x8xf32>
    %c60 = arith.constant 60 : index
    %c0_421 = arith.constant 0 : index
    %1791 = vector.load %arg4[%c60, %c0_421] : memref<80x32xf32, #tpu.memory_space<vmem>>, vector<1x8xf32>
    %1792 = vector.broadcast %1791 : vector<1x8xf32> to vector<8x8xf32>
    %1793 = arith.addf %1790, %1792 : vector<8x8xf32>
    %1794 = arith.addf %1787, %1793 : vector<8x8xf32>
    %1795 = arith.truncf %1794 : vector<8x8xf32> to vector<8x8xbf16>
    %1796 = vector.extract_strided_slice %1795 {offsets = [6, 0], sizes = [2, 8], strides = [1, 1]} : vector<8x8xbf16> to vector<2x8xbf16>
    %1797 = vector.extract_strided_slice %1795 {offsets = [0, 0], sizes = [6, 8], strides = [1, 1]} : vector<8x8xbf16> to vector<6x8xbf16>
    %1798 = tpu.concatenate %1796, %1797 in 0 : vector<2x8xbf16>, vector<6x8xbf16> -> vector<8x8xbf16>
    %1799 = vector.broadcast %696 : vector<8x1xbf16> to vector<8x8xbf16>
    %1800 = arith.mulf %1798, %1799 : vector<8x8xbf16>
    %1801 = vector.extract_strided_slice %1795 {offsets = [7, 0], sizes = [1, 8], strides = [1, 1]} : vector<8x8xbf16> to vector<1x8xbf16>
    %1802 = vector.extract_strided_slice %1795 {offsets = [0, 0], sizes = [7, 8], strides = [1, 1]} : vector<8x8xbf16> to vector<7x8xbf16>
    %1803 = tpu.concatenate %1801, %1802 in 0 : vector<1x8xbf16>, vector<7x8xbf16> -> vector<8x8xbf16>
    %1804 = vector.broadcast %716 : vector<8x1xbf16> to vector<8x8xbf16>
    %1805 = arith.mulf %1803, %1804 : vector<8x8xbf16>
    %1806 = vector.extract_strided_slice %1795 {offsets = [1, 0], sizes = [7, 8], strides = [1, 1]} : vector<8x8xbf16> to vector<7x8xbf16>
    %1807 = vector.extract_strided_slice %1795 {offsets = [0, 0], sizes = [1, 8], strides = [1, 1]} : vector<8x8xbf16> to vector<1x8xbf16>
    %1808 = tpu.concatenate %1806, %1807 in 0 : vector<7x8xbf16>, vector<1x8xbf16> -> vector<8x8xbf16>
    %1809 = vector.broadcast %736 : vector<8x1xbf16> to vector<8x8xbf16>
    %1810 = arith.mulf %1808, %1809 : vector<8x8xbf16>
    %1811 = vector.extract_strided_slice %1795 {offsets = [2, 0], sizes = [6, 8], strides = [1, 1]} : vector<8x8xbf16> to vector<6x8xbf16>
    %1812 = vector.extract_strided_slice %1795 {offsets = [0, 0], sizes = [2, 8], strides = [1, 1]} : vector<8x8xbf16> to vector<2x8xbf16>
    %1813 = tpu.concatenate %1811, %1812 in 0 : vector<6x8xbf16>, vector<2x8xbf16> -> vector<8x8xbf16>
    %1814 = vector.broadcast %756 : vector<8x1xbf16> to vector<8x8xbf16>
    %1815 = arith.mulf %1813, %1814 : vector<8x8xbf16>
    %1816 = tpu.concatenate %1800, %1805, %1795, %1810, %1815 in 1 : vector<8x8xbf16>, vector<8x8xbf16>, vector<8x8xbf16>, vector<8x8xbf16>, vector<8x8xbf16> -> vector<8x40xbf16>
    %c1128 = arith.constant 1128 : index
    %c0_422 = arith.constant 0 : index
    %1817 = vector.load %arg3[%c1128, %c0_422] : memref<1376x32xbf16, #tpu.memory_space<vmem>>, vector<40x8xbf16>
    %cst_423 = arith.constant dense<0.000000e+00> : vector<8x8xf32>
    %1818 = tpu.matmul %1816, %1817, %cst_423 {dimension_numbers = #tpu.dot_dimension_numbers<[1], [0], [0], [1], [0, 0, 1, 1], [], []>} : vector<8x40xbf16>, vector<40x8xbf16>, vector<8x8xf32> -> vector<8x8xf32>
    %c57 = arith.constant 57 : index
    %c0_424 = arith.constant 0 : index
    %1819 = vector.load %arg4[%c57, %c0_424] : memref<80x32xf32, #tpu.memory_space<vmem>>, vector<1x8xf32>
    %1820 = vector.broadcast %1819 : vector<1x8xf32> to vector<8x8xf32>
    %1821 = arith.addf %1818, %1820 : vector<8x8xf32>
    %1822 = vector.extract_strided_slice %1821 {offsets = [0, 0], sizes = [4, 8], strides = [1, 1]} : vector<8x8xf32> to vector<4x8xf32>
    %cst_425 = arith.constant dense<0.000000e+00> : vector<8xf32>
    %1823 = vector.multi_reduction <add>, %1822, %cst_425 [0] : vector<4x8xf32> to vector<8xf32>
    %1824 = vector.shape_cast %1823 : vector<8xf32> to vector<1x8xf32>
    %1825 = arith.mulf %1822, %1822 : vector<4x8xf32>
    %cst_426 = arith.constant dense<0.000000e+00> : vector<8xf32>
    %1826 = vector.multi_reduction <add>, %1825, %cst_426 [0] : vector<4x8xf32> to vector<8xf32>
    %1827 = vector.shape_cast %1826 : vector<8xf32> to vector<1x8xf32>
    %1828 = vector.extract_strided_slice %1821 {offsets = [4, 0], sizes = [4, 8], strides = [1, 1]} : vector<8x8xf32> to vector<4x8xf32>
    %cst_427 = arith.constant dense<0.000000e+00> : vector<8xf32>
    %1829 = vector.multi_reduction <add>, %1828, %cst_427 [0] : vector<4x8xf32> to vector<8xf32>
    %1830 = vector.shape_cast %1829 : vector<8xf32> to vector<1x8xf32>
    %1831 = arith.mulf %1828, %1828 : vector<4x8xf32>
    %cst_428 = arith.constant dense<0.000000e+00> : vector<8xf32>
    %1832 = vector.multi_reduction <add>, %1831, %cst_428 [0] : vector<4x8xf32> to vector<8xf32>
    %1833 = vector.shape_cast %1832 : vector<8xf32> to vector<1x8xf32>
    %1834 = tpu.concatenate %1824, %1827, %1830, %1833 in 0 : vector<1x8xf32>, vector<1x8xf32>, vector<1x8xf32>, vector<1x8xf32> -> vector<4x8xf32>
    %1835 = vector.extract_strided_slice %1834 {offsets = [0, 0], sizes = [1, 8], strides = [1, 1]} : vector<4x8xf32> to vector<1x8xf32>
    %cst_429 = arith.constant 4.000000e+00 : f32
    %1836 = vector.broadcast %cst_429 : f32 to vector<1x8xf32>
    %1837 = arith.divf %1835, %1836 : vector<1x8xf32>
    %1838 = vector.extract_strided_slice %1834 {offsets = [1, 0], sizes = [1, 8], strides = [1, 1]} : vector<4x8xf32> to vector<1x8xf32>
    %cst_430 = arith.constant 4.000000e+00 : f32
    %1839 = vector.broadcast %cst_430 : f32 to vector<1x8xf32>
    %1840 = arith.divf %1838, %1839 : vector<1x8xf32>
    %1841 = arith.mulf %1837, %1837 : vector<1x8xf32>
    %1842 = arith.subf %1840, %1841 : vector<1x8xf32>
    %cst_431 = arith.constant 9.99999974E-6 : f32
    %1843 = vector.broadcast %cst_431 : f32 to vector<1x8xf32>
    %1844 = arith.addf %1842, %1843 : vector<1x8xf32>
    %1845 = math.rsqrt %1844 : vector<1x8xf32>
    %1846 = vector.extract_strided_slice %1834 {offsets = [2, 0], sizes = [1, 8], strides = [1, 1]} : vector<4x8xf32> to vector<1x8xf32>
    %cst_432 = arith.constant 4.000000e+00 : f32
    %1847 = vector.broadcast %cst_432 : f32 to vector<1x8xf32>
    %1848 = arith.divf %1846, %1847 : vector<1x8xf32>
    %1849 = vector.extract_strided_slice %1834 {offsets = [3, 0], sizes = [1, 8], strides = [1, 1]} : vector<4x8xf32> to vector<1x8xf32>
    %cst_433 = arith.constant 4.000000e+00 : f32
    %1850 = vector.broadcast %cst_433 : f32 to vector<1x8xf32>
    %1851 = arith.divf %1849, %1850 : vector<1x8xf32>
    %1852 = arith.mulf %1848, %1848 : vector<1x8xf32>
    %1853 = arith.subf %1851, %1852 : vector<1x8xf32>
    %cst_434 = arith.constant 9.99999974E-6 : f32
    %1854 = vector.broadcast %cst_434 : f32 to vector<1x8xf32>
    %1855 = arith.addf %1853, %1854 : vector<1x8xf32>
    %1856 = math.rsqrt %1855 : vector<1x8xf32>
    %c4_i32_435 = arith.constant 4 : i32
    %1857 = vector.broadcast %c4_i32_435 : i32 to vector<8x1xi32>
    %1858 = arith.cmpi sge, %666, %1857 : vector<8x1xi32>
    %1859 = vector.shape_cast %1858 : vector<8x1xi1> to vector<8x1xi1>
    %1860 = vector.broadcast %1859 : vector<8x1xi1> to vector<8x8xi1>
    %1861 = vector.shape_cast %1848 : vector<1x8xf32> to vector<1x8xf32>
    %1862 = vector.broadcast %1861 : vector<1x8xf32> to vector<8x8xf32>
    %1863 = vector.shape_cast %1837 : vector<1x8xf32> to vector<1x8xf32>
    %1864 = vector.broadcast %1863 : vector<1x8xf32> to vector<8x8xf32>
    %1865 = arith.select %1860, %1862, %1864 : vector<8x8xi1>, vector<8x8xf32>
    %1866 = vector.shape_cast %1858 : vector<8x1xi1> to vector<8x1xi1>
    %1867 = vector.broadcast %1866 : vector<8x1xi1> to vector<8x8xi1>
    %1868 = vector.shape_cast %1856 : vector<1x8xf32> to vector<1x8xf32>
    %1869 = vector.broadcast %1868 : vector<1x8xf32> to vector<8x8xf32>
    %1870 = vector.shape_cast %1845 : vector<1x8xf32> to vector<1x8xf32>
    %1871 = vector.broadcast %1870 : vector<1x8xf32> to vector<8x8xf32>
    %1872 = arith.select %1867, %1869, %1871 : vector<8x8xi1>, vector<8x8xf32>
    %1873 = arith.subf %1821, %1865 : vector<8x8xf32>
    %1874 = arith.mulf %1873, %1872 : vector<8x8xf32>
    %c58 = arith.constant 58 : index
    %c0_436 = arith.constant 0 : index
    %1875 = vector.load %arg4[%c58, %c0_436] : memref<80x32xf32, #tpu.memory_space<vmem>>, vector<1x8xf32>
    %1876 = vector.broadcast %1875 : vector<1x8xf32> to vector<8x8xf32>
    %1877 = arith.mulf %1874, %1876 : vector<8x8xf32>
    %c59 = arith.constant 59 : index
    %c0_437 = arith.constant 0 : index
    %1878 = vector.load %arg4[%c59, %c0_437] : memref<80x32xf32, #tpu.memory_space<vmem>>, vector<1x8xf32>
    %1879 = vector.broadcast %1878 : vector<1x8xf32> to vector<8x8xf32>
    %1880 = arith.addf %1877, %1879 : vector<8x8xf32>
    %cst_438 = arith.constant 0.000000e+00 : f32
    %1881 = vector.broadcast %cst_438 : f32 to vector<8x8xf32>
    %1882 = arith.maximumf %1880, %1881 : vector<8x8xf32>
    %1883 = math.absf %1880 : vector<8x8xf32>
    %cst_439 = arith.constant 0.000000e+00 : f32
    %1884 = vector.broadcast %cst_439 : f32 to vector<8x8xf32>
    %1885 = arith.subf %1884, %1883 : vector<8x8xf32>
    %1886 = math.exp %1885 : vector<8x8xf32>
    %cst_440 = arith.constant 1.000000e+00 : f32
    %1887 = vector.broadcast %cst_440 : f32 to vector<8x8xf32>
    %1888 = arith.addf %1887, %1886 : vector<8x8xf32>
    %1889 = math.log %1888 : vector<8x8xf32>
    %1890 = arith.addf %1882, %1889 : vector<8x8xf32>
    %1891 = math.tanh %1890 : vector<8x8xf32>
    %1892 = arith.mulf %1880, %1891 : vector<8x8xf32>
    %1893 = arith.truncf %1689 : vector<8x32xf32> to vector<8x32xbf16>
    %c1176 = arith.constant 1176 : index
    %c0_441 = arith.constant 0 : index
    %1894 = vector.load %arg3[%c1176, %c0_441] : memref<1376x32xbf16, #tpu.memory_space<vmem>>, vector<32x8xbf16>
    %cst_442 = arith.constant dense<0.000000e+00> : vector<8x8xf32>
    %1895 = tpu.matmul %1893, %1894, %cst_442 {dimension_numbers = #tpu.dot_dimension_numbers<[1], [0], [0], [1], [0, 0, 1, 1], [], []>} : vector<8x32xbf16>, vector<32x8xbf16>, vector<8x8xf32> -> vector<8x8xf32>
    %c61 = arith.constant 61 : index
    %c0_443 = arith.constant 0 : index
    %1896 = vector.load %arg4[%c61, %c0_443] : memref<80x32xf32, #tpu.memory_space<vmem>>, vector<1x8xf32>
    %1897 = vector.broadcast %1896 : vector<1x8xf32> to vector<8x8xf32>
    %1898 = arith.addf %1895, %1897 : vector<8x8xf32>
    %1899 = arith.addf %1892, %1898 : vector<8x8xf32>
    %1900 = arith.truncf %1899 : vector<8x8xf32> to vector<8x8xbf16>
    %1901 = vector.extract_strided_slice %1900 {offsets = [6, 0], sizes = [2, 8], strides = [1, 1]} : vector<8x8xbf16> to vector<2x8xbf16>
    %1902 = vector.extract_strided_slice %1900 {offsets = [0, 0], sizes = [6, 8], strides = [1, 1]} : vector<8x8xbf16> to vector<6x8xbf16>
    %1903 = tpu.concatenate %1901, %1902 in 0 : vector<2x8xbf16>, vector<6x8xbf16> -> vector<8x8xbf16>
    %1904 = vector.broadcast %696 : vector<8x1xbf16> to vector<8x8xbf16>
    %1905 = arith.mulf %1903, %1904 : vector<8x8xbf16>
    %1906 = vector.extract_strided_slice %1900 {offsets = [7, 0], sizes = [1, 8], strides = [1, 1]} : vector<8x8xbf16> to vector<1x8xbf16>
    %1907 = vector.extract_strided_slice %1900 {offsets = [0, 0], sizes = [7, 8], strides = [1, 1]} : vector<8x8xbf16> to vector<7x8xbf16>
    %1908 = tpu.concatenate %1906, %1907 in 0 : vector<1x8xbf16>, vector<7x8xbf16> -> vector<8x8xbf16>
    %1909 = vector.broadcast %716 : vector<8x1xbf16> to vector<8x8xbf16>
    %1910 = arith.mulf %1908, %1909 : vector<8x8xbf16>
    %1911 = vector.extract_strided_slice %1900 {offsets = [1, 0], sizes = [7, 8], strides = [1, 1]} : vector<8x8xbf16> to vector<7x8xbf16>
    %1912 = vector.extract_strided_slice %1900 {offsets = [0, 0], sizes = [1, 8], strides = [1, 1]} : vector<8x8xbf16> to vector<1x8xbf16>
    %1913 = tpu.concatenate %1911, %1912 in 0 : vector<7x8xbf16>, vector<1x8xbf16> -> vector<8x8xbf16>
    %1914 = vector.broadcast %736 : vector<8x1xbf16> to vector<8x8xbf16>
    %1915 = arith.mulf %1913, %1914 : vector<8x8xbf16>
    %1916 = vector.extract_strided_slice %1900 {offsets = [2, 0], sizes = [6, 8], strides = [1, 1]} : vector<8x8xbf16> to vector<6x8xbf16>
    %1917 = vector.extract_strided_slice %1900 {offsets = [0, 0], sizes = [2, 8], strides = [1, 1]} : vector<8x8xbf16> to vector<2x8xbf16>
    %1918 = tpu.concatenate %1916, %1917 in 0 : vector<6x8xbf16>, vector<2x8xbf16> -> vector<8x8xbf16>
    %1919 = vector.broadcast %756 : vector<8x1xbf16> to vector<8x8xbf16>
    %1920 = arith.mulf %1918, %1919 : vector<8x8xbf16>
    %1921 = tpu.concatenate %1905, %1910, %1900, %1915, %1920 in 1 : vector<8x8xbf16>, vector<8x8xbf16>, vector<8x8xbf16>, vector<8x8xbf16>, vector<8x8xbf16> -> vector<8x40xbf16>
    %c1208 = arith.constant 1208 : index
    %c0_444 = arith.constant 0 : index
    %1922 = vector.load %arg3[%c1208, %c0_444] : memref<1376x32xbf16, #tpu.memory_space<vmem>>, vector<40x8xbf16>
    %cst_445 = arith.constant dense<0.000000e+00> : vector<8x8xf32>
    %1923 = tpu.matmul %1921, %1922, %cst_445 {dimension_numbers = #tpu.dot_dimension_numbers<[1], [0], [0], [1], [0, 0, 1, 1], [], []>} : vector<8x40xbf16>, vector<40x8xbf16>, vector<8x8xf32> -> vector<8x8xf32>
    %c62 = arith.constant 62 : index
    %c0_446 = arith.constant 0 : index
    %1924 = vector.load %arg4[%c62, %c0_446] : memref<80x32xf32, #tpu.memory_space<vmem>>, vector<1x8xf32>
    %1925 = vector.broadcast %1924 : vector<1x8xf32> to vector<8x8xf32>
    %1926 = arith.addf %1923, %1925 : vector<8x8xf32>
    %1927 = vector.extract_strided_slice %1926 {offsets = [0, 0], sizes = [4, 8], strides = [1, 1]} : vector<8x8xf32> to vector<4x8xf32>
    %cst_447 = arith.constant dense<0.000000e+00> : vector<8xf32>
    %1928 = vector.multi_reduction <add>, %1927, %cst_447 [0] : vector<4x8xf32> to vector<8xf32>
    %1929 = vector.shape_cast %1928 : vector<8xf32> to vector<1x8xf32>
    %1930 = arith.mulf %1927, %1927 : vector<4x8xf32>
    %cst_448 = arith.constant dense<0.000000e+00> : vector<8xf32>
    %1931 = vector.multi_reduction <add>, %1930, %cst_448 [0] : vector<4x8xf32> to vector<8xf32>
    %1932 = vector.shape_cast %1931 : vector<8xf32> to vector<1x8xf32>
    %1933 = vector.extract_strided_slice %1926 {offsets = [4, 0], sizes = [4, 8], strides = [1, 1]} : vector<8x8xf32> to vector<4x8xf32>
    %cst_449 = arith.constant dense<0.000000e+00> : vector<8xf32>
    %1934 = vector.multi_reduction <add>, %1933, %cst_449 [0] : vector<4x8xf32> to vector<8xf32>
    %1935 = vector.shape_cast %1934 : vector<8xf32> to vector<1x8xf32>
    %1936 = arith.mulf %1933, %1933 : vector<4x8xf32>
    %cst_450 = arith.constant dense<0.000000e+00> : vector<8xf32>
    %1937 = vector.multi_reduction <add>, %1936, %cst_450 [0] : vector<4x8xf32> to vector<8xf32>
    %1938 = vector.shape_cast %1937 : vector<8xf32> to vector<1x8xf32>
    %1939 = tpu.concatenate %1929, %1932, %1935, %1938 in 0 : vector<1x8xf32>, vector<1x8xf32>, vector<1x8xf32>, vector<1x8xf32> -> vector<4x8xf32>
    %1940 = vector.extract_strided_slice %1939 {offsets = [0, 0], sizes = [1, 8], strides = [1, 1]} : vector<4x8xf32> to vector<1x8xf32>
    %cst_451 = arith.constant 4.000000e+00 : f32
    %1941 = vector.broadcast %cst_451 : f32 to vector<1x8xf32>
    %1942 = arith.divf %1940, %1941 : vector<1x8xf32>
    %1943 = vector.extract_strided_slice %1939 {offsets = [1, 0], sizes = [1, 8], strides = [1, 1]} : vector<4x8xf32> to vector<1x8xf32>
    %cst_452 = arith.constant 4.000000e+00 : f32
    %1944 = vector.broadcast %cst_452 : f32 to vector<1x8xf32>
    %1945 = arith.divf %1943, %1944 : vector<1x8xf32>
    %1946 = arith.mulf %1942, %1942 : vector<1x8xf32>
    %1947 = arith.subf %1945, %1946 : vector<1x8xf32>
    %cst_453 = arith.constant 9.99999974E-6 : f32
    %1948 = vector.broadcast %cst_453 : f32 to vector<1x8xf32>
    %1949 = arith.addf %1947, %1948 : vector<1x8xf32>
    %1950 = math.rsqrt %1949 : vector<1x8xf32>
    %1951 = vector.extract_strided_slice %1939 {offsets = [2, 0], sizes = [1, 8], strides = [1, 1]} : vector<4x8xf32> to vector<1x8xf32>
    %cst_454 = arith.constant 4.000000e+00 : f32
    %1952 = vector.broadcast %cst_454 : f32 to vector<1x8xf32>
    %1953 = arith.divf %1951, %1952 : vector<1x8xf32>
    %1954 = vector.extract_strided_slice %1939 {offsets = [3, 0], sizes = [1, 8], strides = [1, 1]} : vector<4x8xf32> to vector<1x8xf32>
    %cst_455 = arith.constant 4.000000e+00 : f32
    %1955 = vector.broadcast %cst_455 : f32 to vector<1x8xf32>
    %1956 = arith.divf %1954, %1955 : vector<1x8xf32>
    %1957 = arith.mulf %1953, %1953 : vector<1x8xf32>
    %1958 = arith.subf %1956, %1957 : vector<1x8xf32>
    %cst_456 = arith.constant 9.99999974E-6 : f32
    %1959 = vector.broadcast %cst_456 : f32 to vector<1x8xf32>
    %1960 = arith.addf %1958, %1959 : vector<1x8xf32>
    %1961 = math.rsqrt %1960 : vector<1x8xf32>
    %c4_i32_457 = arith.constant 4 : i32
    %1962 = vector.broadcast %c4_i32_457 : i32 to vector<8x1xi32>
    %1963 = arith.cmpi sge, %666, %1962 : vector<8x1xi32>
    %1964 = vector.shape_cast %1963 : vector<8x1xi1> to vector<8x1xi1>
    %1965 = vector.broadcast %1964 : vector<8x1xi1> to vector<8x8xi1>
    %1966 = vector.shape_cast %1953 : vector<1x8xf32> to vector<1x8xf32>
    %1967 = vector.broadcast %1966 : vector<1x8xf32> to vector<8x8xf32>
    %1968 = vector.shape_cast %1942 : vector<1x8xf32> to vector<1x8xf32>
    %1969 = vector.broadcast %1968 : vector<1x8xf32> to vector<8x8xf32>
    %1970 = arith.select %1965, %1967, %1969 : vector<8x8xi1>, vector<8x8xf32>
    %1971 = vector.shape_cast %1963 : vector<8x1xi1> to vector<8x1xi1>
    %1972 = vector.broadcast %1971 : vector<8x1xi1> to vector<8x8xi1>
    %1973 = vector.shape_cast %1961 : vector<1x8xf32> to vector<1x8xf32>
    %1974 = vector.broadcast %1973 : vector<1x8xf32> to vector<8x8xf32>
    %1975 = vector.shape_cast %1950 : vector<1x8xf32> to vector<1x8xf32>
    %1976 = vector.broadcast %1975 : vector<1x8xf32> to vector<8x8xf32>
    %1977 = arith.select %1972, %1974, %1976 : vector<8x8xi1>, vector<8x8xf32>
    %1978 = arith.subf %1926, %1970 : vector<8x8xf32>
    %1979 = arith.mulf %1978, %1977 : vector<8x8xf32>
    %c63 = arith.constant 63 : index
    %c0_458 = arith.constant 0 : index
    %1980 = vector.load %arg4[%c63, %c0_458] : memref<80x32xf32, #tpu.memory_space<vmem>>, vector<1x8xf32>
    %1981 = vector.broadcast %1980 : vector<1x8xf32> to vector<8x8xf32>
    %1982 = arith.mulf %1979, %1981 : vector<8x8xf32>
    %c64_459 = arith.constant 64 : index
    %c0_460 = arith.constant 0 : index
    %1983 = vector.load %arg4[%c64_459, %c0_460] : memref<80x32xf32, #tpu.memory_space<vmem>>, vector<1x8xf32>
    %1984 = vector.broadcast %1983 : vector<1x8xf32> to vector<8x8xf32>
    %1985 = arith.addf %1982, %1984 : vector<8x8xf32>
    %cst_461 = arith.constant 0.000000e+00 : f32
    %1986 = vector.broadcast %cst_461 : f32 to vector<8x8xf32>
    %1987 = arith.maximumf %1985, %1986 : vector<8x8xf32>
    %1988 = math.absf %1985 : vector<8x8xf32>
    %cst_462 = arith.constant 0.000000e+00 : f32
    %1989 = vector.broadcast %cst_462 : f32 to vector<8x8xf32>
    %1990 = arith.subf %1989, %1988 : vector<8x8xf32>
    %1991 = math.exp %1990 : vector<8x8xf32>
    %cst_463 = arith.constant 1.000000e+00 : f32
    %1992 = vector.broadcast %cst_463 : f32 to vector<8x8xf32>
    %1993 = arith.addf %1992, %1991 : vector<8x8xf32>
    %1994 = math.log %1993 : vector<8x8xf32>
    %1995 = arith.addf %1987, %1994 : vector<8x8xf32>
    %1996 = math.tanh %1995 : vector<8x8xf32>
    %1997 = arith.mulf %1985, %1996 : vector<8x8xf32>
    %1998 = arith.truncf %677 : vector<8x8xf32> to vector<8x8xbf16>
    %c1288 = arith.constant 1288 : index
    %c0_464 = arith.constant 0 : index
    %1999 = vector.load %arg3[%c1288, %c0_464] : memref<1376x32xbf16, #tpu.memory_space<vmem>>, vector<8x8xbf16>
    %cst_465 = arith.constant dense<0.000000e+00> : vector<8x8xf32>
    %2000 = tpu.matmul %1998, %1999, %cst_465 {dimension_numbers = #tpu.dot_dimension_numbers<[1], [0], [0], [1], [0, 0, 1, 1], [], []>} : vector<8x8xbf16>, vector<8x8xbf16>, vector<8x8xf32> -> vector<8x8xf32>
    %c68 = arith.constant 68 : index
    %c0_466 = arith.constant 0 : index
    %2001 = vector.load %arg4[%c68, %c0_466] : memref<80x32xf32, #tpu.memory_space<vmem>>, vector<1x8xf32>
    %2002 = vector.broadcast %2001 : vector<1x8xf32> to vector<8x8xf32>
    %2003 = arith.addf %2000, %2002 : vector<8x8xf32>
    %2004 = arith.addf %1997, %2003 : vector<8x8xf32>
    %2005 = arith.truncf %2004 : vector<8x8xf32> to vector<8x8xbf16>
    %2006 = vector.extract_strided_slice %2005 {offsets = [6, 0], sizes = [2, 8], strides = [1, 1]} : vector<8x8xbf16> to vector<2x8xbf16>
    %2007 = vector.extract_strided_slice %2005 {offsets = [0, 0], sizes = [6, 8], strides = [1, 1]} : vector<8x8xbf16> to vector<6x8xbf16>
    %2008 = tpu.concatenate %2006, %2007 in 0 : vector<2x8xbf16>, vector<6x8xbf16> -> vector<8x8xbf16>
    %2009 = vector.broadcast %696 : vector<8x1xbf16> to vector<8x8xbf16>
    %2010 = arith.mulf %2008, %2009 : vector<8x8xbf16>
    %2011 = vector.extract_strided_slice %2005 {offsets = [7, 0], sizes = [1, 8], strides = [1, 1]} : vector<8x8xbf16> to vector<1x8xbf16>
    %2012 = vector.extract_strided_slice %2005 {offsets = [0, 0], sizes = [7, 8], strides = [1, 1]} : vector<8x8xbf16> to vector<7x8xbf16>
    %2013 = tpu.concatenate %2011, %2012 in 0 : vector<1x8xbf16>, vector<7x8xbf16> -> vector<8x8xbf16>
    %2014 = vector.broadcast %716 : vector<8x1xbf16> to vector<8x8xbf16>
    %2015 = arith.mulf %2013, %2014 : vector<8x8xbf16>
    %2016 = vector.extract_strided_slice %2005 {offsets = [1, 0], sizes = [7, 8], strides = [1, 1]} : vector<8x8xbf16> to vector<7x8xbf16>
    %2017 = vector.extract_strided_slice %2005 {offsets = [0, 0], sizes = [1, 8], strides = [1, 1]} : vector<8x8xbf16> to vector<1x8xbf16>
    %2018 = tpu.concatenate %2016, %2017 in 0 : vector<7x8xbf16>, vector<1x8xbf16> -> vector<8x8xbf16>
    %2019 = vector.broadcast %736 : vector<8x1xbf16> to vector<8x8xbf16>
    %2020 = arith.mulf %2018, %2019 : vector<8x8xbf16>
    %2021 = vector.extract_strided_slice %2005 {offsets = [2, 0], sizes = [6, 8], strides = [1, 1]} : vector<8x8xbf16> to vector<6x8xbf16>
    %2022 = vector.extract_strided_slice %2005 {offsets = [0, 0], sizes = [2, 8], strides = [1, 1]} : vector<8x8xbf16> to vector<2x8xbf16>
    %2023 = tpu.concatenate %2021, %2022 in 0 : vector<6x8xbf16>, vector<2x8xbf16> -> vector<8x8xbf16>
    %2024 = vector.broadcast %756 : vector<8x1xbf16> to vector<8x8xbf16>
    %2025 = arith.mulf %2023, %2024 : vector<8x8xbf16>
    %2026 = tpu.concatenate %2010, %2015, %2005, %2020, %2025 in 1 : vector<8x8xbf16>, vector<8x8xbf16>, vector<8x8xbf16>, vector<8x8xbf16>, vector<8x8xbf16> -> vector<8x40xbf16>
    %c1248 = arith.constant 1248 : index
    %c0_467 = arith.constant 0 : index
    %2027 = vector.load %arg3[%c1248, %c0_467] : memref<1376x32xbf16, #tpu.memory_space<vmem>>, vector<40x8xbf16>
    %cst_468 = arith.constant dense<0.000000e+00> : vector<8x8xf32>
    %2028 = tpu.matmul %2026, %2027, %cst_468 {dimension_numbers = #tpu.dot_dimension_numbers<[1], [0], [0], [1], [0, 0, 1, 1], [], []>} : vector<8x40xbf16>, vector<40x8xbf16>, vector<8x8xf32> -> vector<8x8xf32>
    %c65 = arith.constant 65 : index
    %c0_469 = arith.constant 0 : index
    %2029 = vector.load %arg4[%c65, %c0_469] : memref<80x32xf32, #tpu.memory_space<vmem>>, vector<1x8xf32>
    %2030 = vector.broadcast %2029 : vector<1x8xf32> to vector<8x8xf32>
    %2031 = arith.addf %2028, %2030 : vector<8x8xf32>
    %2032 = vector.extract_strided_slice %2031 {offsets = [0, 0], sizes = [4, 8], strides = [1, 1]} : vector<8x8xf32> to vector<4x8xf32>
    %cst_470 = arith.constant dense<0.000000e+00> : vector<8xf32>
    %2033 = vector.multi_reduction <add>, %2032, %cst_470 [0] : vector<4x8xf32> to vector<8xf32>
    %2034 = vector.shape_cast %2033 : vector<8xf32> to vector<1x8xf32>
    %2035 = arith.mulf %2032, %2032 : vector<4x8xf32>
    %cst_471 = arith.constant dense<0.000000e+00> : vector<8xf32>
    %2036 = vector.multi_reduction <add>, %2035, %cst_471 [0] : vector<4x8xf32> to vector<8xf32>
    %2037 = vector.shape_cast %2036 : vector<8xf32> to vector<1x8xf32>
    %2038 = vector.extract_strided_slice %2031 {offsets = [4, 0], sizes = [4, 8], strides = [1, 1]} : vector<8x8xf32> to vector<4x8xf32>
    %cst_472 = arith.constant dense<0.000000e+00> : vector<8xf32>
    %2039 = vector.multi_reduction <add>, %2038, %cst_472 [0] : vector<4x8xf32> to vector<8xf32>
    %2040 = vector.shape_cast %2039 : vector<8xf32> to vector<1x8xf32>
    %2041 = arith.mulf %2038, %2038 : vector<4x8xf32>
    %cst_473 = arith.constant dense<0.000000e+00> : vector<8xf32>
    %2042 = vector.multi_reduction <add>, %2041, %cst_473 [0] : vector<4x8xf32> to vector<8xf32>
    %2043 = vector.shape_cast %2042 : vector<8xf32> to vector<1x8xf32>
    %2044 = tpu.concatenate %2034, %2037, %2040, %2043 in 0 : vector<1x8xf32>, vector<1x8xf32>, vector<1x8xf32>, vector<1x8xf32> -> vector<4x8xf32>
    %2045 = vector.extract_strided_slice %2044 {offsets = [0, 0], sizes = [1, 8], strides = [1, 1]} : vector<4x8xf32> to vector<1x8xf32>
    %cst_474 = arith.constant 4.000000e+00 : f32
    %2046 = vector.broadcast %cst_474 : f32 to vector<1x8xf32>
    %2047 = arith.divf %2045, %2046 : vector<1x8xf32>
    %2048 = vector.extract_strided_slice %2044 {offsets = [1, 0], sizes = [1, 8], strides = [1, 1]} : vector<4x8xf32> to vector<1x8xf32>
    %cst_475 = arith.constant 4.000000e+00 : f32
    %2049 = vector.broadcast %cst_475 : f32 to vector<1x8xf32>
    %2050 = arith.divf %2048, %2049 : vector<1x8xf32>
    %2051 = arith.mulf %2047, %2047 : vector<1x8xf32>
    %2052 = arith.subf %2050, %2051 : vector<1x8xf32>
    %cst_476 = arith.constant 9.99999974E-6 : f32
    %2053 = vector.broadcast %cst_476 : f32 to vector<1x8xf32>
    %2054 = arith.addf %2052, %2053 : vector<1x8xf32>
    %2055 = math.rsqrt %2054 : vector<1x8xf32>
    %2056 = vector.extract_strided_slice %2044 {offsets = [2, 0], sizes = [1, 8], strides = [1, 1]} : vector<4x8xf32> to vector<1x8xf32>
    %cst_477 = arith.constant 4.000000e+00 : f32
    %2057 = vector.broadcast %cst_477 : f32 to vector<1x8xf32>
    %2058 = arith.divf %2056, %2057 : vector<1x8xf32>
    %2059 = vector.extract_strided_slice %2044 {offsets = [3, 0], sizes = [1, 8], strides = [1, 1]} : vector<4x8xf32> to vector<1x8xf32>
    %cst_478 = arith.constant 4.000000e+00 : f32
    %2060 = vector.broadcast %cst_478 : f32 to vector<1x8xf32>
    %2061 = arith.divf %2059, %2060 : vector<1x8xf32>
    %2062 = arith.mulf %2058, %2058 : vector<1x8xf32>
    %2063 = arith.subf %2061, %2062 : vector<1x8xf32>
    %cst_479 = arith.constant 9.99999974E-6 : f32
    %2064 = vector.broadcast %cst_479 : f32 to vector<1x8xf32>
    %2065 = arith.addf %2063, %2064 : vector<1x8xf32>
    %2066 = math.rsqrt %2065 : vector<1x8xf32>
    %c4_i32_480 = arith.constant 4 : i32
    %2067 = vector.broadcast %c4_i32_480 : i32 to vector<8x1xi32>
    %2068 = arith.cmpi sge, %666, %2067 : vector<8x1xi32>
    %2069 = vector.shape_cast %2068 : vector<8x1xi1> to vector<8x1xi1>
    %2070 = vector.broadcast %2069 : vector<8x1xi1> to vector<8x8xi1>
    %2071 = vector.shape_cast %2058 : vector<1x8xf32> to vector<1x8xf32>
    %2072 = vector.broadcast %2071 : vector<1x8xf32> to vector<8x8xf32>
    %2073 = vector.shape_cast %2047 : vector<1x8xf32> to vector<1x8xf32>
    %2074 = vector.broadcast %2073 : vector<1x8xf32> to vector<8x8xf32>
    %2075 = arith.select %2070, %2072, %2074 : vector<8x8xi1>, vector<8x8xf32>
    %2076 = vector.shape_cast %2068 : vector<8x1xi1> to vector<8x1xi1>
    %2077 = vector.broadcast %2076 : vector<8x1xi1> to vector<8x8xi1>
    %2078 = vector.shape_cast %2066 : vector<1x8xf32> to vector<1x8xf32>
    %2079 = vector.broadcast %2078 : vector<1x8xf32> to vector<8x8xf32>
    %2080 = vector.shape_cast %2055 : vector<1x8xf32> to vector<1x8xf32>
    %2081 = vector.broadcast %2080 : vector<1x8xf32> to vector<8x8xf32>
    %2082 = arith.select %2077, %2079, %2081 : vector<8x8xi1>, vector<8x8xf32>
    %2083 = arith.subf %2031, %2075 : vector<8x8xf32>
    %2084 = arith.mulf %2083, %2082 : vector<8x8xf32>
    %c66 = arith.constant 66 : index
    %c0_481 = arith.constant 0 : index
    %2085 = vector.load %arg4[%c66, %c0_481] : memref<80x32xf32, #tpu.memory_space<vmem>>, vector<1x8xf32>
    %2086 = vector.broadcast %2085 : vector<1x8xf32> to vector<8x8xf32>
    %2087 = arith.mulf %2084, %2086 : vector<8x8xf32>
    %c67 = arith.constant 67 : index
    %c0_482 = arith.constant 0 : index
    %2088 = vector.load %arg4[%c67, %c0_482] : memref<80x32xf32, #tpu.memory_space<vmem>>, vector<1x8xf32>
    %2089 = vector.broadcast %2088 : vector<1x8xf32> to vector<8x8xf32>
    %2090 = arith.addf %2087, %2089 : vector<8x8xf32>
    %cst_483 = arith.constant 0.000000e+00 : f32
    %2091 = vector.broadcast %cst_483 : f32 to vector<8x8xf32>
    %2092 = arith.maximumf %2090, %2091 : vector<8x8xf32>
    %2093 = math.absf %2090 : vector<8x8xf32>
    %cst_484 = arith.constant 0.000000e+00 : f32
    %2094 = vector.broadcast %cst_484 : f32 to vector<8x8xf32>
    %2095 = arith.subf %2094, %2093 : vector<8x8xf32>
    %2096 = math.exp %2095 : vector<8x8xf32>
    %cst_485 = arith.constant 1.000000e+00 : f32
    %2097 = vector.broadcast %cst_485 : f32 to vector<8x8xf32>
    %2098 = arith.addf %2097, %2096 : vector<8x8xf32>
    %2099 = math.log %2098 : vector<8x8xf32>
    %2100 = arith.addf %2092, %2099 : vector<8x8xf32>
    %2101 = math.tanh %2100 : vector<8x8xf32>
    %2102 = arith.mulf %2090, %2101 : vector<8x8xf32>
    %2103 = arith.addf %2102, %1899 : vector<8x8xf32>
    %2104 = arith.truncf %2103 : vector<8x8xf32> to vector<8x8xbf16>
    %2105 = vector.extract_strided_slice %2104 {offsets = [7, 0], sizes = [1, 8], strides = [1, 1]} : vector<8x8xbf16> to vector<1x8xbf16>
    %2106 = vector.extract_strided_slice %2104 {offsets = [0, 0], sizes = [7, 8], strides = [1, 1]} : vector<8x8xbf16> to vector<7x8xbf16>
    %2107 = tpu.concatenate %2105, %2106 in 0 : vector<1x8xbf16>, vector<7x8xbf16> -> vector<8x8xbf16>
    %2108 = vector.broadcast %716 : vector<8x1xbf16> to vector<8x8xbf16>
    %2109 = arith.mulf %2107, %2108 : vector<8x8xbf16>
    %2110 = tpu.concatenate %2109, %2104 in 1 : vector<8x8xbf16>, vector<8x8xbf16> -> vector<8x16xbf16>
    %c1296 = arith.constant 1296 : index
    %c0_486 = arith.constant 0 : index
    %2111 = vector.load %arg3[%c1296, %c0_486] : memref<1376x32xbf16, #tpu.memory_space<vmem>>, vector<16x8xbf16>
    %cst_487 = arith.constant dense<0.000000e+00> : vector<8x8xf32>
    %2112 = tpu.matmul %2110, %2111, %cst_487 {dimension_numbers = #tpu.dot_dimension_numbers<[1], [0], [0], [1], [0, 0, 1, 1], [], []>} : vector<8x16xbf16>, vector<16x8xbf16>, vector<8x8xf32> -> vector<8x8xf32>
    %2113 = vector.extract_strided_slice %2104 {offsets = [1, 0], sizes = [7, 8], strides = [1, 1]} : vector<8x8xbf16> to vector<7x8xbf16>
    %2114 = vector.extract_strided_slice %2104 {offsets = [0, 0], sizes = [1, 8], strides = [1, 1]} : vector<8x8xbf16> to vector<1x8xbf16>
    %2115 = tpu.concatenate %2113, %2114 in 0 : vector<7x8xbf16>, vector<1x8xbf16> -> vector<8x8xbf16>
    %2116 = vector.broadcast %736 : vector<8x1xbf16> to vector<8x8xbf16>
    %2117 = arith.mulf %2115, %2116 : vector<8x8xbf16>
    %2118 = tpu.concatenate %2104, %2117 in 1 : vector<8x8xbf16>, vector<8x8xbf16> -> vector<8x16xbf16>
    %c1312 = arith.constant 1312 : index
    %c0_488 = arith.constant 0 : index
    %2119 = vector.load %arg3[%c1312, %c0_488] : memref<1376x32xbf16, #tpu.memory_space<vmem>>, vector<16x8xbf16>
    %cst_489 = arith.constant dense<0.000000e+00> : vector<8x8xf32>
    %2120 = tpu.matmul %2118, %2119, %cst_489 {dimension_numbers = #tpu.dot_dimension_numbers<[1], [0], [0], [1], [0, 0, 1, 1], [], []>} : vector<8x16xbf16>, vector<16x8xbf16>, vector<8x8xf32> -> vector<8x8xf32>
    %2121 = tpu.iota {dimensions = array<i32: 0>} : vector<16x8xi32>
    %2122 = tpu.iota {dimensions = array<i32: 1>} : vector<16x8xi32>
    %c7_i32_490 = arith.constant 7 : i32
    %2123 = vector.broadcast %c7_i32_490 : i32 to vector<16x8xi32>
    %2124 = arith.andi %2121, %2123 : vector<16x8xi32>
    %c3_i32_491 = arith.constant 3 : i32
    %2125 = vector.broadcast %c3_i32_491 : i32 to vector<16x8xi32>
    %2126 = arith.shrsi %2121, %2125 : vector<16x8xi32>
    %c4_i32_492 = arith.constant 4 : i32
    %2127 = vector.broadcast %c4_i32_492 : i32 to vector<16x8xi32>
    %2128 = arith.muli %2126, %2127 : vector<16x8xi32>
    %c1_i32_493 = arith.constant 1 : i32
    %2129 = vector.broadcast %c1_i32_493 : i32 to vector<16x8xi32>
    %2130 = arith.shrsi %2124, %2129 : vector<16x8xi32>
    %2131 = arith.addi %2128, %2130 : vector<16x8xi32>
    %2132 = arith.cmpi eq, %2122, %2131 : vector<16x8xi32>
    %c1_i32_494 = arith.constant 1 : i32
    %2133 = vector.broadcast %c1_i32_494 : i32 to vector<16x8xi32>
    %2134 = arith.andi %2124, %2133 : vector<16x8xi32>
    %c0_i32_495 = arith.constant 0 : i32
    %2135 = vector.broadcast %c0_i32_495 : i32 to vector<16x8xi32>
    %2136 = arith.cmpi eq, %2134, %2135 : vector<16x8xi32>
    %2137 = arith.andi %2136, %2132 : vector<16x8xi1>
    %cst_496 = arith.constant 1.000000e+00 : f32
    %cst_497 = arith.constant 0.000000e+00 : f32
    %2138 = vector.broadcast %cst_496 : f32 to vector<16x8xf32>
    %2139 = vector.broadcast %cst_497 : f32 to vector<16x8xf32>
    %2140 = arith.select %2137, %2138, %2139 : vector<16x8xi1>, vector<16x8xf32>
    %c1_i32_498 = arith.constant 1 : i32
    %2141 = vector.broadcast %c1_i32_498 : i32 to vector<16x8xi32>
    %2142 = arith.andi %2124, %2141 : vector<16x8xi32>
    %c1_i32_499 = arith.constant 1 : i32
    %2143 = vector.broadcast %c1_i32_499 : i32 to vector<16x8xi32>
    %2144 = arith.cmpi eq, %2142, %2143 : vector<16x8xi32>
    %2145 = arith.andi %2144, %2132 : vector<16x8xi1>
    %cst_500 = arith.constant 1.000000e+00 : f32
    %cst_501 = arith.constant 0.000000e+00 : f32
    %2146 = vector.broadcast %cst_500 : f32 to vector<16x8xf32>
    %2147 = vector.broadcast %cst_501 : f32 to vector<16x8xf32>
    %2148 = arith.select %2145, %2146, %2147 : vector<16x8xi1>, vector<16x8xf32>
    %cst_502 = arith.constant dense<0.000000e+00> : vector<16x8xf32>
    %2149 = tpu.matmul %2140, %2112, %cst_502 {dimension_numbers = #tpu.dot_dimension_numbers<[1], [0], [0], [1], [0, 0, 1, 1], [], []>} : vector<16x8xf32>, vector<8x8xf32>, vector<16x8xf32> -> vector<16x8xf32>
    %cst_503 = arith.constant dense<0.000000e+00> : vector<16x8xf32>
    %2150 = tpu.matmul %2148, %2120, %cst_503 {dimension_numbers = #tpu.dot_dimension_numbers<[1], [0], [0], [1], [0, 0, 1, 1], [], []>} : vector<16x8xf32>, vector<8x8xf32>, vector<16x8xf32> -> vector<16x8xf32>
    %2151 = arith.addf %2149, %2150 : vector<16x8xf32>
    %c69 = arith.constant 69 : index
    %c0_504 = arith.constant 0 : index
    %2152 = vector.load %arg4[%c69, %c0_504] : memref<80x32xf32, #tpu.memory_space<vmem>>, vector<1x8xf32>
    %2153 = vector.broadcast %2152 : vector<1x8xf32> to vector<16x8xf32>
    %2154 = arith.addf %2151, %2153 : vector<16x8xf32>
    %2155 = arith.truncf %2154 : vector<16x8xf32> to vector<16x8xbf16>
    %2156 = vector.extract_strided_slice %2155 {offsets = [14, 0], sizes = [2, 8], strides = [1, 1]} : vector<16x8xbf16> to vector<2x8xbf16>
    %2157 = vector.extract_strided_slice %2155 {offsets = [0, 0], sizes = [14, 8], strides = [1, 1]} : vector<16x8xbf16> to vector<14x8xbf16>
    %2158 = tpu.concatenate %2156, %2157 in 0 : vector<2x8xbf16>, vector<14x8xbf16> -> vector<16x8xbf16>
    %2159 = vector.broadcast %177 : vector<16x1xbf16> to vector<16x8xbf16>
    %2160 = arith.mulf %2158, %2159 : vector<16x8xbf16>
    %2161 = vector.extract_strided_slice %2155 {offsets = [15, 0], sizes = [1, 8], strides = [1, 1]} : vector<16x8xbf16> to vector<1x8xbf16>
    %2162 = vector.extract_strided_slice %2155 {offsets = [0, 0], sizes = [15, 8], strides = [1, 1]} : vector<16x8xbf16> to vector<15x8xbf16>
    %2163 = tpu.concatenate %2161, %2162 in 0 : vector<1x8xbf16>, vector<15x8xbf16> -> vector<16x8xbf16>
    %2164 = vector.broadcast %197 : vector<16x1xbf16> to vector<16x8xbf16>
    %2165 = arith.mulf %2163, %2164 : vector<16x8xbf16>
    %2166 = vector.extract_strided_slice %2155 {offsets = [1, 0], sizes = [15, 8], strides = [1, 1]} : vector<16x8xbf16> to vector<15x8xbf16>
    %2167 = vector.extract_strided_slice %2155 {offsets = [0, 0], sizes = [1, 8], strides = [1, 1]} : vector<16x8xbf16> to vector<1x8xbf16>
    %2168 = tpu.concatenate %2166, %2167 in 0 : vector<15x8xbf16>, vector<1x8xbf16> -> vector<16x8xbf16>
    %2169 = vector.broadcast %217 : vector<16x1xbf16> to vector<16x8xbf16>
    %2170 = arith.mulf %2168, %2169 : vector<16x8xbf16>
    %2171 = vector.extract_strided_slice %2155 {offsets = [2, 0], sizes = [14, 8], strides = [1, 1]} : vector<16x8xbf16> to vector<14x8xbf16>
    %2172 = vector.extract_strided_slice %2155 {offsets = [0, 0], sizes = [2, 8], strides = [1, 1]} : vector<16x8xbf16> to vector<2x8xbf16>
    %2173 = tpu.concatenate %2171, %2172 in 0 : vector<14x8xbf16>, vector<2x8xbf16> -> vector<16x8xbf16>
    %2174 = vector.broadcast %237 : vector<16x1xbf16> to vector<16x8xbf16>
    %2175 = arith.mulf %2173, %2174 : vector<16x8xbf16>
    %2176 = tpu.concatenate %2160, %2165, %2155, %2170, %2175 in 1 : vector<16x8xbf16>, vector<16x8xbf16>, vector<16x8xbf16>, vector<16x8xbf16>, vector<16x8xbf16> -> vector<16x40xbf16>
    %c1328 = arith.constant 1328 : index
    %c0_505 = arith.constant 0 : index
    %2177 = vector.load %arg3[%c1328, %c0_505] : memref<1376x32xbf16, #tpu.memory_space<vmem>>, vector<40x8xbf16>
    %cst_506 = arith.constant dense<0.000000e+00> : vector<16x8xf32>
    %2178 = tpu.matmul %2176, %2177, %cst_506 {dimension_numbers = #tpu.dot_dimension_numbers<[1], [0], [0], [1], [0, 0, 1, 1], [], []>} : vector<16x40xbf16>, vector<40x8xbf16>, vector<16x8xf32> -> vector<16x8xf32>
    %c70 = arith.constant 70 : index
    %c0_507 = arith.constant 0 : index
    %2179 = vector.load %arg4[%c70, %c0_507] : memref<80x32xf32, #tpu.memory_space<vmem>>, vector<1x8xf32>
    %2180 = vector.broadcast %2179 : vector<1x8xf32> to vector<16x8xf32>
    %2181 = arith.addf %2178, %2180 : vector<16x8xf32>
    %2182 = vector.extract_strided_slice %2181 {offsets = [0, 0], sizes = [8, 8], strides = [1, 1]} : vector<16x8xf32> to vector<8x8xf32>
    %cst_508 = arith.constant dense<0.000000e+00> : vector<8xf32>
    %2183 = vector.multi_reduction <add>, %2182, %cst_508 [0] : vector<8x8xf32> to vector<8xf32>
    %2184 = vector.shape_cast %2183 : vector<8xf32> to vector<1x8xf32>
    %2185 = arith.mulf %2182, %2182 : vector<8x8xf32>
    %cst_509 = arith.constant dense<0.000000e+00> : vector<8xf32>
    %2186 = vector.multi_reduction <add>, %2185, %cst_509 [0] : vector<8x8xf32> to vector<8xf32>
    %2187 = vector.shape_cast %2186 : vector<8xf32> to vector<1x8xf32>
    %2188 = vector.extract_strided_slice %2181 {offsets = [8, 0], sizes = [8, 8], strides = [1, 1]} : vector<16x8xf32> to vector<8x8xf32>
    %cst_510 = arith.constant dense<0.000000e+00> : vector<8xf32>
    %2189 = vector.multi_reduction <add>, %2188, %cst_510 [0] : vector<8x8xf32> to vector<8xf32>
    %2190 = vector.shape_cast %2189 : vector<8xf32> to vector<1x8xf32>
    %2191 = arith.mulf %2188, %2188 : vector<8x8xf32>
    %cst_511 = arith.constant dense<0.000000e+00> : vector<8xf32>
    %2192 = vector.multi_reduction <add>, %2191, %cst_511 [0] : vector<8x8xf32> to vector<8xf32>
    %2193 = vector.shape_cast %2192 : vector<8xf32> to vector<1x8xf32>
    %2194 = tpu.concatenate %2184, %2187, %2190, %2193 in 0 : vector<1x8xf32>, vector<1x8xf32>, vector<1x8xf32>, vector<1x8xf32> -> vector<4x8xf32>
    %2195 = vector.extract_strided_slice %2194 {offsets = [0, 0], sizes = [1, 8], strides = [1, 1]} : vector<4x8xf32> to vector<1x8xf32>
    %cst_512 = arith.constant 8.000000e+00 : f32
    %2196 = vector.broadcast %cst_512 : f32 to vector<1x8xf32>
    %2197 = arith.divf %2195, %2196 : vector<1x8xf32>
    %2198 = vector.extract_strided_slice %2194 {offsets = [1, 0], sizes = [1, 8], strides = [1, 1]} : vector<4x8xf32> to vector<1x8xf32>
    %cst_513 = arith.constant 8.000000e+00 : f32
    %2199 = vector.broadcast %cst_513 : f32 to vector<1x8xf32>
    %2200 = arith.divf %2198, %2199 : vector<1x8xf32>
    %2201 = arith.mulf %2197, %2197 : vector<1x8xf32>
    %2202 = arith.subf %2200, %2201 : vector<1x8xf32>
    %cst_514 = arith.constant 9.99999974E-6 : f32
    %2203 = vector.broadcast %cst_514 : f32 to vector<1x8xf32>
    %2204 = arith.addf %2202, %2203 : vector<1x8xf32>
    %2205 = math.rsqrt %2204 : vector<1x8xf32>
    %2206 = vector.extract_strided_slice %2194 {offsets = [2, 0], sizes = [1, 8], strides = [1, 1]} : vector<4x8xf32> to vector<1x8xf32>
    %cst_515 = arith.constant 8.000000e+00 : f32
    %2207 = vector.broadcast %cst_515 : f32 to vector<1x8xf32>
    %2208 = arith.divf %2206, %2207 : vector<1x8xf32>
    %2209 = vector.extract_strided_slice %2194 {offsets = [3, 0], sizes = [1, 8], strides = [1, 1]} : vector<4x8xf32> to vector<1x8xf32>
    %cst_516 = arith.constant 8.000000e+00 : f32
    %2210 = vector.broadcast %cst_516 : f32 to vector<1x8xf32>
    %2211 = arith.divf %2209, %2210 : vector<1x8xf32>
    %2212 = arith.mulf %2208, %2208 : vector<1x8xf32>
    %2213 = arith.subf %2211, %2212 : vector<1x8xf32>
    %cst_517 = arith.constant 9.99999974E-6 : f32
    %2214 = vector.broadcast %cst_517 : f32 to vector<1x8xf32>
    %2215 = arith.addf %2213, %2214 : vector<1x8xf32>
    %2216 = math.rsqrt %2215 : vector<1x8xf32>
    %c8_i32_518 = arith.constant 8 : i32
    %2217 = vector.broadcast %c8_i32_518 : i32 to vector<16x1xi32>
    %2218 = arith.cmpi sge, %129, %2217 : vector<16x1xi32>
    %2219 = vector.shape_cast %2218 : vector<16x1xi1> to vector<16x1xi1>
    %2220 = vector.broadcast %2219 : vector<16x1xi1> to vector<16x8xi1>
    %2221 = vector.shape_cast %2208 : vector<1x8xf32> to vector<1x8xf32>
    %2222 = vector.broadcast %2221 : vector<1x8xf32> to vector<16x8xf32>
    %2223 = vector.shape_cast %2197 : vector<1x8xf32> to vector<1x8xf32>
    %2224 = vector.broadcast %2223 : vector<1x8xf32> to vector<16x8xf32>
    %2225 = arith.select %2220, %2222, %2224 : vector<16x8xi1>, vector<16x8xf32>
    %2226 = vector.shape_cast %2218 : vector<16x1xi1> to vector<16x1xi1>
    %2227 = vector.broadcast %2226 : vector<16x1xi1> to vector<16x8xi1>
    %2228 = vector.shape_cast %2216 : vector<1x8xf32> to vector<1x8xf32>
    %2229 = vector.broadcast %2228 : vector<1x8xf32> to vector<16x8xf32>
    %2230 = vector.shape_cast %2205 : vector<1x8xf32> to vector<1x8xf32>
    %2231 = vector.broadcast %2230 : vector<1x8xf32> to vector<16x8xf32>
    %2232 = arith.select %2227, %2229, %2231 : vector<16x8xi1>, vector<16x8xf32>
    %2233 = arith.subf %2181, %2225 : vector<16x8xf32>
    %2234 = arith.mulf %2233, %2232 : vector<16x8xf32>
    %c71 = arith.constant 71 : index
    %c0_519 = arith.constant 0 : index
    %2235 = vector.load %arg4[%c71, %c0_519] : memref<80x32xf32, #tpu.memory_space<vmem>>, vector<1x8xf32>
    %2236 = vector.broadcast %2235 : vector<1x8xf32> to vector<16x8xf32>
    %2237 = arith.mulf %2234, %2236 : vector<16x8xf32>
    %c72 = arith.constant 72 : index
    %c0_520 = arith.constant 0 : index
    %2238 = vector.load %arg4[%c72, %c0_520] : memref<80x32xf32, #tpu.memory_space<vmem>>, vector<1x8xf32>
    %2239 = vector.broadcast %2238 : vector<1x8xf32> to vector<16x8xf32>
    %2240 = arith.addf %2237, %2239 : vector<16x8xf32>
    %cst_521 = arith.constant 0.000000e+00 : f32
    %2241 = vector.broadcast %cst_521 : f32 to vector<16x8xf32>
    %2242 = arith.maximumf %2240, %2241 : vector<16x8xf32>
    %2243 = math.absf %2240 : vector<16x8xf32>
    %cst_522 = arith.constant 0.000000e+00 : f32
    %2244 = vector.broadcast %cst_522 : f32 to vector<16x8xf32>
    %2245 = arith.subf %2244, %2243 : vector<16x8xf32>
    %2246 = math.exp %2245 : vector<16x8xf32>
    %cst_523 = arith.constant 1.000000e+00 : f32
    %2247 = vector.broadcast %cst_523 : f32 to vector<16x8xf32>
    %2248 = arith.addf %2247, %2246 : vector<16x8xf32>
    %2249 = math.log %2248 : vector<16x8xf32>
    %2250 = arith.addf %2242, %2249 : vector<16x8xf32>
    %2251 = math.tanh %2250 : vector<16x8xf32>
    %2252 = arith.mulf %2240, %2251 : vector<16x8xf32>
    %2253 = arith.truncf %2252 : vector<16x8xf32> to vector<16x8xbf16>
    %c1368 = arith.constant 1368 : index
    %c0_524 = arith.constant 0 : index
    %2254 = vector.load %arg3[%c1368, %c0_524] : memref<1376x32xbf16, #tpu.memory_space<vmem>>, vector<8x6xbf16>
    %cst_525 = arith.constant dense<0.000000e+00> : vector<16x6xf32>
    %2255 = tpu.matmul %2253, %2254, %cst_525 {dimension_numbers = #tpu.dot_dimension_numbers<[1], [0], [0], [1], [0, 0, 1, 1], [], []>} : vector<16x8xbf16>, vector<8x6xbf16>, vector<16x6xf32> -> vector<16x6xf32>
    %c73 = arith.constant 73 : index
    %c0_526 = arith.constant 0 : index
    %2256 = vector.load %arg4[%c73, %c0_526] : memref<80x32xf32, #tpu.memory_space<vmem>>, vector<1x6xf32>
    %2257 = vector.broadcast %2256 : vector<1x6xf32> to vector<16x6xf32>
    %2258 = arith.addf %2255, %2257 : vector<16x6xf32>
    %c0_527 = arith.constant 0 : index
    %c0_528 = arith.constant 0 : index
    %2259 = vector.load %arg5[%c0_527, %c0_528] : memref<16x6xf32, #tpu.memory_space<vmem>>, vector<16x6xf32>
    tpu.vector_store %arg5[%c0_527, %c0_528], %2258 {strides = array<i32>} : memref<16x6xf32, #tpu.memory_space<vmem>>, vector<16x6xf32>,
    return
  }
  func.func @transform_0(%arg0: i32) -> (i32, i32) {
    %c0_i32 = arith.constant 0 : i32
    %c0_i32_0 = arith.constant 0 : i32
    %c0_i32_1 = arith.constant 0 : i32
    return %c0_i32, %c0_i32_0 : i32, i32
  }
  func.func @transform_1(%arg0: i32) -> (i32, i32) {
    %c0_i32 = arith.constant 0 : i32
    %c0_i32_0 = arith.constant 0 : i32
    %c0_i32_1 = arith.constant 0 : i32
    return %c0_i32, %c0_i32_0 : i32, i32
  }
  func.func @transform_2(%arg0: i32) -> (i32, i32) {
    %c0_i32 = arith.constant 0 : i32
    %c0_i32_0 = arith.constant 0 : i32
    %c0_i32_1 = arith.constant 0 : i32
    return %c0_i32, %c0_i32_0 : i32, i32
  }
  func.func @transform_3(%arg0: i32) -> (i32, i32) {
    %c0_i32 = arith.constant 0 : i32
    %c0_i32_0 = arith.constant 0 : i32
    %c0_i32_1 = arith.constant 0 : i32
    return %c0_i32, %c0_i32_0 : i32, i32
  }
  func.func @transform_4(%arg0: i32) -> (i32, i32) {
    %c0_i32 = arith.constant 0 : i32
    %c0_i32_0 = arith.constant 0 : i32
    %c0_i32_1 = arith.constant 0 : i32
    return %c0_i32, %c0_i32_0 : i32, i32
  }
}

</mosaic_0001>

<llo_original>
// kernel: unet_forward.1
$region0: #{unet_forward.1}
  #allocation0 [shape = 'u32[]', space=smem, size = 0x4, offset = 0x4, fixed_abs, tag = 'smem constant byte address 0x4 - core index']
  #allocation1 [shape = 'u32[72,128]{1,0:T(1,128)}', space=vmem, size = 0x9000, scoped, tag = 'internal scratch']
  %s0 = inlined_call_operand.vmem [shape: f32[16,6], index: 0, kind: input, shape index: {}]
  %s1 = inlined_call_operand.vmem [shape: f32[2,8], index: 1, kind: input, shape index: {}]
  %s2 = inlined_call_operand.vmem [shape: bf16[1376,32], index: 2, kind: input, shape index: {}]
  %s3 = inlined_call_operand.vmem [shape: f32[80,32], index: 3, kind: input, shape index: {}]
  %s4 = inlined_call_operand.vmem [shape: f32[16,6], index: 4, kind: output, shape index: {}]
  %s5 = sld [smem:[#allocation0]]
  $region26: #{unet_forward.1} parent=0
    _
  %s7 = ssub.s32 1, %s5
  %s8 = scalar_select 0, %s7, %s5
  // Predicated region
  $region2: #{unet_forward.1} parent=0 // pred_check
    _
  $region3: #{unet_forward.1} parent=0 // pred_check_branch
    %10 = sbr.rel (0) target = $region5
  $region4: #{unet_forward.1} parent=0 // pred_region
    _
  $region5: #{unet_forward.1} parent=0 // pred_fallthru
    _
  // Predicated region
  $region6: #{unet_forward.1} parent=0 // pred_check
    _
  $region7: #{unet_forward.1} parent=0 // pred_check_branch
    %12 = sbr.rel (0) target = $region9
  $region8: #{unet_forward.1} parent=0 // pred_region
    _
  $region9: #{unet_forward.1} parent=0 // pred_fallthru
    _
  // Predicated region
  $region10: #{unet_forward.1} parent=0 // pred_check
    _
  $region11: #{unet_forward.1} parent=0 // pred_check_branch
    %14 = sbr.rel (0) target = $region13
  $region12: #{unet_forward.1} parent=0 // pred_region
    _
  $region13: #{unet_forward.1} parent=0 // pred_fallthru
    _
  // Predicated region
  $region14: #{unet_forward.1} parent=0 // pred_check
    _
  $region15: #{unet_forward.1} parent=0 // pred_check_branch
    %16 = sbr.rel (0) target = $region17
  $region16: #{unet_forward.1} parent=0 // pred_region
    _
  $region17: #{unet_forward.1} parent=0 // pred_fallthru
    _
  %v18 = vld [vmem:[%s1] sm:$0x3]
  %v19 = vlaneseq
  %v20 = vand.u32 %v19, 127
  %v21 = vcvt.s32.f32 %v20
  %v22 = vmul.f32 %v21, -3.0701134
  %v23 = vmul.f32 %v22, 1.442695
  %v24 = vpow.pop %v23
  %26 = vset.pattern.permute.xlu0 7
  %27 = vperm.xlu0 %26, %v18
  %v28 = vpop.permute.xlu0 %27
  %v30 = vmul.f32 %v28, %v24
  %v31 = vand.u32 2147483647, %v30
  %vm32 = vcmp.le.f32.partialorder %v31, 0.7853982
  %vm33 = vcmp.lt.s32.totalorder %v30, 0
  %v34 = vand.u32 %v30, 2139095040
  %v35 = vshrl.u32 %v34, 23
  %v36 = vsub.s32 %v35, 127
  %v37 = vand.u32 2147483647, %v30
  %v38 = vand.u32 %v37, 8388607
  %v39 = vor.u32 %v38, 8388608
  %v40 = vsub.s32 0, %v39
  %v41 = vadd.s32 %v36, 1
  %vm42 = vcmp.gt.s32.totalorder %v41, 0
  %v43 = vsel %vm42, %v41, 0
  %v44 = vshrl.u32 %v43, 5
  %v45 = vand.u32 %v43, 31
  %v46 = vsub.s32 32, %v45
  %v47 = vshrl.u32 683565275, %v46
  %v48 = vshll.u32 683565275, %v45
  %v49 = vshrl.u32 2475754826, %v46
  %v50 = vor.u32 %v48, %v49
  %v51 = vshll.u32 2475754826, %v45
  %v52 = vshrl.u32 2131351028, %v46
  %v53 = vor.u32 %v51, %v52
  %v54 = vshll.u32 2131351028, %v45
  %v55 = vshrl.u32 2102212464, %v46
  %v56 = vor.u32 %v54, %v55
  %v57 = vshll.u32 2102212464, %v45
  %v58 = vshrl.u32 920167782, %v46
  %v59 = vor.u32 %v57, %v58
  %v60 = vshll.u32 920167782, %v45
  %v61 = vshrl.u32 1326507024, %v46
  %v62 = vor.u32 %v60, %v61
  %vm63 = vcmp.lt.s32.totalorder %v44, 1
  %vm64 = vcmp.lt.s32.totalorder %v44, 2
  %vm65 = vcmp.lt.s32.totalorder %v44, 3
  %vm66 = vcmp.lt.s32.totalorder %v44, 4
  %v67 = vsel %vm63, %v47, %v50
  %v68 = vsel %vm66, %v56, 2102212464
  %v69 = vsel %vm65, %v53, %v68
  %v70 = vsel %vm64, %v67, %v69
  %v71 = vsel %vm63, %v50, %v53
  %v72 = vsel %vm66, %v59, 920167782
  %v73 = vsel %vm65, %v56, %v72
  %v74 = vsel %vm64, %v71, %v73
  %v75 = vsel %vm63, %v53, %v56
  %v76 = vsel %vm66, %v62, 1326507024
  %v77 = vsel %vm65, %v59, %v76
  %v78 = vsel %vm64, %v75, %v77
  %v79 = vshll.u32 %v39, 8
  %v80 = vand.u32 %v79, 65535
  %v81 = vshrl.u32 %v79, 16
  %v82 = vand.u32 %v78, 65535
  %v83 = vshrl.u32 %v78, 16
  %v84 = vmul.u32 %v80, %v82
  %v85 = vmul.u32 %v80, %v83
  %v86 = vmul.u32 %v81, %v82
  %v87 = vmul.u32 %v81, %v83
  %v88 = vshll.u32 %v85, 16
  %v89 = vshrl.u32 %v85, 16
  %v90 = vshll.u32 %v86, 16
  %v91 = vshrl.u32 %v86, 16
  %vm92 = vc.u32 %v84, %v88
  %v93 = vsel %vm92, 1, 0
  %v94 = vadd.s32 %v84, %v88
  %v95 = vadd.s32 %v87, %v93
  %vm96 = vc.u32 %v94, %v90
  %v97 = vsel %vm96, 1, 0
  %v98 = vadd.s32 %v94, %v90
  %v99 = vadd.s32 %v95, %v97
  %v100 = vadd.s32 %v99, %v89
  %v101 = vadd.s32 %v100, %v91
  %v102 = vand.u32 %v79, 65535
  %v103 = vshrl.u32 %v79, 16
  %v104 = vand.u32 %v74, 65535
  %v105 = vshrl.u32 %v74, 16
  %v106 = vmul.u32 %v102, %v104
  %v107 = vmul.u32 %v102, %v105
  %v108 = vmul.u32 %v103, %v104
  %v109 = vmul.u32 %v103, %v105
  %v110 = vshll.u32 %v107, 16
  %v111 = vshrl.u32 %v107, 16
  %v112 = vshll.u32 %v108, 16
  %v113 = vshrl.u32 %v108, 16
  %vm114 = vc.u32 %v106, %v110
  %v115 = vsel %vm114, 1, 0
  %v116 = vadd.s32 %v106, %v110
  %v117 = vadd.s32 %v109, %v115
  %vm118 = vc.u32 %v116, %v112
  %v119 = vsel %vm118, 1, 0
  %v120 = vadd.s32 %v116, %v112
  %v121 = vadd.s32 %v117, %v119
  %v122 = vadd.s32 %v121, %v111
  %v123 = vadd.s32 %v122, %v113
  %v124 = vmul.u32 %v79, %v70
  %v125 = vadd.s32 %v101, %v120
  %vm126 = vc.u32 %v101, %v120
  %v127 = vadd.s32 %v123, 1
  %v128 = vsel %vm126, %v127, %v123
  %v129 = vadd.s32 %v124, %v128
  %v130 = vadd.s32 %v129, 536870912
  %v131 = vshrl.u32 %v130, 30
  %v132 = vshll.u32 %v131, 30
  %v133 = vsub.s32 %v129, %v132
  %vm134 = vcmp.lt.s32.totalorder %v133, 0
  %v135 = vsub.s32 0, %v133
  %v136 = vsel %vm134, %v135, %v133
  %v137 = vclz %v136
  %v138 = vsub.s32 %v137, 2
  %vm139 = vcmp.gt.s32.totalorder 0, %v138
  %v140 = vsel %vm139, 0, %v138
  %v141 = vsub.s32 32, %v140
  %v142 = vshll.u32 %v133, %v140
  %v143 = vshrl.u32 %v125, %v141
  %v144 = vor.u32 %v142, %v143
  %v145 = vsub.s32 4294967266, %v140
  %v146 = vadd.s32 %v145, 127
  %v147 = vshll.u32 %v146, 23
  %v148 = vor.u32 4788187, %v147
  %v149 = vand.u32 2147483647, %v148
  %v151 = vcvt.s32.f32 %v144
  %v152 = vmul.f32 %v151, %v149
  %v153 = vxor.u32 %v152, 2147483648
  %v154 = vsel %vm33, %v153, %v152
  %v155 = vsub.s32 4, %v131
  %v156 = vsel %vm33, %v155, %v131
  %v157 = vsel %vm32, %v30, %v154
  %v158 = vsel %vm32, 0, %v156
  %v159 = vmul.f32 %v157, %v157
  %v160 = vmul.f32 %v159, -0.001358992
  %v161 = vadd.f32 %v160, 0.041655596
  %v162 = vmul.f32 %v159, %v161
  %v163 = vadd.f32 %v162, -0.4999988
  %v164 = vmul.f32 %v159, %v163
  %v165 = vadd.f32 1.0, %v164
  %v166 = vmul.f32 %v157, %v157
  %v167 = vmul.f32 %v166, -0.00019511016
  %v168 = vadd.f32 %v167, 0.008332121
  %v169 = vmul.f32 %v166, %v168
  %v170 = vadd.f32 %v169, -0.16666654
  %v171 = vmul.f32 %v166, %v170
  %v172 = vadd.f32 %v171, 1.0
  %v173 = vmul.f32 %v172, %v157
  %vm174 = vweird.f32 %v30
  %v175 = vadd.s32 %v158, 3
  %v176 = vand.u32 %v175, 3
  %vm177 = vcmp.lt.s32.totalorder %v176, 2
  %vm178 = vcmp.eq.s32.totalorder %v176, 0
  %v179 = vxor.u32 %v173, 2147483648
  %v180 = vsel %vm178, %v165, %v179
  %vm181 = vcmp.eq.s32.totalorder %v176, 2
  %v182 = vxor.u32 %v165, 2147483648
  %v183 = vsel %vm181, %v182, %v173
  %v184 = vsel %vm177, %v180, %v183
  %v185 = vsel %vm174, nan, %v184
  %v186 = vand.u32 2147483647, %v30
  %vm187 = vcmp.le.f32.partialorder %v186, 0.7853982
  %vm188 = vcmp.lt.s32.totalorder %v30, 0
  %v189 = vand.u32 %v30, 2139095040
  %v190 = vshrl.u32 %v189, 23
  %v191 = vsub.s32 %v190, 127
  %v192 = vand.u32 2147483647, %v30
  %v193 = vand.u32 %v192, 8388607
  %v194 = vor.u32 %v193, 8388608
  %v195 = vsub.s32 0, %v194
  %v196 = vadd.s32 %v191, 1
  %vm197 = vcmp.gt.s32.totalorder %v196, 0
  %v198 = vsel %vm197, %v196, 0
  %v199 = vshrl.u32 %v198, 5
  %v200 = vand.u32 %v198, 31
  %v201 = vsub.s32 32, %v200
  %v202 = vshrl.u32 683565275, %v201
  %v203 = vshll.u32 683565275, %v200
  %v204 = vshrl.u32 2475754826, %v201
  %v205 = vor.u32 %v203, %v204
  %v206 = vshll.u32 2475754826, %v200
  %v207 = vshrl.u32 2131351028, %v201
  %v208 = vor.u32 %v206, %v207
  %v209 = vshll.u32 2131351028, %v200
  %v210 = vshrl.u32 2102212464, %v201
  %v211 = vor.u32 %v209, %v210
  %v212 = vshll.u32 2102212464, %v200
  %v213 = vshrl.u32 920167782, %v201
  %v214 = vor.u32 %v212, %v213
  %v215 = vshll.u32 920167782, %v200
  %v216 = vshrl.u32 1326507024, %v201
  %v217 = vor.u32 %v215, %v216
  %vm218 = vcmp.lt.s32.totalorder %v199, 1
  %vm219 = vcmp.lt.s32.totalorder %v199, 2
  %vm220 = vcmp.lt.s32.totalorder %v199, 3
  %vm221 = vcmp.lt.s32.totalorder %v199, 4
  %v222 = vsel %vm218, %v202, %v205
  %v223 = vsel %vm221, %v211, 2102212464
  %v224 = vsel %vm220, %v208, %v223
  %v225 = vsel %vm219, %v222, %v224
  %v226 = vsel %vm218, %v205, %v208
  %v227 = vsel %vm221, %v214, 920167782
  %v228 = vsel %vm220, %v211, %v227
  %v229 = vsel %vm219, %v226, %v228
  %v230 = vsel %vm218, %v208, %v211
  %v231 = vsel %vm221, %v217, 1326507024
  %v232 = vsel %vm220, %v214, %v231
  %v233 = vsel %vm219, %v230, %v232
  %v234 = vshll.u32 %v194, 8
  %v235 = vand.u32 %v234, 65535
  %v236 = vshrl.u32 %v234, 16
  %v237 = vand.u32 %v233, 65535
  %v238 = vshrl.u32 %v233, 16
  %v239 = vmul.u32 %v235, %v237
  %v240 = vmul.u32 %v235, %v238
  %v241 = vmul.u32 %v236, %v237
  %v242 = vmul.u32 %v236, %v238
  %v243 = vshll.u32 %v240, 16
  %v244 = vshrl.u32 %v240, 16
  %v245 = vshll.u32 %v241, 16
  %v246 = vshrl.u32 %v241, 16
  %vm247 = vc.u32 %v239, %v243
  %v248 = vsel %vm247, 1, 0
  %v249 = vadd.s32 %v239, %v243
  %v250 = vadd.s32 %v242, %v248
  %vm251 = vc.u32 %v249, %v245
  %v252 = vsel %vm251, 1, 0
  %v253 = vadd.s32 %v249, %v245
  %v254 = vadd.s32 %v250, %v252
  %v255 = vadd.s32 %v254, %v244
  %v256 = vadd.s32 %v255, %v246
  %v257 = vand.u32 %v234, 65535
  %v258 = vshrl.u32 %v234, 16
  %v259 = vand.u32 %v229, 65535
  %v260 = vshrl.u32 %v229, 16
  %v261 = vmul.u32 %v257, %v259
  %v262 = vmul.u32 %v257, %v260
  %v263 = vmul.u32 %v258, %v259
  %v264 = vmul.u32 %v258, %v260
  %v265 = vshll.u32 %v262, 16
  %v266 = vshrl.u32 %v262, 16
  %v267 = vshll.u32 %v263, 16
  %v268 = vshrl.u32 %v263, 16
  %vm269 = vc.u32 %v261, %v265
  %v270 = vsel %vm269, 1, 0
  %v271 = vadd.s32 %v261, %v265
  %v272 = vadd.s32 %v264, %v270
  %vm273 = vc.u32 %v271, %v267
  %v274 = vsel %vm273, 1, 0
  %v275 = vadd.s32 %v271, %v267
  %v276 = vadd.s32 %v272, %v274
  %v277 = vadd.s32 %v276, %v266
  %v278 = vadd.s32 %v277, %v268
  %v279 = vmul.u32 %v234, %v225
  %v280 = vadd.s32 %v256, %v275
  %vm281 = vc.u32 %v256, %v275
  %v282 = vadd.s32 %v278, 1
  %v283 = vsel %vm281, %v282, %v278
  %v284 = vadd.s32 %v279, %v283
  %v285 = vadd.s32 %v284, 536870912
  %v286 = vshrl.u32 %v285, 30
  %v287 = vshll.u32 %v286, 30
  %v288 = vsub.s32 %v284, %v287
  %vm289 = vcmp.lt.s32.totalorder %v288, 0
  %v290 = vsub.s32 0, %v288
  %v291 = vsel %vm289, %v290, %v288
  %v292 = vclz %v291
  %v293 = vsub.s32 %v292, 2
  %vm294 = vcmp.gt.s32.totalorder 0, %v293
  %v295 = vsel %vm294, 0, %v293
  %v296 = vsub.s32 32, %v295
  %v297 = vshll.u32 %v288, %v295
  %v298 = vshrl.u32 %v280, %v296
  %v299 = vor.u32 %v297, %v298
  %v300 = vsub.s32 4294967266, %v295
  %v301 = vadd.s32 %v300, 127
  %v302 = vshll.u32 %v301, 23
  %v303 = vor.u32 4788187, %v302
  %v304 = vand.u32 2147483647, %v303
  %v306 = vcvt.s32.f32 %v299
  %v307 = vmul.f32 %v306, %v304
  %v308 = vxor.u32 %v307, 2147483648
  %v309 = vsel %vm188, %v308, %v307
  %v310 = vsub.s32 4, %v286
  %v311 = vsel %vm188, %v310, %v286
  %v312 = vsel %vm187, %v30, %v309
  %v313 = vsel %vm187, 0, %v311
  %v314 = vmul.f32 %v312, %v312
  %v315 = vmul.f32 %v314, -0.001358992
  %v316 = vadd.f32 %v315, 0.041655596
  %v317 = vmul.f32 %v314, %v316
  %v318 = vadd.f32 %v317, -0.4999988
  %v319 = vmul.f32 %v314, %v318
  %v320 = vadd.f32 1.0, %v319
  %v321 = vmul.f32 %v312, %v312
  %v322 = vmul.f32 %v321, -0.00019511016
  %v323 = vadd.f32 %v322, 0.008332121
  %v324 = vmul.f32 %v321, %v323
  %v325 = vadd.f32 %v324, -0.16666654
  %v326 = vmul.f32 %v321, %v325
  %v327 = vadd.f32 %v326, 1.0
  %v328 = vmul.f32 %v327, %v312
  %vm329 = vweird.f32 %v30
  %v330 = vand.u32 %v313, 3
  %vm331 = vcmp.lt.s32.totalorder %v330, 2
  %vm332 = vcmp.eq.s32.totalorder %v330, 0
  %v333 = vxor.u32 %v328, 2147483648
  %v334 = vsel %vm332, %v320, %v333
  %vm335 = vcmp.eq.s32.totalorder %v330, 2
  %v336 = vxor.u32 %v320, 2147483648
  %v337 = vsel %vm335, %v336, %v328
  %v338 = vsel %vm331, %v334, %v337
  %v339 = vsel %vm329, nan, %v338
  %341 = vrot.lane.b32.xlu0 %v339, 4
  %v342 = vpop.permute.xlu0 %341
  %vm344 = vcmask 31744
  %v345 = vsel %vm344, %v185, %v342
  %v346 = vpack.c.bf16 %v345, %v345
  %v347 = vld [vmem:[%s2 + $0x28] sm:$0xf]
  %v348 = vld [vmem:[%s3 + $0x6] sm:$0x1]
  %v349 = vperm.slane %v348, 0
  %vm350 = vcmask 64512
  %v352 = vsel %vm350, %v346, 0
  %vm354 = vcmask 1043456
  %v356 = vsel %vm354, %v347, 0
  %358 = vmatpush.bf16.msra.mxu0 0
  %359 = vmatpush.bf16.msra.mxu0 0
  %360 = vmatpush.bf16.msra.mxu0 0
  %361 = vmatpush.bf16.msra.mxu0 0
  %362 = vmatpush.bf16.msra.mxu0 0
  %363 = vmatpush.bf16.msra.mxu0 0
  %364 = vmatpush.bf16.msra.mxu0 0
  %365 = vmatpush.bf16.msra.mxu0 %v356
  %366 = vmatmul.bf16.gmra.mxu0 %v352
  %v367 = vpop.f32.mrf.mxu0
  %v368 = vadd.f32 %v349, %v367
  %v369 = vpop.f32.mrf.mxu0
  %370 = vdwg.mxu0
  %v371 = vmax.f32 %v368, 0.0
  %v372 = vand.u32 2147483647, %v368
  %v373 = vsub.f32 0.0, %v372
  %v374 = vmul.f32 %v373, 1.442695
  %v375 = vpow.pop %v374
  %v376 = vadd.f32 %v375, 1.0
  %v377 = vlog2.pop %v376
  %v378 = vmul.f32 %v377, 0.6931472
  %v379 = vadd.f32 %v371, %v378
  %v380 = vtanh.pop %v379
  %v381 = vmul.f32 %v368, %v380
  %v382 = vpack.c.bf16 %v381, %v381
  %v383 = vld [vmem:[%s2 + $0x2c] sm:$0xf]
  %v384 = vld [vmem:[%s2 + $0x30] sm:$0xf]
  %v385 = vld [vmem:[%s2 + $0x34] sm:$0xf]
  %v386 = vld [vmem:[%s2 + $0x38] sm:$0xf]
  %v387 = vld [vmem:[%s3 + $0x7] sm:$0x1]
  %v388 = vperm.slane %v387, 0
  %v393 = vunpack.c.l.b16 %v383
  %v394 = vunpack.c.l.b16 %v384
  %v395 = vunpack.c.l.b16 %v385
  %v396 = vunpack.c.l.b16 %v386
  %v397 = vpack.c.b16 %v394, %v393
  %v398 = vpack.c.b16 %v396, %v395
  %vm401 = vcmask 261120
  %v403 = vsel %vm401, %v382, 0
  %405 = vmatpush.bf16.msra.mxu0 0
  %406 = vmatpush.bf16.msra.mxu0 0
  %407 = vmatpush.bf16.msra.mxu0 0
  %408 = vmatpush.bf16.msra.mxu0 0
  %409 = vmatpush.bf16.msra.mxu0 0
  %410 = vmatpush.bf16.msra.mxu0 0
  %411 = vmatpush.bf16.msra.mxu0 %v398
  %412 = vmatpush.bf16.msra.mxu0 %v397
  %413 = vmatmul.bf16.gmra.mxu0 %v403
  %v414 = vpop.f32.mrf.mxu0
  %v415 = vadd.f32 %v388, %v414
  %v416 = vpop.f32.mrf.mxu0
  %417 = vdwg.mxu0
  %v418 = vmax.f32 %v415, 0.0
  %v419 = vand.u32 2147483647, %v415
  %v420 = vsub.f32 0.0, %v419
  %v421 = vmul.f32 %v420, 1.442695
  %v422 = vpow.pop %v421
  %v423 = vadd.f32 %v422, 1.0
  %v424 = vlog2.pop %v423
  %v425 = vmul.f32 %v424, 0.6931472
  %v426 = vadd.f32 %v418, %v425
  %v427 = vtanh.pop %v426
  %v428 = vmul.f32 %v415, %v427
  %v429 = vpack.c.bf16 %v18, %v18
  %v430 = vld [vmem:[%s2] sm:$0x3]
  %v431 = vld [vmem:[%s3] sm:$0x1]
  %v432 = vperm.slane %v431, 0
  %v434 = vsel %vm344, %v429, 0
  %vm436 = vcmask 1041408
  %v438 = vsel %vm436, %v430, 0
  %440 = vmatpush.bf16.msra.mxu0 0
  %441 = vmatpush.bf16.msra.mxu0 0
  %442 = vmatpush.bf16.msra.mxu0 0
  %443 = vmatpush.bf16.msra.mxu0 0
  %444 = vmatpush.bf16.msra.mxu0 0
  %445 = vmatpush.bf16.msra.mxu0 0
  %446 = vmatpush.bf16.msra.mxu0 0
  %447 = vmatpush.bf16.msra.mxu0 %v438
  %448 = vmatmul.bf16.gmra.mxu0 %v434
  %v449 = vpop.f32.mrf.mxu0
  %v450 = vadd.f32 %v432, %v449
  %v451 = vpop.f32.mrf.mxu0
  %452 = vdwg.mxu0
  %v453 = vpack.c.bf16 %v450, %v450
  %v454 = vld [vmem:[%s2 + $0x4] sm:$0xf]
  %v455 = vld [vmem:[%s2 + $0x8] sm:$0x3]
  %v456 = vld [vmem:[%s3 + $0x1] sm:$0x1]
  %v457 = vperm.slane %v456, 0
  %v460 = vunpack.c.l.b16 %v454
  %v461 = vunpack.c.l.b16 %v455
  %v462 = vpack.c.b16 %v461, %v460
  %vm463 = vcmask 97280
  %v465 = vsel %vm463, %v453, 0
  %vm467 = vcmask 1045504
  %v469 = vsel %vm467, %v462, 0
  %471 = vmatpush.bf16.msra.mxu0 0
  %472 = vmatpush.bf16.msra.mxu0 0
  %473 = vmatpush.bf16.msra.mxu0 0
  %474 = vmatpush.bf16.msra.mxu0 0
  %475 = vmatpush.bf16.msra.mxu0 0
  %476 = vmatpush.bf16.msra.mxu0 0
  %477 = vmatpush.bf16.msra.mxu0 0
  %478 = vmatpush.bf16.msra.mxu0 %v469
  %479 = vmatmul.bf16.gmra.mxu0 %v465
  %v480 = vpop.f32.mrf.mxu0
  %v481 = vadd.f32 %v457, %v480
  %v482 = vpop.f32.mrf.mxu0
  %483 = vdwg.mxu0
  %v484 = vld [vmem:[%s2 + $0xc] sm:$0x1]
  %v485 = vld [vmem:[%s3 + $0x2] sm:$0x1]
  %v486 = vperm.slane %v485, 0
  %488 = vrot.lane.b32.xlu0 %v429, 124
  %v489 = vpop.permute.xlu0 %488
  %vm490 = vcmask 15360
  %v492 = vsel %vm490, %v489, 0
  %vm494 = vcmask 1040384
  %v496 = vsel %vm494, %v484, 0
  %498 = vmatpush.bf16.msra.mxu0 0
  %499 = vmatpush.bf16.msra.mxu0 0
  %500 = vmatpush.bf16.msra.mxu0 0
  %501 = vmatpush.bf16.msra.mxu0 0
  %502 = vmatpush.bf16.msra.mxu0 0
  %503 = vmatpush.bf16.msra.mxu0 0
  %504 = vmatpush.bf16.msra.mxu0 0
  %505 = vmatpush.bf16.msra.mxu0 %v496
  %506 = vmatmul.bf16.gmra.mxu0 %v492
  %v507 = vpop.f32.mrf.mxu0
  %v508 = vadd.f32 %v486, %v507
  %v509 = vpop.f32.mrf.mxu0
  %510 = vdwg.mxu0
  %v511 = vpack.c.bf16 %v508, %v508
  %v512 = vld [vmem:[%s2 + $0x10] sm:$0xf]
  %v513 = vld [vmem:[%s2 + $0x14] sm:$0x3]
  %v514 = vld [vmem:[%s3 + $0x3] sm:$0x1]
  %v515 = vperm.slane %v514, 0
  %v518 = vunpack.c.l.b16 %v512
  %v519 = vunpack.c.l.b16 %v513
  %v520 = vpack.c.b16 %v519, %v518
  %v522 = vsel %vm463, %v511, 0
  %v525 = vsel %vm467, %v520, 0
  %527 = vmatpush.bf16.msra.mxu0 0
  %528 = vmatpush.bf16.msra.mxu0 0
  %529 = vmatpush.bf16.msra.mxu0 0
  %530 = vmatpush.bf16.msra.mxu0 0
  %531 = vmatpush.bf16.msra.mxu0 0
  %532 = vmatpush.bf16.msra.mxu0 0
  %533 = vmatpush.bf16.msra.mxu0 0
  %534 = vmatpush.bf16.msra.mxu0 %v525
  %535 = vmatmul.bf16.gmra.mxu0 %v522
  %v536 = vpop.f32.mrf.mxu0
  %v537 = vadd.f32 %v515, %v536
  %v538 = vpop.f32.mrf.mxu0
  %539 = vdwg.mxu0
  %541 = vrot.lane.b32.xlu0 %v537, 4
  %v542 = vpop.permute.xlu0 %541
  %v544 = vsel %vm344, %v481, %v542
  %v545 = vpack.c.bf16 %v544, %v544
  %v546 = vld [vmem:[%s2 + $0x3c] sm:$0x7]
  %v547 = vld [vmem:[%s3 + $0x8] sm:$0x1]
  %v548 = vperm.slane %v547, 0
  %vm549 = vcmask 48128
  %v551 = vsel %vm549, %v545, 0
  %vm553 = vcmask 1042432
  %v555 = vsel %vm553, %v546, 0
  %557 = vmatpush.bf16.msra.mxu0 0
  %558 = vmatpush.bf16.msra.mxu0 0
  %559 = vmatpush.bf16.msra.mxu0 0
  %560 = vmatpush.bf16.msra.mxu0 0
  %561 = vmatpush.bf16.msra.mxu0 0
  %562 = vmatpush.bf16.msra.mxu0 0
  %563 = vmatpush.bf16.msra.mxu0 0
  %564 = vmatpush.bf16.msra.mxu0 %v555
  %565 = vmatmul.bf16.gmra.mxu0 %v551
  %v566 = vpop.f32.mrf.mxu0
  %v567 = vadd.f32 %v548, %v566
  %v568 = vpop.f32.mrf.mxu0
  %569 = vdwg.mxu0
  %570 = vset.pattern.permute.xlu0 6
  %571 = vperm.xlu0 %570, %v18
  %v572 = vpop.permute.xlu0 %571
  %v574 = vmul.f32 %v567, %v572
  %v575 = vpack.c.bf16 %v574, %v574
  %v576 = vld [vmem:[%s2 + $0x18] sm:$0xf]
  %v577 = vld [vmem:[%s2 + $0x1c] sm:$0xf]
  %v578 = vld [vmem:[%s3 + $0x4] sm:$0x1]
  %v579 = vperm.slane %v578, 0
  %v582 = vunpack.c.l.b16 %v576
  %v583 = vunpack.c.l.b16 %v577
  %v584 = vpack.c.b16 %v583, %v582
  %vm586 = vcmask 130048
  %v588 = vsel %vm586, %v575, 0
  %590 = vmatpush.bf16.msra.mxu0 0
  %591 = vmatpush.bf16.msra.mxu0 0
  %592 = vmatpush.bf16.msra.mxu0 0
  %593 = vmatpush.bf16.msra.mxu0 0
  %594 = vmatpush.bf16.msra.mxu0 0
  %595 = vmatpush.bf16.msra.mxu0 0
  %596 = vmatpush.bf16.msra.mxu0 0
  %597 = vmatpush.bf16.msra.mxu0 %v584
  %598 = vmatmul.bf16.gmra.mxu0 %v588
  %v599 = vpop.f32.mrf.mxu0
  %v600 = vadd.f32 %v579, %v599
  %v601 = vpop.f32.mrf.mxu0
  %602 = vdwg.mxu0
  %v603 = vld [vmem:[%s0] sm:$0xff]
  %v604 = vld [vmem:[%s0 + $0x8] sm:$0xff]
  %v605 = vpack.c.bf16 %v604, %v603
  %607 = vrot.lane.b32.xlu0 %v605, 126
  %v608 = vpop.permute.xlu0 %607
  %v610 = vsel %vm344, %v608, 0
  %612 = vmatpush.bf16.msra.mxu0 0
  %613 = vmatpush.bf16.msra.mxu0 0
  %614 = vmatpush.bf16.msra.mxu0 0
  %615 = vmatpush.bf16.msra.mxu0 0
  %616 = vmatpush.bf16.msra.mxu0 0
  %617 = vmatpush.bf16.msra.mxu0 0
  %618 = vmatpush.bf16.msra.mxu0 0
  %619 = vmatpush.bf16.msra.mxu0 %v438
  %620 = vmatmul.bf16.gmra.mxu0 %v610
  %v621 = vpop.f32.mrf.mxu0
  %v622 = vadd.f32 %v432, %v621
  %v623 = vpop.f32.mrf.mxu0
  %v624 = vadd.f32 %v432, %v623
  %625 = vdwg.mxu0
  %v626 = vpack.c.bf16 %v624, %v622
  %v628 = vsel %vm463, %v626, 0
  %630 = vmatpush.bf16.msra.mxu0 0
  %631 = vmatpush.bf16.msra.mxu0 0
  %632 = vmatpush.bf16.msra.mxu0 0
  %633 = vmatpush.bf16.msra.mxu0 0
  %634 = vmatpush.bf16.msra.mxu0 0
  %635 = vmatpush.bf16.msra.mxu0 0
  %636 = vmatpush.bf16.msra.mxu0 0
  %637 = vmatpush.bf16.msra.mxu0 %v469
  %638 = vmatmul.bf16.gmra.mxu0 %v628
  %v639 = vpop.f32.mrf.mxu0
  %v640 = vadd.f32 %v457, %v639
  %v641 = vpop.f32.mrf.mxu0
  %v642 = vadd.f32 %v457, %v641
  %643 = vdwg.mxu0
  %v645 = vsel %vm490, %v605, 0
  %647 = vmatpush.bf16.msra.mxu0 0
  %648 = vmatpush.bf16.msra.mxu0 0
  %649 = vmatpush.bf16.msra.mxu0 0
  %650 = vmatpush.bf16.msra.mxu0 0
  %651 = vmatpush.bf16.msra.mxu0 0
  %652 = vmatpush.bf16.msra.mxu0 0
  %653 = vmatpush.bf16.msra.mxu0 0
  %654 = vmatpush.bf16.msra.mxu0 %v496
  %655 = vmatmul.bf16.gmra.mxu0 %v645
  %v656 = vpop.f32.mrf.mxu0
  %v657 = vadd.f32 %v486, %v656
  %v658 = vpop.f32.mrf.mxu0
  %v659 = vadd.f32 %v486, %v658
  %660 = vdwg.mxu0
  %v661 = vpack.c.bf16 %v659, %v657
  %v663 = vsel %vm463, %v661, 0
  %665 = vmatpush.bf16.msra.mxu0 0
  %666 = vmatpush.bf16.msra.mxu0 0
  %667 = vmatpush.bf16.msra.mxu0 0
  %668 = vmatpush.bf16.msra.mxu0 0
  %669 = vmatpush.bf16.msra.mxu0 0
  %670 = vmatpush.bf16.msra.mxu0 0
  %671 = vmatpush.bf16.msra.mxu0 0
  %672 = vmatpush.bf16.msra.mxu0 %v525
  %673 = vmatmul.bf16.gmra.mxu0 %v663
  %v674 = vpop.f32.mrf.mxu0
  %v675 = vadd.f32 %v515, %v674
  %v676 = vpop.f32.mrf.mxu0
  %v677 = vadd.f32 %v515, %v676
  %678 = vdwg.mxu0
  %681 = vrot.lane.b32.xlu0 %v640, 2
  %v682 = vpop.permute.xlu0 %681
  %683 = vrot.lane.b32.xlu0 %v642, 2
  %v684 = vpop.permute.xlu0 %683
  %v687 = vsel %vm490, %v675, %v682
  %v688 = vsel %vm490, %v677, %v684
  %v690 = vrot.slane %v688, 7
  %v692 = vsel %vm494, %v687, %v690
  %694 = vrot.lane.b32.xlu0 %v600, 6
  %v695 = vpop.permute.xlu0 %694
  %v697 = vsel %vm549, %v692, %v695
  %v698 = vpack.c.bf16 %v697, %v697
  %v699 = vld [vmem:[%s2 + $0x20] sm:$0xf]
  %v700 = vld [vmem:[%s2 + $0x24] sm:$0x3]
  %v701 = vld [vmem:[%s3 + $0x5] sm:$0x1]
  %v702 = vperm.slane %v701, 0
  %v705 = vunpack.c.l.b16 %v699
  %v706 = vunpack.c.l.b16 %v700
  %v707 = vpack.c.b16 %v706, %v705
  %v709 = vsel %vm463, %v698, 0
  %v712 = vsel %vm467, %v707, 0
  %714 = vmatpush.bf16.msra.mxu0 0
  %715 = vmatpush.bf16.msra.mxu0 0
  %716 = vmatpush.bf16.msra.mxu0 0
  %717 = vmatpush.bf16.msra.mxu0 0
  %718 = vmatpush.bf16.msra.mxu0 0
  %719 = vmatpush.bf16.msra.mxu0 0
  %720 = vmatpush.bf16.msra.mxu0 0
  %721 = vmatpush.bf16.msra.mxu0 %v712
  %722 = vmatmul.bf16.gmra.mxu0 %v709
  %v723 = vpop.f32.mrf.mxu0
  %v724 = vadd.f32 %v702, %v723
  %v725 = vpop.f32.mrf.mxu0
  %726 = vdwg.mxu0
  %v727 = vlaneseq
  %v728 = vshrl.u32 %v727, 7
  %v729 = vadd.s32 %v728, 8
  %v730 = vand.u32 %v728, 7
  %v731 = vand.u32 %v729, 7
  %vm732 = vcmp.eq.s32.totalorder %v730, 0
  %vm733 = vcmp.eq.s32.totalorder %v731, 0
  %vm734 = vcmp.ge.s32.totalorder %v728, 8
  %vm735 = vcmp.ge.s32.totalorder %v729, 8
  %v736 = vsel %vm734, 1, 0
  %v737 = vsel %vm735, 1, 0
  %vm738 = vcmp.eq.s32.totalorder %v736, 1
  %vm739 = vcmp.eq.s32.totalorder %v737, 1
  %v740 = vperm.slane %v724, 1
  %v741 = vperm.slane %v724, 0
  %v742 = vsel %vm738, %v740, %v741
  %v743 = vsel %vm739, %v740, %v741
  %v744 = vsel %vm732, 1, 0
  %v745 = vsel %vm733, 1, 0
  %vm746 = vcmp.eq.s32.totalorder %v744, 1
  %vm747 = vcmp.eq.s32.totalorder %v745, 1
  %v748 = vsel %vm746, %v742, %v687
  %v749 = vsel %vm747, %v743, %v688
  %v750 = vperm.slane %v428, 1
  %v751 = vperm.slane %v428, 0
  %v752 = vsel %vm738, %v750, %v751
  %v753 = vsel %vm739, %v750, %v751
  %v754 = vpack.c.bf16 %v748, %v748
  %v755 = vpack.c.bf16 %v749, %v749
  %v757 = vunpack.c.l.b16 %v755
  %v758 = vpack.c.b16 %v757, %v757
  %v759 = vrot.slane %v758, 3
  %v761 = vunpack.c.l.b16 %v754
  %v762 = vpack.c.b16 %v757, %v761
  %v763 = vrot.slane %v762, 7
  %v766 = vsel %vm494, %v759, %v763
  %v768 = vadd.s32 %v730, 4294967294
  %v769 = vadd.s32 %v731, 4294967294
  %vm770 = vcmp.ge.s32.totalorder %v768, 0
  %vm771 = vcmp.ge.s32.totalorder %v769, 0
  %vm772 = vcmp.lt.s32.totalorder %v768, 8
  %vm773 = vcmp.lt.s32.totalorder %v769, 8
  %vm774 = vmand %vm770, %vm772
  %vm775 = vmand %vm771, %vm773
  %v776 = vsel %vm774, 1.0, 0.0
  %v777 = vsel %vm775, 1.0, 0.0
  %v778 = vpack.c.bf16 %v776, %v776
  %v779 = vpack.c.bf16 %v777, %v777
  %v780 = vunpack.c.l.bf16 %v766
  %v781 = vunpack.c.h.bf16 %v766
  %v782 = vunpack.c.l.bf16 %v778
  %v783 = vunpack.c.l.bf16 %v779
  %v784 = vmul.f32 %v780, %v782
  %v785 = vmul.f32 %v781, %v783
  %v786 = vpack.c.bf16 %v784, %v784
  %v787 = vpack.c.bf16 %v785, %v785
  %v789 = vshrl.u32 %v758, 16
  %v791 = vrot.slane %v789, 3
  %v794 = vshrl.u32 %v762, 16
  %v796 = vrot.slane %v794, 7
  %v797 = vshll.u32 %v762, 16
  %v799 = vor.u32 %v796, %v797
  %vm801 = vcmask 1040384
  %vm802 = vsmask.f32 256
  %vm803 = vmand %vm801, %vm802
  %v804 = vsel %vm803, %v791, %v799
  %v805 = vadd.s32 %v730, 4294967295
  %v806 = vadd.s32 %v731, 4294967295
  %vm807 = vcmp.ge.s32.totalorder %v805, 0
  %vm808 = vcmp.ge.s32.totalorder %v806, 0
  %vm809 = vcmp.lt.s32.totalorder %v805, 8
  %vm810 = vcmp.lt.s32.totalorder %v806, 8
  %vm811 = vmand %vm807, %vm809
  %vm812 = vmand %vm808, %vm810
  %v813 = vsel %vm811, 1.0, 0.0
  %v814 = vsel %vm812, 1.0, 0.0
  %v815 = vpack.c.bf16 %v813, %v813
  %v816 = vpack.c.bf16 %v814, %v814
  %v817 = vunpack.c.l.bf16 %v804
  %v818 = vunpack.c.h.bf16 %v804
  %v819 = vunpack.c.l.bf16 %v815
  %v820 = vunpack.c.l.bf16 %v816
  %v821 = vmul.f32 %v817, %v819
  %v822 = vmul.f32 %v818, %v820
  %v823 = vpack.c.bf16 %v821, %v821
  %v824 = vpack.c.bf16 %v822, %v822
  %v825 = vrot.slane %v797, 1
  %v826 = vor.u32 %v794, %v825
  %v828 = vpack.c.b16 %v761, %v761
  %v830 = vshll.u32 %v828, 16
  %v832 = vrot.slane %v830, 1
  %vm834 = vcmask 1047552
  %vm835 = vsmask.f32 7424
  %vm836 = vmand %vm834, %vm835
  %v837 = vsel %vm836, %v826, %v832
  %v838 = vadd.s32 %v730, 1
  %v839 = vadd.s32 %v731, 1
  %vm840 = vcmp.ge.s32.totalorder %v838, 0
  %vm841 = vcmp.ge.s32.totalorder %v839, 0
  %vm842 = vcmp.lt.s32.totalorder %v838, 8
  %vm843 = vcmp.lt.s32.totalorder %v839, 8
  %vm844 = vmand %vm840, %vm842
  %vm845 = vmand %vm841, %vm843
  %v846 = vsel %vm844, 1.0, 0.0
  %v847 = vsel %vm845, 1.0, 0.0
  %v848 = vpack.c.bf16 %v846, %v846
  %v849 = vpack.c.bf16 %v847, %v847
  %v850 = vunpack.c.l.bf16 %v837
  %v851 = vunpack.c.h.bf16 %v837
  %v852 = vunpack.c.l.bf16 %v848
  %v853 = vunpack.c.l.bf16 %v849
  %v854 = vmul.f32 %v850, %v852
  %v855 = vmul.f32 %v851, %v853
  %v856 = vpack.c.bf16 %v854, %v854
  %v857 = vpack.c.bf16 %v855, %v855
  %v858 = vrot.slane %v762, 1
  %v859 = vrot.slane %v828, 1
  %vm860 = vcmask 1046528
  %v863 = vsel %vm860, %v858, %v859
  %v865 = vadd.s32 %v730, 2
  %v866 = vadd.s32 %v731, 2
  %vm867 = vcmp.ge.s32.totalorder %v865, 0
  %vm868 = vcmp.ge.s32.totalorder %v866, 0
  %vm869 = vcmp.lt.s32.totalorder %v865, 8
  %vm870 = vcmp.lt.s32.totalorder %v866, 8
  %vm871 = vmand %vm867, %vm869
  %vm872 = vmand %vm868, %vm870
  %v873 = vsel %vm871, 1.0, 0.0
  %v874 = vsel %vm872, 1.0, 0.0
  %v875 = vpack.c.bf16 %v873, %v873
  %v876 = vpack.c.bf16 %v874, %v874
  %v877 = vunpack.c.l.bf16 %v863
  %v878 = vunpack.c.h.bf16 %v863
  %v879 = vunpack.c.l.bf16 %v875
  %v880 = vunpack.c.l.bf16 %v876
  %v881 = vmul.f32 %v877, %v879
  %v882 = vmul.f32 %v878, %v880
  %v883 = vpack.c.bf16 %v881, %v881
  %v884 = vpack.c.bf16 %v882, %v882
  %v887 = vunpack.c.l.b16 %v786
  %v888 = vunpack.c.l.b16 %v787
  %v889 = vpack.c.b16 %v888, %v887
  %v892 = vunpack.c.l.b16 %v823
  %v893 = vunpack.c.l.b16 %v824
  %v894 = vpack.c.b16 %v893, %v892
  %895 = vrot.lane.b32.xlu0 %v894, 6
  %v896 = vpop.permute.xlu0 %895
  %897 = vrot.lane.b32.xlu0 %v762, 12
  %v898 = vpop.permute.xlu0 %897
  %v901 = vunpack.c.l.b16 %v856
  %v902 = vunpack.c.l.b16 %v857
  %v903 = vpack.c.b16 %v902, %v901
  %904 = vrot.lane.b32.xlu0 %v903, 18
  %v905 = vpop.permute.xlu0 %904
  %v908 = vunpack.c.l.b16 %v883
  %v909 = vunpack.c.l.b16 %v884
  %v910 = vpack.c.b16 %v909, %v908
  %911 = vrot.lane.b32.xlu0 %v910, 24
  %v912 = vpop.permute.xlu0 %911
  %v915 = vsel %vm549, %v889, %v896
  %v917 = vsel %vm463, %v915, %v898
  %vm918 = vcmask 146432
  %v920 = vsel %vm918, %v917, %v905
  %vm921 = vcmask 195584
  %v923 = vsel %vm921, %v920, %v912
  %v924 = vld [vmem:[%s2 + $0x40] sm:$0xf]
  %v925 = vld [vmem:[%s2 + $0x44] sm:$0xf]
  %v926 = vld [vmem:[%s2 + $0x48] sm:$0xf]
  %v927 = vld [vmem:[%s2 + $0x4c] sm:$0x7]
  %v928 = vld [vmem:[%s3 + $0x9] sm:$0x1]
  %v929 = vperm.slane %v928, 0
  %v934 = vunpack.c.l.b16 %v924
  %v935 = vunpack.c.l.b16 %v925
  %v936 = vunpack.c.l.b16 %v926
  %v937 = vunpack.c.l.b16 %v927
  %v938 = vpack.c.b16 %v935, %v934
  %v939 = vpack.c.b16 %v937, %v936
  %vm941 = vcmask 244736
  %v942 = vsel %vm941, %v923, 0
  %v945 = vsel %vm860, %v939, 0
  %947 = vmatpush.bf16.msra.mxu0 0
  %948 = vmatpush.bf16.msra.mxu0 0
  %949 = vmatpush.bf16.msra.mxu0 0
  %950 = vmatpush.bf16.msra.mxu0 0
  %951 = vmatpush.bf16.msra.mxu0 0
  %952 = vmatpush.bf16.msra.mxu0 0
  %953 = vmatpush.bf16.msra.mxu0 %v945
  %954 = vmatpush.bf16.msra.mxu0 %v938
  %955 = vmatmul.bf16.gmra.mxu0 %v942
  %v956 = vpop.f32.mrf.mxu0
  %v957 = vadd.f32 %v929, %v956
  %v958 = vpop.f32.mrf.mxu0
  %v959 = vadd.f32 %v929, %v958
  %960 = vdwg.mxu0
  %v961 = vsel %vm350, %v957, 0.0
  %v962 = vrot.slane %v961, 4
  %v963 = vadd.f32 %v961, %v962
  %v964 = vrot.slane %v963, 2
  %v965 = vadd.f32 %v963, %v964
  %v966 = vrot.slane %v965, 1
  %v967 = vadd.f32 %v965, %v966
  %v968 = vmul.f32 %v957, %v957
  %v969 = vsel %vm350, %v968, 0.0
  %v970 = vrot.slane %v969, 4
  %v971 = vadd.f32 %v969, %v970
  %v972 = vrot.slane %v971, 2
  %v973 = vadd.f32 %v971, %v972
  %v974 = vrot.slane %v973, 1
  %v975 = vadd.f32 %v973, %v974
  %v976 = vsel %vm350, %v959, 0.0
  %v977 = vrot.slane %v976, 4
  %v978 = vadd.f32 %v976, %v977
  %v979 = vrot.slane %v978, 2
  %v980 = vadd.f32 %v978, %v979
  %v981 = vrot.slane %v980, 1
  %v982 = vadd.f32 %v980, %v981
  %v983 = vmul.f32 %v959, %v959
  %v984 = vsel %vm350, %v983, 0.0
  %v985 = vrot.slane %v984, 4
  %v986 = vadd.f32 %v984, %v985
  %v987 = vrot.slane %v986, 2
  %v988 = vadd.f32 %v986, %v987
  %v989 = vrot.slane %v988, 1
  %v990 = vadd.f32 %v988, %v989
  %v991 = vsel %vm494, %v967, %v975
  %v992 = vsel %vm436, %v991, %v982
  %v993 = vsel %vm553, %v992, %v990
  %v994 = vrcp.pop 8.0
  %v995 = vmul.f32 8.0, %v994
  %v996 = vsub.f32 1.0, %v995
  %v997 = vmul.f32 %v994, %v996
  %v998 = vadd.f32 %v994, %v997
  %vm999 = vweird.f32 %v994
  %v1000 = vsel %vm999, %v994, %v998
  %v1001 = vmul.f32 %v993, %v1000
  %v1002 = vmul.f32 %v1001, %v1001
  %v1004 = vrot.slane %v1002, 7
  %v1006 = vsub.f32 %v1001, %v1004
  %v1007 = vadd.f32 %v1006, 1e-05
  %v1008 = vrsqrt.pop %v1007
  %v1009 = vmul.f32 %v1008, %v1007
  %v1010 = vmul.f32 %v1009, %v1008
  %v1011 = vmul.f32 0.5, %v1010
  %v1012 = vsub.f32 1.5, %v1011
  %v1013 = vmul.f32 %v1008, %v1012
  %vm1014 = vweird.f32 %v1007
  %vm1015 = vweird.f32 %v1008
  %vm1016 = vmor %vm1014, %vm1015
  %v1017 = vsel %vm1016, %v1008, %v1013
  %v1018 = vperm.slane %v1001, 2
  %v1019 = vperm.slane %v1001, 0
  %v1020 = vsel %vm738, %v1018, %v1019
  %v1021 = vsel %vm739, %v1018, %v1019
  %v1022 = vperm.slane %v1017, 3
  %v1023 = vperm.slane %v1017, 1
  %v1024 = vsel %vm738, %v1022, %v1023
  %v1025 = vsel %vm739, %v1022, %v1023
  %v1026 = vsub.f32 %v957, %v1020
  %v1027 = vsub.f32 %v959, %v1021
  %v1028 = vmul.f32 %v1026, %v1024
  %v1029 = vmul.f32 %v1027, %v1025
  %v1030 = vld [vmem:[%s3 + $0xa] sm:$0x1]
  %v1031 = vperm.slane %v1030, 0
  %v1032 = vmul.f32 %v1028, %v1031
  %v1033 = vmul.f32 %v1029, %v1031
  %v1034 = vld [vmem:[%s3 + $0xb] sm:$0x1]
  %v1035 = vperm.slane %v1034, 0
  %v1036 = vadd.f32 %v1032, %v1035
  %v1037 = vadd.f32 %v1033, %v1035
  %v1038 = vmax.f32 %v1036, 0.0
  %v1039 = vmax.f32 %v1037, 0.0
  %v1040 = vand.u32 2147483647, %v1036
  %v1041 = vand.u32 2147483647, %v1037
  %v1042 = vsub.f32 0.0, %v1040
  %v1043 = vsub.f32 0.0, %v1041
  %v1044 = vmul.f32 %v1042, 1.442695
  %v1045 = vpow.pop %v1044
  %v1046 = vmul.f32 %v1043, 1.442695
  %v1047 = vpow.pop %v1046
  %v1048 = vadd.f32 %v1045, 1.0
  %v1049 = vadd.f32 %v1047, 1.0
  %v1050 = vlog2.pop %v1048
  %v1051 = vmul.f32 %v1050, 0.6931472
  %v1052 = vlog2.pop %v1049
  %v1053 = vmul.f32 %v1052, 0.6931472
  %v1054 = vadd.f32 %v1038, %v1051
  %v1055 = vadd.f32 %v1039, %v1053
  %v1056 = vtanh.pop %v1054
  %v1057 = vtanh.pop %v1055
  %v1058 = vmul.f32 %v1036, %v1056
  %v1059 = vmul.f32 %v1037, %v1057
  %v1060 = vpack.c.bf16 %v753, %v752
  %v1061 = vld [vmem:[%s2 + $0x64] sm:$0xf]
  %v1062 = vld [vmem:[%s3 + $0xf] sm:$0x1]
  %v1063 = vperm.slane %v1062, 0
  %v1065 = vsel %vm350, %v1060, 0
  %v1068 = vsel %vm354, %v1061, 0
  %1070 = vmatpush.bf16.msra.mxu0 0
  %1071 = vmatpush.bf16.msra.mxu0 0
  %1072 = vmatpush.bf16.msra.mxu0 0
  %1073 = vmatpush.bf16.msra.mxu0 0
  %1074 = vmatpush.bf16.msra.mxu0 0
  %1075 = vmatpush.bf16.msra.mxu0 0
  %1076 = vmatpush.bf16.msra.mxu0 0
  %1077 = vmatpush.bf16.msra.mxu0 %v1068
  %1078 = vmatmul.bf16.gmra.mxu0 %v1065
  %v1079 = vpop.f32.mrf.mxu0
  %v1080 = vadd.f32 %v1063, %v1079
  %v1081 = vpop.f32.mrf.mxu0
  %v1082 = vadd.f32 %v1063, %v1081
  %1083 = vdwg.mxu0
  %v1084 = vadd.f32 %v1058, %v1080
  %v1085 = vadd.f32 %v1059, %v1082
  %v1086 = vpack.c.bf16 %v1084, %v1084
  %v1087 = vpack.c.bf16 %v1085, %v1085
  %v1089 = vunpack.c.l.b16 %v1087
  %v1090 = vpack.c.b16 %v1089, %v1089
  %v1091 = vrot.slane %v1090, 3
  %v1093 = vunpack.c.l.b16 %v1086
  %v1094 = vpack.c.b16 %v1089, %v1093
  %v1095 = vrot.slane %v1094, 7
  %v1098 = vsel %vm494, %v1091, %v1095
  %v1100 = vunpack.c.l.bf16 %v1098
  %v1101 = vunpack.c.h.bf16 %v1098
  %v1102 = vmul.f32 %v1100, %v782
  %v1103 = vmul.f32 %v1101, %v783
  %v1104 = vpack.c.bf16 %v1102, %v1102
  %v1105 = vpack.c.bf16 %v1103, %v1103
  %v1107 = vshrl.u32 %v1090, 16
  %v1109 = vrot.slane %v1107, 3
  %v1112 = vshrl.u32 %v1094, 16
  %v1114 = vrot.slane %v1112, 7
  %v1115 = vshll.u32 %v1094, 16
  %v1117 = vor.u32 %v1114, %v1115
  %v1119 = vsel %vm803, %v1109, %v1117
  %v1120 = vunpack.c.l.bf16 %v1119
  %v1121 = vunpack.c.h.bf16 %v1119
  %v1122 = vmul.f32 %v1120, %v819
  %v1123 = vmul.f32 %v1121, %v820
  %v1124 = vpack.c.bf16 %v1122, %v1122
  %v1125 = vpack.c.bf16 %v1123, %v1123
  %v1126 = vrot.slane %v1115, 1
  %v1127 = vor.u32 %v1112, %v1126
  %v1129 = vpack.c.b16 %v1093, %v1093
  %v1131 = vshll.u32 %v1129, 16
  %v1133 = vrot.slane %v1131, 1
  %v1135 = vsel %vm836, %v1127, %v1133
  %v1136 = vunpack.c.l.bf16 %v1135
  %v1137 = vunpack.c.h.bf16 %v1135
  %v1138 = vmul.f32 %v1136, %v852
  %v1139 = vmul.f32 %v1137, %v853
  %v1140 = vpack.c.bf16 %v1138, %v1138
  %v1141 = vpack.c.bf16 %v1139, %v1139
  %v1142 = vrot.slane %v1094, 1
  %v1143 = vrot.slane %v1129, 1
  %v1146 = vsel %vm860, %v1142, %v1143
  %v1148 = vunpack.c.l.bf16 %v1146
  %v1149 = vunpack.c.h.bf16 %v1146
  %v1150 = vmul.f32 %v1148, %v879
  %v1151 = vmul.f32 %v1149, %v880
  %v1152 = vpack.c.bf16 %v1150, %v1150
  %v1153 = vpack.c.bf16 %v1151, %v1151
  %v1156 = vunpack.c.l.b16 %v1104
  %v1157 = vunpack.c.l.b16 %v1105
  %v1158 = vpack.c.b16 %v1157, %v1156
  %v1161 = vunpack.c.l.b16 %v1124
  %v1162 = vunpack.c.l.b16 %v1125
  %v1163 = vpack.c.b16 %v1162, %v1161
  %1164 = vrot.lane.b32.xlu0 %v1163, 8
  %v1165 = vpop.permute.xlu0 %1164
  %1166 = vrot.lane.b32.xlu0 %v1094, 16
  %v1167 = vpop.permute.xlu0 %1166
  %v1170 = vunpack.c.l.b16 %v1140
  %v1171 = vunpack.c.l.b16 %v1141
  %v1172 = vpack.c.b16 %v1171, %v1170
  %1173 = vrot.lane.b32.xlu0 %v1172, 24
  %v1174 = vpop.permute.xlu0 %1173
  %v1177 = vunpack.c.l.b16 %v1152
  %v1178 = vunpack.c.l.b16 %v1153
  %v1179 = vpack.c.b16 %v1178, %v1177
  %1180 = vrot.lane.b32.xlu0 %v1179, 32
  %v1181 = vpop.permute.xlu0 %1180
  %v1184 = vsel %vm350, %v1158, %v1165
  %v1186 = vsel %vm586, %v1184, %v1167
  %v1188 = vsel %vm921, %v1186, %v1174
  %v1190 = vsel %vm401, %v1188, %v1181
  %v1191 = vld [vmem:[%s2 + $0x50] sm:$0xf]
  %v1192 = vld [vmem:[%s2 + $0x54] sm:$0xf]
  %v1193 = vld [vmem:[%s2 + $0x58] sm:$0xf]
  %v1194 = vld [vmem:[%s2 + $0x5c] sm:$0xf]
  %v1195 = vld [vmem:[%s2 + $0x60] sm:$0xf]
  %v1196 = vld [vmem:[%s3 + $0xc] sm:$0x1]
  %v1197 = vperm.slane %v1196, 0
  %v1203 = vunpack.c.l.b16 %v1191
  %v1204 = vunpack.c.l.b16 %v1192
  %v1205 = vunpack.c.l.b16 %v1193
  %v1206 = vunpack.c.l.b16 %v1194
  %v1207 = vunpack.c.l.b16 %v1195
  %v1208 = vpack.c.b16 %v1204, %v1203
  %v1209 = vpack.c.b16 %v1206, %v1205
  %v1210 = vpack.c.b16 %v1207, %v1207
  %vm1213 = vcmask 326656
  %v1214 = vsel %vm1213, %v1190, 0
  %v1217 = vsel %vm354, %v1210, 0
  %1219 = vmatpush.bf16.msra.mxu0 0
  %1220 = vmatpush.bf16.msra.mxu0 0
  %1221 = vmatpush.bf16.msra.mxu0 0
  %1222 = vmatpush.bf16.msra.mxu0 0
  %1223 = vmatpush.bf16.msra.mxu0 0
  %1224 = vmatpush.bf16.msra.mxu0 %v1217
  %1225 = vmatpush.bf16.msra.mxu0 %v1209
  %1226 = vmatpush.bf16.msra.mxu0 %v1208
  %1227 = vmatmul.bf16.gmra.mxu0 %v1214
  %v1228 = vpop.f32.mrf.mxu0
  %v1229 = vadd.f32 %v1197, %v1228
  %v1230 = vpop.f32.mrf.mxu0
  %v1231 = vadd.f32 %v1197, %v1230
  %1232 = vdwg.mxu0
  %v1233 = vsel %vm350, %v1229, 0.0
  %v1234 = vrot.slane %v1233, 4
  %v1235 = vadd.f32 %v1233, %v1234
  %v1236 = vrot.slane %v1235, 2
  %v1237 = vadd.f32 %v1235, %v1236
  %v1238 = vrot.slane %v1237, 1
  %v1239 = vadd.f32 %v1237, %v1238
  %v1240 = vmul.f32 %v1229, %v1229
  %v1241 = vsel %vm350, %v1240, 0.0
  %v1242 = vrot.slane %v1241, 4
  %v1243 = vadd.f32 %v1241, %v1242
  %v1244 = vrot.slane %v1243, 2
  %v1245 = vadd.f32 %v1243, %v1244
  %v1246 = vrot.slane %v1245, 1
  %v1247 = vadd.f32 %v1245, %v1246
  %v1248 = vsel %vm350, %v1231, 0.0
  %v1249 = vrot.slane %v1248, 4
  %v1250 = vadd.f32 %v1248, %v1249
  %v1251 = vrot.slane %v1250, 2
  %v1252 = vadd.f32 %v1250, %v1251
  %v1253 = vrot.slane %v1252, 1
  %v1254 = vadd.f32 %v1252, %v1253
  %v1255 = vmul.f32 %v1231, %v1231
  %v1256 = vsel %vm350, %v1255, 0.0
  %v1257 = vrot.slane %v1256, 4
  %v1258 = vadd.f32 %v1256, %v1257
  %v1259 = vrot.slane %v1258, 2
  %v1260 = vadd.f32 %v1258, %v1259
  %v1261 = vrot.slane %v1260, 1
  %v1262 = vadd.f32 %v1260, %v1261
  %v1263 = vsel %vm494, %v1239, %v1247
  %v1264 = vsel %vm436, %v1263, %v1254
  %v1265 = vsel %vm553, %v1264, %v1262
  %v1266 = vmul.f32 %v1265, %v1000
  %v1267 = vmul.f32 %v1266, %v1266
  %v1269 = vrot.slane %v1267, 7
  %v1271 = vsub.f32 %v1266, %v1269
  %v1272 = vadd.f32 %v1271, 1e-05
  %v1273 = vrsqrt.pop %v1272
  %v1274 = vmul.f32 %v1273, %v1272
  %v1275 = vmul.f32 %v1274, %v1273
  %v1276 = vmul.f32 0.5, %v1275
  %v1277 = vsub.f32 1.5, %v1276
  %v1278 = vmul.f32 %v1273, %v1277
  %vm1279 = vweird.f32 %v1272
  %vm1280 = vweird.f32 %v1273
  %vm1281 = vmor %vm1279, %vm1280
  %v1282 = vsel %vm1281, %v1273, %v1278
  %v1283 = vperm.slane %v1266, 2
  %v1284 = vperm.slane %v1266, 0
  %v1285 = vsel %vm738, %v1283, %v1284
  %v1286 = vsel %vm739, %v1283, %v1284
  %v1287 = vperm.slane %v1282, 3
  %v1288 = vperm.slane %v1282, 1
  %v1289 = vsel %vm738, %v1287, %v1288
  %v1290 = vsel %vm739, %v1287, %v1288
  %v1291 = vsub.f32 %v1229, %v1285
  %v1292 = vsub.f32 %v1231, %v1286
  %v1293 = vmul.f32 %v1291, %v1289
  %v1294 = vmul.f32 %v1292, %v1290
  %v1295 = vld [vmem:[%s3 + $0xd] sm:$0x1]
  %v1296 = vperm.slane %v1295, 0
  %v1297 = vmul.f32 %v1293, %v1296
  %v1298 = vmul.f32 %v1294, %v1296
  %v1299 = vld [vmem:[%s3 + $0xe] sm:$0x1]
  %v1300 = vperm.slane %v1299, 0
  %v1301 = vadd.f32 %v1297, %v1300
  %v1302 = vadd.f32 %v1298, %v1300
  %v1303 = vmax.f32 %v1301, 0.0
  %v1304 = vmax.f32 %v1302, 0.0
  %v1305 = vand.u32 2147483647, %v1301
  %v1306 = vand.u32 2147483647, %v1302
  %v1307 = vsub.f32 0.0, %v1305
  %v1308 = vsub.f32 0.0, %v1306
  %v1309 = vmul.f32 %v1307, 1.442695
  %v1310 = vpow.pop %v1309
  %v1311 = vmul.f32 %v1308, 1.442695
  %v1312 = vpow.pop %v1311
  %v1313 = vadd.f32 %v1310, 1.0
  %v1314 = vadd.f32 %v1312, 1.0
  %v1315 = vlog2.pop %v1313
  %v1316 = vmul.f32 %v1315, 0.6931472
  %v1317 = vlog2.pop %v1314
  %v1318 = vmul.f32 %v1317, 0.6931472
  %v1319 = vadd.f32 %v1303, %v1316
  %v1320 = vadd.f32 %v1304, %v1318
  %v1321 = vtanh.pop %v1319
  %v1322 = vtanh.pop %v1320
  %v1323 = vmul.f32 %v1301, %v1321
  %v1324 = vmul.f32 %v1302, %v1322
  %v1325 = vld [vmem:[%s2 + $0x68] sm:$0x7]
  %v1326 = vld [vmem:[%s3 + $0x10] sm:$0x1]
  %v1327 = vperm.slane %v1326, 0
  %v1328 = vsel %vm549, %v762, 0
  %v1331 = vsel %vm553, %v1325, 0
  %1333 = vmatpush.bf16.msra.mxu0 0
  %1334 = vmatpush.bf16.msra.mxu0 0
  %1335 = vmatpush.bf16.msra.mxu0 0
  %1336 = vmatpush.bf16.msra.mxu0 0
  %1337 = vmatpush.bf16.msra.mxu0 0
  %1338 = vmatpush.bf16.msra.mxu0 0
  %1339 = vmatpush.bf16.msra.mxu0 0
  %1340 = vmatpush.bf16.msra.mxu0 %v1331
  %1341 = vmatmul.bf16.gmra.mxu0 %v1328
  %v1342 = vpop.f32.mrf.mxu0
  %v1343 = vadd.f32 %v1327, %v1342
  %v1344 = vpop.f32.mrf.mxu0
  %v1345 = vadd.f32 %v1327, %v1344
  %1346 = vdwg.mxu0
  %v1347 = vadd.f32 %v1323, %v1343
  %v1348 = vadd.f32 %v1324, %v1345
  %v1349 = vpack.c.bf16 %v1347, %v1347
  %v1350 = vpack.c.bf16 %v1348, %v1348
  %v1352 = vunpack.c.l.b16 %v1350
  %v1353 = vpack.c.b16 %v1352, %v1352
  %v1354 = vrot.slane %v1353, 3
  %v1356 = vunpack.c.l.b16 %v1349
  %v1357 = vpack.c.b16 %v1352, %v1356
  %v1358 = vrot.slane %v1357, 7
  %v1361 = vsel %vm494, %v1354, %v1358
  %v1363 = vunpack.c.l.bf16 %v1361
  %v1364 = vunpack.c.h.bf16 %v1361
  %v1365 = vmul.f32 %v1363, %v782
  %v1366 = vmul.f32 %v1364, %v783
  %v1367 = vpack.c.bf16 %v1365, %v1365
  %v1368 = vpack.c.bf16 %v1366, %v1366
  %v1370 = vshrl.u32 %v1353, 16
  %v1372 = vrot.slane %v1370, 3
  %v1375 = vshrl.u32 %v1357, 16
  %v1377 = vrot.slane %v1375, 7
  %v1378 = vshll.u32 %v1357, 16
  %v1380 = vor.u32 %v1377, %v1378
  %v1382 = vsel %vm803, %v1372, %v1380
  %v1383 = vunpack.c.l.bf16 %v1382
  %v1384 = vunpack.c.h.bf16 %v1382
  %v1385 = vmul.f32 %v1383, %v819
  %v1386 = vmul.f32 %v1384, %v820
  %v1387 = vpack.c.bf16 %v1385, %v1385
  %v1388 = vpack.c.bf16 %v1386, %v1386
  %v1389 = vrot.slane %v1378, 1
  %v1390 = vor.u32 %v1375, %v1389
  %v1392 = vpack.c.b16 %v1356, %v1356
  %v1394 = vshll.u32 %v1392, 16
  %v1396 = vrot.slane %v1394, 1
  %v1398 = vsel %vm836, %v1390, %v1396
  %v1399 = vunpack.c.l.bf16 %v1398
  %v1400 = vunpack.c.h.bf16 %v1398
  %v1401 = vmul.f32 %v1399, %v852
  %v1402 = vmul.f32 %v1400, %v853
  %v1403 = vpack.c.bf16 %v1401, %v1401
  %v1404 = vpack.c.bf16 %v1402, %v1402
  %v1405 = vrot.slane %v1357, 1
  %v1406 = vrot.slane %v1392, 1
  %v1409 = vsel %vm860, %v1405, %v1406
  %v1411 = vunpack.c.l.bf16 %v1409
  %v1412 = vunpack.c.h.bf16 %v1409
  %v1413 = vmul.f32 %v1411, %v879
  %v1414 = vmul.f32 %v1412, %v880
  %v1415 = vpack.c.bf16 %v1413, %v1413
  %v1416 = vpack.c.bf16 %v1414, %v1414
  %v1419 = vunpack.c.l.b16 %v1367
  %v1420 = vunpack.c.l.b16 %v1368
  %v1421 = vpack.c.b16 %v1420, %v1419
  %v1424 = vunpack.c.l.b16 %v1387
  %v1425 = vunpack.c.l.b16 %v1388
  %v1426 = vpack.c.b16 %v1425, %v1424
  %1427 = vrot.lane.b32.xlu0 %v1426, 8
  %v1428 = vpop.permute.xlu0 %1427
  %1429 = vrot.lane.b32.xlu0 %v1357, 16
  %v1430 = vpop.permute.xlu0 %1429
  %v1433 = vunpack.c.l.b16 %v1403
  %v1434 = vunpack.c.l.b16 %v1404
  %v1435 = vpack.c.b16 %v1434, %v1433
  %1436 = vrot.lane.b32.xlu0 %v1435, 24
  %v1437 = vpop.permute.xlu0 %1436
  %v1440 = vunpack.c.l.b16 %v1415
  %v1441 = vunpack.c.l.b16 %v1416
  %v1442 = vpack.c.b16 %v1441, %v1440
  %1443 = vrot.lane.b32.xlu0 %v1442, 32
  %v1444 = vpop.permute.xlu0 %1443
  %v1447 = vsel %vm350, %v1421, %v1428
  %v1449 = vsel %vm586, %v1447, %v1430
  %v1451 = vsel %vm921, %v1449, %v1437
  %v1453 = vsel %vm401, %v1451, %v1444
  %v1454 = vld [vmem:[%s2 + $0x6c] sm:$0xf]
  %v1455 = vld [vmem:[%s2 + $0x70] sm:$0xf]
  %v1456 = vld [vmem:[%s2 + $0x74] sm:$0xf]
  %v1457 = vld [vmem:[%s2 + $0x78] sm:$0xf]
  %v1458 = vld [vmem:[%s2 + $0x7c] sm:$0xf]
  %v1459 = vld [vmem:[%s3 + $0x11] sm:$0x1]
  %v1460 = vperm.slane %v1459, 0
  %v1466 = vunpack.c.l.b16 %v1454
  %v1467 = vunpack.c.l.b16 %v1455
  %v1468 = vunpack.c.l.b16 %v1456
  %v1469 = vunpack.c.l.b16 %v1457
  %v1470 = vunpack.c.l.b16 %v1458
  %v1471 = vpack.c.b16 %v1467, %v1466
  %v1472 = vpack.c.b16 %v1469, %v1468
  %v1473 = vpack.c.b16 %v1470, %v1470
  %v1476 = vsel %vm1213, %v1453, 0
  %v1479 = vsel %vm354, %v1473, 0
  %1481 = vmatpush.bf16.msra.mxu0 0
  %1482 = vmatpush.bf16.msra.mxu0 0
  %1483 = vmatpush.bf16.msra.mxu0 0
  %1484 = vmatpush.bf16.msra.mxu0 0
  %1485 = vmatpush.bf16.msra.mxu0 0
  %1486 = vmatpush.bf16.msra.mxu0 %v1479
  %1487 = vmatpush.bf16.msra.mxu0 %v1472
  %1488 = vmatpush.bf16.msra.mxu0 %v1471
  %1489 = vmatmul.bf16.gmra.mxu0 %v1476
  %v1490 = vpop.f32.mrf.mxu0
  %v1491 = vadd.f32 %v1460, %v1490
  %v1492 = vpop.f32.mrf.mxu0
  %v1493 = vadd.f32 %v1460, %v1492
  %1494 = vdwg.mxu0
  %v1495 = vsel %vm350, %v1491, 0.0
  %v1496 = vrot.slane %v1495, 4
  %v1497 = vadd.f32 %v1495, %v1496
  %v1498 = vrot.slane %v1497, 2
  %v1499 = vadd.f32 %v1497, %v1498
  %v1500 = vrot.slane %v1499, 1
  %v1501 = vadd.f32 %v1499, %v1500
  %v1502 = vmul.f32 %v1491, %v1491
  %v1503 = vsel %vm350, %v1502, 0.0
  %v1504 = vrot.slane %v1503, 4
  %v1505 = vadd.f32 %v1503, %v1504
  %v1506 = vrot.slane %v1505, 2
  %v1507 = vadd.f32 %v1505, %v1506
  %v1508 = vrot.slane %v1507, 1
  %v1509 = vadd.f32 %v1507, %v1508
  %v1510 = vsel %vm350, %v1493, 0.0
  %v1511 = vrot.slane %v1510, 4
  %v1512 = vadd.f32 %v1510, %v1511
  %v1513 = vrot.slane %v1512, 2
  %v1514 = vadd.f32 %v1512, %v1513
  %v1515 = vrot.slane %v1514, 1
  %v1516 = vadd.f32 %v1514, %v1515
  %v1517 = vmul.f32 %v1493, %v1493
  %v1518 = vsel %vm350, %v1517, 0.0
  %v1519 = vrot.slane %v1518, 4
  %v1520 = vadd.f32 %v1518, %v1519
  %v1521 = vrot.slane %v1520, 2
  %v1522 = vadd.f32 %v1520, %v1521
  %v1523 = vrot.slane %v1522, 1
  %v1524 = vadd.f32 %v1522, %v1523
  %v1525 = vsel %vm494, %v1501, %v1509
  %v1526 = vsel %vm436, %v1525, %v1516
  %v1527 = vsel %vm553, %v1526, %v1524
  %v1528 = vmul.f32 %v1527, %v1000
  %v1529 = vmul.f32 %v1528, %v1528
  %v1531 = vrot.slane %v1529, 7
  %v1533 = vsub.f32 %v1528, %v1531
  %v1534 = vadd.f32 %v1533, 1e-05
  %v1535 = vrsqrt.pop %v1534
  %v1536 = vmul.f32 %v1535, %v1534
  %v1537 = vmul.f32 %v1536, %v1535
  %v1538 = vmul.f32 0.5, %v1537
  %v1539 = vsub.f32 1.5, %v1538
  %v1540 = vmul.f32 %v1535, %v1539
  %vm1541 = vweird.f32 %v1534
  %vm1542 = vweird.f32 %v1535
  %vm1543 = vmor %vm1541, %vm1542
  %v1544 = vsel %vm1543, %v1535, %v1540
  %v1545 = vperm.slane %v1528, 2
  %v1546 = vperm.slane %v1528, 0
  %v1547 = vsel %vm738, %v1545, %v1546
  %v1548 = vsel %vm739, %v1545, %v1546
  %v1549 = vperm.slane %v1544, 3
  %v1550 = vperm.slane %v1544, 1
  %v1551 = vsel %vm738, %v1549, %v1550
  %v1552 = vsel %vm739, %v1549, %v1550
  %v1553 = vsub.f32 %v1491, %v1547
  %v1554 = vsub.f32 %v1493, %v1548
  %v1555 = vmul.f32 %v1553, %v1551
  %v1556 = vmul.f32 %v1554, %v1552
  %v1557 = vld [vmem:[%s3 + $0x12] sm:$0x1]
  %v1558 = vperm.slane %v1557, 0
  %v1559 = vmul.f32 %v1555, %v1558
  %v1560 = vmul.f32 %v1556, %v1558
  %v1561 = vld [vmem:[%s3 + $0x13] sm:$0x1]
  %v1562 = vperm.slane %v1561, 0
  %v1563 = vadd.f32 %v1559, %v1562
  %v1564 = vadd.f32 %v1560, %v1562
  %v1565 = vmax.f32 %v1563, 0.0
  %v1566 = vmax.f32 %v1564, 0.0
  %v1567 = vand.u32 2147483647, %v1563
  %v1568 = vand.u32 2147483647, %v1564
  %v1569 = vsub.f32 0.0, %v1567
  %v1570 = vsub.f32 0.0, %v1568
  %v1571 = vmul.f32 %v1569, 1.442695
  %v1572 = vpow.pop %v1571
  %v1573 = vmul.f32 %v1570, 1.442695
  %v1574 = vpow.pop %v1573
  %v1575 = vadd.f32 %v1572, 1.0
  %v1576 = vadd.f32 %v1574, 1.0
  %v1577 = vlog2.pop %v1575
  %v1578 = vmul.f32 %v1577, 0.6931472
  %v1579 = vlog2.pop %v1576
  %v1580 = vmul.f32 %v1579, 0.6931472
  %v1581 = vadd.f32 %v1565, %v1578
  %v1582 = vadd.f32 %v1566, %v1580
  %v1583 = vtanh.pop %v1581
  %v1584 = vtanh.pop %v1582
  %v1585 = vmul.f32 %v1563, %v1583
  %v1586 = vmul.f32 %v1564, %v1584
  %v1587 = vld [vmem:[%s2 + $0x94] sm:$0xf]
  %v1588 = vld [vmem:[%s3 + $0x17] sm:$0x1]
  %v1589 = vperm.slane %v1588, 0
  %v1591 = vsel %vm354, %v1587, 0
  %1593 = vmatpush.bf16.msra.mxu0 0
  %1594 = vmatpush.bf16.msra.mxu0 0
  %1595 = vmatpush.bf16.msra.mxu0 0
  %1596 = vmatpush.bf16.msra.mxu0 0
  %1597 = vmatpush.bf16.msra.mxu0 0
  %1598 = vmatpush.bf16.msra.mxu0 0
  %1599 = vmatpush.bf16.msra.mxu0 0
  %1600 = vmatpush.bf16.msra.mxu0 %v1591
  %1601 = vmatmul.bf16.gmra.mxu0 %v1065
  %v1602 = vpop.f32.mrf.mxu0
  %v1603 = vadd.f32 %v1589, %v1602
  %v1604 = vpop.f32.mrf.mxu0
  %v1605 = vadd.f32 %v1589, %v1604
  %1606 = vdwg.mxu0
  %v1607 = vadd.f32 %v1585, %v1603
  %v1608 = vadd.f32 %v1586, %v1605
  %v1609 = vpack.c.bf16 %v1607, %v1607
  %v1610 = vpack.c.bf16 %v1608, %v1608
  %v1612 = vunpack.c.l.b16 %v1610
  %v1613 = vpack.c.b16 %v1612, %v1612
  %v1614 = vrot.slane %v1613, 3
  %v1616 = vunpack.c.l.b16 %v1609
  %v1617 = vpack.c.b16 %v1612, %v1616
  %v1618 = vrot.slane %v1617, 7
  %v1621 = vsel %vm494, %v1614, %v1618
  %v1623 = vunpack.c.l.bf16 %v1621
  %v1624 = vunpack.c.h.bf16 %v1621
  %v1625 = vmul.f32 %v1623, %v782
  %v1626 = vmul.f32 %v1624, %v783
  %v1627 = vpack.c.bf16 %v1625, %v1625
  %v1628 = vpack.c.bf16 %v1626, %v1626
  %v1630 = vshrl.u32 %v1613, 16
  %v1632 = vrot.slane %v1630, 3
  %v1635 = vshrl.u32 %v1617, 16
  %v1637 = vrot.slane %v1635, 7
  %v1638 = vshll.u32 %v1617, 16
  %v1640 = vor.u32 %v1637, %v1638
  %v1642 = vsel %vm803, %v1632, %v1640
  %v1643 = vunpack.c.l.bf16 %v1642
  %v1644 = vunpack.c.h.bf16 %v1642
  %v1645 = vmul.f32 %v1643, %v819
  %v1646 = vmul.f32 %v1644, %v820
  %v1647 = vpack.c.bf16 %v1645, %v1645
  %v1648 = vpack.c.bf16 %v1646, %v1646
  %v1649 = vrot.slane %v1638, 1
  %v1650 = vor.u32 %v1635, %v1649
  %v1652 = vpack.c.b16 %v1616, %v1616
  %v1654 = vshll.u32 %v1652, 16
  %v1656 = vrot.slane %v1654, 1
  %v1658 = vsel %vm836, %v1650, %v1656
  %v1659 = vunpack.c.l.bf16 %v1658
  %v1660 = vunpack.c.h.bf16 %v1658
  %v1661 = vmul.f32 %v1659, %v852
  %v1662 = vmul.f32 %v1660, %v853
  %v1663 = vpack.c.bf16 %v1661, %v1661
  %v1664 = vpack.c.bf16 %v1662, %v1662
  %v1665 = vrot.slane %v1617, 1
  %v1666 = vrot.slane %v1652, 1
  %v1669 = vsel %vm860, %v1665, %v1666
  %v1671 = vunpack.c.l.bf16 %v1669
  %v1672 = vunpack.c.h.bf16 %v1669
  %v1673 = vmul.f32 %v1671, %v879
  %v1674 = vmul.f32 %v1672, %v880
  %v1675 = vpack.c.bf16 %v1673, %v1673
  %v1676 = vpack.c.bf16 %v1674, %v1674
  %v1679 = vunpack.c.l.b16 %v1627
  %v1680 = vunpack.c.l.b16 %v1628
  %v1681 = vpack.c.b16 %v1680, %v1679
  %v1684 = vunpack.c.l.b16 %v1647
  %v1685 = vunpack.c.l.b16 %v1648
  %v1686 = vpack.c.b16 %v1685, %v1684
  %1687 = vrot.lane.b32.xlu0 %v1686, 8
  %v1688 = vpop.permute.xlu0 %1687
  %1689 = vrot.lane.b32.xlu0 %v1617, 16
  %v1690 = vpop.permute.xlu0 %1689
  %v1693 = vunpack.c.l.b16 %v1663
  %v1694 = vunpack.c.l.b16 %v1664
  %v1695 = vpack.c.b16 %v1694, %v1693
  %1696 = vrot.lane.b32.xlu0 %v1695, 24
  %v1697 = vpop.permute.xlu0 %1696
  %v1700 = vunpack.c.l.b16 %v1675
  %v1701 = vunpack.c.l.b16 %v1676
  %v1702 = vpack.c.b16 %v1701, %v1700
  %1703 = vrot.lane.b32.xlu0 %v1702, 32
  %v1704 = vpop.permute.xlu0 %1703
  %v1707 = vsel %vm350, %v1681, %v1688
  %v1709 = vsel %vm586, %v1707, %v1690
  %v1711 = vsel %vm921, %v1709, %v1697
  %v1713 = vsel %vm401, %v1711, %v1704
  %v1714 = vld [vmem:[%s2 + $0x80] sm:$0xf]
  %v1715 = vld [vmem:[%s2 + $0x84] sm:$0xf]
  %v1716 = vld [vmem:[%s2 + $0x88] sm:$0xf]
  %v1717 = vld [vmem:[%s2 + $0x8c] sm:$0xf]
  %v1718 = vld [vmem:[%s2 + $0x90] sm:$0xf]
  %v1719 = vld [vmem:[%s3 + $0x14] sm:$0x1]
  %v1720 = vperm.slane %v1719, 0
  %v1726 = vunpack.c.l.b16 %v1714
  %v1727 = vunpack.c.l.b16 %v1715
  %v1728 = vunpack.c.l.b16 %v1716
  %v1729 = vunpack.c.l.b16 %v1717
  %v1730 = vunpack.c.l.b16 %v1718
  %v1731 = vpack.c.b16 %v1727, %v1726
  %v1732 = vpack.c.b16 %v1729, %v1728
  %v1733 = vpack.c.b16 %v1730, %v1730
  %v1736 = vsel %vm1213, %v1713, 0
  %v1739 = vsel %vm354, %v1733, 0
  %1741 = vmatpush.bf16.msra.mxu0 0
  %1742 = vmatpush.bf16.msra.mxu0 0
  %1743 = vmatpush.bf16.msra.mxu0 0
  %1744 = vmatpush.bf16.msra.mxu0 0
  %1745 = vmatpush.bf16.msra.mxu0 0
  %1746 = vmatpush.bf16.msra.mxu0 %v1739
  %1747 = vmatpush.bf16.msra.mxu0 %v1732
  %1748 = vmatpush.bf16.msra.mxu0 %v1731
  %1749 = vmatmul.bf16.gmra.mxu0 %v1736
  %v1750 = vpop.f32.mrf.mxu0
  %v1751 = vadd.f32 %v1720, %v1750
  %v1752 = vpop.f32.mrf.mxu0
  %v1753 = vadd.f32 %v1720, %v1752
  %1754 = vdwg.mxu0
  %v1755 = vsel %vm350, %v1751, 0.0
  %v1756 = vrot.slane %v1755, 4
  %v1757 = vadd.f32 %v1755, %v1756
  %v1758 = vrot.slane %v1757, 2
  %v1759 = vadd.f32 %v1757, %v1758
  %v1760 = vrot.slane %v1759, 1
  %v1761 = vadd.f32 %v1759, %v1760
  %v1762 = vmul.f32 %v1751, %v1751
  %v1763 = vsel %vm350, %v1762, 0.0
  %v1764 = vrot.slane %v1763, 4
  %v1765 = vadd.f32 %v1763, %v1764
  %v1766 = vrot.slane %v1765, 2
  %v1767 = vadd.f32 %v1765, %v1766
  %v1768 = vrot.slane %v1767, 1
  %v1769 = vadd.f32 %v1767, %v1768
  %v1770 = vsel %vm350, %v1753, 0.0
  %v1771 = vrot.slane %v1770, 4
  %v1772 = vadd.f32 %v1770, %v1771
  %v1773 = vrot.slane %v1772, 2
  %v1774 = vadd.f32 %v1772, %v1773
  %v1775 = vrot.slane %v1774, 1
  %v1776 = vadd.f32 %v1774, %v1775
  %v1777 = vmul.f32 %v1753, %v1753
  %v1778 = vsel %vm350, %v1777, 0.0
  %v1779 = vrot.slane %v1778, 4
  %v1780 = vadd.f32 %v1778, %v1779
  %v1781 = vrot.slane %v1780, 2
  %v1782 = vadd.f32 %v1780, %v1781
  %v1783 = vrot.slane %v1782, 1
  %v1784 = vadd.f32 %v1782, %v1783
  %v1785 = vsel %vm494, %v1761, %v1769
  %v1786 = vsel %vm436, %v1785, %v1776
  %v1787 = vsel %vm553, %v1786, %v1784
  %v1788 = vmul.f32 %v1787, %v1000
  %v1789 = vmul.f32 %v1788, %v1788
  %v1791 = vrot.slane %v1789, 7
  %v1793 = vsub.f32 %v1788, %v1791
  %v1794 = vadd.f32 %v1793, 1e-05
  %v1795 = vrsqrt.pop %v1794
  %v1796 = vmul.f32 %v1795, %v1794
  %v1797 = vmul.f32 %v1796, %v1795
  %v1798 = vmul.f32 0.5, %v1797
  %v1799 = vsub.f32 1.5, %v1798
  %v1800 = vmul.f32 %v1795, %v1799
  %vm1801 = vweird.f32 %v1794
  %vm1802 = vweird.f32 %v1795
  %vm1803 = vmor %vm1801, %vm1802
  %v1804 = vsel %vm1803, %v1795, %v1800
  %v1805 = vperm.slane %v1788, 2
  %v1806 = vperm.slane %v1788, 0
  %v1807 = vsel %vm738, %v1805, %v1806
  %v1808 = vsel %vm739, %v1805, %v1806
  %v1809 = vperm.slane %v1804, 3
  %v1810 = vperm.slane %v1804, 1
  %v1811 = vsel %vm738, %v1809, %v1810
  %v1812 = vsel %vm739, %v1809, %v1810
  %v1813 = vsub.f32 %v1751, %v1807
  %v1814 = vsub.f32 %v1753, %v1808
  %v1815 = vmul.f32 %v1813, %v1811
  %v1816 = vmul.f32 %v1814, %v1812
  %v1817 = vld [vmem:[%s3 + $0x15] sm:$0x1]
  %v1818 = vperm.slane %v1817, 0
  %v1819 = vmul.f32 %v1815, %v1818
  %v1820 = vmul.f32 %v1816, %v1818
  %v1821 = vld [vmem:[%s3 + $0x16] sm:$0x1]
  %v1822 = vperm.slane %v1821, 0
  %v1823 = vadd.f32 %v1819, %v1822
  %v1824 = vadd.f32 %v1820, %v1822
  %v1825 = vmax.f32 %v1823, 0.0
  %v1826 = vmax.f32 %v1824, 0.0
  %v1827 = vand.u32 2147483647, %v1823
  %v1828 = vand.u32 2147483647, %v1824
  %v1829 = vsub.f32 0.0, %v1827
  %v1830 = vsub.f32 0.0, %v1828
  %v1831 = vmul.f32 %v1829, 1.442695
  %v1832 = vpow.pop %v1831
  %v1833 = vmul.f32 %v1830, 1.442695
  %v1834 = vpow.pop %v1833
  %v1835 = vadd.f32 %v1832, 1.0
  %v1836 = vadd.f32 %v1834, 1.0
  %v1837 = vlog2.pop %v1835
  %v1838 = vmul.f32 %v1837, 0.6931472
  %v1839 = vlog2.pop %v1836
  %v1840 = vmul.f32 %v1839, 0.6931472
  %v1841 = vadd.f32 %v1825, %v1838
  %v1842 = vadd.f32 %v1826, %v1840
  %v1843 = vtanh.pop %v1841
  %v1844 = vtanh.pop %v1842
  %v1845 = vmul.f32 %v1823, %v1843
  %v1846 = vmul.f32 %v1824, %v1844
  %v1847 = vadd.f32 %v1845, %v1347
  %v1848 = vadd.f32 %v1846, %v1348
  %v1849 = vpack.c.bf16 %v1847, %v1847
  %v1850 = vpack.c.bf16 %v1848, %v1848
  %v1852 = vunpack.c.l.b16 %v1850
  %v1853 = vpack.c.b16 %v1852, %v1852
  %v1855 = vshrl.u32 %v1853, 16
  %v1857 = vrot.slane %v1855, 3
  %v1860 = vunpack.c.l.b16 %v1849
  %v1861 = vpack.c.b16 %v1852, %v1860
  %v1863 = vshrl.u32 %v1861, 16
  %v1865 = vrot.slane %v1863, 7
  %v1866 = vshll.u32 %v1861, 16
  %v1868 = vor.u32 %v1865, %v1866
  %v1870 = vsel %vm803, %v1857, %v1868
  %v1871 = vunpack.c.l.bf16 %v1870
  %v1872 = vunpack.c.h.bf16 %v1870
  %v1873 = vmul.f32 %v1871, %v819
  %v1874 = vmul.f32 %v1872, %v820
  %v1875 = vpack.c.bf16 %v1873, %v1873
  %v1876 = vpack.c.bf16 %v1874, %v1874
  %v1877 = vrot.slane %v1866, 1
  %v1878 = vor.u32 %v1863, %v1877
  %v1880 = vpack.c.b16 %v1860, %v1860
  %v1882 = vshll.u32 %v1880, 16
  %v1884 = vrot.slane %v1882, 1
  %v1886 = vsel %vm836, %v1878, %v1884
  %v1887 = vunpack.c.l.bf16 %v1886
  %v1888 = vunpack.c.h.bf16 %v1886
  %v1889 = vmul.f32 %v1887, %v852
  %v1890 = vmul.f32 %v1888, %v853
  %v1891 = vpack.c.bf16 %v1889, %v1889
  %v1892 = vpack.c.bf16 %v1890, %v1890
  %v1895 = vunpack.c.l.b16 %v1875
  %v1896 = vunpack.c.l.b16 %v1876
  %v1897 = vpack.c.b16 %v1896, %v1895
  %1898 = vrot.lane.b32.xlu0 %v1861, 8
  %v1899 = vpop.permute.xlu0 %1898
  %v1902 = vunpack.c.l.b16 %v1891
  %v1903 = vunpack.c.l.b16 %v1892
  %v1904 = vpack.c.b16 %v1903, %v1902
  %1905 = vrot.lane.b32.xlu0 %v1904, 16
  %v1906 = vpop.permute.xlu0 %1905
  %v1909 = vsel %vm350, %v1897, %v1899
  %v1911 = vsel %vm586, %v1909, %v1906
  %v1912 = vld [vmem:[%s2 + $0x98] sm:$0xf]
  %v1913 = vld [vmem:[%s2 + $0x9c] sm:$0xf]
  %v1914 = vld [vmem:[%s2 + $0xa0] sm:$0xf]
  %v1915 = vld [vmem:[%s3 + $0x18] sm:$0x1]
  %v1916 = vperm.slane %v1915, 0
  %v1920 = vunpack.c.l.b16 %v1912
  %v1921 = vunpack.c.l.b16 %v1913
  %v1922 = vunpack.c.l.b16 %v1914
  %v1923 = vpack.c.b16 %v1921, %v1920
  %v1924 = vpack.c.b16 %v1922, %v1922
  %v1926 = vsel %vm921, %v1911, 0
  %v1929 = vsel %vm354, %v1924, 0
  %1931 = vmatpush.bf16.msra.mxu0 0
  %1932 = vmatpush.bf16.msra.mxu0 0
  %1933 = vmatpush.bf16.msra.mxu0 0
  %1934 = vmatpush.bf16.msra.mxu0 0
  %1935 = vmatpush.bf16.msra.mxu0 0
  %1936 = vmatpush.bf16.msra.mxu0 0
  %1937 = vmatpush.bf16.msra.mxu0 %v1929
  %1938 = vmatpush.bf16.msra.mxu0 %v1923
  %1939 = vmatmul.bf16.gmra.mxu0 %v1926
  %v1940 = vpop.f32.mrf.mxu0
  %v1941 = vadd.f32 %v1916, %v1940
  %v1942 = vpop.f32.mrf.mxu0
  %v1943 = vadd.f32 %v1916, %v1942
  %1944 = vdwg.mxu0
  %v1945 = vshra.s32 %v728, 2
  %v1946 = vmul.u32 %v1945, 8
  %v1947 = vand.u32 %v728, 3
  %v1948 = vmul.u32 %v1947, 2
  %v1949 = vadd.s32 %v1946, %v1948
  %vm1950 = vcmp.eq.s32.totalorder %v20, %v1949
  %v1951 = vsel %vm1950, 1.0, 0.0
  %v1953 = vsel %vm586, %v1951, 0
  %1955 = vmatpush.msra.mxu0 0.0
  %1956 = vmatpush.msra.mxu0 0.0
  %1957 = vmatpush.msra.mxu0 0.0
  %1958 = vmatpush.msra.mxu0 0.0
  %1959 = vmatpush.msra.mxu0 0.0
  %1960 = vmatpush.msra.mxu0 0.0
  %1961 = vmatpush.msra.mxu0 0.0
  %1962 = vmatpush.msra.mxu0 0.0
  %1963 = vmatpush.msra.mxu0 0.0
  %1964 = vmatpush.msra.mxu0 0.0
  %1965 = vmatpush.msra.mxu0 0.0
  %1966 = vmatpush.msra.mxu0 0.0
  %1967 = vmatpush.msra.mxu0 0.0
  %1968 = vmatpush.msra.mxu0 0.0
  %1969 = vmatpush.msra.mxu0 %v1943
  %1970 = vmatpush.msra.mxu0 %v1941
  %1971 = vmatmul.f32.gmra.mxu0 %v1953
  %v1972 = vpop.f32.mrf.mxu0
  %v1973 = vadd.f32 0.0, %v1972
  %1974 = vdwg.mxu0
  %vm1975 = vcmp.ge.s32.totalorder %v728, 4
  %v1976 = vsel %vm1975, 1, 0
  %vm1977 = vcmp.eq.s32.totalorder %v1976, 1
  %v1978 = vsel %vm1977, %v750, %v751
  %v1979 = vpack.c.bf16 %v1973, %v1973
  %v1981 = vunpack.c.l.b16 %v1979
  %v1982 = vpack.c.b16 %v1981, %v1981
  %v1983 = vrot.slane %v1982, 3
  %v1984 = vrot.slane %v1982, 7
  %v1987 = vsel %vm494, %v1983, %v1984
  %v1989 = vadd.s32 %v1947, 4294967294
  %vm1990 = vcmp.ge.s32.totalorder %v1989, 0
  %vm1991 = vcmp.lt.s32.totalorder %v1989, 4
  %vm1992 = vmand %vm1990, %vm1991
  %v1993 = vsel %vm1992, 1.0, 0.0
  %v1994 = vpack.c.bf16 %v1993, %v1993
  %v1995 = vunpack.c.l.bf16 %v1987
  %v1996 = vunpack.c.l.bf16 %v1994
  %v1997 = vmul.f32 %v1995, %v1996
  %v1998 = vpack.c.bf16 %v1997, %v1997
  %v2000 = vshrl.u32 %v1982, 16
  %v2002 = vrot.slane %v2000, 3
  %v2004 = vrot.slane %v2000, 7
  %v2005 = vshll.u32 %v1982, 16
  %v2007 = vor.u32 %v2004, %v2005
  %v2009 = vsel %vm803, %v2002, %v2007
  %v2010 = vadd.s32 %v1947, 4294967295
  %vm2011 = vcmp.ge.s32.totalorder %v2010, 0
  %vm2012 = vcmp.lt.s32.totalorder %v2010, 4
  %vm2013 = vmand %vm2011, %vm2012
  %v2014 = vsel %vm2013, 1.0, 0.0
  %v2015 = vpack.c.bf16 %v2014, %v2014
  %v2016 = vunpack.c.l.bf16 %v2009
  %v2017 = vunpack.c.l.bf16 %v2015
  %v2018 = vmul.f32 %v2016, %v2017
  %v2019 = vpack.c.bf16 %v2018, %v2018
  %v2020 = vrot.slane %v2005, 1
  %v2021 = vor.u32 %v2000, %v2020
  %v2023 = vrot.slane %v2005, 5
  %vm2025 = vcmask 1043456
  %vm2026 = vsmask.f32 3328
  %vm2027 = vmand %vm2025, %vm2026
  %v2028 = vsel %vm2027, %v2021, %v2023
  %v2029 = vadd.s32 %v1947, 1
  %vm2030 = vcmp.ge.s32.totalorder %v2029, 0
  %vm2031 = vcmp.lt.s32.totalorder %v2029, 4
  %vm2032 = vmand %vm2030, %vm2031
  %v2033 = vsel %vm2032, 1.0, 0.0
  %v2034 = vpack.c.bf16 %v2033, %v2033
  %v2035 = vunpack.c.l.bf16 %v2028
  %v2036 = vunpack.c.l.bf16 %v2034
  %v2037 = vmul.f32 %v2035, %v2036
  %v2038 = vpack.c.bf16 %v2037, %v2037
  %v2039 = vrot.slane %v1982, 1
  %v2040 = vrot.slane %v1982, 5
  %v2043 = vsel %vm553, %v2039, %v2040
  %v2045 = vadd.s32 %v1947, 2
  %vm2046 = vcmp.ge.s32.totalorder %v2045, 0
  %vm2047 = vcmp.lt.s32.totalorder %v2045, 4
  %vm2048 = vmand %vm2046, %vm2047
  %v2049 = vsel %vm2048, 1.0, 0.0
  %v2050 = vpack.c.bf16 %v2049, %v2049
  %v2051 = vunpack.c.l.bf16 %v2043
  %v2052 = vunpack.c.l.bf16 %v2050
  %v2053 = vmul.f32 %v2051, %v2052
  %v2054 = vpack.c.bf16 %v2053, %v2053
  %v2056 = vunpack.c.l.b16 %v2019
  %v2057 = vpack.c.b16 %v2056, %v2056
  %2058 = vrot.lane.b32.xlu0 %v2057, 8
  %v2059 = vpop.permute.xlu0 %2058
  %2060 = vrot.lane.b32.xlu0 %v1982, 16
  %v2061 = vpop.permute.xlu0 %2060
  %v2063 = vunpack.c.l.b16 %v2038
  %v2064 = vpack.c.b16 %v2063, %v2063
  %2065 = vrot.lane.b32.xlu0 %v2064, 24
  %v2066 = vpop.permute.xlu0 %2065
  %v2068 = vunpack.c.l.b16 %v2054
  %v2069 = vpack.c.b16 %v2068, %v2068
  %2070 = vrot.lane.b32.xlu0 %v2069, 32
  %v2071 = vpop.permute.xlu0 %2070
  %v2074 = vsel %vm350, %v1998, %v2059
  %v2076 = vsel %vm586, %v2074, %v2061
  %v2078 = vsel %vm921, %v2076, %v2066
  %v2080 = vsel %vm401, %v2078, %v2071
  %v2081 = vld [vmem:[%s2 + $0xa4] sm:$0xf]
  %v2082 = vld [vmem:[%s2 + $0xa8] sm:$0xf]
  %v2083 = vld [vmem:[%s2 + $0xac] sm:$0xf]
  %v2084 = vld [vmem:[%s2 + $0xb0] sm:$0xf]
  %v2085 = vld [vmem:[%s2 + $0xb4] sm:$0xf]
  %v2086 = vld [vmem:[%s3 + $0x19] sm:$0x1]
  %v2087 = vperm.slane %v2086, 0
  %v2093 = vunpack.c.l.b16 %v2081
  %v2094 = vunpack.c.l.b16 %v2082
  %v2095 = vunpack.c.l.b16 %v2083
  %v2096 = vunpack.c.l.b16 %v2084
  %v2097 = vunpack.c.l.b16 %v2085
  %v2098 = vpack.c.b16 %v2094, %v2093
  %v2099 = vpack.c.b16 %v2096, %v2095
  %v2100 = vpack.c.b16 %v2097, %v2097
  %v2103 = vsel %vm1213, %v2080, 0
  %v2106 = vsel %vm354, %v2100, 0
  %2108 = vmatpush.bf16.msra.mxu0 0
  %2109 = vmatpush.bf16.msra.mxu0 0
  %2110 = vmatpush.bf16.msra.mxu0 0
  %2111 = vmatpush.bf16.msra.mxu0 0
  %2112 = vmatpush.bf16.msra.mxu0 0
  %2113 = vmatpush.bf16.msra.mxu0 %v2106
  %2114 = vmatpush.bf16.msra.mxu0 %v2099
  %2115 = vmatpush.bf16.msra.mxu0 %v2098
  %2116 = vmatmul.bf16.gmra.mxu0 %v2103
  %v2117 = vpop.f32.mrf.mxu0
  %v2118 = vadd.f32 %v2087, %v2117
  %v2119 = vpop.f32.mrf.mxu0
  %2120 = vdwg.mxu0
  %vm2121 = vcmask 125952
  %v2122 = vsel %vm2121, %v2118, 0.0
  %v2123 = vrot.slane %v2122, 4
  %v2124 = vadd.f32 %v2122, %v2123
  %v2125 = vrot.slane %v2124, 2
  %v2126 = vadd.f32 %v2124, %v2125
  %v2127 = vrot.slane %v2126, 1
  %v2128 = vadd.f32 %v2126, %v2127
  %v2129 = vmul.f32 %v2118, %v2118
  %v2130 = vsel %vm2121, %v2129, 0.0
  %v2131 = vrot.slane %v2130, 4
  %v2132 = vadd.f32 %v2130, %v2131
  %v2133 = vrot.slane %v2132, 2
  %v2134 = vadd.f32 %v2132, %v2133
  %v2135 = vrot.slane %v2134, 1
  %v2136 = vadd.f32 %v2134, %v2135
  %v2138 = vrot.slane %v2118, 4
  %v2140 = vsel %vm2121, %v2138, 0.0
  %v2141 = vrot.slane %v2140, 4
  %v2142 = vadd.f32 %v2140, %v2141
  %v2143 = vrot.slane %v2142, 2
  %v2144 = vadd.f32 %v2142, %v2143
  %v2145 = vrot.slane %v2144, 1
  %v2146 = vadd.f32 %v2144, %v2145
  %v2148 = vrot.slane %v2129, 4
  %v2150 = vsel %vm2121, %v2148, 0.0
  %v2151 = vrot.slane %v2150, 4
  %v2152 = vadd.f32 %v2150, %v2151
  %v2153 = vrot.slane %v2152, 2
  %v2154 = vadd.f32 %v2152, %v2153
  %v2155 = vrot.slane %v2154, 1
  %v2156 = vadd.f32 %v2154, %v2155
  %v2157 = vsel %vm494, %v2128, %v2136
  %v2158 = vsel %vm436, %v2157, %v2146
  %v2159 = vsel %vm553, %v2158, %v2156
  %2161 = vrot.lane.b32.xlu0 %v2159, 127
  %v2162 = vpop.permute.xlu0 %2161
  %2164 = vrot.lane.b32.xlu0 %v2159, 15
  %v2165 = vpop.permute.xlu0 %2164
  %vm2167 = vcmask 121856
  %v2168 = vsel %vm2167, %v2162, %v2165
  %2169 = vrot.lane.b32.xlu0 %v2159, 113
  %v2170 = vpop.permute.xlu0 %2169
  %2172 = vrot.lane.b32.xlu0 %v2159, 1
  %v2173 = vpop.permute.xlu0 %2172
  %vm2175 = vcmask 7168
  %v2176 = vsel %vm2175, %v2170, %v2173
  %v2177 = vand.u32 %v20, 1
  %vm2178 = vcmp.eq.s32.totalorder %v2177, 0
  %v2179 = vsel %vm2178, 1, 0
  %vm2180 = vcmp.eq.s32.totalorder %v2179, 1
  %v2181 = vsel %vm2180, %v2168, %v2176
  %v2182 = vadd.f32 %v2159, %v2181
  %v2183 = vmul.f32 %v2182, %v1000
  %v2184 = vmul.f32 %v2183, %v2183
  %v2186 = vrot.slane %v2184, 7
  %v2188 = vsub.f32 %v2183, %v2186
  %v2189 = vadd.f32 %v2188, 1e-05
  %v2190 = vrsqrt.pop %v2189
  %v2191 = vmul.f32 %v2190, %v2189
  %v2192 = vmul.f32 %v2191, %v2190
  %v2193 = vmul.f32 0.5, %v2192
  %v2194 = vsub.f32 1.5, %v2193
  %v2195 = vmul.f32 %v2190, %v2194
  %vm2196 = vweird.f32 %v2189
  %vm2197 = vweird.f32 %v2190
  %vm2198 = vmor %vm2196, %vm2197
  %v2199 = vsel %vm2198, %v2190, %v2195
  %v2200 = vperm.slane %v2183, 2
  %v2201 = vperm.slane %v2183, 0
  %v2202 = vsel %vm1977, %v2200, %v2201
  %v2203 = vperm.slane %v2199, 3
  %v2204 = vperm.slane %v2199, 1
  %v2205 = vsel %vm1977, %v2203, %v2204
  %v2206 = vsub.f32 %v2118, %v2202
  %v2207 = vmul.f32 %v2206, %v2205
  %v2208 = vld [vmem:[%s3 + $0x1a] sm:$0x1]
  %v2209 = vperm.slane %v2208, 0
  %v2210 = vmul.f32 %v2207, %v2209
  %v2211 = vld [vmem:[%s3 + $0x1b] sm:$0x1]
  %v2212 = vperm.slane %v2211, 0
  %v2213 = vadd.f32 %v2210, %v2212
  %v2214 = vmax.f32 %v2213, 0.0
  %v2215 = vand.u32 2147483647, %v2213
  %v2216 = vsub.f32 0.0, %v2215
  %v2217 = vmul.f32 %v2216, 1.442695
  %v2218 = vpow.pop %v2217
  %v2219 = vadd.f32 %v2218, 1.0
  %v2220 = vlog2.pop %v2219
  %v2221 = vmul.f32 %v2220, 0.6931472
  %v2222 = vadd.f32 %v2214, %v2221
  %v2223 = vtanh.pop %v2222
  %v2224 = vmul.f32 %v2213, %v2223
  %v2225 = vpack.c.bf16 %v1978, %v1978
  %v2226 = vld [vmem:[%s2 + $0xe0] sm:$0xf]
  %v2227 = vld [vmem:[%s3 + $0x1f] sm:$0x1]
  %v2228 = vperm.slane %v2227, 0
  %v2230 = vsel %vm350, %v2225, 0
  %v2233 = vsel %vm354, %v2226, 0
  %2235 = vmatpush.bf16.msra.mxu0 0
  %2236 = vmatpush.bf16.msra.mxu0 0
  %2237 = vmatpush.bf16.msra.mxu0 0
  %2238 = vmatpush.bf16.msra.mxu0 0
  %2239 = vmatpush.bf16.msra.mxu0 0
  %2240 = vmatpush.bf16.msra.mxu0 0
  %2241 = vmatpush.bf16.msra.mxu0 0
  %2242 = vmatpush.bf16.msra.mxu0 %v2233
  %2243 = vmatmul.bf16.gmra.mxu0 %v2230
  %v2244 = vpop.f32.mrf.mxu0
  %v2245 = vadd.f32 %v2228, %v2244
  %v2246 = vpop.f32.mrf.mxu0
  %2247 = vdwg.mxu0
  %v2248 = vadd.f32 %v2224, %v2245
  %v2249 = vpack.c.bf16 %v2248, %v2248
  %v2251 = vunpack.c.l.b16 %v2249
  %v2252 = vpack.c.b16 %v2251, %v2251
  %v2253 = vrot.slane %v2252, 3
  %v2254 = vrot.slane %v2252, 7
  %v2257 = vsel %vm494, %v2253, %v2254
  %v2259 = vunpack.c.l.bf16 %v2257
  %v2260 = vmul.f32 %v2259, %v1996
  %v2261 = vpack.c.bf16 %v2260, %v2260
  %v2263 = vshrl.u32 %v2252, 16
  %v2265 = vrot.slane %v2263, 3
  %v2267 = vrot.slane %v2263, 7
  %v2268 = vshll.u32 %v2252, 16
  %v2270 = vor.u32 %v2267, %v2268
  %v2272 = vsel %vm803, %v2265, %v2270
  %v2273 = vunpack.c.l.bf16 %v2272
  %v2274 = vmul.f32 %v2273, %v2017
  %v2275 = vpack.c.bf16 %v2274, %v2274
  %v2276 = vrot.slane %v2268, 1
  %v2277 = vor.u32 %v2263, %v2276
  %v2279 = vrot.slane %v2268, 5
  %v2281 = vsel %vm2027, %v2277, %v2279
  %v2282 = vunpack.c.l.bf16 %v2281
  %v2283 = vmul.f32 %v2282, %v2036
  %v2284 = vpack.c.bf16 %v2283, %v2283
  %v2285 = vrot.slane %v2252, 1
  %v2286 = vrot.slane %v2252, 5
  %v2289 = vsel %vm553, %v2285, %v2286
  %v2291 = vunpack.c.l.bf16 %v2289
  %v2292 = vmul.f32 %v2291, %v2052
  %v2293 = vpack.c.bf16 %v2292, %v2292
  %v2295 = vunpack.c.l.b16 %v2275
  %v2296 = vpack.c.b16 %v2295, %v2295
  %2297 = vrot.lane.b32.xlu0 %v2296, 16
  %v2298 = vpop.permute.xlu0 %2297
  %2299 = vrot.lane.b32.xlu0 %v2252, 32
  %v2300 = vpop.permute.xlu0 %2299
  %v2302 = vunpack.c.l.b16 %v2284
  %v2303 = vpack.c.b16 %v2302, %v2302
  %2304 = vrot.lane.b32.xlu0 %v2303, 48
  %v2305 = vpop.permute.xlu0 %2304
  %v2307 = vunpack.c.l.b16 %v2293
  %v2308 = vpack.c.b16 %v2307, %v2307
  %2309 = vrot.lane.b32.xlu0 %v2308, 64
  %v2310 = vpop.permute.xlu0 %2309
  %v2313 = vsel %vm586, %v2261, %v2298
  %v2315 = vsel %vm401, %v2313, %v2300
  %vm2316 = vcmask 392192
  %v2318 = vsel %vm2316, %v2315, %v2305
  %vm2319 = vcmask 523264
  %v2321 = vsel %vm2319, %v2318, %v2310
  %v2322 = vld [vmem:[%s2 + $0xb8] sm:$0xf]
  %v2323 = vld [vmem:[%s2 + $0xbc] sm:$0xf]
  %v2324 = vld [vmem:[%s2 + $0xc0] sm:$0xf]
  %v2325 = vld [vmem:[%s2 + $0xc4] sm:$0xf]
  %v2326 = vld [vmem:[%s2 + $0xc8] sm:$0xf]
  %v2327 = vld [vmem:[%s2 + $0xcc] sm:$0xf]
  %v2328 = vld [vmem:[%s2 + $0xd0] sm:$0xf]
  %v2329 = vld [vmem:[%s2 + $0xd4] sm:$0xf]
  %v2330 = vld [vmem:[%s2 + $0xd8] sm:$0xf]
  %v2331 = vld [vmem:[%s2 + $0xdc] sm:$0xf]
  %v2332 = vld [vmem:[%s3 + $0x1c] sm:$0x1]
  %v2333 = vperm.slane %v2332, 0
  %v2344 = vunpack.c.l.b16 %v2322
  %v2345 = vunpack.c.l.b16 %v2323
  %v2346 = vunpack.c.l.b16 %v2324
  %v2347 = vunpack.c.l.b16 %v2325
  %v2348 = vunpack.c.l.b16 %v2326
  %v2349 = vunpack.c.l.b16 %v2327
  %v2350 = vunpack.c.l.b16 %v2328
  %v2351 = vunpack.c.l.b16 %v2329
  %v2352 = vunpack.c.l.b16 %v2330
  %v2353 = vunpack.c.l.b16 %v2331
  %v2354 = vpack.c.b16 %v2345, %v2344
  %v2355 = vpack.c.b16 %v2347, %v2346
  %v2356 = vpack.c.b16 %v2349, %v2348
  %v2357 = vpack.c.b16 %v2351, %v2350
  %v2358 = vpack.c.b16 %v2353, %v2352
  %vm2364 = vcmask 654336
  %v2365 = vsel %vm2364, %v2321, 0
  %2367 = vmatpush.bf16.msra.mxu0 0
  %2368 = vmatpush.bf16.msra.mxu0 0
  %2369 = vmatpush.bf16.msra.mxu0 0
  %2370 = vmatpush.bf16.msra.mxu0 %v2358
  %2371 = vmatpush.bf16.msra.mxu0 %v2357
  %2372 = vmatpush.bf16.msra.mxu0 %v2356
  %2373 = vmatpush.bf16.msra.mxu0 %v2355
  %2374 = vmatpush.bf16.msra.mxu0 %v2354
  %2375 = vmatmul.bf16.gmra.mxu0 %v2365
  %v2376 = vpop.f32.mrf.mxu0
  %v2377 = vadd.f32 %v2333, %v2376
  %v2378 = vpop.f32.mrf.mxu0
  %2379 = vdwg.mxu0
  %v2380 = vsel %vm2121, %v2377, 0.0
  %v2381 = vrot.slane %v2380, 4
  %v2382 = vadd.f32 %v2380, %v2381
  %v2383 = vrot.slane %v2382, 2
  %v2384 = vadd.f32 %v2382, %v2383
  %v2385 = vrot.slane %v2384, 1
  %v2386 = vadd.f32 %v2384, %v2385
  %v2387 = vmul.f32 %v2377, %v2377
  %v2388 = vsel %vm2121, %v2387, 0.0
  %v2389 = vrot.slane %v2388, 4
  %v2390 = vadd.f32 %v2388, %v2389
  %v2391 = vrot.slane %v2390, 2
  %v2392 = vadd.f32 %v2390, %v2391
  %v2393 = vrot.slane %v2392, 1
  %v2394 = vadd.f32 %v2392, %v2393
  %v2396 = vrot.slane %v2377, 4
  %v2398 = vsel %vm2121, %v2396, 0.0
  %v2399 = vrot.slane %v2398, 4
  %v2400 = vadd.f32 %v2398, %v2399
  %v2401 = vrot.slane %v2400, 2
  %v2402 = vadd.f32 %v2400, %v2401
  %v2403 = vrot.slane %v2402, 1
  %v2404 = vadd.f32 %v2402, %v2403
  %v2406 = vrot.slane %v2387, 4
  %v2408 = vsel %vm2121, %v2406, 0.0
  %v2409 = vrot.slane %v2408, 4
  %v2410 = vadd.f32 %v2408, %v2409
  %v2411 = vrot.slane %v2410, 2
  %v2412 = vadd.f32 %v2410, %v2411
  %v2413 = vrot.slane %v2412, 1
  %v2414 = vadd.f32 %v2412, %v2413
  %v2415 = vsel %vm494, %v2386, %v2394
  %v2416 = vsel %vm436, %v2415, %v2404
  %v2417 = vsel %vm553, %v2416, %v2414
  %2419 = vrot.lane.b32.xlu0 %v2417, 127
  %v2420 = vpop.permute.xlu0 %2419
  %2422 = vrot.lane.b32.xlu0 %v2417, 15
  %v2423 = vpop.permute.xlu0 %2422
  %v2425 = vsel %vm2167, %v2420, %v2423
  %2426 = vrot.lane.b32.xlu0 %v2417, 113
  %v2427 = vpop.permute.xlu0 %2426
  %2429 = vrot.lane.b32.xlu0 %v2417, 1
  %v2430 = vpop.permute.xlu0 %2429
  %v2432 = vsel %vm2175, %v2427, %v2430
  %v2433 = vsel %vm2180, %v2425, %v2432
  %v2434 = vadd.f32 %v2417, %v2433
  %v2435 = vmul.f32 %v2434, %v1000
  %v2436 = vmul.f32 %v2435, %v2435
  %v2438 = vrot.slane %v2436, 7
  %v2440 = vsub.f32 %v2435, %v2438
  %v2441 = vadd.f32 %v2440, 1e-05
  %v2442 = vrsqrt.pop %v2441
  %v2443 = vmul.f32 %v2442, %v2441
  %v2444 = vmul.f32 %v2443, %v2442
  %v2445 = vmul.f32 0.5, %v2444
  %v2446 = vsub.f32 1.5, %v2445
  %v2447 = vmul.f32 %v2442, %v2446
  %vm2448 = vweird.f32 %v2441
  %vm2449 = vweird.f32 %v2442
  %vm2450 = vmor %vm2448, %vm2449
  %v2451 = vsel %vm2450, %v2442, %v2447
  %v2452 = vperm.slane %v2435, 2
  %v2453 = vperm.slane %v2435, 0
  %v2454 = vsel %vm1977, %v2452, %v2453
  %v2455 = vperm.slane %v2451, 3
  %v2456 = vperm.slane %v2451, 1
  %v2457 = vsel %vm1977, %v2455, %v2456
  %v2458 = vsub.f32 %v2377, %v2454
  %v2459 = vmul.f32 %v2458, %v2457
  %v2460 = vld [vmem:[%s3 + $0x1d] sm:$0x1]
  %v2461 = vperm.slane %v2460, 0
  %v2462 = vmul.f32 %v2459, %v2461
  %v2463 = vld [vmem:[%s3 + $0x1e] sm:$0x1]
  %v2464 = vperm.slane %v2463, 0
  %v2465 = vadd.f32 %v2462, %v2464
  %v2466 = vmax.f32 %v2465, 0.0
  %v2467 = vand.u32 2147483647, %v2465
  %v2468 = vsub.f32 0.0, %v2467
  %v2469 = vmul.f32 %v2468, 1.442695
  %v2470 = vpow.pop %v2469
  %v2471 = vadd.f32 %v2470, 1.0
  %v2472 = vlog2.pop %v2471
  %v2473 = vmul.f32 %v2472, 0.6931472
  %v2474 = vadd.f32 %v2466, %v2473
  %v2475 = vtanh.pop %v2474
  %v2476 = vmul.f32 %v2465, %v2475
  %v2477 = vld [vmem:[%s2 + $0xe4] sm:$0xf]
  %v2478 = vld [vmem:[%s3 + $0x20] sm:$0x1]
  %v2479 = vperm.slane %v2478, 0
  %v2481 = vsel %vm350, %v1979, 0
  %v2484 = vsel %vm354, %v2477, 0
  %2486 = vmatpush.bf16.msra.mxu0 0
  %2487 = vmatpush.bf16.msra.mxu0 0
  %2488 = vmatpush.bf16.msra.mxu0 0
  %2489 = vmatpush.bf16.msra.mxu0 0
  %2490 = vmatpush.bf16.msra.mxu0 0
  %2491 = vmatpush.bf16.msra.mxu0 0
  %2492 = vmatpush.bf16.msra.mxu0 0
  %2493 = vmatpush.bf16.msra.mxu0 %v2484
  %2494 = vmatmul.bf16.gmra.mxu0 %v2481
  %v2495 = vpop.f32.mrf.mxu0
  %v2496 = vadd.f32 %v2479, %v2495
  %v2497 = vpop.f32.mrf.mxu0
  %2498 = vdwg.mxu0
  %v2499 = vadd.f32 %v2476, %v2496
  %v2500 = vpack.c.bf16 %v2499, %v2499
  %v2502 = vunpack.c.l.b16 %v2500
  %v2503 = vpack.c.b16 %v2502, %v2502
  %v2504 = vrot.slane %v2503, 3
  %v2505 = vrot.slane %v2503, 7
  %v2508 = vsel %vm494, %v2504, %v2505
  %v2510 = vunpack.c.l.bf16 %v2508
  %v2511 = vmul.f32 %v2510, %v1996
  %v2512 = vpack.c.bf16 %v2511, %v2511
  %v2514 = vshrl.u32 %v2503, 16
  %v2516 = vrot.slane %v2514, 3
  %v2518 = vrot.slane %v2514, 7
  %v2519 = vshll.u32 %v2503, 16
  %v2521 = vor.u32 %v2518, %v2519
  %v2523 = vsel %vm803, %v2516, %v2521
  %v2524 = vunpack.c.l.bf16 %v2523
  %v2525 = vmul.f32 %v2524, %v2017
  %v2526 = vpack.c.bf16 %v2525, %v2525
  %v2527 = vrot.slane %v2519, 1
  %v2528 = vor.u32 %v2514, %v2527
  %v2530 = vrot.slane %v2519, 5
  %v2532 = vsel %vm2027, %v2528, %v2530
  %v2533 = vunpack.c.l.bf16 %v2532
  %v2534 = vmul.f32 %v2533, %v2036
  %v2535 = vpack.c.bf16 %v2534, %v2534
  %v2536 = vrot.slane %v2503, 1
  %v2537 = vrot.slane %v2503, 5
  %v2540 = vsel %vm553, %v2536, %v2537
  %v2542 = vunpack.c.l.bf16 %v2540
  %v2543 = vmul.f32 %v2542, %v2052
  %v2544 = vpack.c.bf16 %v2543, %v2543
  %v2546 = vunpack.c.l.b16 %v2526
  %v2547 = vpack.c.b16 %v2546, %v2546
  %2548 = vrot.lane.b32.xlu0 %v2547, 16
  %v2549 = vpop.permute.xlu0 %2548
  %2550 = vrot.lane.b32.xlu0 %v2503, 32
  %v2551 = vpop.permute.xlu0 %2550
  %v2553 = vunpack.c.l.b16 %v2535
  %v2554 = vpack.c.b16 %v2553, %v2553
  %2555 = vrot.lane.b32.xlu0 %v2554, 48
  %v2556 = vpop.permute.xlu0 %2555
  %v2558 = vunpack.c.l.b16 %v2544
  %v2559 = vpack.c.b16 %v2558, %v2558
  %2560 = vrot.lane.b32.xlu0 %v2559, 64
  %v2561 = vpop.permute.xlu0 %2560
  %v2564 = vsel %vm586, %v2512, %v2549
  %v2566 = vsel %vm401, %v2564, %v2551
  %v2568 = vsel %vm2316, %v2566, %v2556
  %v2570 = vsel %vm2319, %v2568, %v2561
  %v2571 = vld [vmem:[%s2 + $0xe8] sm:$0xf]
  %v2572 = vld [vmem:[%s2 + $0xec] sm:$0xf]
  %v2573 = vld [vmem:[%s2 + $0xf0] sm:$0xf]
  %v2574 = vld [vmem:[%s2 + $0xf4] sm:$0xf]
  %v2575 = vld [vmem:[%s2 + $0xf8] sm:$0xf]
  %v2576 = vld [vmem:[%s2 + $0xfc] sm:$0xf]
  %v2577 = vld [vmem:[%s2 + $0x100] sm:$0xf]
  %v2578 = vld [vmem:[%s2 + $0x104] sm:$0xf]
  %v2579 = vld [vmem:[%s2 + $0x108] sm:$0xf]
  %v2580 = vld [vmem:[%s2 + $0x10c] sm:$0xf]
  %v2581 = vld [vmem:[%s3 + $0x21] sm:$0x1]
  %v2582 = vperm.slane %v2581, 0
  %v2593 = vunpack.c.l.b16 %v2571
  %v2594 = vunpack.c.l.b16 %v2572
  %v2595 = vunpack.c.l.b16 %v2573
  %v2596 = vunpack.c.l.b16 %v2574
  %v2597 = vunpack.c.l.b16 %v2575
  %v2598 = vunpack.c.l.b16 %v2576
  %v2599 = vunpack.c.l.b16 %v2577
  %v2600 = vunpack.c.l.b16 %v2578
  %v2601 = vunpack.c.l.b16 %v2579
  %v2602 = vunpack.c.l.b16 %v2580
  %v2603 = vpack.c.b16 %v2594, %v2593
  %v2604 = vpack.c.b16 %v2596, %v2595
  %v2605 = vpack.c.b16 %v2598, %v2597
  %v2606 = vpack.c.b16 %v2600, %v2599
  %v2607 = vpack.c.b16 %v2602, %v2601
  %v2613 = vsel %vm2364, %v2570, 0
  %2615 = vmatpush.bf16.msra.mxu0 0
  %2616 = vmatpush.bf16.msra.mxu0 0
  %2617 = vmatpush.bf16.msra.mxu0 0
  %2618 = vmatpush.bf16.msra.mxu0 %v2607
  %2619 = vmatpush.bf16.msra.mxu0 %v2606
  %2620 = vmatpush.bf16.msra.mxu0 %v2605
  %2621 = vmatpush.bf16.msra.mxu0 %v2604
  %2622 = vmatpush.bf16.msra.mxu0 %v2603
  %2623 = vmatmul.bf16.gmra.mxu0 %v2613
  %v2624 = vpop.f32.mrf.mxu0
  %v2625 = vadd.f32 %v2582, %v2624
  %v2626 = vpop.f32.mrf.mxu0
  %2627 = vdwg.mxu0
  %v2628 = vsel %vm2121, %v2625, 0.0
  %v2629 = vrot.slane %v2628, 4
  %v2630 = vadd.f32 %v2628, %v2629
  %v2631 = vrot.slane %v2630, 2
  %v2632 = vadd.f32 %v2630, %v2631
  %v2633 = vrot.slane %v2632, 1
  %v2634 = vadd.f32 %v2632, %v2633
  %v2635 = vmul.f32 %v2625, %v2625
  %v2636 = vsel %vm2121, %v2635, 0.0
  %v2637 = vrot.slane %v2636, 4
  %v2638 = vadd.f32 %v2636, %v2637
  %v2639 = vrot.slane %v2638, 2
  %v2640 = vadd.f32 %v2638, %v2639
  %v2641 = vrot.slane %v2640, 1
  %v2642 = vadd.f32 %v2640, %v2641
  %v2644 = vrot.slane %v2625, 4
  %v2646 = vsel %vm2121, %v2644, 0.0
  %v2647 = vrot.slane %v2646, 4
  %v2648 = vadd.f32 %v2646, %v2647
  %v2649 = vrot.slane %v2648, 2
  %v2650 = vadd.f32 %v2648, %v2649
  %v2651 = vrot.slane %v2650, 1
  %v2652 = vadd.f32 %v2650, %v2651
  %v2654 = vrot.slane %v2635, 4
  %v2656 = vsel %vm2121, %v2654, 0.0
  %v2657 = vrot.slane %v2656, 4
  %v2658 = vadd.f32 %v2656, %v2657
  %v2659 = vrot.slane %v2658, 2
  %v2660 = vadd.f32 %v2658, %v2659
  %v2661 = vrot.slane %v2660, 1
  %v2662 = vadd.f32 %v2660, %v2661
  %v2663 = vsel %vm494, %v2634, %v2642
  %v2664 = vsel %vm436, %v2663, %v2652
  %v2665 = vsel %vm553, %v2664, %v2662
  %2667 = vrot.lane.b32.xlu0 %v2665, 127
  %v2668 = vpop.permute.xlu0 %2667
  %2670 = vrot.lane.b32.xlu0 %v2665, 15
  %v2671 = vpop.permute.xlu0 %2670
  %v2673 = vsel %vm2167, %v2668, %v2671
  %2674 = vrot.lane.b32.xlu0 %v2665, 113
  %v2675 = vpop.permute.xlu0 %2674
  %2677 = vrot.lane.b32.xlu0 %v2665, 1
  %v2678 = vpop.permute.xlu0 %2677
  %v2680 = vsel %vm2175, %v2675, %v2678
  %v2681 = vsel %vm2180, %v2673, %v2680
  %v2682 = vadd.f32 %v2665, %v2681
  %v2683 = vmul.f32 %v2682, %v1000
  %v2684 = vmul.f32 %v2683, %v2683
  %v2686 = vrot.slane %v2684, 7
  %v2688 = vsub.f32 %v2683, %v2686
  %v2689 = vadd.f32 %v2688, 1e-05
  %v2690 = vrsqrt.pop %v2689
  %v2691 = vmul.f32 %v2690, %v2689
  %v2692 = vmul.f32 %v2691, %v2690
  %v2693 = vmul.f32 0.5, %v2692
  %v2694 = vsub.f32 1.5, %v2693
  %v2695 = vmul.f32 %v2690, %v2694
  %vm2696 = vweird.f32 %v2689
  %vm2697 = vweird.f32 %v2690
  %vm2698 = vmor %vm2696, %vm2697
  %v2699 = vsel %vm2698, %v2690, %v2695
  %v2700 = vperm.slane %v2683, 2
  %v2701 = vperm.slane %v2683, 0
  %v2702 = vsel %vm1977, %v2700, %v2701
  %v2703 = vperm.slane %v2699, 3
  %v2704 = vperm.slane %v2699, 1
  %v2705 = vsel %vm1977, %v2703, %v2704
  %v2706 = vsub.f32 %v2625, %v2702
  %v2707 = vmul.f32 %v2706, %v2705
  %v2708 = vld [vmem:[%s3 + $0x22] sm:$0x1]
  %v2709 = vperm.slane %v2708, 0
  %v2710 = vmul.f32 %v2707, %v2709
  %v2711 = vld [vmem:[%s3 + $0x23] sm:$0x1]
  %v2712 = vperm.slane %v2711, 0
  %v2713 = vadd.f32 %v2710, %v2712
  %v2714 = vmax.f32 %v2713, 0.0
  %v2715 = vand.u32 2147483647, %v2713
  %v2716 = vsub.f32 0.0, %v2715
  %v2717 = vmul.f32 %v2716, 1.442695
  %v2718 = vpow.pop %v2717
  %v2719 = vadd.f32 %v2718, 1.0
  %v2720 = vlog2.pop %v2719
  %v2721 = vmul.f32 %v2720, 0.6931472
  %v2722 = vadd.f32 %v2714, %v2721
  %v2723 = vtanh.pop %v2722
  %v2724 = vmul.f32 %v2713, %v2723
  %v2725 = vld [vmem:[%s2 + $0x138] sm:$0xf]
  %v2726 = vld [vmem:[%s3 + $0x27] sm:$0x1]
  %v2727 = vperm.slane %v2726, 0
  %v2729 = vsel %vm354, %v2725, 0
  %2731 = vmatpush.bf16.msra.mxu0 0
  %2732 = vmatpush.bf16.msra.mxu0 0
  %2733 = vmatpush.bf16.msra.mxu0 0
  %2734 = vmatpush.bf16.msra.mxu0 0
  %2735 = vmatpush.bf16.msra.mxu0 0
  %2736 = vmatpush.bf16.msra.mxu0 0
  %2737 = vmatpush.bf16.msra.mxu0 0
  %2738 = vmatpush.bf16.msra.mxu0 %v2729
  %2739 = vmatmul.bf16.gmra.mxu0 %v2230
  %v2740 = vpop.f32.mrf.mxu0
  %v2741 = vadd.f32 %v2727, %v2740
  %v2742 = vpop.f32.mrf.mxu0
  %2743 = vdwg.mxu0
  %v2744 = vadd.f32 %v2724, %v2741
  %v2745 = vpack.c.bf16 %v2744, %v2744
  %v2747 = vunpack.c.l.b16 %v2745
  %v2748 = vpack.c.b16 %v2747, %v2747
  %v2749 = vrot.slane %v2748, 3
  %v2750 = vrot.slane %v2748, 7
  %v2753 = vsel %vm494, %v2749, %v2750
  %v2755 = vunpack.c.l.bf16 %v2753
  %v2756 = vmul.f32 %v2755, %v1996
  %v2757 = vpack.c.bf16 %v2756, %v2756
  %v2759 = vshrl.u32 %v2748, 16
  %v2761 = vrot.slane %v2759, 3
  %v2763 = vrot.slane %v2759, 7
  %v2764 = vshll.u32 %v2748, 16
  %v2766 = vor.u32 %v2763, %v2764
  %v2768 = vsel %vm803, %v2761, %v2766
  %v2769 = vunpack.c.l.bf16 %v2768
  %v2770 = vmul.f32 %v2769, %v2017
  %v2771 = vpack.c.bf16 %v2770, %v2770
  %v2772 = vrot.slane %v2764, 1
  %v2773 = vor.u32 %v2759, %v2772
  %v2775 = vrot.slane %v2764, 5
  %v2777 = vsel %vm2027, %v2773, %v2775
  %v2778 = vunpack.c.l.bf16 %v2777
  %v2779 = vmul.f32 %v2778, %v2036
  %v2780 = vpack.c.bf16 %v2779, %v2779
  %v2781 = vrot.slane %v2748, 1
  %v2782 = vrot.slane %v2748, 5
  %v2785 = vsel %vm553, %v2781, %v2782
  %v2787 = vunpack.c.l.bf16 %v2785
  %v2788 = vmul.f32 %v2787, %v2052
  %v2789 = vpack.c.bf16 %v2788, %v2788
  %v2791 = vunpack.c.l.b16 %v2771
  %v2792 = vpack.c.b16 %v2791, %v2791
  %2793 = vrot.lane.b32.xlu0 %v2792, 16
  %v2794 = vpop.permute.xlu0 %2793
  %2795 = vrot.lane.b32.xlu0 %v2748, 32
  %v2796 = vpop.permute.xlu0 %2795
  %v2798 = vunpack.c.l.b16 %v2780
  %v2799 = vpack.c.b16 %v2798, %v2798
  %2800 = vrot.lane.b32.xlu0 %v2799, 48
  %v2801 = vpop.permute.xlu0 %2800
  %v2803 = vunpack.c.l.b16 %v2789
  %v2804 = vpack.c.b16 %v2803, %v2803
  %2805 = vrot.lane.b32.xlu0 %v2804, 64
  %v2806 = vpop.permute.xlu0 %2805
  %v2809 = vsel %vm586, %v2757, %v2794
  %v2811 = vsel %vm401, %v2809, %v2796
  %v2813 = vsel %vm2316, %v2811, %v2801
  %v2815 = vsel %vm2319, %v2813, %v2806
  %v2816 = vld [vmem:[%s2 + $0x110] sm:$0xf]
  %v2817 = vld [vmem:[%s2 + $0x114] sm:$0xf]
  %v2818 = vld [vmem:[%s2 + $0x118] sm:$0xf]
  %v2819 = vld [vmem:[%s2 + $0x11c] sm:$0xf]
  %v2820 = vld [vmem:[%s2 + $0x120] sm:$0xf]
  %v2821 = vld [vmem:[%s2 + $0x124] sm:$0xf]
  %v2822 = vld [vmem:[%s2 + $0x128] sm:$0xf]
  %v2823 = vld [vmem:[%s2 + $0x12c] sm:$0xf]
  %v2824 = vld [vmem:[%s2 + $0x130] sm:$0xf]
  %v2825 = vld [vmem:[%s2 + $0x134] sm:$0xf]
  %v2826 = vld [vmem:[%s3 + $0x24] sm:$0x1]
  %v2827 = vperm.slane %v2826, 0
  %v2838 = vunpack.c.l.b16 %v2816
  %v2839 = vunpack.c.l.b16 %v2817
  %v2840 = vunpack.c.l.b16 %v2818
  %v2841 = vunpack.c.l.b16 %v2819
  %v2842 = vunpack.c.l.b16 %v2820
  %v2843 = vunpack.c.l.b16 %v2821
  %v2844 = vunpack.c.l.b16 %v2822
  %v2845 = vunpack.c.l.b16 %v2823
  %v2846 = vunpack.c.l.b16 %v2824
  %v2847 = vunpack.c.l.b16 %v2825
  %v2848 = vpack.c.b16 %v2839, %v2838
  %v2849 = vpack.c.b16 %v2841, %v2840
  %v2850 = vpack.c.b16 %v2843, %v2842
  %v2851 = vpack.c.b16 %v2845, %v2844
  %v2852 = vpack.c.b16 %v2847, %v2846
  %v2858 = vsel %vm2364, %v2815, 0
  %2860 = vmatpush.bf16.msra.mxu0 0
  %2861 = vmatpush.bf16.msra.mxu0 0
  %2862 = vmatpush.bf16.msra.mxu0 0
  %2863 = vmatpush.bf16.msra.mxu0 %v2852
  %2864 = vmatpush.bf16.msra.mxu0 %v2851
  %2865 = vmatpush.bf16.msra.mxu0 %v2850
  %2866 = vmatpush.bf16.msra.mxu0 %v2849
  %2867 = vmatpush.bf16.msra.mxu0 %v2848
  %2868 = vmatmul.bf16.gmra.mxu0 %v2858
  %v2869 = vpop.f32.mrf.mxu0
  %v2870 = vadd.f32 %v2827, %v2869
  %v2871 = vpop.f32.mrf.mxu0
  %2872 = vdwg.mxu0
  %v2873 = vsel %vm2121, %v2870, 0.0
  %v2874 = vrot.slane %v2873, 4
  %v2875 = vadd.f32 %v2873, %v2874
  %v2876 = vrot.slane %v2875, 2
  %v2877 = vadd.f32 %v2875, %v2876
  %v2878 = vrot.slane %v2877, 1
  %v2879 = vadd.f32 %v2877, %v2878
  %v2880 = vmul.f32 %v2870, %v2870
  %v2881 = vsel %vm2121, %v2880, 0.0
  %v2882 = vrot.slane %v2881, 4
  %v2883 = vadd.f32 %v2881, %v2882
  %v2884 = vrot.slane %v2883, 2
  %v2885 = vadd.f32 %v2883, %v2884
  %v2886 = vrot.slane %v2885, 1
  %v2887 = vadd.f32 %v2885, %v2886
  %v2889 = vrot.slane %v2870, 4
  %v2891 = vsel %vm2121, %v2889, 0.0
  %v2892 = vrot.slane %v2891, 4
  %v2893 = vadd.f32 %v2891, %v2892
  %v2894 = vrot.slane %v2893, 2
  %v2895 = vadd.f32 %v2893, %v2894
  %v2896 = vrot.slane %v2895, 1
  %v2897 = vadd.f32 %v2895, %v2896
  %v2899 = vrot.slane %v2880, 4
  %v2901 = vsel %vm2121, %v2899, 0.0
  %v2902 = vrot.slane %v2901, 4
  %v2903 = vadd.f32 %v2901, %v2902
  %v2904 = vrot.slane %v2903, 2
  %v2905 = vadd.f32 %v2903, %v2904
  %v2906 = vrot.slane %v2905, 1
  %v2907 = vadd.f32 %v2905, %v2906
  %v2908 = vsel %vm494, %v2879, %v2887
  %v2909 = vsel %vm436, %v2908, %v2897
  %v2910 = vsel %vm553, %v2909, %v2907
  %2912 = vrot.lane.b32.xlu0 %v2910, 127
  %v2913 = vpop.permute.xlu0 %2912
  %2915 = vrot.lane.b32.xlu0 %v2910, 15
  %v2916 = vpop.permute.xlu0 %2915
  %v2918 = vsel %vm2167, %v2913, %v2916
  %2919 = vrot.lane.b32.xlu0 %v2910, 113
  %v2920 = vpop.permute.xlu0 %2919
  %2922 = vrot.lane.b32.xlu0 %v2910, 1
  %v2923 = vpop.permute.xlu0 %2922
  %v2925 = vsel %vm2175, %v2920, %v2923
  %v2926 = vsel %vm2180, %v2918, %v2925
  %v2927 = vadd.f32 %v2910, %v2926
  %v2928 = vmul.f32 %v2927, %v1000
  %v2929 = vmul.f32 %v2928, %v2928
  %v2931 = vrot.slane %v2929, 7
  %v2933 = vsub.f32 %v2928, %v2931
  %v2934 = vadd.f32 %v2933, 1e-05
  %v2935 = vrsqrt.pop %v2934
  %v2936 = vmul.f32 %v2935, %v2934
  %v2937 = vmul.f32 %v2936, %v2935
  %v2938 = vmul.f32 0.5, %v2937
  %v2939 = vsub.f32 1.5, %v2938
  %v2940 = vmul.f32 %v2935, %v2939
  %vm2941 = vweird.f32 %v2934
  %vm2942 = vweird.f32 %v2935
  %vm2943 = vmor %vm2941, %vm2942
  %v2944 = vsel %vm2943, %v2935, %v2940
  %v2945 = vperm.slane %v2928, 2
  %v2946 = vperm.slane %v2928, 0
  %v2947 = vsel %vm1977, %v2945, %v2946
  %v2948 = vperm.slane %v2944, 3
  %v2949 = vperm.slane %v2944, 1
  %v2950 = vsel %vm1977, %v2948, %v2949
  %v2951 = vsub.f32 %v2870, %v2947
  %v2952 = vmul.f32 %v2951, %v2950
  %v2953 = vld [vmem:[%s3 + $0x25] sm:$0x1]
  %v2954 = vperm.slane %v2953, 0
  %v2955 = vmul.f32 %v2952, %v2954
  %v2956 = vld [vmem:[%s3 + $0x26] sm:$0x1]
  %v2957 = vperm.slane %v2956, 0
  %v2958 = vadd.f32 %v2955, %v2957
  %v2959 = vmax.f32 %v2958, 0.0
  %v2960 = vand.u32 2147483647, %v2958
  %v2961 = vsub.f32 0.0, %v2960
  %v2962 = vmul.f32 %v2961, 1.442695
  %v2963 = vpow.pop %v2962
  %v2964 = vadd.f32 %v2963, 1.0
  %v2965 = vlog2.pop %v2964
  %v2966 = vmul.f32 %v2965, 0.6931472
  %v2967 = vadd.f32 %v2959, %v2966
  %v2968 = vtanh.pop %v2967
  %v2969 = vmul.f32 %v2958, %v2968
  %v2970 = vadd.f32 %v2969, %v2499
  %v2971 = vpack.c.bf16 %v2970, %v2970
  %v2973 = vunpack.c.l.b16 %v2971
  %v2974 = vpack.c.b16 %v2973, %v2973
  %v2975 = vrot.slane %v2974, 3
  %v2976 = vrot.slane %v2974, 7
  %v2979 = vsel %vm494, %v2975, %v2976
  %v2981 = vunpack.c.l.bf16 %v2979
  %v2982 = vmul.f32 %v2981, %v1996
  %v2983 = vpack.c.bf16 %v2982, %v2982
  %v2985 = vshrl.u32 %v2974, 16
  %v2987 = vrot.slane %v2985, 3
  %v2989 = vrot.slane %v2985, 7
  %v2990 = vshll.u32 %v2974, 16
  %v2992 = vor.u32 %v2989, %v2990
  %v2994 = vsel %vm803, %v2987, %v2992
  %v2995 = vunpack.c.l.bf16 %v2994
  %v2996 = vmul.f32 %v2995, %v2017
  %v2997 = vpack.c.bf16 %v2996, %v2996
  %v2998 = vrot.slane %v2990, 1
  %v2999 = vor.u32 %v2985, %v2998
  %v3001 = vrot.slane %v2990, 5
  %v3003 = vsel %vm2027, %v2999, %v3001
  %v3004 = vunpack.c.l.bf16 %v3003
  %v3005 = vmul.f32 %v3004, %v2036
  %v3006 = vpack.c.bf16 %v3005, %v3005
  %v3007 = vrot.slane %v2974, 1
  %v3008 = vrot.slane %v2974, 5
  %v3011 = vsel %vm553, %v3007, %v3008
  %v3013 = vunpack.c.l.bf16 %v3011
  %v3014 = vmul.f32 %v3013, %v2052
  %v3015 = vpack.c.bf16 %v3014, %v3014
  %v3017 = vunpack.c.l.b16 %v2997
  %v3018 = vpack.c.b16 %v3017, %v3017
  %3019 = vrot.lane.b32.xlu0 %v3018, 16
  %v3020 = vpop.permute.xlu0 %3019
  %3021 = vrot.lane.b32.xlu0 %v2974, 32
  %v3022 = vpop.permute.xlu0 %3021
  %v3024 = vunpack.c.l.b16 %v3006
  %v3025 = vpack.c.b16 %v3024, %v3024
  %3026 = vrot.lane.b32.xlu0 %v3025, 48
  %v3027 = vpop.permute.xlu0 %3026
  %v3029 = vunpack.c.l.b16 %v3015
  %v3030 = vpack.c.b16 %v3029, %v3029
  %3031 = vrot.lane.b32.xlu0 %v3030, 64
  %v3032 = vpop.permute.xlu0 %3031
  %v3035 = vsel %vm586, %v2983, %v3020
  %v3037 = vsel %vm401, %v3035, %v3022
  %v3039 = vsel %vm2316, %v3037, %v3027
  %v3041 = vsel %vm2319, %v3039, %v3032
  %v3042 = vld [vmem:[%s2 + $0x13c] sm:$0xf]
  %v3043 = vld [vmem:[%s2 + $0x140] sm:$0xf]
  %v3044 = vld [vmem:[%s2 + $0x144] sm:$0xf]
  %v3045 = vld [vmem:[%s2 + $0x148] sm:$0xf]
  %v3046 = vld [vmem:[%s2 + $0x14c] sm:$0xf]
  %v3047 = vld [vmem:[%s2 + $0x150] sm:$0xf]
  %v3048 = vld [vmem:[%s2 + $0x154] sm:$0xf]
  %v3049 = vld [vmem:[%s2 + $0x158] sm:$0xf]
  %v3050 = vld [vmem:[%s2 + $0x15c] sm:$0xf]
  %v3051 = vld [vmem:[%s2 + $0x160] sm:$0xf]
  %v3052 = vld [vmem:[%s3 + $0x28] sm:$0x1]
  %v3053 = vperm.slane %v3052, 0
  %v3064 = vunpack.c.l.b16 %v3042
  %v3065 = vunpack.c.l.b16 %v3043
  %v3066 = vunpack.c.l.b16 %v3044
  %v3067 = vunpack.c.l.b16 %v3045
  %v3068 = vunpack.c.l.b16 %v3046
  %v3069 = vunpack.c.l.b16 %v3047
  %v3070 = vunpack.c.l.b16 %v3048
  %v3071 = vunpack.c.l.b16 %v3049
  %v3072 = vunpack.c.l.b16 %v3050
  %v3073 = vunpack.c.l.b16 %v3051
  %v3074 = vpack.c.b16 %v3065, %v3064
  %v3075 = vpack.c.b16 %v3067, %v3066
  %v3076 = vpack.c.b16 %v3069, %v3068
  %v3077 = vpack.c.b16 %v3071, %v3070
  %v3078 = vpack.c.b16 %v3073, %v3072
  %v3084 = vsel %vm2364, %v3041, 0
  %3086 = vmatpush.bf16.msra.mxu0 0
  %3087 = vmatpush.bf16.msra.mxu0 0
  %3088 = vmatpush.bf16.msra.mxu0 0
  %3089 = vmatpush.bf16.msra.mxu0 %v3078
  %3090 = vmatpush.bf16.msra.mxu0 %v3077
  %3091 = vmatpush.bf16.msra.mxu0 %v3076
  %3092 = vmatpush.bf16.msra.mxu0 %v3075
  %3093 = vmatpush.bf16.msra.mxu0 %v3074
  %3094 = vmatmul.bf16.gmra.mxu0 %v3084
  %v3095 = vpop.f32.mrf.mxu0
  %v3096 = vadd.f32 %v3053, %v3095
  %v3097 = vpop.f32.mrf.mxu0
  %3098 = vdwg.mxu0
  %v3099 = vsel %vm2121, %v3096, 0.0
  %v3100 = vrot.slane %v3099, 4
  %v3101 = vadd.f32 %v3099, %v3100
  %v3102 = vrot.slane %v3101, 2
  %v3103 = vadd.f32 %v3101, %v3102
  %v3104 = vrot.slane %v3103, 1
  %v3105 = vadd.f32 %v3103, %v3104
  %v3106 = vmul.f32 %v3096, %v3096
  %v3107 = vsel %vm2121, %v3106, 0.0
  %v3108 = vrot.slane %v3107, 4
  %v3109 = vadd.f32 %v3107, %v3108
  %v3110 = vrot.slane %v3109, 2
  %v3111 = vadd.f32 %v3109, %v3110
  %v3112 = vrot.slane %v3111, 1
  %v3113 = vadd.f32 %v3111, %v3112
  %v3115 = vrot.slane %v3096, 4
  %v3117 = vsel %vm2121, %v3115, 0.0
  %v3118 = vrot.slane %v3117, 4
  %v3119 = vadd.f32 %v3117, %v3118
  %v3120 = vrot.slane %v3119, 2
  %v3121 = vadd.f32 %v3119, %v3120
  %v3122 = vrot.slane %v3121, 1
  %v3123 = vadd.f32 %v3121, %v3122
  %v3125 = vrot.slane %v3106, 4
  %v3127 = vsel %vm2121, %v3125, 0.0
  %v3128 = vrot.slane %v3127, 4
  %v3129 = vadd.f32 %v3127, %v3128
  %v3130 = vrot.slane %v3129, 2
  %v3131 = vadd.f32 %v3129, %v3130
  %v3132 = vrot.slane %v3131, 1
  %v3133 = vadd.f32 %v3131, %v3132
  %v3134 = vsel %vm494, %v3105, %v3113
  %v3135 = vsel %vm436, %v3134, %v3123
  %v3136 = vsel %vm553, %v3135, %v3133
  %3138 = vrot.lane.b32.xlu0 %v3136, 127
  %v3139 = vpop.permute.xlu0 %3138
  %3141 = vrot.lane.b32.xlu0 %v3136, 15
  %v3142 = vpop.permute.xlu0 %3141
  %v3144 = vsel %vm2167, %v3139, %v3142
  %3145 = vrot.lane.b32.xlu0 %v3136, 113
  %v3146 = vpop.permute.xlu0 %3145
  %3148 = vrot.lane.b32.xlu0 %v3136, 1
  %v3149 = vpop.permute.xlu0 %3148
  %v3151 = vsel %vm2175, %v3146, %v3149
  %v3152 = vsel %vm2180, %v3144, %v3151
  %v3153 = vadd.f32 %v3136, %v3152
  %v3154 = vmul.f32 %v3153, %v1000
  %v3155 = vmul.f32 %v3154, %v3154
  %v3157 = vrot.slane %v3155, 7
  %v3159 = vsub.f32 %v3154, %v3157
  %v3160 = vadd.f32 %v3159, 1e-05
  %v3161 = vrsqrt.pop %v3160
  %v3162 = vmul.f32 %v3161, %v3160
  %v3163 = vmul.f32 %v3162, %v3161
  %v3164 = vmul.f32 0.5, %v3163
  %v3165 = vsub.f32 1.5, %v3164
  %v3166 = vmul.f32 %v3161, %v3165
  %vm3167 = vweird.f32 %v3160
  %vm3168 = vweird.f32 %v3161
  %vm3169 = vmor %vm3167, %vm3168
  %v3170 = vsel %vm3169, %v3161, %v3166
  %v3171 = vperm.slane %v3154, 2
  %v3172 = vperm.slane %v3154, 0
  %v3173 = vsel %vm1977, %v3171, %v3172
  %v3174 = vperm.slane %v3170, 3
  %v3175 = vperm.slane %v3170, 1
  %v3176 = vsel %vm1977, %v3174, %v3175
  %v3177 = vsub.f32 %v3096, %v3173
  %v3178 = vmul.f32 %v3177, %v3176
  %v3179 = vld [vmem:[%s3 + $0x29] sm:$0x1]
  %v3180 = vperm.slane %v3179, 0
  %v3181 = vmul.f32 %v3178, %v3180
  %v3182 = vld [vmem:[%s3 + $0x2a] sm:$0x1]
  %v3183 = vperm.slane %v3182, 0
  %v3184 = vadd.f32 %v3181, %v3183
  %v3185 = vmax.f32 %v3184, 0.0
  %v3186 = vand.u32 2147483647, %v3184
  %v3187 = vsub.f32 0.0, %v3186
  %v3188 = vmul.f32 %v3187, 1.442695
  %v3189 = vpow.pop %v3188
  %v3190 = vadd.f32 %v3189, 1.0
  %v3191 = vlog2.pop %v3190
  %v3192 = vmul.f32 %v3191, 0.6931472
  %v3193 = vadd.f32 %v3185, %v3192
  %v3194 = vtanh.pop %v3193
  %v3195 = vmul.f32 %v3184, %v3194
  %v3196 = vld [vmem:[%s2 + $0x18c] sm:$0xf]
  %v3197 = vld [vmem:[%s3 + $0x2e] sm:$0x1]
  %v3198 = vperm.slane %v3197, 0
  %v3200 = vsel %vm354, %v3196, 0
  %3202 = vmatpush.bf16.msra.mxu0 0
  %3203 = vmatpush.bf16.msra.mxu0 0
  %3204 = vmatpush.bf16.msra.mxu0 0
  %3205 = vmatpush.bf16.msra.mxu0 0
  %3206 = vmatpush.bf16.msra.mxu0 0
  %3207 = vmatpush.bf16.msra.mxu0 0
  %3208 = vmatpush.bf16.msra.mxu0 0
  %3209 = vmatpush.bf16.msra.mxu0 %v3200
  %3210 = vmatmul.bf16.gmra.mxu0 %v2230
  %v3211 = vpop.f32.mrf.mxu0
  %v3212 = vadd.f32 %v3198, %v3211
  %v3213 = vpop.f32.mrf.mxu0
  %3214 = vdwg.mxu0
  %v3215 = vadd.f32 %v3195, %v3212
  %v3216 = vpack.c.bf16 %v3215, %v3215
  %v3218 = vunpack.c.l.b16 %v3216
  %v3219 = vpack.c.b16 %v3218, %v3218
  %v3220 = vrot.slane %v3219, 3
  %v3221 = vrot.slane %v3219, 7
  %v3224 = vsel %vm494, %v3220, %v3221
  %v3226 = vunpack.c.l.bf16 %v3224
  %v3227 = vmul.f32 %v3226, %v1996
  %v3228 = vpack.c.bf16 %v3227, %v3227
  %v3230 = vshrl.u32 %v3219, 16
  %v3232 = vrot.slane %v3230, 3
  %v3234 = vrot.slane %v3230, 7
  %v3235 = vshll.u32 %v3219, 16
  %v3237 = vor.u32 %v3234, %v3235
  %v3239 = vsel %vm803, %v3232, %v3237
  %v3240 = vunpack.c.l.bf16 %v3239
  %v3241 = vmul.f32 %v3240, %v2017
  %v3242 = vpack.c.bf16 %v3241, %v3241
  %v3243 = vrot.slane %v3235, 1
  %v3244 = vor.u32 %v3230, %v3243
  %v3246 = vrot.slane %v3235, 5
  %v3248 = vsel %vm2027, %v3244, %v3246
  %v3249 = vunpack.c.l.bf16 %v3248
  %v3250 = vmul.f32 %v3249, %v2036
  %v3251 = vpack.c.bf16 %v3250, %v3250
  %v3252 = vrot.slane %v3219, 1
  %v3253 = vrot.slane %v3219, 5
  %v3256 = vsel %vm553, %v3252, %v3253
  %v3258 = vunpack.c.l.bf16 %v3256
  %v3259 = vmul.f32 %v3258, %v2052
  %v3260 = vpack.c.bf16 %v3259, %v3259
  %v3262 = vunpack.c.l.b16 %v3242
  %v3263 = vpack.c.b16 %v3262, %v3262
  %3264 = vrot.lane.b32.xlu0 %v3263, 16
  %v3265 = vpop.permute.xlu0 %3264
  %3266 = vrot.lane.b32.xlu0 %v3219, 32
  %v3267 = vpop.permute.xlu0 %3266
  %v3269 = vunpack.c.l.b16 %v3251
  %v3270 = vpack.c.b16 %v3269, %v3269
  %3271 = vrot.lane.b32.xlu0 %v3270, 48
  %v3272 = vpop.permute.xlu0 %3271
  %v3274 = vunpack.c.l.b16 %v3260
  %v3275 = vpack.c.b16 %v3274, %v3274
  %3276 = vrot.lane.b32.xlu0 %v3275, 64
  %v3277 = vpop.permute.xlu0 %3276
  %v3280 = vsel %vm586, %v3228, %v3265
  %v3282 = vsel %vm401, %v3280, %v3267
  %v3284 = vsel %vm2316, %v3282, %v3272
  %v3286 = vsel %vm2319, %v3284, %v3277
  %v3287 = vld [vmem:[%s2 + $0x164] sm:$0xf]
  %v3288 = vld [vmem:[%s2 + $0x168] sm:$0xf]
  %v3289 = vld [vmem:[%s2 + $0x16c] sm:$0xf]
  %v3290 = vld [vmem:[%s2 + $0x170] sm:$0xf]
  %v3291 = vld [vmem:[%s2 + $0x174] sm:$0xf]
  %v3292 = vld [vmem:[%s2 + $0x178] sm:$0xf]
  %v3293 = vld [vmem:[%s2 + $0x17c] sm:$0xf]
  %v3294 = vld [vmem:[%s2 + $0x180] sm:$0xf]
  %v3295 = vld [vmem:[%s2 + $0x184] sm:$0xf]
  %v3296 = vld [vmem:[%s2 + $0x188] sm:$0xf]
  %v3297 = vld [vmem:[%s3 + $0x2b] sm:$0x1]
  %v3298 = vperm.slane %v3297, 0
  %v3309 = vunpack.c.l.b16 %v3287
  %v3310 = vunpack.c.l.b16 %v3288
  %v3311 = vunpack.c.l.b16 %v3289
  %v3312 = vunpack.c.l.b16 %v3290
  %v3313 = vunpack.c.l.b16 %v3291
  %v3314 = vunpack.c.l.b16 %v3292
  %v3315 = vunpack.c.l.b16 %v3293
  %v3316 = vunpack.c.l.b16 %v3294
  %v3317 = vunpack.c.l.b16 %v3295
  %v3318 = vunpack.c.l.b16 %v3296
  %v3319 = vpack.c.b16 %v3310, %v3309
  %v3320 = vpack.c.b16 %v3312, %v3311
  %v3321 = vpack.c.b16 %v3314, %v3313
  %v3322 = vpack.c.b16 %v3316, %v3315
  %v3323 = vpack.c.b16 %v3318, %v3317
  %v3329 = vsel %vm2364, %v3286, 0
  %3331 = vmatpush.bf16.msra.mxu0 0
  %3332 = vmatpush.bf16.msra.mxu0 0
  %3333 = vmatpush.bf16.msra.mxu0 0
  %3334 = vmatpush.bf16.msra.mxu0 %v3323
  %3335 = vmatpush.bf16.msra.mxu0 %v3322
  %3336 = vmatpush.bf16.msra.mxu0 %v3321
  %3337 = vmatpush.bf16.msra.mxu0 %v3320
  %3338 = vmatpush.bf16.msra.mxu0 %v3319
  %3339 = vmatmul.bf16.gmra.mxu0 %v3329
  %v3340 = vpop.f32.mrf.mxu0
  %v3341 = vadd.f32 %v3298, %v3340
  %v3342 = vpop.f32.mrf.mxu0
  %3343 = vdwg.mxu0
  %v3344 = vsel %vm2121, %v3341, 0.0
  %v3345 = vrot.slane %v3344, 4
  %v3346 = vadd.f32 %v3344, %v3345
  %v3347 = vrot.slane %v3346, 2
  %v3348 = vadd.f32 %v3346, %v3347
  %v3349 = vrot.slane %v3348, 1
  %v3350 = vadd.f32 %v3348, %v3349
  %v3351 = vmul.f32 %v3341, %v3341
  %v3352 = vsel %vm2121, %v3351, 0.0
  %v3353 = vrot.slane %v3352, 4
  %v3354 = vadd.f32 %v3352, %v3353
  %v3355 = vrot.slane %v3354, 2
  %v3356 = vadd.f32 %v3354, %v3355
  %v3357 = vrot.slane %v3356, 1
  %v3358 = vadd.f32 %v3356, %v3357
  %v3360 = vrot.slane %v3341, 4
  %v3362 = vsel %vm2121, %v3360, 0.0
  %v3363 = vrot.slane %v3362, 4
  %v3364 = vadd.f32 %v3362, %v3363
  %v3365 = vrot.slane %v3364, 2
  %v3366 = vadd.f32 %v3364, %v3365
  %v3367 = vrot.slane %v3366, 1
  %v3368 = vadd.f32 %v3366, %v3367
  %v3370 = vrot.slane %v3351, 4
  %v3372 = vsel %vm2121, %v3370, 0.0
  %v3373 = vrot.slane %v3372, 4
  %v3374 = vadd.f32 %v3372, %v3373
  %v3375 = vrot.slane %v3374, 2
  %v3376 = vadd.f32 %v3374, %v3375
  %v3377 = vrot.slane %v3376, 1
  %v3378 = vadd.f32 %v3376, %v3377
  %v3379 = vsel %vm494, %v3350, %v3358
  %v3380 = vsel %vm436, %v3379, %v3368
  %v3381 = vsel %vm553, %v3380, %v3378
  %3383 = vrot.lane.b32.xlu0 %v3381, 127
  %v3384 = vpop.permute.xlu0 %3383
  %3386 = vrot.lane.b32.xlu0 %v3381, 15
  %v3387 = vpop.permute.xlu0 %3386
  %v3389 = vsel %vm2167, %v3384, %v3387
  %3390 = vrot.lane.b32.xlu0 %v3381, 113
  %v3391 = vpop.permute.xlu0 %3390
  %3393 = vrot.lane.b32.xlu0 %v3381, 1
  %v3394 = vpop.permute.xlu0 %3393
  %v3396 = vsel %vm2175, %v3391, %v3394
  %v3397 = vsel %vm2180, %v3389, %v3396
  %v3398 = vadd.f32 %v3381, %v3397
  %v3399 = vmul.f32 %v3398, %v1000
  %v3400 = vmul.f32 %v3399, %v3399
  %v3402 = vrot.slane %v3400, 7
  %v3404 = vsub.f32 %v3399, %v3402
  %v3405 = vadd.f32 %v3404, 1e-05
  %v3406 = vrsqrt.pop %v3405
  %v3407 = vmul.f32 %v3406, %v3405
  %v3408 = vmul.f32 %v3407, %v3406
  %v3409 = vmul.f32 0.5, %v3408
  %v3410 = vsub.f32 1.5, %v3409
  %v3411 = vmul.f32 %v3406, %v3410
  %vm3412 = vweird.f32 %v3405
  %vm3413 = vweird.f32 %v3406
  %vm3414 = vmor %vm3412, %vm3413
  %v3415 = vsel %vm3414, %v3406, %v3411
  %v3416 = vperm.slane %v3399, 2
  %v3417 = vperm.slane %v3399, 0
  %v3418 = vsel %vm1977, %v3416, %v3417
  %v3419 = vperm.slane %v3415, 3
  %v3420 = vperm.slane %v3415, 1
  %v3421 = vsel %vm1977, %v3419, %v3420
  %v3422 = vsub.f32 %v3341, %v3418
  %v3423 = vmul.f32 %v3422, %v3421
  %v3424 = vld [vmem:[%s3 + $0x2c] sm:$0x1]
  %v3425 = vperm.slane %v3424, 0
  %v3426 = vmul.f32 %v3423, %v3425
  %v3427 = vld [vmem:[%s3 + $0x2d] sm:$0x1]
  %v3428 = vperm.slane %v3427, 0
  %v3429 = vadd.f32 %v3426, %v3428
  %v3430 = vmax.f32 %v3429, 0.0
  %v3431 = vand.u32 2147483647, %v3429
  %v3432 = vsub.f32 0.0, %v3431
  %v3433 = vmul.f32 %v3432, 1.442695
  %v3434 = vpow.pop %v3433
  %v3435 = vadd.f32 %v3434, 1.0
  %v3436 = vlog2.pop %v3435
  %v3437 = vmul.f32 %v3436, 0.6931472
  %v3438 = vadd.f32 %v3430, %v3437
  %v3439 = vtanh.pop %v3438
  %v3440 = vmul.f32 %v3429, %v3439
  %v3441 = vadd.f32 %v3440, %v2970
  %v3442 = vpack.c.bf16 %v3441, %v3441
  %v3444 = vunpack.c.l.b16 %v3442
  %v3445 = vpack.c.b16 %v3444, %v3444
  %v3446 = vrot.slane %v3445, 3
  %v3447 = vrot.slane %v3445, 7
  %v3450 = vsel %vm494, %v3446, %v3447
  %v3452 = vunpack.c.l.bf16 %v3450
  %v3453 = vmul.f32 %v3452, %v1996
  %v3454 = vpack.c.bf16 %v3453, %v3453
  %v3456 = vshrl.u32 %v3445, 16
  %v3458 = vrot.slane %v3456, 3
  %v3460 = vrot.slane %v3456, 7
  %v3461 = vshll.u32 %v3445, 16
  %v3463 = vor.u32 %v3460, %v3461
  %v3465 = vsel %vm803, %v3458, %v3463
  %v3466 = vunpack.c.l.bf16 %v3465
  %v3467 = vmul.f32 %v3466, %v2017
  %v3468 = vpack.c.bf16 %v3467, %v3467
  %v3469 = vrot.slane %v3461, 1
  %v3470 = vor.u32 %v3456, %v3469
  %v3472 = vrot.slane %v3461, 5
  %v3474 = vsel %vm2027, %v3470, %v3472
  %v3475 = vunpack.c.l.bf16 %v3474
  %v3476 = vmul.f32 %v3475, %v2036
  %v3477 = vpack.c.bf16 %v3476, %v3476
  %v3478 = vrot.slane %v3445, 1
  %v3479 = vrot.slane %v3445, 5
  %v3482 = vsel %vm553, %v3478, %v3479
  %v3484 = vunpack.c.l.bf16 %v3482
  %v3485 = vmul.f32 %v3484, %v2052
  %v3486 = vpack.c.bf16 %v3485, %v3485
  %v3488 = vunpack.c.l.b16 %v3468
  %v3489 = vpack.c.b16 %v3488, %v3488
  %3490 = vrot.lane.b32.xlu0 %v3489, 16
  %v3491 = vpop.permute.xlu0 %3490
  %3492 = vrot.lane.b32.xlu0 %v3445, 32
  %v3493 = vpop.permute.xlu0 %3492
  %v3495 = vunpack.c.l.b16 %v3477
  %v3496 = vpack.c.b16 %v3495, %v3495
  %3497 = vrot.lane.b32.xlu0 %v3496, 48
  %v3498 = vpop.permute.xlu0 %3497
  %v3500 = vunpack.c.l.b16 %v3486
  %v3501 = vpack.c.b16 %v3500, %v3500
  %3502 = vrot.lane.b32.xlu0 %v3501, 64
  %v3503 = vpop.permute.xlu0 %3502
  %v3506 = vsel %vm586, %v3454, %v3491
  %v3508 = vsel %vm401, %v3506, %v3493
  %v3510 = vsel %vm2316, %v3508, %v3498
  %v3512 = vsel %vm2319, %v3510, %v3503
  %v3513 = vld [vmem:[%s2 + $0x190] sm:$0xf]
  %v3514 = vld [vmem:[%s2 + $0x194] sm:$0xf]
  %v3515 = vld [vmem:[%s2 + $0x198] sm:$0xf]
  %v3516 = vld [vmem:[%s2 + $0x19c] sm:$0xf]
  %v3517 = vld [vmem:[%s2 + $0x1a0] sm:$0xf]
  %v3518 = vld [vmem:[%s2 + $0x1a4] sm:$0xf]
  %v3519 = vld [vmem:[%s2 + $0x1a8] sm:$0xf]
  %v3520 = vld [vmem:[%s2 + $0x1ac] sm:$0xf]
  %v3521 = vld [vmem:[%s2 + $0x1b0] sm:$0xf]
  %v3522 = vld [vmem:[%s2 + $0x1b4] sm:$0xf]
  %v3523 = vld [vmem:[%s3 + $0x2f] sm:$0x1]
  %v3524 = vperm.slane %v3523, 0
  %v3535 = vunpack.c.l.b16 %v3513
  %v3536 = vunpack.c.l.b16 %v3514
  %v3537 = vunpack.c.l.b16 %v3515
  %v3538 = vunpack.c.l.b16 %v3516
  %v3539 = vunpack.c.l.b16 %v3517
  %v3540 = vunpack.c.l.b16 %v3518
  %v3541 = vunpack.c.l.b16 %v3519
  %v3542 = vunpack.c.l.b16 %v3520
  %v3543 = vunpack.c.l.b16 %v3521
  %v3544 = vunpack.c.l.b16 %v3522
  %v3545 = vpack.c.b16 %v3536, %v3535
  %v3546 = vpack.c.b16 %v3538, %v3537
  %v3547 = vpack.c.b16 %v3540, %v3539
  %v3548 = vpack.c.b16 %v3542, %v3541
  %v3549 = vpack.c.b16 %v3544, %v3543
  %v3555 = vsel %vm2364, %v3512, 0
  %3557 = vmatpush.bf16.msra.mxu0 0
  %3558 = vmatpush.bf16.msra.mxu0 0
  %3559 = vmatpush.bf16.msra.mxu0 0
  %3560 = vmatpush.bf16.msra.mxu0 %v3549
  %3561 = vmatpush.bf16.msra.mxu0 %v3548
  %3562 = vmatpush.bf16.msra.mxu0 %v3547
  %3563 = vmatpush.bf16.msra.mxu0 %v3546
  %3564 = vmatpush.bf16.msra.mxu0 %v3545
  %3565 = vmatmul.bf16.gmra.mxu0 %v3555
  %v3566 = vpop.f32.mrf.mxu0
  %v3567 = vadd.f32 %v3524, %v3566
  %v3568 = vpop.f32.mrf.mxu0
  %3569 = vdwg.mxu0
  %v3570 = vsel %vm2121, %v3567, 0.0
  %v3571 = vrot.slane %v3570, 4
  %v3572 = vadd.f32 %v3570, %v3571
  %v3573 = vrot.slane %v3572, 2
  %v3574 = vadd.f32 %v3572, %v3573
  %v3575 = vrot.slane %v3574, 1
  %v3576 = vadd.f32 %v3574, %v3575
  %v3577 = vmul.f32 %v3567, %v3567
  %v3578 = vsel %vm2121, %v3577, 0.0
  %v3579 = vrot.slane %v3578, 4
  %v3580 = vadd.f32 %v3578, %v3579
  %v3581 = vrot.slane %v3580, 2
  %v3582 = vadd.f32 %v3580, %v3581
  %v3583 = vrot.slane %v3582, 1
  %v3584 = vadd.f32 %v3582, %v3583
  %v3586 = vrot.slane %v3567, 4
  %v3588 = vsel %vm2121, %v3586, 0.0
  %v3589 = vrot.slane %v3588, 4
  %v3590 = vadd.f32 %v3588, %v3589
  %v3591 = vrot.slane %v3590, 2
  %v3592 = vadd.f32 %v3590, %v3591
  %v3593 = vrot.slane %v3592, 1
  %v3594 = vadd.f32 %v3592, %v3593
  %v3596 = vrot.slane %v3577, 4
  %v3598 = vsel %vm2121, %v3596, 0.0
  %v3599 = vrot.slane %v3598, 4
  %v3600 = vadd.f32 %v3598, %v3599
  %v3601 = vrot.slane %v3600, 2
  %v3602 = vadd.f32 %v3600, %v3601
  %v3603 = vrot.slane %v3602, 1
  %v3604 = vadd.f32 %v3602, %v3603
  %v3605 = vsel %vm494, %v3576, %v3584
  %v3606 = vsel %vm436, %v3605, %v3594
  %v3607 = vsel %vm553, %v3606, %v3604
  %3609 = vrot.lane.b32.xlu0 %v3607, 127
  %v3610 = vpop.permute.xlu0 %3609
  %3612 = vrot.lane.b32.xlu0 %v3607, 15
  %v3613 = vpop.permute.xlu0 %3612
  %v3615 = vsel %vm2167, %v3610, %v3613
  %3616 = vrot.lane.b32.xlu0 %v3607, 113
  %v3617 = vpop.permute.xlu0 %3616
  %3619 = vrot.lane.b32.xlu0 %v3607, 1
  %v3620 = vpop.permute.xlu0 %3619
  %v3622 = vsel %vm2175, %v3617, %v3620
  %v3623 = vsel %vm2180, %v3615, %v3622
  %v3624 = vadd.f32 %v3607, %v3623
  %v3625 = vmul.f32 %v3624, %v1000
  %v3626 = vmul.f32 %v3625, %v3625
  %v3628 = vrot.slane %v3626, 7
  %v3630 = vsub.f32 %v3625, %v3628
  %v3631 = vadd.f32 %v3630, 1e-05
  %v3632 = vrsqrt.pop %v3631
  %v3633 = vmul.f32 %v3632, %v3631
  %v3634 = vmul.f32 %v3633, %v3632
  %v3635 = vmul.f32 0.5, %v3634
  %v3636 = vsub.f32 1.5, %v3635
  %v3637 = vmul.f32 %v3632, %v3636
  %vm3638 = vweird.f32 %v3631
  %vm3639 = vweird.f32 %v3632
  %vm3640 = vmor %vm3638, %vm3639
  %v3641 = vsel %vm3640, %v3632, %v3637
  %v3642 = vperm.slane %v3625, 2
  %v3643 = vperm.slane %v3625, 0
  %v3644 = vsel %vm1977, %v3642, %v3643
  %v3645 = vperm.slane %v3641, 3
  %v3646 = vperm.slane %v3641, 1
  %v3647 = vsel %vm1977, %v3645, %v3646
  %v3648 = vsub.f32 %v3567, %v3644
  %v3649 = vmul.f32 %v3648, %v3647
  %v3650 = vld [vmem:[%s3 + $0x30] sm:$0x1]
  %v3651 = vperm.slane %v3650, 0
  %v3652 = vmul.f32 %v3649, %v3651
  %v3653 = vld [vmem:[%s3 + $0x31] sm:$0x1]
  %v3654 = vperm.slane %v3653, 0
  %v3655 = vadd.f32 %v3652, %v3654
  %v3656 = vmax.f32 %v3655, 0.0
  %v3657 = vand.u32 2147483647, %v3655
  %v3658 = vsub.f32 0.0, %v3657
  %v3659 = vmul.f32 %v3658, 1.442695
  %v3660 = vpow.pop %v3659
  %v3661 = vadd.f32 %v3660, 1.0
  %v3662 = vlog2.pop %v3661
  %v3663 = vmul.f32 %v3662, 0.6931472
  %v3664 = vadd.f32 %v3656, %v3663
  %v3665 = vtanh.pop %v3664
  %v3666 = vmul.f32 %v3655, %v3665
  %v3667 = vld [vmem:[%s2 + $0x1e0] sm:$0xf]
  %v3668 = vld [vmem:[%s3 + $0x35] sm:$0x1]
  %v3669 = vperm.slane %v3668, 0
  %v3671 = vsel %vm354, %v3667, 0
  %3673 = vmatpush.bf16.msra.mxu0 0
  %3674 = vmatpush.bf16.msra.mxu0 0
  %3675 = vmatpush.bf16.msra.mxu0 0
  %3676 = vmatpush.bf16.msra.mxu0 0
  %3677 = vmatpush.bf16.msra.mxu0 0
  %3678 = vmatpush.bf16.msra.mxu0 0
  %3679 = vmatpush.bf16.msra.mxu0 0
  %3680 = vmatpush.bf16.msra.mxu0 %v3671
  %3681 = vmatmul.bf16.gmra.mxu0 %v2230
  %v3682 = vpop.f32.mrf.mxu0
  %v3683 = vadd.f32 %v3669, %v3682
  %v3684 = vpop.f32.mrf.mxu0
  %3685 = vdwg.mxu0
  %v3686 = vadd.f32 %v3666, %v3683
  %v3687 = vpack.c.bf16 %v3686, %v3686
  %v3689 = vunpack.c.l.b16 %v3687
  %v3690 = vpack.c.b16 %v3689, %v3689
  %v3691 = vrot.slane %v3690, 3
  %v3692 = vrot.slane %v3690, 7
  %v3695 = vsel %vm494, %v3691, %v3692
  %v3697 = vunpack.c.l.bf16 %v3695
  %v3698 = vmul.f32 %v3697, %v1996
  %v3699 = vpack.c.bf16 %v3698, %v3698
  %v3701 = vshrl.u32 %v3690, 16
  %v3703 = vrot.slane %v3701, 3
  %v3705 = vrot.slane %v3701, 7
  %v3706 = vshll.u32 %v3690, 16
  %v3708 = vor.u32 %v3705, %v3706
  %v3710 = vsel %vm803, %v3703, %v3708
  %v3711 = vunpack.c.l.bf16 %v3710
  %v3712 = vmul.f32 %v3711, %v2017
  %v3713 = vpack.c.bf16 %v3712, %v3712
  %v3714 = vrot.slane %v3706, 1
  %v3715 = vor.u32 %v3701, %v3714
  %v3717 = vrot.slane %v3706, 5
  %v3719 = vsel %vm2027, %v3715, %v3717
  %v3720 = vunpack.c.l.bf16 %v3719
  %v3721 = vmul.f32 %v3720, %v2036
  %v3722 = vpack.c.bf16 %v3721, %v3721
  %v3723 = vrot.slane %v3690, 1
  %v3724 = vrot.slane %v3690, 5
  %v3727 = vsel %vm553, %v3723, %v3724
  %v3729 = vunpack.c.l.bf16 %v3727
  %v3730 = vmul.f32 %v3729, %v2052
  %v3731 = vpack.c.bf16 %v3730, %v3730
  %v3733 = vunpack.c.l.b16 %v3713
  %v3734 = vpack.c.b16 %v3733, %v3733
  %3735 = vrot.lane.b32.xlu0 %v3734, 16
  %v3736 = vpop.permute.xlu0 %3735
  %3737 = vrot.lane.b32.xlu0 %v3690, 32
  %v3738 = vpop.permute.xlu0 %3737
  %v3740 = vunpack.c.l.b16 %v3722
  %v3741 = vpack.c.b16 %v3740, %v3740
  %3742 = vrot.lane.b32.xlu0 %v3741, 48
  %v3743 = vpop.permute.xlu0 %3742
  %v3745 = vunpack.c.l.b16 %v3731
  %v3746 = vpack.c.b16 %v3745, %v3745
  %3747 = vrot.lane.b32.xlu0 %v3746, 64
  %v3748 = vpop.permute.xlu0 %3747
  %v3751 = vsel %vm586, %v3699, %v3736
  %v3753 = vsel %vm401, %v3751, %v3738
  %v3755 = vsel %vm2316, %v3753, %v3743
  %v3757 = vsel %vm2319, %v3755, %v3748
  %v3758 = vld [vmem:[%s2 + $0x1b8] sm:$0xf]
  %v3759 = vld [vmem:[%s2 + $0x1bc] sm:$0xf]
  %v3760 = vld [vmem:[%s2 + $0x1c0] sm:$0xf]
  %v3761 = vld [vmem:[%s2 + $0x1c4] sm:$0xf]
  %v3762 = vld [vmem:[%s2 + $0x1c8] sm:$0xf]
  %v3763 = vld [vmem:[%s2 + $0x1cc] sm:$0xf]
  %v3764 = vld [vmem:[%s2 + $0x1d0] sm:$0xf]
  %v3765 = vld [vmem:[%s2 + $0x1d4] sm:$0xf]
  %v3766 = vld [vmem:[%s2 + $0x1d8] sm:$0xf]
  %v3767 = vld [vmem:[%s2 + $0x1dc] sm:$0xf]
  %v3768 = vld [vmem:[%s3 + $0x32] sm:$0x1]
  %v3769 = vperm.slane %v3768, 0
  %v3780 = vunpack.c.l.b16 %v3758
  %v3781 = vunpack.c.l.b16 %v3759
  %v3782 = vunpack.c.l.b16 %v3760
  %v3783 = vunpack.c.l.b16 %v3761
  %v3784 = vunpack.c.l.b16 %v3762
  %v3785 = vunpack.c.l.b16 %v3763
  %v3786 = vunpack.c.l.b16 %v3764
  %v3787 = vunpack.c.l.b16 %v3765
  %v3788 = vunpack.c.l.b16 %v3766
  %v3789 = vunpack.c.l.b16 %v3767
  %v3790 = vpack.c.b16 %v3781, %v3780
  %v3791 = vpack.c.b16 %v3783, %v3782
  %v3792 = vpack.c.b16 %v3785, %v3784
  %v3793 = vpack.c.b16 %v3787, %v3786
  %v3794 = vpack.c.b16 %v3789, %v3788
  %v3800 = vsel %vm2364, %v3757, 0
  %3802 = vmatpush.bf16.msra.mxu0 0
  %3803 = vmatpush.bf16.msra.mxu0 0
  %3804 = vmatpush.bf16.msra.mxu0 0
  %3805 = vmatpush.bf16.msra.mxu0 %v3794
  %3806 = vmatpush.bf16.msra.mxu0 %v3793
  %3807 = vmatpush.bf16.msra.mxu0 %v3792
  %3808 = vmatpush.bf16.msra.mxu0 %v3791
  %3809 = vmatpush.bf16.msra.mxu0 %v3790
  %3810 = vmatmul.bf16.gmra.mxu0 %v3800
  %v3811 = vpop.f32.mrf.mxu0
  %v3812 = vadd.f32 %v3769, %v3811
  %v3813 = vpop.f32.mrf.mxu0
  %3814 = vdwg.mxu0
  %v3815 = vsel %vm2121, %v3812, 0.0
  %v3816 = vrot.slane %v3815, 4
  %v3817 = vadd.f32 %v3815, %v3816
  %v3818 = vrot.slane %v3817, 2
  %v3819 = vadd.f32 %v3817, %v3818
  %v3820 = vrot.slane %v3819, 1
  %v3821 = vadd.f32 %v3819, %v3820
  %v3822 = vmul.f32 %v3812, %v3812
  %v3823 = vsel %vm2121, %v3822, 0.0
  %v3824 = vrot.slane %v3823, 4
  %v3825 = vadd.f32 %v3823, %v3824
  %v3826 = vrot.slane %v3825, 2
  %v3827 = vadd.f32 %v3825, %v3826
  %v3828 = vrot.slane %v3827, 1
  %v3829 = vadd.f32 %v3827, %v3828
  %v3831 = vrot.slane %v3812, 4
  %v3833 = vsel %vm2121, %v3831, 0.0
  %v3834 = vrot.slane %v3833, 4
  %v3835 = vadd.f32 %v3833, %v3834
  %v3836 = vrot.slane %v3835, 2
  %v3837 = vadd.f32 %v3835, %v3836
  %v3838 = vrot.slane %v3837, 1
  %v3839 = vadd.f32 %v3837, %v3838
  %v3841 = vrot.slane %v3822, 4
  %v3843 = vsel %vm2121, %v3841, 0.0
  %v3844 = vrot.slane %v3843, 4
  %v3845 = vadd.f32 %v3843, %v3844
  %v3846 = vrot.slane %v3845, 2
  %v3847 = vadd.f32 %v3845, %v3846
  %v3848 = vrot.slane %v3847, 1
  %v3849 = vadd.f32 %v3847, %v3848
  %v3850 = vsel %vm494, %v3821, %v3829
  %v3851 = vsel %vm436, %v3850, %v3839
  %v3852 = vsel %vm553, %v3851, %v3849
  %3854 = vrot.lane.b32.xlu0 %v3852, 127
  %v3855 = vpop.permute.xlu0 %3854
  %3857 = vrot.lane.b32.xlu0 %v3852, 15
  %v3858 = vpop.permute.xlu0 %3857
  %v3860 = vsel %vm2167, %v3855, %v3858
  %3861 = vrot.lane.b32.xlu0 %v3852, 113
  %v3862 = vpop.permute.xlu0 %3861
  %3864 = vrot.lane.b32.xlu0 %v3852, 1
  %v3865 = vpop.permute.xlu0 %3864
  %v3867 = vsel %vm2175, %v3862, %v3865
  %v3868 = vsel %vm2180, %v3860, %v3867
  %v3869 = vadd.f32 %v3852, %v3868
  %v3870 = vmul.f32 %v3869, %v1000
  %v3871 = vmul.f32 %v3870, %v3870
  %v3873 = vrot.slane %v3871, 7
  %v3875 = vsub.f32 %v3870, %v3873
  %v3876 = vadd.f32 %v3875, 1e-05
  %v3877 = vrsqrt.pop %v3876
  %v3878 = vmul.f32 %v3877, %v3876
  %v3879 = vmul.f32 %v3878, %v3877
  %v3880 = vmul.f32 0.5, %v3879
  %v3881 = vsub.f32 1.5, %v3880
  %v3882 = vmul.f32 %v3877, %v3881
  %vm3883 = vweird.f32 %v3876
  %vm3884 = vweird.f32 %v3877
  %vm3885 = vmor %vm3883, %vm3884
  %v3886 = vsel %vm3885, %v3877, %v3882
  %v3887 = vperm.slane %v3870, 2
  %v3888 = vperm.slane %v3870, 0
  %v3889 = vsel %vm1977, %v3887, %v3888
  %v3890 = vperm.slane %v3886, 3
  %v3891 = vperm.slane %v3886, 1
  %v3892 = vsel %vm1977, %v3890, %v3891
  %v3893 = vsub.f32 %v3812, %v3889
  %v3894 = vmul.f32 %v3893, %v3892
  %v3895 = vld [vmem:[%s3 + $0x33] sm:$0x1]
  %v3896 = vperm.slane %v3895, 0
  %v3897 = vmul.f32 %v3894, %v3896
  %v3898 = vld [vmem:[%s3 + $0x34] sm:$0x1]
  %v3899 = vperm.slane %v3898, 0
  %v3900 = vadd.f32 %v3897, %v3899
  %v3901 = vmax.f32 %v3900, 0.0
  %v3902 = vand.u32 2147483647, %v3900
  %v3903 = vsub.f32 0.0, %v3902
  %v3904 = vmul.f32 %v3903, 1.442695
  %v3905 = vpow.pop %v3904
  %v3906 = vadd.f32 %v3905, 1.0
  %v3907 = vlog2.pop %v3906
  %v3908 = vmul.f32 %v3907, 0.6931472
  %v3909 = vadd.f32 %v3901, %v3908
  %v3910 = vtanh.pop %v3909
  %v3911 = vmul.f32 %v3900, %v3910
  %v3912 = vadd.f32 %v3911, %v3441
  %3914 = vrot.lane.b32.xlu0 %v2970, 16
  %v3915 = vpop.permute.xlu0 %3914
  %v3917 = vsel %vm586, %v3912, %v3915
  %v3918 = vpack.c.bf16 %v3917, %v3917
  %v3920 = vunpack.c.l.b16 %v3918
  %v3921 = vpack.c.b16 %v3920, %v3920
  %v3922 = vrot.slane %v3921, 3
  %v3923 = vrot.slane %v3921, 7
  %v3926 = vsel %vm494, %v3922, %v3923
  %v3928 = vunpack.c.l.bf16 %v3926
  %v3929 = vmul.f32 %v3928, %v1996
  %v3930 = vpack.c.bf16 %v3929, %v3929
  %v3932 = vshrl.u32 %v3921, 16
  %v3934 = vrot.slane %v3932, 3
  %v3936 = vrot.slane %v3932, 7
  %v3937 = vshll.u32 %v3921, 16
  %v3939 = vor.u32 %v3936, %v3937
  %v3941 = vsel %vm803, %v3934, %v3939
  %v3942 = vunpack.c.l.bf16 %v3941
  %v3943 = vmul.f32 %v3942, %v2017
  %v3944 = vpack.c.bf16 %v3943, %v3943
  %v3945 = vrot.slane %v3937, 1
  %v3946 = vor.u32 %v3932, %v3945
  %v3948 = vrot.slane %v3937, 5
  %v3950 = vsel %vm2027, %v3946, %v3948
  %v3951 = vunpack.c.l.bf16 %v3950
  %v3952 = vmul.f32 %v3951, %v2036
  %v3953 = vpack.c.bf16 %v3952, %v3952
  %v3954 = vrot.slane %v3921, 1
  %v3955 = vrot.slane %v3921, 5
  %v3958 = vsel %vm553, %v3954, %v3955
  %v3960 = vunpack.c.l.bf16 %v3958
  %v3961 = vmul.f32 %v3960, %v2052
  %v3962 = vpack.c.bf16 %v3961, %v3961
  %v3964 = vunpack.c.l.b16 %v3944
  %v3965 = vpack.c.b16 %v3964, %v3964
  %3966 = vrot.lane.b32.xlu0 %v3965, 32
  %v3967 = vpop.permute.xlu0 %3966
  %3968 = vrot.lane.b32.xlu0 %v3921, 64
  %v3969 = vpop.permute.xlu0 %3968
  %v3971 = vunpack.c.l.b16 %v3953
  %v3972 = vpack.c.b16 %v3971, %v3971
  %3973 = vrot.lane.b32.xlu0 %v3972, 96
  %v3974 = vpop.permute.xlu0 %3973
  %v3977 = vsel %vm401, %v3930, %v3967
  %v3979 = vsel %vm2319, %v3977, %v3969
  %vm3980 = vcmask 785408
  %v3982 = vsel %vm3980, %v3979, %v3974
  %v3984 = vld [vmem:[%s2 + $0x1e4] sm:$0xf]
  %v3985 = vld [vmem:[%s2 + $0x1e8] sm:$0xf]
  %v3986 = vld [vmem:[%s2 + $0x1ec] sm:$0xf]
  %v3987 = vld [vmem:[%s2 + $0x1f0] sm:$0xf]
  %v3988 = vld [vmem:[%s2 + $0x1f4] sm:$0xf]
  %v3989 = vld [vmem:[%s2 + $0x1f8] sm:$0xf]
  %v3990 = vld [vmem:[%s2 + $0x1fc] sm:$0xf]
  %v3991 = vld [vmem:[%s2 + $0x200] sm:$0xf]
  %v3992 = vld [vmem:[%s2 + $0x204] sm:$0xf]
  %v3993 = vld [vmem:[%s2 + $0x208] sm:$0xf]
  %v3994 = vld [vmem:[%s2 + $0x20c] sm:$0xf]
  %v3995 = vld [vmem:[%s2 + $0x210] sm:$0xf]
  %v3996 = vld [vmem:[%s2 + $0x214] sm:$0xf]
  %v3997 = vld [vmem:[%s2 + $0x218] sm:$0xf]
  %v3998 = vld [vmem:[%s2 + $0x21c] sm:$0xf]
  %v3999 = vld [vmem:[%s2 + $0x220] sm:$0xf]
  %v4000 = vld [vmem:[%s2 + $0x224] sm:$0xf]
  %v4001 = vld [vmem:[%s2 + $0x228] sm:$0xf]
  %v4002 = vld [vmem:[%s2 + $0x22c] sm:$0xf]
  %v4003 = vld [vmem:[%s2 + $0x230] sm:$0xf]
  %v4004 = vld [vmem:[%s3 + $0x36] sm:$0x1]
  %v4005 = vperm.slane %v4004, 0
  %v4026 = vunpack.c.l.b16 %v3984
  %v4027 = vunpack.c.l.b16 %v3985
  %v4028 = vunpack.c.l.b16 %v3986
  %v4029 = vunpack.c.l.b16 %v3987
  %v4030 = vunpack.c.l.b16 %v3988
  %v4031 = vunpack.c.l.b16 %v3989
  %v4032 = vunpack.c.l.b16 %v3990
  %v4033 = vunpack.c.l.b16 %v3991
  %v4034 = vunpack.c.l.b16 %v3992
  %v4035 = vunpack.c.l.b16 %v3993
  %v4036 = vunpack.c.l.b16 %v3994
  %v4037 = vunpack.c.l.b16 %v3995
  %v4038 = vunpack.c.l.b16 %v3996
  %v4039 = vunpack.c.l.b16 %v3997
  %v4040 = vunpack.c.l.b16 %v3998
  %v4041 = vunpack.c.l.b16 %v3999
  %v4042 = vunpack.c.l.b16 %v4000
  %v4043 = vunpack.c.l.b16 %v4001
  %v4044 = vunpack.c.l.b16 %v4002
  %v4045 = vunpack.c.l.b16 %v4003
  %v4046 = vpack.c.b16 %v4027, %v4026
  %v4047 = vpack.c.b16 %v4029, %v4028
  %v4048 = vpack.c.b16 %v4031, %v4030
  %v4049 = vpack.c.b16 %v4033, %v4032
  %v4050 = vpack.c.b16 %v4035, %v4034
  %v4051 = vpack.c.b16 %v4037, %v4036
  %v4052 = vpack.c.b16 %v4039, %v4038
  %v4053 = vpack.c.b16 %v4041, %v4040
  %v4054 = vpack.c.b16 %v4043, %v4042
  %v4055 = vpack.c.b16 %v4045, %v4044
  %v4067 = vsel %vm401, %v3962, 0
  %4069 = vmatpush.bf16.msra.mxu0 %v4053
  %4070 = vmatpush.bf16.msra.mxu0 %v4052
  %4071 = vmatpush.bf16.msra.mxu0 %v4051
  %4072 = vmatpush.bf16.msra.mxu0 %v4050
  %4073 = vmatpush.bf16.msra.mxu0 %v4049
  %4074 = vmatpush.bf16.msra.mxu0 %v4048
  %4075 = vmatpush.bf16.msra.mxu0 %v4047
  %4076 = vmatpush.bf16.msra.mxu0 %v4046
  %4077 = vmatmul.bf16.gmra.mxu0 %v3982
  %v4078 = vpop.f32.mrf.mxu0
  %v4079 = vadd.f32 %v4005, %v4078
  %v4080 = vpop.f32.mrf.mxu0
  %4081 = vdwg.mxu0
  %4082 = vmatpush.bf16.msra.mxu0 0
  %4083 = vmatpush.bf16.msra.mxu0 0
  %4084 = vmatpush.bf16.msra.mxu0 0
  %4085 = vmatpush.bf16.msra.mxu0 0
  %4086 = vmatpush.bf16.msra.mxu0 0
  %4087 = vmatpush.bf16.msra.mxu0 0
  %4088 = vmatpush.bf16.msra.mxu0 %v4055
  %4089 = vmatpush.bf16.msra.mxu0 %v4054
  %4090 = vmatmul.bf16.gmra.mxu0 %v4067
  %v4091 = vpop.f32.mrf.mxu0
  %v4092 = vadd.f32 %v4079, %v4091
  %v4093 = vpop.f32.mrf.mxu0
  %4094 = vdwg.mxu0
  %vm4095 = vcmask 60416
  %v4096 = vsel %vm4095, %v4092, 0.0
  %v4097 = vrot.slane %v4096, 4
  %v4098 = vadd.f32 %v4096, %v4097
  %v4099 = vrot.slane %v4098, 2
  %v4100 = vadd.f32 %v4098, %v4099
  %v4101 = vrot.slane %v4100, 1
  %v4102 = vadd.f32 %v4100, %v4101
  %v4103 = vmul.f32 %v4092, %v4092
  %v4104 = vsel %vm4095, %v4103, 0.0
  %v4105 = vrot.slane %v4104, 4
  %v4106 = vadd.f32 %v4104, %v4105
  %v4107 = vrot.slane %v4106, 2
  %v4108 = vadd.f32 %v4106, %v4107
  %v4109 = vrot.slane %v4108, 1
  %v4110 = vadd.f32 %v4108, %v4109
  %v4112 = vrot.slane %v4092, 4
  %v4114 = vsel %vm4095, %v4112, 0.0
  %v4115 = vrot.slane %v4114, 4
  %v4116 = vadd.f32 %v4114, %v4115
  %v4117 = vrot.slane %v4116, 2
  %v4118 = vadd.f32 %v4116, %v4117
  %v4119 = vrot.slane %v4118, 1
  %v4120 = vadd.f32 %v4118, %v4119
  %v4122 = vrot.slane %v4103, 4
  %v4124 = vsel %vm4095, %v4122, 0.0
  %v4125 = vrot.slane %v4124, 4
  %v4126 = vadd.f32 %v4124, %v4125
  %v4127 = vrot.slane %v4126, 2
  %v4128 = vadd.f32 %v4126, %v4127
  %v4129 = vrot.slane %v4128, 1
  %v4130 = vadd.f32 %v4128, %v4129
  %v4131 = vsel %vm494, %v4102, %v4110
  %v4132 = vsel %vm436, %v4131, %v4120
  %v4133 = vsel %vm553, %v4132, %v4130
  %v4134 = vrcp.pop 4.0
  %v4135 = vmul.f32 4.0, %v4134
  %v4136 = vsub.f32 1.0, %v4135
  %v4137 = vmul.f32 %v4134, %v4136
  %v4138 = vadd.f32 %v4134, %v4137
  %vm4139 = vweird.f32 %v4134
  %v4140 = vsel %vm4139, %v4134, %v4138
  %v4141 = vmul.f32 %v4133, %v4140
  %v4142 = vmul.f32 %v4141, %v4141
  %v4144 = vrot.slane %v4142, 7
  %v4146 = vsub.f32 %v4141, %v4144
  %v4147 = vadd.f32 %v4146, 1e-05
  %v4148 = vrsqrt.pop %v4147
  %v4149 = vmul.f32 %v4148, %v4147
  %v4150 = vmul.f32 %v4149, %v4148
  %v4151 = vmul.f32 0.5, %v4150
  %v4152 = vsub.f32 1.5, %v4151
  %v4153 = vmul.f32 %v4148, %v4152
  %vm4154 = vweird.f32 %v4147
  %vm4155 = vweird.f32 %v4148
  %vm4156 = vmor %vm4154, %vm4155
  %v4157 = vsel %vm4156, %v4148, %v4153
  %v4158 = vperm.slane %v4141, 2
  %v4159 = vperm.slane %v4141, 0
  %v4160 = vsel %vm1977, %v4158, %v4159
  %v4161 = vperm.slane %v4157, 3
  %v4162 = vperm.slane %v4157, 1
  %v4163 = vsel %vm1977, %v4161, %v4162
  %v4164 = vsub.f32 %v4092, %v4160
  %v4165 = vmul.f32 %v4164, %v4163
  %v4166 = vld [vmem:[%s3 + $0x37] sm:$0x1]
  %v4167 = vperm.slane %v4166, 0
  %v4168 = vmul.f32 %v4165, %v4167
  %v4169 = vld [vmem:[%s3 + $0x38] sm:$0x1]
  %v4170 = vperm.slane %v4169, 0
  %v4171 = vadd.f32 %v4168, %v4170
  %v4172 = vmax.f32 %v4171, 0.0
  %v4173 = vand.u32 2147483647, %v4171
  %v4174 = vsub.f32 0.0, %v4173
  %v4175 = vmul.f32 %v4174, 1.442695
  %v4176 = vpow.pop %v4175
  %v4177 = vadd.f32 %v4176, 1.0
  %v4178 = vlog2.pop %v4177
  %v4179 = vmul.f32 %v4178, 0.6931472
  %v4180 = vadd.f32 %v4172, %v4179
  %v4181 = vtanh.pop %v4180
  %v4182 = vmul.f32 %v4171, %v4181
  %v4183 = vld [vmem:[%s2 + $0x248] sm:$0xf]
  %v4184 = vld [vmem:[%s3 + $0x3c] sm:$0x1]
  %v4185 = vperm.slane %v4184, 0
  %v4187 = vsel %vm354, %v4183, 0
  %4189 = vmatpush.bf16.msra.mxu0 0
  %4190 = vmatpush.bf16.msra.mxu0 0
  %4191 = vmatpush.bf16.msra.mxu0 0
  %4192 = vmatpush.bf16.msra.mxu0 0
  %4193 = vmatpush.bf16.msra.mxu0 0
  %4194 = vmatpush.bf16.msra.mxu0 0
  %4195 = vmatpush.bf16.msra.mxu0 0
  %4196 = vmatpush.bf16.msra.mxu0 %v4187
  %4197 = vmatmul.bf16.gmra.mxu0 %v2230
  %v4198 = vpop.f32.mrf.mxu0
  %v4199 = vadd.f32 %v4185, %v4198
  %v4200 = vpop.f32.mrf.mxu0
  %4201 = vdwg.mxu0
  %v4202 = vadd.f32 %v4182, %v4199
  %v4203 = vpack.c.bf16 %v4202, %v4202
  %v4205 = vunpack.c.l.b16 %v4203
  %v4206 = vpack.c.b16 %v4205, %v4205
  %v4207 = vrot.slane %v4206, 3
  %v4208 = vrot.slane %v4206, 7
  %v4211 = vsel %vm494, %v4207, %v4208
  %v4213 = vunpack.c.l.bf16 %v4211
  %v4214 = vmul.f32 %v4213, %v1996
  %v4215 = vpack.c.bf16 %v4214, %v4214
  %v4217 = vshrl.u32 %v4206, 16
  %v4219 = vrot.slane %v4217, 3
  %v4221 = vrot.slane %v4217, 7
  %v4222 = vshll.u32 %v4206, 16
  %v4224 = vor.u32 %v4221, %v4222
  %v4226 = vsel %vm803, %v4219, %v4224
  %v4227 = vunpack.c.l.bf16 %v4226
  %v4228 = vmul.f32 %v4227, %v2017
  %v4229 = vpack.c.bf16 %v4228, %v4228
  %v4230 = vrot.slane %v4222, 1
  %v4231 = vor.u32 %v4217, %v4230
  %v4233 = vrot.slane %v4222, 5
  %v4235 = vsel %vm2027, %v4231, %v4233
  %v4236 = vunpack.c.l.bf16 %v4235
  %v4237 = vmul.f32 %v4236, %v2036
  %v4238 = vpack.c.bf16 %v4237, %v4237
  %v4239 = vrot.slane %v4206, 1
  %v4240 = vrot.slane %v4206, 5
  %v4243 = vsel %vm553, %v4239, %v4240
  %v4245 = vunpack.c.l.bf16 %v4243
  %v4246 = vmul.f32 %v4245, %v2052
  %v4247 = vpack.c.bf16 %v4246, %v4246
  %v4249 = vunpack.c.l.b16 %v4229
  %v4250 = vpack.c.b16 %v4249, %v4249
  %4251 = vrot.lane.b32.xlu0 %v4250, 8
  %v4252 = vpop.permute.xlu0 %4251
  %4253 = vrot.lane.b32.xlu0 %v4206, 16
  %v4254 = vpop.permute.xlu0 %4253
  %v4256 = vunpack.c.l.b16 %v4238
  %v4257 = vpack.c.b16 %v4256, %v4256
  %4258 = vrot.lane.b32.xlu0 %v4257, 24
  %v4259 = vpop.permute.xlu0 %4258
  %v4261 = vunpack.c.l.b16 %v4247
  %v4262 = vpack.c.b16 %v4261, %v4261
  %4263 = vrot.lane.b32.xlu0 %v4262, 32
  %v4264 = vpop.permute.xlu0 %4263
  %v4267 = vsel %vm350, %v4215, %v4252
  %v4269 = vsel %vm586, %v4267, %v4254
  %v4271 = vsel %vm921, %v4269, %v4259
  %v4273 = vsel %vm401, %v4271, %v4264
  %v4274 = vld [vmem:[%s2 + $0x234] sm:$0xf]
  %v4275 = vld [vmem:[%s2 + $0x238] sm:$0xf]
  %v4276 = vld [vmem:[%s2 + $0x23c] sm:$0xf]
  %v4277 = vld [vmem:[%s2 + $0x240] sm:$0xf]
  %v4278 = vld [vmem:[%s2 + $0x244] sm:$0xf]
  %v4279 = vld [vmem:[%s3 + $0x39] sm:$0x1]
  %v4280 = vperm.slane %v4279, 0
  %v4286 = vunpack.c.l.b16 %v4274
  %v4287 = vunpack.c.l.b16 %v4275
  %v4288 = vunpack.c.l.b16 %v4276
  %v4289 = vunpack.c.l.b16 %v4277
  %v4290 = vunpack.c.l.b16 %v4278
  %v4291 = vpack.c.b16 %v4287, %v4286
  %v4292 = vpack.c.b16 %v4289, %v4288
  %v4293 = vpack.c.b16 %v4290, %v4290
  %v4296 = vsel %vm1213, %v4273, 0
  %v4299 = vsel %vm354, %v4293, 0
  %4301 = vmatpush.bf16.msra.mxu0 0
  %4302 = vmatpush.bf16.msra.mxu0 0
  %4303 = vmatpush.bf16.msra.mxu0 0
  %4304 = vmatpush.bf16.msra.mxu0 0
  %4305 = vmatpush.bf16.msra.mxu0 0
  %4306 = vmatpush.bf16.msra.mxu0 %v4299
  %4307 = vmatpush.bf16.msra.mxu0 %v4292
  %4308 = vmatpush.bf16.msra.mxu0 %v4291
  %4309 = vmatmul.bf16.gmra.mxu0 %v4296
  %v4310 = vpop.f32.mrf.mxu0
  %v4311 = vadd.f32 %v4280, %v4310
  %v4312 = vpop.f32.mrf.mxu0
  %4313 = vdwg.mxu0
  %v4314 = vsel %vm4095, %v4311, 0.0
  %v4315 = vrot.slane %v4314, 4
  %v4316 = vadd.f32 %v4314, %v4315
  %v4317 = vrot.slane %v4316, 2
  %v4318 = vadd.f32 %v4316, %v4317
  %v4319 = vrot.slane %v4318, 1
  %v4320 = vadd.f32 %v4318, %v4319
  %v4321 = vmul.f32 %v4311, %v4311
  %v4322 = vsel %vm4095, %v4321, 0.0
  %v4323 = vrot.slane %v4322, 4
  %v4324 = vadd.f32 %v4322, %v4323
  %v4325 = vrot.slane %v4324, 2
  %v4326 = vadd.f32 %v4324, %v4325
  %v4327 = vrot.slane %v4326, 1
  %v4328 = vadd.f32 %v4326, %v4327
  %v4330 = vrot.slane %v4311, 4
  %v4332 = vsel %vm4095, %v4330, 0.0
  %v4333 = vrot.slane %v4332, 4
  %v4334 = vadd.f32 %v4332, %v4333
  %v4335 = vrot.slane %v4334, 2
  %v4336 = vadd.f32 %v4334, %v4335
  %v4337 = vrot.slane %v4336, 1
  %v4338 = vadd.f32 %v4336, %v4337
  %v4340 = vrot.slane %v4321, 4
  %v4342 = vsel %vm4095, %v4340, 0.0
  %v4343 = vrot.slane %v4342, 4
  %v4344 = vadd.f32 %v4342, %v4343
  %v4345 = vrot.slane %v4344, 2
  %v4346 = vadd.f32 %v4344, %v4345
  %v4347 = vrot.slane %v4346, 1
  %v4348 = vadd.f32 %v4346, %v4347
  %v4349 = vsel %vm494, %v4320, %v4328
  %v4350 = vsel %vm436, %v4349, %v4338
  %v4351 = vsel %vm553, %v4350, %v4348
  %v4352 = vmul.f32 %v4351, %v4140
  %v4353 = vmul.f32 %v4352, %v4352
  %v4355 = vrot.slane %v4353, 7
  %v4357 = vsub.f32 %v4352, %v4355
  %v4358 = vadd.f32 %v4357, 1e-05
  %v4359 = vrsqrt.pop %v4358
  %v4360 = vmul.f32 %v4359, %v4358
  %v4361 = vmul.f32 %v4360, %v4359
  %v4362 = vmul.f32 0.5, %v4361
  %v4363 = vsub.f32 1.5, %v4362
  %v4364 = vmul.f32 %v4359, %v4363
  %vm4365 = vweird.f32 %v4358
  %vm4366 = vweird.f32 %v4359
  %vm4367 = vmor %vm4365, %vm4366
  %v4368 = vsel %vm4367, %v4359, %v4364
  %v4369 = vperm.slane %v4352, 2
  %v4370 = vperm.slane %v4352, 0
  %v4371 = vsel %vm1977, %v4369, %v4370
  %v4372 = vperm.slane %v4368, 3
  %v4373 = vperm.slane %v4368, 1
  %v4374 = vsel %vm1977, %v4372, %v4373
  %v4375 = vsub.f32 %v4311, %v4371
  %v4376 = vmul.f32 %v4375, %v4374
  %v4377 = vld [vmem:[%s3 + $0x3a] sm:$0x1]
  %v4378 = vperm.slane %v4377, 0
  %v4379 = vmul.f32 %v4376, %v4378
  %v4380 = vld [vmem:[%s3 + $0x3b] sm:$0x1]
  %v4381 = vperm.slane %v4380, 0
  %v4382 = vadd.f32 %v4379, %v4381
  %v4383 = vmax.f32 %v4382, 0.0
  %v4384 = vand.u32 2147483647, %v4382
  %v4385 = vsub.f32 0.0, %v4384
  %v4386 = vmul.f32 %v4385, 1.442695
  %v4387 = vpow.pop %v4386
  %v4388 = vadd.f32 %v4387, 1.0
  %v4389 = vlog2.pop %v4388
  %v4390 = vmul.f32 %v4389, 0.6931472
  %v4391 = vadd.f32 %v4383, %v4390
  %v4392 = vtanh.pop %v4391
  %v4393 = vmul.f32 %v4382, %v4392
  %v4394 = vld [vmem:[%s2 + $0x24c] sm:$0xf]
  %v4395 = vld [vmem:[%s2 + $0x250] sm:$0xf]
  %v4396 = vld [vmem:[%s2 + $0x254] sm:$0xf]
  %v4397 = vld [vmem:[%s2 + $0x258] sm:$0xf]
  %v4398 = vld [vmem:[%s3 + $0x3d] sm:$0x1]
  %v4399 = vperm.slane %v4398, 0
  %v4404 = vunpack.c.l.b16 %v4394
  %v4405 = vunpack.c.l.b16 %v4395
  %v4406 = vunpack.c.l.b16 %v4396
  %v4407 = vunpack.c.l.b16 %v4397
  %v4408 = vpack.c.b16 %v4405, %v4404
  %v4409 = vpack.c.b16 %v4407, %v4406
  %v4413 = vsel %vm401, %v3918, 0
  %4415 = vmatpush.bf16.msra.mxu0 0
  %4416 = vmatpush.bf16.msra.mxu0 0
  %4417 = vmatpush.bf16.msra.mxu0 0
  %4418 = vmatpush.bf16.msra.mxu0 0
  %4419 = vmatpush.bf16.msra.mxu0 0
  %4420 = vmatpush.bf16.msra.mxu0 0
  %4421 = vmatpush.bf16.msra.mxu0 %v4409
  %4422 = vmatpush.bf16.msra.mxu0 %v4408
  %4423 = vmatmul.bf16.gmra.mxu0 %v4413
  %v4424 = vpop.f32.mrf.mxu0
  %v4425 = vadd.f32 %v4399, %v4424
  %v4426 = vpop.f32.mrf.mxu0
  %4427 = vdwg.mxu0
  %v4428 = vadd.f32 %v4393, %v4425
  %v4429 = vpack.c.bf16 %v4428, %v4428
  %v4431 = vunpack.c.l.b16 %v4429
  %v4432 = vpack.c.b16 %v4431, %v4431
  %v4433 = vrot.slane %v4432, 3
  %v4434 = vrot.slane %v4432, 7
  %v4437 = vsel %vm494, %v4433, %v4434
  %v4439 = vunpack.c.l.bf16 %v4437
  %v4440 = vmul.f32 %v4439, %v1996
  %v4441 = vpack.c.bf16 %v4440, %v4440
  %v4443 = vshrl.u32 %v4432, 16
  %v4445 = vrot.slane %v4443, 3
  %v4447 = vrot.slane %v4443, 7
  %v4448 = vshll.u32 %v4432, 16
  %v4450 = vor.u32 %v4447, %v4448
  %v4452 = vsel %vm803, %v4445, %v4450
  %v4453 = vunpack.c.l.bf16 %v4452
  %v4454 = vmul.f32 %v4453, %v2017
  %v4455 = vpack.c.bf16 %v4454, %v4454
  %v4456 = vrot.slane %v4448, 1
  %v4457 = vor.u32 %v4443, %v4456
  %v4459 = vrot.slane %v4448, 5
  %v4461 = vsel %vm2027, %v4457, %v4459
  %v4462 = vunpack.c.l.bf16 %v4461
  %v4463 = vmul.f32 %v4462, %v2036
  %v4464 = vpack.c.bf16 %v4463, %v4463
  %v4465 = vrot.slane %v4432, 1
  %v4466 = vrot.slane %v4432, 5
  %v4469 = vsel %vm553, %v4465, %v4466
  %v4471 = vunpack.c.l.bf16 %v4469
  %v4472 = vmul.f32 %v4471, %v2052
  %v4473 = vpack.c.bf16 %v4472, %v4472
  %v4475 = vunpack.c.l.b16 %v4455
  %v4476 = vpack.c.b16 %v4475, %v4475
  %4477 = vrot.lane.b32.xlu0 %v4476, 8
  %v4478 = vpop.permute.xlu0 %4477
  %4479 = vrot.lane.b32.xlu0 %v4432, 16
  %v4480 = vpop.permute.xlu0 %4479
  %v4482 = vunpack.c.l.b16 %v4464
  %v4483 = vpack.c.b16 %v4482, %v4482
  %4484 = vrot.lane.b32.xlu0 %v4483, 24
  %v4485 = vpop.permute.xlu0 %4484
  %v4487 = vunpack.c.l.b16 %v4473
  %v4488 = vpack.c.b16 %v4487, %v4487
  %4489 = vrot.lane.b32.xlu0 %v4488, 32
  %v4490 = vpop.permute.xlu0 %4489
  %v4493 = vsel %vm350, %v4441, %v4478
  %v4495 = vsel %vm586, %v4493, %v4480
  %v4497 = vsel %vm921, %v4495, %v4485
  %v4499 = vsel %vm401, %v4497, %v4490
  %v4500 = vld [vmem:[%s2 + $0x25c] sm:$0xf]
  %v4501 = vld [vmem:[%s2 + $0x260] sm:$0xf]
  %v4502 = vld [vmem:[%s2 + $0x264] sm:$0xf]
  %v4503 = vld [vmem:[%s2 + $0x268] sm:$0xf]
  %v4504 = vld [vmem:[%s2 + $0x26c] sm:$0xf]
  %v4505 = vld [vmem:[%s3 + $0x3e] sm:$0x1]
  %v4506 = vperm.slane %v4505, 0
  %v4512 = vunpack.c.l.b16 %v4500
  %v4513 = vunpack.c.l.b16 %v4501
  %v4514 = vunpack.c.l.b16 %v4502
  %v4515 = vunpack.c.l.b16 %v4503
  %v4516 = vunpack.c.l.b16 %v4504
  %v4517 = vpack.c.b16 %v4513, %v4512
  %v4518 = vpack.c.b16 %v4515, %v4514
  %v4519 = vpack.c.b16 %v4516, %v4516
  %v4522 = vsel %vm1213, %v4499, 0
  %v4525 = vsel %vm354, %v4519, 0
  %4527 = vmatpush.bf16.msra.mxu0 0
  %4528 = vmatpush.bf16.msra.mxu0 0
  %4529 = vmatpush.bf16.msra.mxu0 0
  %4530 = vmatpush.bf16.msra.mxu0 0
  %4531 = vmatpush.bf16.msra.mxu0 0
  %4532 = vmatpush.bf16.msra.mxu0 %v4525
  %4533 = vmatpush.bf16.msra.mxu0 %v4518
  %4534 = vmatpush.bf16.msra.mxu0 %v4517
  %4535 = vmatmul.bf16.gmra.mxu0 %v4522
  %v4536 = vpop.f32.mrf.mxu0
  %v4537 = vadd.f32 %v4506, %v4536
  %v4538 = vpop.f32.mrf.mxu0
  %4539 = vdwg.mxu0
  %v4540 = vsel %vm4095, %v4537, 0.0
  %v4541 = vrot.slane %v4540, 4
  %v4542 = vadd.f32 %v4540, %v4541
  %v4543 = vrot.slane %v4542, 2
  %v4544 = vadd.f32 %v4542, %v4543
  %v4545 = vrot.slane %v4544, 1
  %v4546 = vadd.f32 %v4544, %v4545
  %v4547 = vmul.f32 %v4537, %v4537
  %v4548 = vsel %vm4095, %v4547, 0.0
  %v4549 = vrot.slane %v4548, 4
  %v4550 = vadd.f32 %v4548, %v4549
  %v4551 = vrot.slane %v4550, 2
  %v4552 = vadd.f32 %v4550, %v4551
  %v4553 = vrot.slane %v4552, 1
  %v4554 = vadd.f32 %v4552, %v4553
  %v4556 = vrot.slane %v4537, 4
  %v4558 = vsel %vm4095, %v4556, 0.0
  %v4559 = vrot.slane %v4558, 4
  %v4560 = vadd.f32 %v4558, %v4559
  %v4561 = vrot.slane %v4560, 2
  %v4562 = vadd.f32 %v4560, %v4561
  %v4563 = vrot.slane %v4562, 1
  %v4564 = vadd.f32 %v4562, %v4563
  %v4566 = vrot.slane %v4547, 4
  %v4568 = vsel %vm4095, %v4566, 0.0
  %v4569 = vrot.slane %v4568, 4
  %v4570 = vadd.f32 %v4568, %v4569
  %v4571 = vrot.slane %v4570, 2
  %v4572 = vadd.f32 %v4570, %v4571
  %v4573 = vrot.slane %v4572, 1
  %v4574 = vadd.f32 %v4572, %v4573
  %v4575 = vsel %vm494, %v4546, %v4554
  %v4576 = vsel %vm436, %v4575, %v4564
  %v4577 = vsel %vm553, %v4576, %v4574
  %v4578 = vmul.f32 %v4577, %v4140
  %v4579 = vmul.f32 %v4578, %v4578
  %v4581 = vrot.slane %v4579, 7
  %v4583 = vsub.f32 %v4578, %v4581
  %v4584 = vadd.f32 %v4583, 1e-05
  %v4585 = vrsqrt.pop %v4584
  %v4586 = vmul.f32 %v4585, %v4584
  %v4587 = vmul.f32 %v4586, %v4585
  %v4588 = vmul.f32 0.5, %v4587
  %v4589 = vsub.f32 1.5, %v4588
  %v4590 = vmul.f32 %v4585, %v4589
  %vm4591 = vweird.f32 %v4584
  %vm4592 = vweird.f32 %v4585
  %vm4593 = vmor %vm4591, %vm4592
  %v4594 = vsel %vm4593, %v4585, %v4590
  %v4595 = vperm.slane %v4578, 2
  %v4596 = vperm.slane %v4578, 0
  %v4597 = vsel %vm1977, %v4595, %v4596
  %v4598 = vperm.slane %v4594, 3
  %v4599 = vperm.slane %v4594, 1
  %v4600 = vsel %vm1977, %v4598, %v4599
  %v4601 = vsub.f32 %v4537, %v4597
  %v4602 = vmul.f32 %v4601, %v4600
  %v4603 = vld [vmem:[%s3 + $0x3f] sm:$0x1]
  %v4604 = vperm.slane %v4603, 0
  %v4605 = vmul.f32 %v4602, %v4604
  %v4606 = vld [vmem:[%s3 + $0x40] sm:$0x1]
  %v4607 = vperm.slane %v4606, 0
  %v4608 = vadd.f32 %v4605, %v4607
  %v4609 = vmax.f32 %v4608, 0.0
  %v4610 = vand.u32 2147483647, %v4608
  %v4611 = vsub.f32 0.0, %v4610
  %v4612 = vmul.f32 %v4611, 1.442695
  %v4613 = vpow.pop %v4612
  %v4614 = vadd.f32 %v4613, 1.0
  %v4615 = vlog2.pop %v4614
  %v4616 = vmul.f32 %v4615, 0.6931472
  %v4617 = vadd.f32 %v4609, %v4616
  %v4618 = vtanh.pop %v4617
  %v4619 = vmul.f32 %v4608, %v4618
  %v4620 = vld [vmem:[%s2 + $0x284] sm:$0xf]
  %v4621 = vld [vmem:[%s3 + $0x44] sm:$0x1]
  %v4622 = vperm.slane %v4621, 0
  %v4624 = vsel %vm354, %v4620, 0
  %4626 = vmatpush.bf16.msra.mxu0 0
  %4627 = vmatpush.bf16.msra.mxu0 0
  %4628 = vmatpush.bf16.msra.mxu0 0
  %4629 = vmatpush.bf16.msra.mxu0 0
  %4630 = vmatpush.bf16.msra.mxu0 0
  %4631 = vmatpush.bf16.msra.mxu0 0
  %4632 = vmatpush.bf16.msra.mxu0 0
  %4633 = vmatpush.bf16.msra.mxu0 %v4624
  %4634 = vmatmul.bf16.gmra.mxu0 %v2230
  %v4635 = vpop.f32.mrf.mxu0
  %v4636 = vadd.f32 %v4622, %v4635
  %v4637 = vpop.f32.mrf.mxu0
  %4638 = vdwg.mxu0
  %v4639 = vadd.f32 %v4619, %v4636
  %v4640 = vpack.c.bf16 %v4639, %v4639
  %v4642 = vunpack.c.l.b16 %v4640
  %v4643 = vpack.c.b16 %v4642, %v4642
  %v4644 = vrot.slane %v4643, 3
  %v4645 = vrot.slane %v4643, 7
  %v4648 = vsel %vm494, %v4644, %v4645
  %v4650 = vunpack.c.l.bf16 %v4648
  %v4651 = vmul.f32 %v4650, %v1996
  %v4652 = vpack.c.bf16 %v4651, %v4651
  %v4654 = vshrl.u32 %v4643, 16
  %v4656 = vrot.slane %v4654, 3
  %v4658 = vrot.slane %v4654, 7
  %v4659 = vshll.u32 %v4643, 16
  %v4661 = vor.u32 %v4658, %v4659
  %v4663 = vsel %vm803, %v4656, %v4661
  %v4664 = vunpack.c.l.bf16 %v4663
  %v4665 = vmul.f32 %v4664, %v2017
  %v4666 = vpack.c.bf16 %v4665, %v4665
  %v4667 = vrot.slane %v4659, 1
  %v4668 = vor.u32 %v4654, %v4667
  %v4670 = vrot.slane %v4659, 5
  %v4672 = vsel %vm2027, %v4668, %v4670
  %v4673 = vunpack.c.l.bf16 %v4672
  %v4674 = vmul.f32 %v4673, %v2036
  %v4675 = vpack.c.bf16 %v4674, %v4674
  %v4676 = vrot.slane %v4643, 1
  %v4677 = vrot.slane %v4643, 5
  %v4680 = vsel %vm553, %v4676, %v4677
  %v4682 = vunpack.c.l.bf16 %v4680
  %v4683 = vmul.f32 %v4682, %v2052
  %v4684 = vpack.c.bf16 %v4683, %v4683
  %v4686 = vunpack.c.l.b16 %v4666
  %v4687 = vpack.c.b16 %v4686, %v4686
  %4688 = vrot.lane.b32.xlu0 %v4687, 8
  %v4689 = vpop.permute.xlu0 %4688
  %4690 = vrot.lane.b32.xlu0 %v4643, 16
  %v4691 = vpop.permute.xlu0 %4690
  %v4693 = vunpack.c.l.b16 %v4675
  %v4694 = vpack.c.b16 %v4693, %v4693
  %4695 = vrot.lane.b32.xlu0 %v4694, 24
  %v4696 = vpop.permute.xlu0 %4695
  %v4698 = vunpack.c.l.b16 %v4684
  %v4699 = vpack.c.b16 %v4698, %v4698
  %4700 = vrot.lane.b32.xlu0 %v4699, 32
  %v4701 = vpop.permute.xlu0 %4700
  %v4704 = vsel %vm350, %v4652, %v4689
  %v4706 = vsel %vm586, %v4704, %v4691
  %v4708 = vsel %vm921, %v4706, %v4696
  %v4710 = vsel %vm401, %v4708, %v4701
  %v4711 = vld [vmem:[%s2 + $0x270] sm:$0xf]
  %v4712 = vld [vmem:[%s2 + $0x274] sm:$0xf]
  %v4713 = vld [vmem:[%s2 + $0x278] sm:$0xf]
  %v4714 = vld [vmem:[%s2 + $0x27c] sm:$0xf]
  %v4715 = vld [vmem:[%s2 + $0x280] sm:$0xf]
  %v4716 = vld [vmem:[%s3 + $0x41] sm:$0x1]
  %v4717 = vperm.slane %v4716, 0
  %v4723 = vunpack.c.l.b16 %v4711
  %v4724 = vunpack.c.l.b16 %v4712
  %v4725 = vunpack.c.l.b16 %v4713
  %v4726 = vunpack.c.l.b16 %v4714
  %v4727 = vunpack.c.l.b16 %v4715
  %v4728 = vpack.c.b16 %v4724, %v4723
  %v4729 = vpack.c.b16 %v4726, %v4725
  %v4730 = vpack.c.b16 %v4727, %v4727
  %v4733 = vsel %vm1213, %v4710, 0
  %v4736 = vsel %vm354, %v4730, 0
  %4738 = vmatpush.bf16.msra.mxu0 0
  %4739 = vmatpush.bf16.msra.mxu0 0
  %4740 = vmatpush.bf16.msra.mxu0 0
  %4741 = vmatpush.bf16.msra.mxu0 0
  %4742 = vmatpush.bf16.msra.mxu0 0
  %4743 = vmatpush.bf16.msra.mxu0 %v4736
  %4744 = vmatpush.bf16.msra.mxu0 %v4729
  %4745 = vmatpush.bf16.msra.mxu0 %v4728
  %4746 = vmatmul.bf16.gmra.mxu0 %v4733
  %v4747 = vpop.f32.mrf.mxu0
  %v4748 = vadd.f32 %v4717, %v4747
  %v4749 = vpop.f32.mrf.mxu0
  %4750 = vdwg.mxu0
  %v4751 = vsel %vm4095, %v4748, 0.0
  %v4752 = vrot.slane %v4751, 4
  %v4753 = vadd.f32 %v4751, %v4752
  %v4754 = vrot.slane %v4753, 2
  %v4755 = vadd.f32 %v4753, %v4754
  %v4756 = vrot.slane %v4755, 1
  %v4757 = vadd.f32 %v4755, %v4756
  %v4758 = vmul.f32 %v4748, %v4748
  %v4759 = vsel %vm4095, %v4758, 0.0
  %v4760 = vrot.slane %v4759, 4
  %v4761 = vadd.f32 %v4759, %v4760
  %v4762 = vrot.slane %v4761, 2
  %v4763 = vadd.f32 %v4761, %v4762
  %v4764 = vrot.slane %v4763, 1
  %v4765 = vadd.f32 %v4763, %v4764
  %v4767 = vrot.slane %v4748, 4
  %v4769 = vsel %vm4095, %v4767, 0.0
  %v4770 = vrot.slane %v4769, 4
  %v4771 = vadd.f32 %v4769, %v4770
  %v4772 = vrot.slane %v4771, 2
  %v4773 = vadd.f32 %v4771, %v4772
  %v4774 = vrot.slane %v4773, 1
  %v4775 = vadd.f32 %v4773, %v4774
  %v4777 = vrot.slane %v4758, 4
  %v4779 = vsel %vm4095, %v4777, 0.0
  %v4780 = vrot.slane %v4779, 4
  %v4781 = vadd.f32 %v4779, %v4780
  %v4782 = vrot.slane %v4781, 2
  %v4783 = vadd.f32 %v4781, %v4782
  %v4784 = vrot.slane %v4783, 1
  %v4785 = vadd.f32 %v4783, %v4784
  %v4786 = vsel %vm494, %v4757, %v4765
  %v4787 = vsel %vm436, %v4786, %v4775
  %v4788 = vsel %vm553, %v4787, %v4785
  %v4789 = vmul.f32 %v4788, %v4140
  %v4790 = vmul.f32 %v4789, %v4789
  %v4792 = vrot.slane %v4790, 7
  %v4794 = vsub.f32 %v4789, %v4792
  %v4795 = vadd.f32 %v4794, 1e-05
  %v4796 = vrsqrt.pop %v4795
  %v4797 = vmul.f32 %v4796, %v4795
  %v4798 = vmul.f32 %v4797, %v4796
  %v4799 = vmul.f32 0.5, %v4798
  %v4800 = vsub.f32 1.5, %v4799
  %v4801 = vmul.f32 %v4796, %v4800
  %vm4802 = vweird.f32 %v4795
  %vm4803 = vweird.f32 %v4796
  %vm4804 = vmor %vm4802, %vm4803
  %v4805 = vsel %vm4804, %v4796, %v4801
  %v4806 = vperm.slane %v4789, 2
  %v4807 = vperm.slane %v4789, 0
  %v4808 = vsel %vm1977, %v4806, %v4807
  %v4809 = vperm.slane %v4805, 3
  %v4810 = vperm.slane %v4805, 1
  %v4811 = vsel %vm1977, %v4809, %v4810
  %v4812 = vsub.f32 %v4748, %v4808
  %v4813 = vmul.f32 %v4812, %v4811
  %v4814 = vld [vmem:[%s3 + $0x42] sm:$0x1]
  %v4815 = vperm.slane %v4814, 0
  %v4816 = vmul.f32 %v4813, %v4815
  %v4817 = vld [vmem:[%s3 + $0x43] sm:$0x1]
  %v4818 = vperm.slane %v4817, 0
  %v4819 = vadd.f32 %v4816, %v4818
  %v4820 = vmax.f32 %v4819, 0.0
  %v4821 = vand.u32 2147483647, %v4819
  %v4822 = vsub.f32 0.0, %v4821
  %v4823 = vmul.f32 %v4822, 1.442695
  %v4824 = vpow.pop %v4823
  %v4825 = vadd.f32 %v4824, 1.0
  %v4826 = vlog2.pop %v4825
  %v4827 = vmul.f32 %v4826, 0.6931472
  %v4828 = vadd.f32 %v4820, %v4827
  %v4829 = vtanh.pop %v4828
  %v4830 = vmul.f32 %v4819, %v4829
  %v4831 = vadd.f32 %v4830, %v4428
  %v4832 = vpack.c.bf16 %v4831, %v4831
  %v4834 = vunpack.c.l.b16 %v4832
  %v4835 = vpack.c.b16 %v4834, %v4834
  %v4837 = vshrl.u32 %v4835, 16
  %v4839 = vrot.slane %v4837, 3
  %v4841 = vrot.slane %v4837, 7
  %v4842 = vshll.u32 %v4835, 16
  %v4844 = vor.u32 %v4841, %v4842
  %v4846 = vsel %vm803, %v4839, %v4844
  %v4847 = vunpack.c.l.bf16 %v4846
  %v4848 = vmul.f32 %v4847, %v2017
  %v4849 = vpack.c.bf16 %v4848, %v4848
  %4850 = vrot.lane.b32.xlu0 %v4835, 8
  %v4851 = vpop.permute.xlu0 %4850
  %v4854 = vsel %vm350, %v4849, %v4851
  %v4855 = vld [vmem:[%s2 + $0x288] sm:$0xf]
  %v4856 = vld [vmem:[%s2 + $0x28c] sm:$0xf]
  %v4859 = vunpack.c.l.b16 %v4855
  %v4860 = vunpack.c.l.b16 %v4856
  %v4861 = vpack.c.b16 %v4860, %v4859
  %v4863 = vsel %vm586, %v4854, 0
  %4865 = vmatpush.bf16.msra.mxu0 0
  %4866 = vmatpush.bf16.msra.mxu0 0
  %4867 = vmatpush.bf16.msra.mxu0 0
  %4868 = vmatpush.bf16.msra.mxu0 0
  %4869 = vmatpush.bf16.msra.mxu0 0
  %4870 = vmatpush.bf16.msra.mxu0 0
  %4871 = vmatpush.bf16.msra.mxu0 0
  %4872 = vmatpush.bf16.msra.mxu0 %v4861
  %4873 = vmatmul.bf16.gmra.mxu0 %v4863
  %v4874 = vpop.f32.mrf.mxu0
  %v4875 = vadd.f32 0.0, %v4874
  %v4876 = vpop.f32.mrf.mxu0
  %4877 = vdwg.mxu0
  %v4878 = vrot.slane %v4842, 1
  %v4879 = vor.u32 %v4837, %v4878
  %v4881 = vrot.slane %v4842, 5
  %v4883 = vsel %vm2027, %v4879, %v4881
  %v4884 = vunpack.c.l.bf16 %v4883
  %v4885 = vmul.f32 %v4884, %v2036
  %v4886 = vpack.c.bf16 %v4885, %v4885
  %v4888 = vunpack.c.l.b16 %v4886
  %v4889 = vpack.c.b16 %v4888, %v4888
  %4890 = vrot.lane.b32.xlu0 %v4889, 8
  %v4891 = vpop.permute.xlu0 %4890
  %v4894 = vsel %vm350, %v4832, %v4891
  %v4895 = vld [vmem:[%s2 + $0x290] sm:$0xf]
  %v4896 = vld [vmem:[%s2 + $0x294] sm:$0xf]
  %v4899 = vunpack.c.l.b16 %v4895
  %v4900 = vunpack.c.l.b16 %v4896
  %v4901 = vpack.c.b16 %v4900, %v4899
  %v4903 = vsel %vm586, %v4894, 0
  %4905 = vmatpush.bf16.msra.mxu0 0
  %4906 = vmatpush.bf16.msra.mxu0 0
  %4907 = vmatpush.bf16.msra.mxu0 0
  %4908 = vmatpush.bf16.msra.mxu0 0
  %4909 = vmatpush.bf16.msra.mxu0 0
  %4910 = vmatpush.bf16.msra.mxu0 0
  %4911 = vmatpush.bf16.msra.mxu0 0
  %4912 = vmatpush.bf16.msra.mxu0 %v4901
  %4913 = vmatmul.bf16.gmra.mxu0 %v4903
  %v4914 = vpop.f32.mrf.mxu0
  %v4915 = vadd.f32 0.0, %v4914
  %v4916 = vpop.f32.mrf.mxu0
  %4917 = vdwg.mxu0
  %v4918 = vshra.s32 %v728, 3
  %v4919 = vshra.s32 %v729, 3
  %v4920 = vmul.u32 %v4918, 4
  %v4921 = vmul.u32 %v4919, 4
  %v4922 = vshra.s32 %v730, 1
  %v4923 = vshra.s32 %v731, 1
  %v4924 = vadd.s32 %v4920, %v4922
  %v4925 = vadd.s32 %v4921, %v4923
  %vm4926 = vcmp.eq.s32.totalorder %v20, %v4924
  %vm4927 = vcmp.eq.s32.totalorder %v20, %v4925
  %v4928 = vand.u32 %v730, 1
  %v4929 = vand.u32 %v731, 1
  %vm4930 = vcmp.eq.s32.totalorder %v4928, 0
  %vm4931 = vcmp.eq.s32.totalorder %v4929, 0
  %vm4932 = vmand %vm4930, %vm4926
  %vm4933 = vmand %vm4931, %vm4927
  %v4934 = vsel %vm4932, 1.0, 0.0
  %v4935 = vsel %vm4933, 1.0, 0.0
  %vm4936 = vcmp.eq.s32.totalorder %v4928, 1
  %vm4937 = vcmp.eq.s32.totalorder %v4929, 1
  %vm4938 = vmand %vm4936, %vm4926
  %vm4939 = vmand %vm4937, %vm4927
  %v4940 = vsel %vm4938, 1.0, 0.0
  %v4941 = vsel %vm4939, 1.0, 0.0
  %v4943 = vsel %vm350, %v4940, 0
  %v4946 = vsel %vm350, %v4941, 0
  %4948 = vmatpush.msra.mxu0 0.0
  %4949 = vmatpush.msra.mxu0 0.0
  %4950 = vmatpush.msra.mxu0 0.0
  %4951 = vmatpush.msra.mxu0 0.0
  %4952 = vmatpush.msra.mxu0 0.0
  %4953 = vmatpush.msra.mxu0 0.0
  %4954 = vmatpush.msra.mxu0 0.0
  %4955 = vmatpush.msra.mxu0 0.0
  %4956 = vmatpush.msra.mxu0 0.0
  %4957 = vmatpush.msra.mxu0 0.0
  %4958 = vmatpush.msra.mxu0 0.0
  %4959 = vmatpush.msra.mxu0 0.0
  %4960 = vmatpush.msra.mxu0 0.0
  %4961 = vmatpush.msra.mxu0 0.0
  %4962 = vmatpush.msra.mxu0 0.0
  %4963 = vmatpush.msra.mxu0 %v4915
  %4964 = vmatmul.f32.gmra.mxu0 %v4943
  %v4965 = vpop.f32.mrf.mxu0
  %v4966 = vadd.f32 0.0, %v4965
  %4967 = vmatmul.f32.gmra.mxu0 %v4946
  %v4968 = vpop.f32.mrf.mxu0
  %v4969 = vadd.f32 0.0, %v4968
  %4970 = vdwg.mxu0
  %v4972 = vsel %vm350, %v4934, 0
  %v4975 = vsel %vm350, %v4935, 0
  %4977 = vmatpush.msra.mxu0 0.0
  %4978 = vmatpush.msra.mxu0 0.0
  %4979 = vmatpush.msra.mxu0 0.0
  %4980 = vmatpush.msra.mxu0 0.0
  %4981 = vmatpush.msra.mxu0 0.0
  %4982 = vmatpush.msra.mxu0 0.0
  %4983 = vmatpush.msra.mxu0 0.0
  %4984 = vmatpush.msra.mxu0 0.0
  %4985 = vmatpush.msra.mxu0 0.0
  %4986 = vmatpush.msra.mxu0 0.0
  %4987 = vmatpush.msra.mxu0 0.0
  %4988 = vmatpush.msra.mxu0 0.0
  %4989 = vmatpush.msra.mxu0 0.0
  %4990 = vmatpush.msra.mxu0 0.0
  %4991 = vmatpush.msra.mxu0 0.0
  %4992 = vmatpush.msra.mxu0 %v4875
  %4993 = vmatmul.f32.gmra.mxu0 %v4972
  %v4994 = vpop.f32.mrf.mxu0
  %v4995 = vadd.f32 %v4966, %v4994
  %4996 = vmatmul.f32.gmra.mxu0 %v4975
  %v4997 = vpop.f32.mrf.mxu0
  %v4998 = vadd.f32 %v4969, %v4997
  %4999 = vdwg.mxu0
  %v5000 = vld [vmem:[%s3 + $0x45] sm:$0x1]
  %v5001 = vperm.slane %v5000, 0
  %v5002 = vadd.f32 %v4995, %v5001
  %v5003 = vadd.f32 %v4998, %v5001
  %v5004 = vpack.c.bf16 %v5002, %v5002
  %v5005 = vpack.c.bf16 %v5003, %v5003
  %v5007 = vunpack.c.l.b16 %v5005
  %v5008 = vpack.c.b16 %v5007, %v5007
  %v5009 = vrot.slane %v5008, 3
  %v5011 = vunpack.c.l.b16 %v5004
  %v5012 = vpack.c.b16 %v5007, %v5011
  %v5013 = vrot.slane %v5012, 7
  %v5016 = vsel %vm494, %v5009, %v5013
  %v5018 = vunpack.c.l.bf16 %v5016
  %v5019 = vunpack.c.h.bf16 %v5016
  %v5020 = vmul.f32 %v5018, %v782
  %v5021 = vmul.f32 %v5019, %v783
  %v5022 = vpack.c.bf16 %v5020, %v5020
  %v5023 = vpack.c.bf16 %v5021, %v5021
  %v5025 = vshrl.u32 %v5008, 16
  %v5027 = vrot.slane %v5025, 3
  %v5030 = vshrl.u32 %v5012, 16
  %v5032 = vrot.slane %v5030, 7
  %v5033 = vshll.u32 %v5012, 16
  %v5035 = vor.u32 %v5032, %v5033
  %v5037 = vsel %vm803, %v5027, %v5035
  %v5038 = vunpack.c.l.bf16 %v5037
  %v5039 = vunpack.c.h.bf16 %v5037
  %v5040 = vmul.f32 %v5038, %v819
  %v5041 = vmul.f32 %v5039, %v820
  %v5042 = vpack.c.bf16 %v5040, %v5040
  %v5043 = vpack.c.bf16 %v5041, %v5041
  %v5044 = vrot.slane %v5033, 1
  %v5045 = vor.u32 %v5030, %v5044
  %v5047 = vpack.c.b16 %v5011, %v5011
  %v5049 = vshll.u32 %v5047, 16
  %v5051 = vrot.slane %v5049, 1
  %v5053 = vsel %vm836, %v5045, %v5051
  %v5054 = vunpack.c.l.bf16 %v5053
  %v5055 = vunpack.c.h.bf16 %v5053
  %v5056 = vmul.f32 %v5054, %v852
  %v5057 = vmul.f32 %v5055, %v853
  %v5058 = vpack.c.bf16 %v5056, %v5056
  %v5059 = vpack.c.bf16 %v5057, %v5057
  %v5060 = vrot.slane %v5012, 1
  %v5061 = vrot.slane %v5047, 1
  %v5064 = vsel %vm860, %v5060, %v5061
  %v5066 = vunpack.c.l.bf16 %v5064
  %v5067 = vunpack.c.h.bf16 %v5064
  %v5068 = vmul.f32 %v5066, %v879
  %v5069 = vmul.f32 %v5067, %v880
  %v5070 = vpack.c.bf16 %v5068, %v5068
  %v5071 = vpack.c.bf16 %v5069, %v5069
  %v5074 = vunpack.c.l.b16 %v5022
  %v5075 = vunpack.c.l.b16 %v5023
  %v5076 = vpack.c.b16 %v5075, %v5074
  %v5079 = vunpack.c.l.b16 %v5042
  %v5080 = vunpack.c.l.b16 %v5043
  %v5081 = vpack.c.b16 %v5080, %v5079
  %5082 = vrot.lane.b32.xlu0 %v5081, 8
  %v5083 = vpop.permute.xlu0 %5082
  %5084 = vrot.lane.b32.xlu0 %v5012, 16
  %v5085 = vpop.permute.xlu0 %5084
  %v5088 = vunpack.c.l.b16 %v5058
  %v5089 = vunpack.c.l.b16 %v5059
  %v5090 = vpack.c.b16 %v5089, %v5088
  %5091 = vrot.lane.b32.xlu0 %v5090, 24
  %v5092 = vpop.permute.xlu0 %5091
  %v5095 = vunpack.c.l.b16 %v5070
  %v5096 = vunpack.c.l.b16 %v5071
  %v5097 = vpack.c.b16 %v5096, %v5095
  %5098 = vrot.lane.b32.xlu0 %v5097, 32
  %v5099 = vpop.permute.xlu0 %5098
  %v5102 = vsel %vm350, %v5076, %v5083
  %v5104 = vsel %vm586, %v5102, %v5085
  %v5106 = vsel %vm921, %v5104, %v5092
  %v5108 = vsel %vm401, %v5106, %v5099
  %v5109 = vld [vmem:[%s2 + $0x298] sm:$0xf]
  %v5110 = vld [vmem:[%s2 + $0x29c] sm:$0xf]
  %v5111 = vld [vmem:[%s2 + $0x2a0] sm:$0xf]
  %v5112 = vld [vmem:[%s2 + $0x2a4] sm:$0xf]
  %v5113 = vld [vmem:[%s2 + $0x2a8] sm:$0xf]
  %v5114 = vld [vmem:[%s3 + $0x46] sm:$0x1]
  %v5115 = vperm.slane %v5114, 0
  %v5121 = vunpack.c.l.b16 %v5109
  %v5122 = vunpack.c.l.b16 %v5110
  %v5123 = vunpack.c.l.b16 %v5111
  %v5124 = vunpack.c.l.b16 %v5112
  %v5125 = vunpack.c.l.b16 %v5113
  %v5126 = vpack.c.b16 %v5122, %v5121
  %v5127 = vpack.c.b16 %v5124, %v5123
  %v5128 = vpack.c.b16 %v5125, %v5125
  %v5131 = vsel %vm1213, %v5108, 0
  %v5134 = vsel %vm354, %v5128, 0
  %5136 = vmatpush.bf16.msra.mxu0 0
  %5137 = vmatpush.bf16.msra.mxu0 0
  %5138 = vmatpush.bf16.msra.mxu0 0
  %5139 = vmatpush.bf16.msra.mxu0 0
  %5140 = vmatpush.bf16.msra.mxu0 0
  %5141 = vmatpush.bf16.msra.mxu0 %v5134
  %5142 = vmatpush.bf16.msra.mxu0 %v5127
  %5143 = vmatpush.bf16.msra.mxu0 %v5126
  %5144 = vmatmul.bf16.gmra.mxu0 %v5131
  %v5145 = vpop.f32.mrf.mxu0
  %v5146 = vadd.f32 %v5115, %v5145
  %v5147 = vpop.f32.mrf.mxu0
  %v5148 = vadd.f32 %v5115, %v5147
  %5149 = vdwg.mxu0
  %v5150 = vsel %vm350, %v5146, 0.0
  %v5151 = vrot.slane %v5150, 4
  %v5152 = vadd.f32 %v5150, %v5151
  %v5153 = vrot.slane %v5152, 2
  %v5154 = vadd.f32 %v5152, %v5153
  %v5155 = vrot.slane %v5154, 1
  %v5156 = vadd.f32 %v5154, %v5155
  %v5157 = vmul.f32 %v5146, %v5146
  %v5158 = vsel %vm350, %v5157, 0.0
  %v5159 = vrot.slane %v5158, 4
  %v5160 = vadd.f32 %v5158, %v5159
  %v5161 = vrot.slane %v5160, 2
  %v5162 = vadd.f32 %v5160, %v5161
  %v5163 = vrot.slane %v5162, 1
  %v5164 = vadd.f32 %v5162, %v5163
  %v5165 = vsel %vm350, %v5148, 0.0
  %v5166 = vrot.slane %v5165, 4
  %v5167 = vadd.f32 %v5165, %v5166
  %v5168 = vrot.slane %v5167, 2
  %v5169 = vadd.f32 %v5167, %v5168
  %v5170 = vrot.slane %v5169, 1
  %v5171 = vadd.f32 %v5169, %v5170
  %v5172 = vmul.f32 %v5148, %v5148
  %v5173 = vsel %vm350, %v5172, 0.0
  %v5174 = vrot.slane %v5173, 4
  %v5175 = vadd.f32 %v5173, %v5174
  %v5176 = vrot.slane %v5175, 2
  %v5177 = vadd.f32 %v5175, %v5176
  %v5178 = vrot.slane %v5177, 1
  %v5179 = vadd.f32 %v5177, %v5178
  %v5180 = vsel %vm494, %v5156, %v5164
  %v5181 = vsel %vm436, %v5180, %v5171
  %v5182 = vsel %vm553, %v5181, %v5179
  %v5183 = vmul.f32 %v5182, %v1000
  %v5184 = vmul.f32 %v5183, %v5183
  %v5186 = vrot.slane %v5184, 7
  %v5188 = vsub.f32 %v5183, %v5186
  %v5189 = vadd.f32 %v5188, 1e-05
  %v5190 = vrsqrt.pop %v5189
  %v5191 = vmul.f32 %v5190, %v5189
  %v5192 = vmul.f32 %v5191, %v5190
  %v5193 = vmul.f32 0.5, %v5192
  %v5194 = vsub.f32 1.5, %v5193
  %v5195 = vmul.f32 %v5190, %v5194
  %vm5196 = vweird.f32 %v5189
  %vm5197 = vweird.f32 %v5190
  %vm5198 = vmor %vm5196, %vm5197
  %v5199 = vsel %vm5198, %v5190, %v5195
  %v5200 = vperm.slane %v5183, 2
  %v5201 = vperm.slane %v5183, 0
  %v5202 = vsel %vm738, %v5200, %v5201
  %v5203 = vsel %vm739, %v5200, %v5201
  %v5204 = vperm.slane %v5199, 3
  %v5205 = vperm.slane %v5199, 1
  %v5206 = vsel %vm738, %v5204, %v5205
  %v5207 = vsel %vm739, %v5204, %v5205
  %v5208 = vsub.f32 %v5146, %v5202
  %v5209 = vsub.f32 %v5148, %v5203
  %v5210 = vmul.f32 %v5208, %v5206
  %v5211 = vmul.f32 %v5209, %v5207
  %v5212 = vld [vmem:[%s3 + $0x47] sm:$0x1]
  %v5213 = vperm.slane %v5212, 0
  %v5214 = vmul.f32 %v5210, %v5213
  %v5215 = vmul.f32 %v5211, %v5213
  %v5216 = vld [vmem:[%s3 + $0x48] sm:$0x1]
  %v5217 = vperm.slane %v5216, 0
  %v5218 = vadd.f32 %v5214, %v5217
  %v5219 = vadd.f32 %v5215, %v5217
  %v5220 = vmax.f32 %v5218, 0.0
  %v5221 = vmax.f32 %v5219, 0.0
  %v5222 = vand.u32 2147483647, %v5218
  %v5223 = vand.u32 2147483647, %v5219
  %v5224 = vsub.f32 0.0, %v5222
  %v5225 = vsub.f32 0.0, %v5223
  %v5226 = vmul.f32 %v5224, 1.442695
  %v5227 = vpow.pop %v5226
  %v5228 = vmul.f32 %v5225, 1.442695
  %v5229 = vpow.pop %v5228
  %v5230 = vadd.f32 %v5227, 1.0
  %v5231 = vadd.f32 %v5229, 1.0
  %v5232 = vlog2.pop %v5230
  %v5233 = vmul.f32 %v5232, 0.6931472
  %v5234 = vlog2.pop %v5231
  %v5235 = vmul.f32 %v5234, 0.6931472
  %v5236 = vadd.f32 %v5220, %v5233
  %v5237 = vadd.f32 %v5221, %v5235
  %v5238 = vtanh.pop %v5236
  %v5239 = vtanh.pop %v5237
  %v5240 = vmul.f32 %v5218, %v5238
  %v5241 = vmul.f32 %v5219, %v5239
  %v5242 = vpack.c.bf16 %v5241, %v5240
  %v5243 = vld [vmem:[%s2 + $0x2ac] sm:$0xf]
  %v5244 = vld [vmem:[%s3 + $0x49] sm:$0x1]
  %v5245 = vperm.slane %v5244, 0
  %v5247 = vsel %vm350, %v5242, 0
  %v5250 = vsel %vm354, %v5243, 0
  %5252 = vmatpush.bf16.msra.mxu0 0
  %5253 = vmatpush.bf16.msra.mxu0 0
  %5254 = vmatpush.bf16.msra.mxu0 0
  %5255 = vmatpush.bf16.msra.mxu0 0
  %5256 = vmatpush.bf16.msra.mxu0 0
  %5257 = vmatpush.bf16.msra.mxu0 0
  %5258 = vmatpush.bf16.msra.mxu0 0
  %5259 = vmatpush.bf16.msra.mxu0 %v5250
  %5260 = vmatmul.bf16.gmra.mxu0 %v5247
  %v5261 = vpop.f32.mrf.mxu0
  %v5262 = vadd.f32 %v5245, %v5261
  %v5263 = vpop.f32.mrf.mxu0
  %v5264 = vadd.f32 %v5245, %v5263
  %5265 = vdwg.mxu0
  %5266 = vst.msk [vmem:[%s4] sm:$0xff] %vm549, %v5262
  %5267 = vst.msk [vmem:[%s4 + $0x8] sm:$0xff] %vm549, %v5264
  // Predicated region
  $region18: #{unet_forward.1} parent=0 // pred_check
    _
  $region19: #{unet_forward.1} parent=0 // pred_check_branch
    %5269 = sbr.rel (0) target = $region21
  $region20: #{unet_forward.1} parent=0 // pred_region
    _
  $region21: #{unet_forward.1} parent=0 // pred_fallthru
    _
  // Predicated region
  $region22: #{unet_forward.1} parent=0 // pred_check
    _
  $region23: #{unet_forward.1} parent=0 // pred_check_branch
    %5271 = sbr.rel (0) target = $region25
  $region24: #{unet_forward.1} parent=0 // pred_region
    _
  $region25: #{unet_forward.1} parent=0 // pred_fallthru
    _

</llo_original>
